<compile_context>
chip_gen: v7x
topology: tpu7x:2x2x1
jax: 0.10.0
libtpu: 0.0.40
codegen_flags: <defaults>
</compile_context>

<pallas_src>
import math

import jax
import jax.numpy as jnp
from jax.experimental import pallas as pl
from jax.experimental.pallas import tpu as pltpu

# ----------------------------- model hyper-parameters (small, synthetic) ------
D_MODEL = 32
NHEAD = 4
NUM_LAYERS = 2
LANG_DH = D_MODEL // NHEAD           # 8

# IPA(dim=d_model, heads=dim_head, dim_head=dim_head, kv_dim=d_model)
IPA_HEADS = D_MODEL // NHEAD         # reference passes heads=dim_head -> 8
IPA_DH = D_MODEL // NHEAD            # 8
NUM_QK_POINTS = 4                    # InvariantPointAttention defaults
NUM_V_POINTS = 8
SCALAR_SCALE = (2 * IPA_DH) ** -0.5
POINT_SCALE = (2 * NUM_QK_POINTS * (9.0 / 2.0)) ** -0.5
FF_DIM = 4 * D_MODEL
LN_EPS = 1e-5

NPQ = IPA_HEADS * NUM_QK_POINTS                      # 32 (points per coordinate)
NPV = IPA_HEADS * NUM_V_POINTS                       # 64
NSD = IPA_HEADS * IPA_DH                             # 64 (scalar q/k/v width)
QDIM = NSD + 3 * NPQ                                 # 160  (qs | qp x,y,z)
CTXDIM = 2 * NSD + 3 * NPQ + 3 * NPV                 # 416  (ks | vs | kp | vp)
OUTDIM = NSD + 3 * NPV + NPV                         # 320  (to_out input width)


# --------------------------------------------------------------- fused kernel
def _decoder_layer_kernel(
    # activations / geometry (indexed by batch)
    tgt_ref, mem_ref, lang_ref, geoq_ref, geok_ref,
    # IPA block weights (indexed by layer)
    ln_ag_ref, ln_ab_ref, wq_ref, wctx_ref, ptscale_ref,
    wout_ref, bout_ref, ln_fg_ref, ln_fb_ref,
    wff1_ref, bff1_ref, wff2_ref, bff2_ref,
    # lang (ParallelAttention) block weights (indexed by layer)
    wlq_ref, blq_ref, wlkv_ref, blkv_ref, wlo_ref, blo_ref,
    ln1g_ref, ln1b_ref, wlf1_ref, blf1_ref, wlf2_ref, blf2_ref,
    ln2g_ref, ln2b_ref,
    # outputs
    tgt_out_ref, mem_out_ref,
    # VMEM scratch carrying state across the layer grid axis
    tgt_st, mem_st,
):
  H, dh, Pq, Pv = IPA_HEADS, IPA_DH, NUM_QK_POINTS, NUM_V_POINTS
  layer_idx = pl.program_id(1)

  @pl.when(layer_idx == 0)
  def _init_state():
    tgt_st[...] = tgt_ref[0]
    mem_st[...] = mem_ref[0]

  tgt = tgt_st[...]                 # [T, D]
  mem = mem_st[...]                 # [M, D]
  lng = lang_ref[0]                 # [L, D]
  gq = geoq_ref[0]                  # [T, 12]  (row-major 3x3 rot | trans)
  gk = geok_ref[0]                  # [M, 12]
  T = tgt.shape[0]
  M = mem.shape[0]

  # ------------------------------------------------------------- helpers
  def ln(x, g_ref, b_ref):
    mu = jnp.mean(x, axis=-1, keepdims=True)
    var = jnp.mean(jnp.square(x - mu), axis=-1, keepdims=True)
    return (x - mu) * jax.lax.rsqrt(var + LN_EPS) * g_ref[0] + b_ref[0]

  def softmax(s):
    m = jnp.max(s, axis=-1, keepdims=True)
    p = jnp.exp(s - m)
    return p * pl.reciprocal(jnp.sum(p, axis=-1, keepdims=True), approx=True)

  def qk(a, b):  # a @ b.T on the MXU without an explicit transpose
    return jax.lax.dot_general(a, b, (((1,), (1,)), ((), ())),
                               preferred_element_type=jnp.float32)

  def rot_rows(g):
    rot = [[g[:, 3 * i + j:3 * i + j + 1] for j in range(3)] for i in range(3)]
    trn = [g[:, 9 + i:10 + i] for i in range(3)]
    return rot, trn

  def frame_apply(rot, trn, px, py, pz, scale):
    out = []
    for i in range(3):
      gi = rot[i][0] * px + rot[i][1] * py + rot[i][2] * pz + trn[i]
      out.append(gi * scale if scale is not None else gi)
    return out

  # ============================================================== IPA block
  x = ln(tgt, ln_ag_ref, ln_ab_ref)                                   # [T, D]
  q_all = jnp.dot(x, wq_ref[0], preferred_element_type=jnp.float32)   # [T, 160]
  ctx = jnp.dot(mem, wctx_ref[0], preferred_element_type=jnp.float32)  # [M, 416]

  qs = q_all[:, :NSD] * SCALAR_SCALE
  ks = ctx[:, :NSD]
  vs = ctx[:, NSD:2 * NSD]
  qp = [q_all[:, NSD + c * NPQ:NSD + (c + 1) * NPQ] for c in range(3)]
  kp = [ctx[:, 2 * NSD + c * NPQ:2 * NSD + (c + 1) * NPQ] for c in range(3)]
  vp = [ctx[:, 2 * NSD + 3 * NPQ + c * NPV:2 * NSD + 3 * NPQ + (c + 1) * NPV]
        for c in range(3)]

  pt_scale = ptscale_ref[0]          # [1, H*Pq]: sqrt(0.5*softplus(pw)*w_C)
  Rq, Tq = rot_rows(gq)
  Rk, Tk = rot_rows(gk)

  # local -> global frames; gamma/point scale folded into q/k points.
  # NOTE: point logits use the q^2 + k^2 - 2 q.k expansion on globally framed
  # coordinates (same as the reference implementation); with O(1) translations
  # this is numerically fine in f32.
  gq_pts = frame_apply(Rq, Tq, qp[0], qp[1], qp[2], pt_scale)   # 3 x [T, 32]
  gk_pts = frame_apply(Rk, Tk, kp[0], kp[1], kp[2], pt_scale)   # 3 x [M, 32]
  gv_pts = frame_apply(Rk, Tk, vp[0], vp[1], vp[2], None)       # 3 x [M, 64]

  neg1_q = jnp.full((T, 1), -1.0, jnp.float32)
  neg1_k = jnp.full((M, 1), -1.0, jnp.float32)

  os_l, ox_l, oy_l, oz_l = [], [], [], []
  for h in range(H):
    s8 = slice(h * dh, (h + 1) * dh)
    s4 = slice(h * Pq, (h + 1) * Pq)
    sv = slice(h * Pv, (h + 1) * Pv)
    qpx, qpy, qpz = [p[:, s4] for p in gq_pts]
    kpx, kpy, kpz = [p[:, s4] for p in gk_pts]
    q2 = jnp.sum(qpx * qpx + qpy * qpy + qpz * qpz, axis=-1, keepdims=True)
    k2 = jnp.sum(kpx * kpx + kpy * kpy + kpz * kpz, axis=-1, keepdims=True)
    # Fold scalar logits, 2*point-cross and the -q^2 / -k^2 terms into a single
    # MXU matmul per head: logits = qs.ks - (q^2 + k^2 - 2 qp.kp)
    q_h = jnp.concatenate(
        [qs[:, s8], 2.0 * qpx, 2.0 * qpy, 2.0 * qpz, q2, neg1_q], axis=1)
    k_h = jnp.concatenate(
        [ks[:, s8], kpx, kpy, kpz, neg1_k, k2], axis=1)
    p_attn = softmax(qk(q_h, k_h))                                   # [T, M]
    v_h = jnp.concatenate(
        [vs[:, s8], gv_pts[0][:, sv], gv_pts[1][:, sv], gv_pts[2][:, sv]],
        axis=1)                                                      # [M, 32]
    o_h = jnp.dot(p_attn, v_h, preferred_element_type=jnp.float32)   # [T, 32]
    os_l.append(o_h[:, :dh])
    ox_l.append(o_h[:, dh:dh + Pv])
    oy_l.append(o_h[:, dh + Pv:dh + 2 * Pv])
    oz_l.append(o_h[:, dh + 2 * Pv:dh + 3 * Pv])

  OS = jnp.concatenate(os_l, axis=1)   # [T, H*dh]
  OX = jnp.concatenate(ox_l, axis=1)   # [T, H*Pv]
  OY = jnp.concatenate(oy_l, axis=1)
  OZ = jnp.concatenate(oz_l, axis=1)

  # global -> local frame of the query tokens: R^T (o - t)
  dx = OX - Tq[0]
  dy = OY - Tq[1]
  dz = OZ - Tq[2]
  LX = Rq[0][0] * dx + Rq[1][0] * dy + Rq[2][0] * dz
  LY = Rq[0][1] * dx + Rq[1][1] * dy + Rq[2][1] * dz
  LZ = Rq[0][2] * dx + Rq[1][2] * dy + Rq[2][2] * dz
  NRM = jnp.sqrt(LX * LX + LY * LY + LZ * LZ + 1e-8)

  feat = jnp.concatenate([OS, LX, LY, LZ, NRM], axis=1)              # [T, 320]
  tgt = tgt + jnp.dot(feat, wout_ref[0],
                      preferred_element_type=jnp.float32) + bout_ref[0]

  # residual FFN (ReLU, 4x hidden)
  y = ln(tgt, ln_fg_ref, ln_fb_ref)
  hid = jnp.maximum(
      jnp.dot(y, wff1_ref[0], preferred_element_type=jnp.float32) + bff1_ref[0],
      0.0)
  tgt = tgt + jnp.dot(hid, wff2_ref[0],
                      preferred_element_type=jnp.float32) + bff2_ref[0]

  # ===================================================== lang (cross-attn) block
  # TODO(synk): ParallelAttention internals reconstructed as post-norm residual
  # cross-attention (seq1 -> seq2) + post-norm residual FFN (ReLU, 4x hidden).
  feats = jnp.concatenate([tgt, mem], axis=0)                        # [T+M, D]
  q = (jnp.dot(feats, wlq_ref[0], preferred_element_type=jnp.float32)
       + blq_ref[0]) * (LANG_DH ** -0.5)
  kv = jnp.dot(lng, wlkv_ref[0],
               preferred_element_type=jnp.float32) + blkv_ref[0]     # [L, 2D]
  k = kv[:, :D_MODEL]
  v = kv[:, D_MODEL:]
  heads = []
  for h in range(NHEAD):
    s = slice(h * LANG_DH, (h + 1) * LANG_DH)
    p_attn = softmax(qk(q[:, s], k[:, s]))                           # [T+M, L]
    heads.append(jnp.dot(p_attn, v[:, s], preferred_element_type=jnp.float32))
  o = jnp.concatenate(heads, axis=1)                                 # [T+M, D]
  o = jnp.dot(o, wlo_ref[0], preferred_element_type=jnp.float32) + blo_ref[0]
  feats = ln(feats + o, ln1g_ref, ln1b_ref)
  hid = jnp.maximum(
      jnp.dot(feats, wlf1_ref[0], preferred_element_type=jnp.float32)
      + blf1_ref[0], 0.0)
  feats = ln(feats + jnp.dot(hid, wlf2_ref[0],
                             preferred_element_type=jnp.float32) + blf2_ref[0],
             ln2g_ref, ln2b_ref)

  new_tgt = feats[:T, :]
  new_mem = feats[T:, :]
  tgt_st[...] = new_tgt
  mem_st[...] = new_mem
  tgt_out_ref[0] = new_tgt
  mem_out_ref[0] = new_mem


# ----------------------------------------------------------------- parameters
def init_params(key):
  def nrm(k, shape):
    return 0.02 * jax.random.normal(k, shape, jnp.float32)

  ones_d = jnp.ones((1, D_MODEL), jnp.float32)
  zeros_d = jnp.zeros((1, D_MODEL), jnp.float32)
  zeros_ff = jnp.zeros((1, FF_DIM), jnp.float32)

  layers = []
  for _ in range(NUM_LAYERS):
    key, *ks = jax.random.split(key, 11)
    layers.append({
        # IPA block (projection weights concatenated: query side / ctx side)
        "ln_attn_g": ones_d, "ln_attn_b": zeros_d,
        "w_q_all": nrm(ks[0], (D_MODEL, QDIM)),
        "w_ctx_all": nrm(ks[1], (D_MODEL, CTXDIM)),
        "point_weights": jnp.full((1, IPA_HEADS), math.log(math.e - 1.0),
                                  jnp.float32),
        "w_out": nrm(ks[2], (OUTDIM, D_MODEL)), "b_out": zeros_d,
        "ln_ff_g": ones_d, "ln_ff_b": zeros_d,
        "w_ff1": nrm(ks[3], (D_MODEL, FF_DIM)), "b_ff1": zeros_ff,
        "w_ff2": nrm(ks[4], (FF_DIM, D_MODEL)), "b_ff2": zeros_d,
        # lang block (K/V projections fused)
        "w_lq": nrm(ks[5], (D_MODEL, D_MODEL)), "b_lq": zeros_d,
        "w_lkv": nrm(ks[6], (D_MODEL, 2 * D_MODEL)),
        "b_lkv": jnp.zeros((1, 2 * D_MODEL), jnp.float32),
        "w_lo": nrm(ks[7], (D_MODEL, D_MODEL)), "b_lo": zeros_d,
        "ln1_g": ones_d, "ln1_b": zeros_d,
        "w_lff1": nrm(ks[8], (D_MODEL, FF_DIM)), "b_lff1": zeros_ff,
        "w_lff2": nrm(ks[9], (FF_DIM, D_MODEL)), "b_lff2": zeros_d,
        "ln2_g": ones_d, "ln2_b": zeros_d,
    })
  # stack per-layer params along a leading layer axis
  return jax.tree_util.tree_map(lambda *xs: jnp.stack(xs), *layers)


# -------------------------------------------------------------------- forward
def lang_enhanced_ipa_decoder(tgt, memory, lang_memory, geometric_args, params):
  B, T, D = tgt.shape
  M = memory.shape[1]
  L = lang_memory.shape[1]

  # pack frames: [rot(9) | trans(3)] per token (tiny, param/glue side)
  geo_q = jnp.concatenate(
      [geometric_args["query"]["rot"].reshape(B, T, 9),
       geometric_args["query"]["trans"]], axis=-1)
  geo_k = jnp.concatenate(
      [geometric_args["key"]["rot"].reshape(B, M, 9),
       geometric_args["key"]["trans"]], axis=-1)

  # per-head point scale sqrt(0.5 * softplus(pw) * w_C), repeated over points
  gamma = jax.nn.softplus(params["point_weights"])                   # [NL,1,H]
  pt_scale = jnp.repeat(jnp.sqrt(0.5 * gamma * POINT_SCALE),
                        NUM_QK_POINTS, axis=-1)                      # [NL,1,H*Pq]

  def aspec(r, c):   # activation / geometry: indexed by batch
    return pl.BlockSpec((1, r, c), lambda b, l: (b, 0, 0))

  def wspec(r, c):   # stacked weights: indexed by layer
    return pl.BlockSpec((1, r, c), lambda b, l: (l, 0, 0))

  inputs = [
      tgt, memory, lang_memory, geo_q, geo_k,
      params["ln_attn_g"], params["ln_attn_b"],
      params["w_q_all"], params["w_ctx_all"], pt_scale,
      params["w_out"], params["b_out"],
      params["ln_ff_g"], params["ln_ff_b"],
      params["w_ff1"], params["b_ff1"], params["w_ff2"], params["b_ff2"],
      params["w_lq"], params["b_lq"], params["w_lkv"], params["b_lkv"],
      params["w_lo"], params["b_lo"],
      params["ln1_g"], params["ln1_b"],
      params["w_lff1"], params["b_lff1"], params["w_lff2"], params["b_lff2"],
      params["ln2_g"], params["ln2_b"],
  ]
  in_specs = [
      aspec(T, D), aspec(M, D), aspec(L, D), aspec(T, 12), aspec(M, 12),
      wspec(1, D), wspec(1, D),
      wspec(D, QDIM), wspec(D, CTXDIM), wspec(1, NPQ),
      wspec(OUTDIM, D), wspec(1, D),
      wspec(1, D), wspec(1, D),
      wspec(D, FF_DIM), wspec(1, FF_DIM), wspec(FF_DIM, D), wspec(1, D),
      wspec(D, D), wspec(1, D), wspec(D, 2 * D), wspec(1, 2 * D),
      wspec(D, D), wspec(1, D),
      wspec(1, D), wspec(1, D),
      wspec(D, FF_DIM), wspec(1, FF_DIM), wspec(FF_DIM, D), wspec(1, D),
      wspec(1, D), wspec(1, D),
  ]

  tgt_out, _mem_out = pl.pallas_call(
      _decoder_layer_kernel,
      grid=(B, NUM_LAYERS),
      in_specs=in_specs,
      out_specs=(
          pl.BlockSpec((1, T, D), lambda b, l: (b, 0, 0)),
          pl.BlockSpec((1, M, D), lambda b, l: (b, 0, 0)),
      ),
      out_shape=(
          jax.ShapeDtypeStruct((B, T, D), jnp.float32),
          jax.ShapeDtypeStruct((B, M, D), jnp.float32),
      ),
      scratch_shapes=[
          pltpu.VMEM((T, D), jnp.float32),   # carried tgt state
          pltpu.VMEM((M, D), jnp.float32),   # carried memory state
      ],
      compiler_params=pltpu.CompilerParams(
          dimension_semantics=("parallel", "arbitrary")),
  )(*inputs)
  return tgt_out


# ----------------------------------------------------------------------- main
if __name__ == "__main__":
  B, T, M, L = 2, 8, 16, 8
  key = jax.random.PRNGKey(0)
  k1, k2, k3, k4, k5, k6, k7, kp = jax.random.split(key, 8)

  tgt = jax.random.normal(k1, (B, T, D_MODEL), jnp.float32)
  memory = jax.random.normal(k2, (B, M, D_MODEL), jnp.float32)
  lang_memory = jax.random.normal(k3, (B, L, D_MODEL), jnp.float32)

  def rand_rot(k, n):
    m = jax.random.normal(k, (B, n, 3, 3), jnp.float32)
    q, _ = jnp.linalg.qr(m)
    return q

  geometric_args = {
      "query": {"rot": rand_rot(k4, T),
                "trans": jax.random.normal(k5, (B, T, 3), jnp.float32)},
      "key": {"rot": rand_rot(k6, M),
              "trans": jax.random.normal(k7, (B, M, 3), jnp.float32)},
  }
  params = init_params(kp)

  fwd = jax.jit(lang_enhanced_ipa_decoder)
  out = fwd(tgt, memory, lang_memory, geometric_args, params)
  jax.block_until_ready(out)
  assert out.shape == (B, T, D_MODEL) and out.dtype == jnp.float32
  assert bool(jnp.all(jnp.isfinite(out)))
  print("KERNEL_OK")
</pallas_src>

<mosaic_0001>
module attributes {stable_mosaic.version = 11 : i64} {
  func.func @_decoder_layer_kernel(%arg0: i32, %arg1: i32, %arg2: memref<1x8x32xf32, #tpu.memory_space<vmem>>, %arg3: memref<1x16x32xf32, #tpu.memory_space<vmem>>, %arg4: memref<1x8x32xf32, #tpu.memory_space<vmem>>, %arg5: memref<1x8x12xf32, #tpu.memory_space<vmem>>, %arg6: memref<1x16x12xf32, #tpu.memory_space<vmem>>, %arg7: memref<1x1x32xf32, #tpu.memory_space<vmem>>, %arg8: memref<1x1x32xf32, #tpu.memory_space<vmem>>, %arg9: memref<1x32x160xf32, #tpu.memory_space<vmem>>, %arg10: memref<1x32x416xf32, #tpu.memory_space<vmem>>, %arg11: memref<1x1x32xf32, #tpu.memory_space<vmem>>, %arg12: memref<1x320x32xf32, #tpu.memory_space<vmem>>, %arg13: memref<1x1x32xf32, #tpu.memory_space<vmem>>, %arg14: memref<1x1x32xf32, #tpu.memory_space<vmem>>, %arg15: memref<1x1x32xf32, #tpu.memory_space<vmem>>, %arg16: memref<1x32x128xf32, #tpu.memory_space<vmem>>, %arg17: memref<1x1x128xf32, #tpu.memory_space<vmem>>, %arg18: memref<1x128x32xf32, #tpu.memory_space<vmem>>, %arg19: memref<1x1x32xf32, #tpu.memory_space<vmem>>, %arg20: memref<1x32x32xf32, #tpu.memory_space<vmem>>, %arg21: memref<1x1x32xf32, #tpu.memory_space<vmem>>, %arg22: memref<1x32x64xf32, #tpu.memory_space<vmem>>, %arg23: memref<1x1x64xf32, #tpu.memory_space<vmem>>, %arg24: memref<1x32x32xf32, #tpu.memory_space<vmem>>, %arg25: memref<1x1x32xf32, #tpu.memory_space<vmem>>, %arg26: memref<1x1x32xf32, #tpu.memory_space<vmem>>, %arg27: memref<1x1x32xf32, #tpu.memory_space<vmem>>, %arg28: memref<1x32x128xf32, #tpu.memory_space<vmem>>, %arg29: memref<1x1x128xf32, #tpu.memory_space<vmem>>, %arg30: memref<1x128x32xf32, #tpu.memory_space<vmem>>, %arg31: memref<1x1x32xf32, #tpu.memory_space<vmem>>, %arg32: memref<1x1x32xf32, #tpu.memory_space<vmem>>, %arg33: memref<1x1x32xf32, #tpu.memory_space<vmem>>, %arg34: memref<1x8x32xf32, #tpu.memory_space<vmem>>, %arg35: memref<1x16x32xf32, #tpu.memory_space<vmem>>, %arg36: memref<8x32xf32, #tpu.memory_space<vmem>>, %arg37: memref<16x32xf32, #tpu.memory_space<vmem>>) attributes {dimension_semantics = [#tpu.dimension_semantics<parallel>, #tpu.dimension_semantics<arbitrary>], iteration_bounds = array<i64: 2, 2>, scalar_prefetch = 0 : i64, scratch_operands = 2 : i64, tpu.core_type = #tpu.core_type<tc>, window_params = [{transform_indices = @transform_0, window_bounds = array<i64: 1, 8, 32>}, {transform_indices = @transform_1, window_bounds = array<i64: 1, 16, 32>}, {transform_indices = @transform_2, window_bounds = array<i64: 1, 8, 32>}, {transform_indices = @transform_3, window_bounds = array<i64: 1, 8, 12>}, {transform_indices = @transform_4, window_bounds = array<i64: 1, 16, 12>}, {transform_indices = @transform_5, window_bounds = array<i64: 1, 1, 32>}, {transform_indices = @transform_6, window_bounds = array<i64: 1, 1, 32>}, {transform_indices = @transform_7, window_bounds = array<i64: 1, 32, 160>}, {transform_indices = @transform_8, window_bounds = array<i64: 1, 32, 416>}, {transform_indices = @transform_9, window_bounds = array<i64: 1, 1, 32>}, {transform_indices = @transform_10, window_bounds = array<i64: 1, 320, 32>}, {transform_indices = @transform_11, window_bounds = array<i64: 1, 1, 32>}, {transform_indices = @transform_12, window_bounds = array<i64: 1, 1, 32>}, {transform_indices = @transform_13, window_bounds = array<i64: 1, 1, 32>}, {transform_indices = @transform_14, window_bounds = array<i64: 1, 32, 128>}, {transform_indices = @transform_15, window_bounds = array<i64: 1, 1, 128>}, {transform_indices = @transform_16, window_bounds = array<i64: 1, 128, 32>}, {transform_indices = @transform_17, window_bounds = array<i64: 1, 1, 32>}, {transform_indices = @transform_18, window_bounds = array<i64: 1, 32, 32>}, {transform_indices = @transform_19, window_bounds = array<i64: 1, 1, 32>}, {transform_indices = @transform_20, window_bounds = array<i64: 1, 32, 64>}, {transform_indices = @transform_21, window_bounds = array<i64: 1, 1, 64>}, {transform_indices = @transform_22, window_bounds = array<i64: 1, 32, 32>}, {transform_indices = @transform_23, window_bounds = array<i64: 1, 1, 32>}, {transform_indices = @transform_24, window_bounds = array<i64: 1, 1, 32>}, {transform_indices = @transform_25, window_bounds = array<i64: 1, 1, 32>}, {transform_indices = @transform_26, window_bounds = array<i64: 1, 32, 128>}, {transform_indices = @transform_27, window_bounds = array<i64: 1, 1, 128>}, {transform_indices = @transform_28, window_bounds = array<i64: 1, 128, 32>}, {transform_indices = @transform_29, window_bounds = array<i64: 1, 1, 32>}, {transform_indices = @transform_30, window_bounds = array<i64: 1, 1, 32>}, {transform_indices = @transform_31, window_bounds = array<i64: 1, 1, 32>}, {transform_indices = @transform_32, window_bounds = array<i64: 1, 8, 32>}, {transform_indices = @transform_33, window_bounds = array<i64: 1, 16, 32>}]} {
    %c0_i32 = arith.constant 0 : i32
    %0 = arith.cmpi eq, %arg1, %c0_i32 : i32
    %1 = arith.extui %0 : i1 to i32
    %c0_i32_0 = arith.constant 0 : i32
    %2 = arith.cmpi ne, %1, %c0_i32_0 : i32
    scf.if %2 {
      %c0_228 = arith.constant 0 : index
      %c0_229 = arith.constant 0 : index
      %c0_230 = arith.constant 0 : index
      %856 = vector.load %arg2[%c0_228, %c0_229, %c0_230] : memref<1x8x32xf32, #tpu.memory_space<vmem>>, vector<1x8x32xf32>
      %857 = vector.shape_cast %856 : vector<1x8x32xf32> to vector<8x32xf32>
      %c0_231 = arith.constant 0 : index
      %c0_232 = arith.constant 0 : index
      %858 = vector.load %arg36[%c0_231, %c0_232] : memref<8x32xf32, #tpu.memory_space<vmem>>, vector<8x32xf32>
      tpu.vector_store %arg36[%c0_231, %c0_232], %857 {strides = array<i32>} : memref<8x32xf32, #tpu.memory_space<vmem>>, vector<8x32xf32>,
      %c0_233 = arith.constant 0 : index
      %c0_234 = arith.constant 0 : index
      %c0_235 = arith.constant 0 : index
      %859 = vector.load %arg3[%c0_233, %c0_234, %c0_235] : memref<1x16x32xf32, #tpu.memory_space<vmem>>, vector<1x16x32xf32>
      %860 = vector.shape_cast %859 : vector<1x16x32xf32> to vector<16x32xf32>
      %c0_236 = arith.constant 0 : index
      %c0_237 = arith.constant 0 : index
      %861 = vector.load %arg37[%c0_236, %c0_237] : memref<16x32xf32, #tpu.memory_space<vmem>>, vector<16x32xf32>
      tpu.vector_store %arg37[%c0_236, %c0_237], %860 {strides = array<i32>} : memref<16x32xf32, #tpu.memory_space<vmem>>, vector<16x32xf32>,
    } else {
    }
    %c0 = arith.constant 0 : index
    %c0_1 = arith.constant 0 : index
    %3 = vector.load %arg36[%c0, %c0_1] : memref<8x32xf32, #tpu.memory_space<vmem>>, vector<8x32xf32>
    %c0_2 = arith.constant 0 : index
    %c0_3 = arith.constant 0 : index
    %4 = vector.load %arg37[%c0_2, %c0_3] : memref<16x32xf32, #tpu.memory_space<vmem>>, vector<16x32xf32>
    %c0_4 = arith.constant 0 : index
    %c0_5 = arith.constant 0 : index
    %c0_6 = arith.constant 0 : index
    %5 = vector.load %arg4[%c0_4, %c0_5, %c0_6] : memref<1x8x32xf32, #tpu.memory_space<vmem>>, vector<1x8x32xf32>
    %6 = vector.shape_cast %5 : vector<1x8x32xf32> to vector<8x32xf32>
    %c0_7 = arith.constant 0 : index
    %c0_8 = arith.constant 0 : index
    %c0_9 = arith.constant 0 : index
    %7 = vector.load %arg5[%c0_7, %c0_8, %c0_9] : memref<1x8x12xf32, #tpu.memory_space<vmem>>, vector<1x8x12xf32>
    %8 = vector.shape_cast %7 : vector<1x8x12xf32> to vector<8x12xf32>
    %c0_10 = arith.constant 0 : index
    %c0_11 = arith.constant 0 : index
    %c0_12 = arith.constant 0 : index
    %9 = vector.load %arg6[%c0_10, %c0_11, %c0_12] : memref<1x16x12xf32, #tpu.memory_space<vmem>>, vector<1x16x12xf32>
    %10 = vector.shape_cast %9 : vector<1x16x12xf32> to vector<16x12xf32>
    %cst = arith.constant dense<0.000000e+00> : vector<8xf32>
    %11 = vector.multi_reduction <add>, %3, %cst [1] : vector<8x32xf32> to vector<8xf32>
    %12 = vector.shape_cast %11 : vector<8xf32> to vector<8x1xf32>
    %cst_13 = arith.constant 3.200000e+01 : f32
    %13 = vector.broadcast %cst_13 : f32 to vector<8x1xf32>
    %14 = arith.divf %12, %13 : vector<8x1xf32>
    %15 = vector.broadcast %14 : vector<8x1xf32> to vector<8x32xf32>
    %16 = arith.subf %3, %15 : vector<8x32xf32>
    %17 = arith.mulf %16, %16 : vector<8x32xf32>
    %cst_14 = arith.constant dense<0.000000e+00> : vector<8xf32>
    %18 = vector.multi_reduction <add>, %17, %cst_14 [1] : vector<8x32xf32> to vector<8xf32>
    %19 = vector.shape_cast %18 : vector<8xf32> to vector<8x1xf32>
    %cst_15 = arith.constant 3.200000e+01 : f32
    %20 = vector.broadcast %cst_15 : f32 to vector<8x1xf32>
    %21 = arith.divf %19, %20 : vector<8x1xf32>
    %22 = vector.broadcast %14 : vector<8x1xf32> to vector<8x32xf32>
    %23 = arith.subf %3, %22 : vector<8x32xf32>
    %cst_16 = arith.constant 9.99999974E-6 : f32
    %24 = vector.broadcast %cst_16 : f32 to vector<8x1xf32>
    %25 = arith.addf %21, %24 : vector<8x1xf32>
    %26 = math.rsqrt %25 : vector<8x1xf32>
    %27 = vector.broadcast %26 : vector<8x1xf32> to vector<8x32xf32>
    %28 = arith.mulf %23, %27 : vector<8x32xf32>
    %c0_17 = arith.constant 0 : index
    %c0_18 = arith.constant 0 : index
    %c0_19 = arith.constant 0 : index
    %29 = vector.load %arg7[%c0_17, %c0_18, %c0_19] : memref<1x1x32xf32, #tpu.memory_space<vmem>>, vector<1x1x32xf32>
    %30 = vector.shape_cast %29 : vector<1x1x32xf32> to vector<1x32xf32>
    %31 = vector.broadcast %30 : vector<1x32xf32> to vector<8x32xf32>
    %32 = arith.mulf %28, %31 : vector<8x32xf32>
    %c0_20 = arith.constant 0 : index
    %c0_21 = arith.constant 0 : index
    %c0_22 = arith.constant 0 : index
    %33 = vector.load %arg8[%c0_20, %c0_21, %c0_22] : memref<1x1x32xf32, #tpu.memory_space<vmem>>, vector<1x1x32xf32>
    %34 = vector.shape_cast %33 : vector<1x1x32xf32> to vector<1x32xf32>
    %35 = vector.broadcast %34 : vector<1x32xf32> to vector<8x32xf32>
    %36 = arith.addf %32, %35 : vector<8x32xf32>
    %c0_23 = arith.constant 0 : index
    %c0_24 = arith.constant 0 : index
    %c0_25 = arith.constant 0 : index
    %37 = vector.load %arg9[%c0_23, %c0_24, %c0_25] : memref<1x32x160xf32, #tpu.memory_space<vmem>>, vector<1x32x160xf32>
    %38 = vector.shape_cast %37 : vector<1x32x160xf32> to vector<32x160xf32>
    %cst_26 = arith.constant dense<0.000000e+00> : vector<8x160xf32>
    %39 = tpu.matmul %36, %38, %cst_26 {dimension_numbers = #tpu.dot_dimension_numbers<[1], [0], [0], [1], [0, 0, 1, 1], [], []>} : vector<8x32xf32>, vector<32x160xf32>, vector<8x160xf32> -> vector<8x160xf32>
    %c0_27 = arith.constant 0 : index
    %c0_28 = arith.constant 0 : index
    %c0_29 = arith.constant 0 : index
    %40 = vector.load %arg10[%c0_27, %c0_28, %c0_29] : memref<1x32x416xf32, #tpu.memory_space<vmem>>, vector<1x32x416xf32>
    %41 = vector.shape_cast %40 : vector<1x32x416xf32> to vector<32x416xf32>
    %cst_30 = arith.constant dense<0.000000e+00> : vector<16x416xf32>
    %42 = tpu.matmul %4, %41, %cst_30 {dimension_numbers = #tpu.dot_dimension_numbers<[1], [0], [0], [1], [0, 0, 1, 1], [], []>} : vector<16x32xf32>, vector<32x416xf32>, vector<16x416xf32> -> vector<16x416xf32>
    %43 = vector.extract_strided_slice %39 {offsets = [0, 0], sizes = [8, 64], strides = [1, 1]} : vector<8x160xf32> to vector<8x64xf32>
    %cst_31 = arith.constant 2.500000e-01 : f32
    %44 = vector.broadcast %cst_31 : f32 to vector<8x64xf32>
    %45 = arith.mulf %43, %44 : vector<8x64xf32>
    %46 = vector.extract_strided_slice %42 {offsets = [0, 0], sizes = [16, 64], strides = [1, 1]} : vector<16x416xf32> to vector<16x64xf32>
    %47 = vector.extract_strided_slice %42 {offsets = [0, 64], sizes = [16, 64], strides = [1, 1]} : vector<16x416xf32> to vector<16x64xf32>
    %48 = vector.extract_strided_slice %39 {offsets = [0, 64], sizes = [8, 32], strides = [1, 1]} : vector<8x160xf32> to vector<8x32xf32>
    %49 = vector.extract_strided_slice %39 {offsets = [0, 96], sizes = [8, 32], strides = [1, 1]} : vector<8x160xf32> to vector<8x32xf32>
    %50 = vector.extract_strided_slice %39 {offsets = [0, 128], sizes = [8, 32], strides = [1, 1]} : vector<8x160xf32> to vector<8x32xf32>
    %51 = vector.extract_strided_slice %42 {offsets = [0, 128], sizes = [16, 32], strides = [1, 1]} : vector<16x416xf32> to vector<16x32xf32>
    %52 = vector.extract_strided_slice %42 {offsets = [0, 160], sizes = [16, 32], strides = [1, 1]} : vector<16x416xf32> to vector<16x32xf32>
    %53 = vector.extract_strided_slice %42 {offsets = [0, 192], sizes = [16, 32], strides = [1, 1]} : vector<16x416xf32> to vector<16x32xf32>
    %54 = vector.extract_strided_slice %42 {offsets = [0, 224], sizes = [16, 64], strides = [1, 1]} : vector<16x416xf32> to vector<16x64xf32>
    %55 = vector.extract_strided_slice %42 {offsets = [0, 288], sizes = [16, 64], strides = [1, 1]} : vector<16x416xf32> to vector<16x64xf32>
    %56 = vector.extract_strided_slice %42 {offsets = [0, 352], sizes = [16, 64], strides = [1, 1]} : vector<16x416xf32> to vector<16x64xf32>
    %c0_32 = arith.constant 0 : index
    %c0_33 = arith.constant 0 : index
    %c0_34 = arith.constant 0 : index
    %57 = vector.load %arg11[%c0_32, %c0_33, %c0_34] : memref<1x1x32xf32, #tpu.memory_space<vmem>>, vector<1x1x32xf32>
    %58 = vector.shape_cast %57 : vector<1x1x32xf32> to vector<1x32xf32>
    %59 = vector.extract_strided_slice %8 {offsets = [0, 0], sizes = [8, 1], strides = [1, 1]} : vector<8x12xf32> to vector<8x1xf32>
    %60 = vector.extract_strided_slice %8 {offsets = [0, 1], sizes = [8, 1], strides = [1, 1]} : vector<8x12xf32> to vector<8x1xf32>
    %61 = vector.extract_strided_slice %8 {offsets = [0, 2], sizes = [8, 1], strides = [1, 1]} : vector<8x12xf32> to vector<8x1xf32>
    %62 = vector.extract_strided_slice %8 {offsets = [0, 3], sizes = [8, 1], strides = [1, 1]} : vector<8x12xf32> to vector<8x1xf32>
    %63 = vector.extract_strided_slice %8 {offsets = [0, 4], sizes = [8, 1], strides = [1, 1]} : vector<8x12xf32> to vector<8x1xf32>
    %64 = vector.extract_strided_slice %8 {offsets = [0, 5], sizes = [8, 1], strides = [1, 1]} : vector<8x12xf32> to vector<8x1xf32>
    %65 = vector.extract_strided_slice %8 {offsets = [0, 6], sizes = [8, 1], strides = [1, 1]} : vector<8x12xf32> to vector<8x1xf32>
    %66 = vector.extract_strided_slice %8 {offsets = [0, 7], sizes = [8, 1], strides = [1, 1]} : vector<8x12xf32> to vector<8x1xf32>
    %67 = vector.extract_strided_slice %8 {offsets = [0, 8], sizes = [8, 1], strides = [1, 1]} : vector<8x12xf32> to vector<8x1xf32>
    %68 = vector.extract_strided_slice %8 {offsets = [0, 9], sizes = [8, 1], strides = [1, 1]} : vector<8x12xf32> to vector<8x1xf32>
    %69 = vector.extract_strided_slice %8 {offsets = [0, 10], sizes = [8, 1], strides = [1, 1]} : vector<8x12xf32> to vector<8x1xf32>
    %70 = vector.extract_strided_slice %8 {offsets = [0, 11], sizes = [8, 1], strides = [1, 1]} : vector<8x12xf32> to vector<8x1xf32>
    %71 = vector.extract_strided_slice %10 {offsets = [0, 0], sizes = [16, 1], strides = [1, 1]} : vector<16x12xf32> to vector<16x1xf32>
    %72 = vector.extract_strided_slice %10 {offsets = [0, 1], sizes = [16, 1], strides = [1, 1]} : vector<16x12xf32> to vector<16x1xf32>
    %73 = vector.extract_strided_slice %10 {offsets = [0, 2], sizes = [16, 1], strides = [1, 1]} : vector<16x12xf32> to vector<16x1xf32>
    %74 = vector.extract_strided_slice %10 {offsets = [0, 3], sizes = [16, 1], strides = [1, 1]} : vector<16x12xf32> to vector<16x1xf32>
    %75 = vector.extract_strided_slice %10 {offsets = [0, 4], sizes = [16, 1], strides = [1, 1]} : vector<16x12xf32> to vector<16x1xf32>
    %76 = vector.extract_strided_slice %10 {offsets = [0, 5], sizes = [16, 1], strides = [1, 1]} : vector<16x12xf32> to vector<16x1xf32>
    %77 = vector.extract_strided_slice %10 {offsets = [0, 6], sizes = [16, 1], strides = [1, 1]} : vector<16x12xf32> to vector<16x1xf32>
    %78 = vector.extract_strided_slice %10 {offsets = [0, 7], sizes = [16, 1], strides = [1, 1]} : vector<16x12xf32> to vector<16x1xf32>
    %79 = vector.extract_strided_slice %10 {offsets = [0, 8], sizes = [16, 1], strides = [1, 1]} : vector<16x12xf32> to vector<16x1xf32>
    %80 = vector.extract_strided_slice %10 {offsets = [0, 9], sizes = [16, 1], strides = [1, 1]} : vector<16x12xf32> to vector<16x1xf32>
    %81 = vector.extract_strided_slice %10 {offsets = [0, 10], sizes = [16, 1], strides = [1, 1]} : vector<16x12xf32> to vector<16x1xf32>
    %82 = vector.extract_strided_slice %10 {offsets = [0, 11], sizes = [16, 1], strides = [1, 1]} : vector<16x12xf32> to vector<16x1xf32>
    %83 = vector.broadcast %59 : vector<8x1xf32> to vector<8x32xf32>
    %84 = arith.mulf %83, %48 : vector<8x32xf32>
    %85 = vector.broadcast %60 : vector<8x1xf32> to vector<8x32xf32>
    %86 = arith.mulf %85, %49 : vector<8x32xf32>
    %87 = arith.addf %84, %86 : vector<8x32xf32>
    %88 = vector.broadcast %61 : vector<8x1xf32> to vector<8x32xf32>
    %89 = arith.mulf %88, %50 : vector<8x32xf32>
    %90 = arith.addf %87, %89 : vector<8x32xf32>
    %91 = vector.broadcast %68 : vector<8x1xf32> to vector<8x32xf32>
    %92 = arith.addf %90, %91 : vector<8x32xf32>
    %93 = vector.broadcast %58 : vector<1x32xf32> to vector<8x32xf32>
    %94 = arith.mulf %92, %93 : vector<8x32xf32>
    %95 = vector.broadcast %62 : vector<8x1xf32> to vector<8x32xf32>
    %96 = arith.mulf %95, %48 : vector<8x32xf32>
    %97 = vector.broadcast %63 : vector<8x1xf32> to vector<8x32xf32>
    %98 = arith.mulf %97, %49 : vector<8x32xf32>
    %99 = arith.addf %96, %98 : vector<8x32xf32>
    %100 = vector.broadcast %64 : vector<8x1xf32> to vector<8x32xf32>
    %101 = arith.mulf %100, %50 : vector<8x32xf32>
    %102 = arith.addf %99, %101 : vector<8x32xf32>
    %103 = vector.broadcast %69 : vector<8x1xf32> to vector<8x32xf32>
    %104 = arith.addf %102, %103 : vector<8x32xf32>
    %105 = vector.broadcast %58 : vector<1x32xf32> to vector<8x32xf32>
    %106 = arith.mulf %104, %105 : vector<8x32xf32>
    %107 = vector.broadcast %65 : vector<8x1xf32> to vector<8x32xf32>
    %108 = arith.mulf %107, %48 : vector<8x32xf32>
    %109 = vector.broadcast %66 : vector<8x1xf32> to vector<8x32xf32>
    %110 = arith.mulf %109, %49 : vector<8x32xf32>
    %111 = arith.addf %108, %110 : vector<8x32xf32>
    %112 = vector.broadcast %67 : vector<8x1xf32> to vector<8x32xf32>
    %113 = arith.mulf %112, %50 : vector<8x32xf32>
    %114 = arith.addf %111, %113 : vector<8x32xf32>
    %115 = vector.broadcast %70 : vector<8x1xf32> to vector<8x32xf32>
    %116 = arith.addf %114, %115 : vector<8x32xf32>
    %117 = vector.broadcast %58 : vector<1x32xf32> to vector<8x32xf32>
    %118 = arith.mulf %116, %117 : vector<8x32xf32>
    %119 = vector.broadcast %71 : vector<16x1xf32> to vector<16x32xf32>
    %120 = arith.mulf %119, %51 : vector<16x32xf32>
    %121 = vector.broadcast %72 : vector<16x1xf32> to vector<16x32xf32>
    %122 = arith.mulf %121, %52 : vector<16x32xf32>
    %123 = arith.addf %120, %122 : vector<16x32xf32>
    %124 = vector.broadcast %73 : vector<16x1xf32> to vector<16x32xf32>
    %125 = arith.mulf %124, %53 : vector<16x32xf32>
    %126 = arith.addf %123, %125 : vector<16x32xf32>
    %127 = vector.broadcast %80 : vector<16x1xf32> to vector<16x32xf32>
    %128 = arith.addf %126, %127 : vector<16x32xf32>
    %129 = vector.broadcast %58 : vector<1x32xf32> to vector<16x32xf32>
    %130 = arith.mulf %128, %129 : vector<16x32xf32>
    %131 = vector.broadcast %74 : vector<16x1xf32> to vector<16x32xf32>
    %132 = arith.mulf %131, %51 : vector<16x32xf32>
    %133 = vector.broadcast %75 : vector<16x1xf32> to vector<16x32xf32>
    %134 = arith.mulf %133, %52 : vector<16x32xf32>
    %135 = arith.addf %132, %134 : vector<16x32xf32>
    %136 = vector.broadcast %76 : vector<16x1xf32> to vector<16x32xf32>
    %137 = arith.mulf %136, %53 : vector<16x32xf32>
    %138 = arith.addf %135, %137 : vector<16x32xf32>
    %139 = vector.broadcast %81 : vector<16x1xf32> to vector<16x32xf32>
    %140 = arith.addf %138, %139 : vector<16x32xf32>
    %141 = vector.broadcast %58 : vector<1x32xf32> to vector<16x32xf32>
    %142 = arith.mulf %140, %141 : vector<16x32xf32>
    %143 = vector.broadcast %77 : vector<16x1xf32> to vector<16x32xf32>
    %144 = arith.mulf %143, %51 : vector<16x32xf32>
    %145 = vector.broadcast %78 : vector<16x1xf32> to vector<16x32xf32>
    %146 = arith.mulf %145, %52 : vector<16x32xf32>
    %147 = arith.addf %144, %146 : vector<16x32xf32>
    %148 = vector.broadcast %79 : vector<16x1xf32> to vector<16x32xf32>
    %149 = arith.mulf %148, %53 : vector<16x32xf32>
    %150 = arith.addf %147, %149 : vector<16x32xf32>
    %151 = vector.broadcast %82 : vector<16x1xf32> to vector<16x32xf32>
    %152 = arith.addf %150, %151 : vector<16x32xf32>
    %153 = vector.broadcast %58 : vector<1x32xf32> to vector<16x32xf32>
    %154 = arith.mulf %152, %153 : vector<16x32xf32>
    %155 = vector.broadcast %71 : vector<16x1xf32> to vector<16x64xf32>
    %156 = arith.mulf %155, %54 : vector<16x64xf32>
    %157 = vector.broadcast %72 : vector<16x1xf32> to vector<16x64xf32>
    %158 = arith.mulf %157, %55 : vector<16x64xf32>
    %159 = arith.addf %156, %158 : vector<16x64xf32>
    %160 = vector.broadcast %73 : vector<16x1xf32> to vector<16x64xf32>
    %161 = arith.mulf %160, %56 : vector<16x64xf32>
    %162 = arith.addf %159, %161 : vector<16x64xf32>
    %163 = vector.broadcast %80 : vector<16x1xf32> to vector<16x64xf32>
    %164 = arith.addf %162, %163 : vector<16x64xf32>
    %165 = vector.broadcast %74 : vector<16x1xf32> to vector<16x64xf32>
    %166 = arith.mulf %165, %54 : vector<16x64xf32>
    %167 = vector.broadcast %75 : vector<16x1xf32> to vector<16x64xf32>
    %168 = arith.mulf %167, %55 : vector<16x64xf32>
    %169 = arith.addf %166, %168 : vector<16x64xf32>
    %170 = vector.broadcast %76 : vector<16x1xf32> to vector<16x64xf32>
    %171 = arith.mulf %170, %56 : vector<16x64xf32>
    %172 = arith.addf %169, %171 : vector<16x64xf32>
    %173 = vector.broadcast %81 : vector<16x1xf32> to vector<16x64xf32>
    %174 = arith.addf %172, %173 : vector<16x64xf32>
    %175 = vector.broadcast %77 : vector<16x1xf32> to vector<16x64xf32>
    %176 = arith.mulf %175, %54 : vector<16x64xf32>
    %177 = vector.broadcast %78 : vector<16x1xf32> to vector<16x64xf32>
    %178 = arith.mulf %177, %55 : vector<16x64xf32>
    %179 = arith.addf %176, %178 : vector<16x64xf32>
    %180 = vector.broadcast %79 : vector<16x1xf32> to vector<16x64xf32>
    %181 = arith.mulf %180, %56 : vector<16x64xf32>
    %182 = arith.addf %179, %181 : vector<16x64xf32>
    %183 = vector.broadcast %82 : vector<16x1xf32> to vector<16x64xf32>
    %184 = arith.addf %182, %183 : vector<16x64xf32>
    %cst_35 = arith.constant -1.000000e+00 : f32
    %185 = vector.broadcast %cst_35 : f32 to vector<8x1xf32>
    %cst_36 = arith.constant -1.000000e+00 : f32
    %186 = vector.broadcast %cst_36 : f32 to vector<16x1xf32>
    %187 = vector.extract_strided_slice %94 {offsets = [0, 0], sizes = [8, 4], strides = [1, 1]} : vector<8x32xf32> to vector<8x4xf32>
    %188 = vector.extract_strided_slice %106 {offsets = [0, 0], sizes = [8, 4], strides = [1, 1]} : vector<8x32xf32> to vector<8x4xf32>
    %189 = vector.extract_strided_slice %118 {offsets = [0, 0], sizes = [8, 4], strides = [1, 1]} : vector<8x32xf32> to vector<8x4xf32>
    %190 = vector.extract_strided_slice %130 {offsets = [0, 0], sizes = [16, 4], strides = [1, 1]} : vector<16x32xf32> to vector<16x4xf32>
    %191 = vector.extract_strided_slice %142 {offsets = [0, 0], sizes = [16, 4], strides = [1, 1]} : vector<16x32xf32> to vector<16x4xf32>
    %192 = vector.extract_strided_slice %154 {offsets = [0, 0], sizes = [16, 4], strides = [1, 1]} : vector<16x32xf32> to vector<16x4xf32>
    %193 = arith.mulf %187, %187 : vector<8x4xf32>
    %194 = arith.mulf %188, %188 : vector<8x4xf32>
    %195 = arith.addf %193, %194 : vector<8x4xf32>
    %196 = arith.mulf %189, %189 : vector<8x4xf32>
    %197 = arith.addf %195, %196 : vector<8x4xf32>
    %cst_37 = arith.constant dense<0.000000e+00> : vector<8xf32>
    %198 = vector.multi_reduction <add>, %197, %cst_37 [1] : vector<8x4xf32> to vector<8xf32>
    %199 = vector.shape_cast %198 : vector<8xf32> to vector<8x1xf32>
    %200 = arith.mulf %190, %190 : vector<16x4xf32>
    %201 = arith.mulf %191, %191 : vector<16x4xf32>
    %202 = arith.addf %200, %201 : vector<16x4xf32>
    %203 = arith.mulf %192, %192 : vector<16x4xf32>
    %204 = arith.addf %202, %203 : vector<16x4xf32>
    %cst_38 = arith.constant dense<0.000000e+00> : vector<16xf32>
    %205 = vector.multi_reduction <add>, %204, %cst_38 [1] : vector<16x4xf32> to vector<16xf32>
    %206 = vector.shape_cast %205 : vector<16xf32> to vector<16x1xf32>
    %207 = vector.extract_strided_slice %45 {offsets = [0, 0], sizes = [8, 8], strides = [1, 1]} : vector<8x64xf32> to vector<8x8xf32>
    %cst_39 = arith.constant 2.000000e+00 : f32
    %208 = vector.broadcast %cst_39 : f32 to vector<8x4xf32>
    %209 = arith.mulf %208, %187 : vector<8x4xf32>
    %cst_40 = arith.constant 2.000000e+00 : f32
    %210 = vector.broadcast %cst_40 : f32 to vector<8x4xf32>
    %211 = arith.mulf %210, %188 : vector<8x4xf32>
    %cst_41 = arith.constant 2.000000e+00 : f32
    %212 = vector.broadcast %cst_41 : f32 to vector<8x4xf32>
    %213 = arith.mulf %212, %189 : vector<8x4xf32>
    %214 = tpu.concatenate %207, %209, %211, %213, %199, %185 in 1 : vector<8x8xf32>, vector<8x4xf32>, vector<8x4xf32>, vector<8x4xf32>, vector<8x1xf32>, vector<8x1xf32> -> vector<8x22xf32>
    %215 = vector.extract_strided_slice %46 {offsets = [0, 0], sizes = [16, 8], strides = [1, 1]} : vector<16x64xf32> to vector<16x8xf32>
    %216 = tpu.concatenate %215, %190, %191, %192, %186, %206 in 1 : vector<16x8xf32>, vector<16x4xf32>, vector<16x4xf32>, vector<16x4xf32>, vector<16x1xf32>, vector<16x1xf32> -> vector<16x22xf32>
    %cst_42 = arith.constant dense<0.000000e+00> : vector<8x16xf32>
    %217 = tpu.matmul %214, %216, %cst_42 {dimension_numbers = #tpu.dot_dimension_numbers<[1], [1], [0], [0], [0, 0, 1, 0], [], []>} : vector<8x22xf32>, vector<16x22xf32>, vector<8x16xf32> -> vector<8x16xf32>
    %cst_43 = arith.constant dense<0xFF800000> : vector<8xf32>
    %218 = vector.multi_reduction <maximumf>, %217, %cst_43 [1] : vector<8x16xf32> to vector<8xf32>
    %219 = vector.shape_cast %218 : vector<8xf32> to vector<8x1xf32>
    %220 = vector.broadcast %219 : vector<8x1xf32> to vector<8x16xf32>
    %221 = arith.subf %217, %220 : vector<8x16xf32>
    %222 = math.exp %221 : vector<8x16xf32>
    %cst_44 = arith.constant dense<0.000000e+00> : vector<8xf32>
    %223 = vector.multi_reduction <add>, %222, %cst_44 [1] : vector<8x16xf32> to vector<8xf32>
    %224 = vector.shape_cast %223 : vector<8xf32> to vector<8x1xf32>
    %225 = tpu.reciprocal %224 {approx = true} : vector<8x1xf32> -> vector<8x1xf32>
    %226 = vector.broadcast %225 : vector<8x1xf32> to vector<8x16xf32>
    %227 = arith.mulf %222, %226 : vector<8x16xf32>
    %228 = vector.extract_strided_slice %47 {offsets = [0, 0], sizes = [16, 8], strides = [1, 1]} : vector<16x64xf32> to vector<16x8xf32>
    %229 = vector.extract_strided_slice %164 {offsets = [0, 0], sizes = [16, 8], strides = [1, 1]} : vector<16x64xf32> to vector<16x8xf32>
    %230 = vector.extract_strided_slice %174 {offsets = [0, 0], sizes = [16, 8], strides = [1, 1]} : vector<16x64xf32> to vector<16x8xf32>
    %231 = vector.extract_strided_slice %184 {offsets = [0, 0], sizes = [16, 8], strides = [1, 1]} : vector<16x64xf32> to vector<16x8xf32>
    %232 = tpu.concatenate %228, %229, %230, %231 in 1 : vector<16x8xf32>, vector<16x8xf32>, vector<16x8xf32>, vector<16x8xf32> -> vector<16x32xf32>
    %cst_45 = arith.constant dense<0.000000e+00> : vector<8x32xf32>
    %233 = tpu.matmul %227, %232, %cst_45 {dimension_numbers = #tpu.dot_dimension_numbers<[1], [0], [0], [1], [0, 0, 1, 1], [], []>} : vector<8x16xf32>, vector<16x32xf32>, vector<8x32xf32> -> vector<8x32xf32>
    %234 = vector.extract_strided_slice %233 {offsets = [0, 0], sizes = [8, 8], strides = [1, 1]} : vector<8x32xf32> to vector<8x8xf32>
    %235 = vector.extract_strided_slice %233 {offsets = [0, 8], sizes = [8, 8], strides = [1, 1]} : vector<8x32xf32> to vector<8x8xf32>
    %236 = vector.extract_strided_slice %233 {offsets = [0, 16], sizes = [8, 8], strides = [1, 1]} : vector<8x32xf32> to vector<8x8xf32>
    %237 = vector.extract_strided_slice %233 {offsets = [0, 24], sizes = [8, 8], strides = [1, 1]} : vector<8x32xf32> to vector<8x8xf32>
    %238 = vector.extract_strided_slice %94 {offsets = [0, 4], sizes = [8, 4], strides = [1, 1]} : vector<8x32xf32> to vector<8x4xf32>
    %239 = vector.extract_strided_slice %106 {offsets = [0, 4], sizes = [8, 4], strides = [1, 1]} : vector<8x32xf32> to vector<8x4xf32>
    %240 = vector.extract_strided_slice %118 {offsets = [0, 4], sizes = [8, 4], strides = [1, 1]} : vector<8x32xf32> to vector<8x4xf32>
    %241 = vector.extract_strided_slice %130 {offsets = [0, 4], sizes = [16, 4], strides = [1, 1]} : vector<16x32xf32> to vector<16x4xf32>
    %242 = vector.extract_strided_slice %142 {offsets = [0, 4], sizes = [16, 4], strides = [1, 1]} : vector<16x32xf32> to vector<16x4xf32>
    %243 = vector.extract_strided_slice %154 {offsets = [0, 4], sizes = [16, 4], strides = [1, 1]} : vector<16x32xf32> to vector<16x4xf32>
    %244 = arith.mulf %238, %238 : vector<8x4xf32>
    %245 = arith.mulf %239, %239 : vector<8x4xf32>
    %246 = arith.addf %244, %245 : vector<8x4xf32>
    %247 = arith.mulf %240, %240 : vector<8x4xf32>
    %248 = arith.addf %246, %247 : vector<8x4xf32>
    %cst_46 = arith.constant dense<0.000000e+00> : vector<8xf32>
    %249 = vector.multi_reduction <add>, %248, %cst_46 [1] : vector<8x4xf32> to vector<8xf32>
    %250 = vector.shape_cast %249 : vector<8xf32> to vector<8x1xf32>
    %251 = arith.mulf %241, %241 : vector<16x4xf32>
    %252 = arith.mulf %242, %242 : vector<16x4xf32>
    %253 = arith.addf %251, %252 : vector<16x4xf32>
    %254 = arith.mulf %243, %243 : vector<16x4xf32>
    %255 = arith.addf %253, %254 : vector<16x4xf32>
    %cst_47 = arith.constant dense<0.000000e+00> : vector<16xf32>
    %256 = vector.multi_reduction <add>, %255, %cst_47 [1] : vector<16x4xf32> to vector<16xf32>
    %257 = vector.shape_cast %256 : vector<16xf32> to vector<16x1xf32>
    %258 = vector.extract_strided_slice %45 {offsets = [0, 8], sizes = [8, 8], strides = [1, 1]} : vector<8x64xf32> to vector<8x8xf32>
    %cst_48 = arith.constant 2.000000e+00 : f32
    %259 = vector.broadcast %cst_48 : f32 to vector<8x4xf32>
    %260 = arith.mulf %259, %238 : vector<8x4xf32>
    %cst_49 = arith.constant 2.000000e+00 : f32
    %261 = vector.broadcast %cst_49 : f32 to vector<8x4xf32>
    %262 = arith.mulf %261, %239 : vector<8x4xf32>
    %cst_50 = arith.constant 2.000000e+00 : f32
    %263 = vector.broadcast %cst_50 : f32 to vector<8x4xf32>
    %264 = arith.mulf %263, %240 : vector<8x4xf32>
    %265 = tpu.concatenate %258, %260, %262, %264, %250, %185 in 1 : vector<8x8xf32>, vector<8x4xf32>, vector<8x4xf32>, vector<8x4xf32>, vector<8x1xf32>, vector<8x1xf32> -> vector<8x22xf32>
    %266 = vector.extract_strided_slice %46 {offsets = [0, 8], sizes = [16, 8], strides = [1, 1]} : vector<16x64xf32> to vector<16x8xf32>
    %267 = tpu.concatenate %266, %241, %242, %243, %186, %257 in 1 : vector<16x8xf32>, vector<16x4xf32>, vector<16x4xf32>, vector<16x4xf32>, vector<16x1xf32>, vector<16x1xf32> -> vector<16x22xf32>
    %cst_51 = arith.constant dense<0.000000e+00> : vector<8x16xf32>
    %268 = tpu.matmul %265, %267, %cst_51 {dimension_numbers = #tpu.dot_dimension_numbers<[1], [1], [0], [0], [0, 0, 1, 0], [], []>} : vector<8x22xf32>, vector<16x22xf32>, vector<8x16xf32> -> vector<8x16xf32>
    %cst_52 = arith.constant dense<0xFF800000> : vector<8xf32>
    %269 = vector.multi_reduction <maximumf>, %268, %cst_52 [1] : vector<8x16xf32> to vector<8xf32>
    %270 = vector.shape_cast %269 : vector<8xf32> to vector<8x1xf32>
    %271 = vector.broadcast %270 : vector<8x1xf32> to vector<8x16xf32>
    %272 = arith.subf %268, %271 : vector<8x16xf32>
    %273 = math.exp %272 : vector<8x16xf32>
    %cst_53 = arith.constant dense<0.000000e+00> : vector<8xf32>
    %274 = vector.multi_reduction <add>, %273, %cst_53 [1] : vector<8x16xf32> to vector<8xf32>
    %275 = vector.shape_cast %274 : vector<8xf32> to vector<8x1xf32>
    %276 = tpu.reciprocal %275 {approx = true} : vector<8x1xf32> -> vector<8x1xf32>
    %277 = vector.broadcast %276 : vector<8x1xf32> to vector<8x16xf32>
    %278 = arith.mulf %273, %277 : vector<8x16xf32>
    %279 = vector.extract_strided_slice %47 {offsets = [0, 8], sizes = [16, 8], strides = [1, 1]} : vector<16x64xf32> to vector<16x8xf32>
    %280 = vector.extract_strided_slice %164 {offsets = [0, 8], sizes = [16, 8], strides = [1, 1]} : vector<16x64xf32> to vector<16x8xf32>
    %281 = vector.extract_strided_slice %174 {offsets = [0, 8], sizes = [16, 8], strides = [1, 1]} : vector<16x64xf32> to vector<16x8xf32>
    %282 = vector.extract_strided_slice %184 {offsets = [0, 8], sizes = [16, 8], strides = [1, 1]} : vector<16x64xf32> to vector<16x8xf32>
    %283 = tpu.concatenate %279, %280, %281, %282 in 1 : vector<16x8xf32>, vector<16x8xf32>, vector<16x8xf32>, vector<16x8xf32> -> vector<16x32xf32>
    %cst_54 = arith.constant dense<0.000000e+00> : vector<8x32xf32>
    %284 = tpu.matmul %278, %283, %cst_54 {dimension_numbers = #tpu.dot_dimension_numbers<[1], [0], [0], [1], [0, 0, 1, 1], [], []>} : vector<8x16xf32>, vector<16x32xf32>, vector<8x32xf32> -> vector<8x32xf32>
    %285 = vector.extract_strided_slice %284 {offsets = [0, 0], sizes = [8, 8], strides = [1, 1]} : vector<8x32xf32> to vector<8x8xf32>
    %286 = vector.extract_strided_slice %284 {offsets = [0, 8], sizes = [8, 8], strides = [1, 1]} : vector<8x32xf32> to vector<8x8xf32>
    %287 = vector.extract_strided_slice %284 {offsets = [0, 16], sizes = [8, 8], strides = [1, 1]} : vector<8x32xf32> to vector<8x8xf32>
    %288 = vector.extract_strided_slice %284 {offsets = [0, 24], sizes = [8, 8], strides = [1, 1]} : vector<8x32xf32> to vector<8x8xf32>
    %289 = vector.extract_strided_slice %94 {offsets = [0, 8], sizes = [8, 4], strides = [1, 1]} : vector<8x32xf32> to vector<8x4xf32>
    %290 = vector.extract_strided_slice %106 {offsets = [0, 8], sizes = [8, 4], strides = [1, 1]} : vector<8x32xf32> to vector<8x4xf32>
    %291 = vector.extract_strided_slice %118 {offsets = [0, 8], sizes = [8, 4], strides = [1, 1]} : vector<8x32xf32> to vector<8x4xf32>
    %292 = vector.extract_strided_slice %130 {offsets = [0, 8], sizes = [16, 4], strides = [1, 1]} : vector<16x32xf32> to vector<16x4xf32>
    %293 = vector.extract_strided_slice %142 {offsets = [0, 8], sizes = [16, 4], strides = [1, 1]} : vector<16x32xf32> to vector<16x4xf32>
    %294 = vector.extract_strided_slice %154 {offsets = [0, 8], sizes = [16, 4], strides = [1, 1]} : vector<16x32xf32> to vector<16x4xf32>
    %295 = arith.mulf %289, %289 : vector<8x4xf32>
    %296 = arith.mulf %290, %290 : vector<8x4xf32>
    %297 = arith.addf %295, %296 : vector<8x4xf32>
    %298 = arith.mulf %291, %291 : vector<8x4xf32>
    %299 = arith.addf %297, %298 : vector<8x4xf32>
    %cst_55 = arith.constant dense<0.000000e+00> : vector<8xf32>
    %300 = vector.multi_reduction <add>, %299, %cst_55 [1] : vector<8x4xf32> to vector<8xf32>
    %301 = vector.shape_cast %300 : vector<8xf32> to vector<8x1xf32>
    %302 = arith.mulf %292, %292 : vector<16x4xf32>
    %303 = arith.mulf %293, %293 : vector<16x4xf32>
    %304 = arith.addf %302, %303 : vector<16x4xf32>
    %305 = arith.mulf %294, %294 : vector<16x4xf32>
    %306 = arith.addf %304, %305 : vector<16x4xf32>
    %cst_56 = arith.constant dense<0.000000e+00> : vector<16xf32>
    %307 = vector.multi_reduction <add>, %306, %cst_56 [1] : vector<16x4xf32> to vector<16xf32>
    %308 = vector.shape_cast %307 : vector<16xf32> to vector<16x1xf32>
    %309 = vector.extract_strided_slice %45 {offsets = [0, 16], sizes = [8, 8], strides = [1, 1]} : vector<8x64xf32> to vector<8x8xf32>
    %cst_57 = arith.constant 2.000000e+00 : f32
    %310 = vector.broadcast %cst_57 : f32 to vector<8x4xf32>
    %311 = arith.mulf %310, %289 : vector<8x4xf32>
    %cst_58 = arith.constant 2.000000e+00 : f32
    %312 = vector.broadcast %cst_58 : f32 to vector<8x4xf32>
    %313 = arith.mulf %312, %290 : vector<8x4xf32>
    %cst_59 = arith.constant 2.000000e+00 : f32
    %314 = vector.broadcast %cst_59 : f32 to vector<8x4xf32>
    %315 = arith.mulf %314, %291 : vector<8x4xf32>
    %316 = tpu.concatenate %309, %311, %313, %315, %301, %185 in 1 : vector<8x8xf32>, vector<8x4xf32>, vector<8x4xf32>, vector<8x4xf32>, vector<8x1xf32>, vector<8x1xf32> -> vector<8x22xf32>
    %317 = vector.extract_strided_slice %46 {offsets = [0, 16], sizes = [16, 8], strides = [1, 1]} : vector<16x64xf32> to vector<16x8xf32>
    %318 = tpu.concatenate %317, %292, %293, %294, %186, %308 in 1 : vector<16x8xf32>, vector<16x4xf32>, vector<16x4xf32>, vector<16x4xf32>, vector<16x1xf32>, vector<16x1xf32> -> vector<16x22xf32>
    %cst_60 = arith.constant dense<0.000000e+00> : vector<8x16xf32>
    %319 = tpu.matmul %316, %318, %cst_60 {dimension_numbers = #tpu.dot_dimension_numbers<[1], [1], [0], [0], [0, 0, 1, 0], [], []>} : vector<8x22xf32>, vector<16x22xf32>, vector<8x16xf32> -> vector<8x16xf32>
    %cst_61 = arith.constant dense<0xFF800000> : vector<8xf32>
    %320 = vector.multi_reduction <maximumf>, %319, %cst_61 [1] : vector<8x16xf32> to vector<8xf32>
    %321 = vector.shape_cast %320 : vector<8xf32> to vector<8x1xf32>
    %322 = vector.broadcast %321 : vector<8x1xf32> to vector<8x16xf32>
    %323 = arith.subf %319, %322 : vector<8x16xf32>
    %324 = math.exp %323 : vector<8x16xf32>
    %cst_62 = arith.constant dense<0.000000e+00> : vector<8xf32>
    %325 = vector.multi_reduction <add>, %324, %cst_62 [1] : vector<8x16xf32> to vector<8xf32>
    %326 = vector.shape_cast %325 : vector<8xf32> to vector<8x1xf32>
    %327 = tpu.reciprocal %326 {approx = true} : vector<8x1xf32> -> vector<8x1xf32>
    %328 = vector.broadcast %327 : vector<8x1xf32> to vector<8x16xf32>
    %329 = arith.mulf %324, %328 : vector<8x16xf32>
    %330 = vector.extract_strided_slice %47 {offsets = [0, 16], sizes = [16, 8], strides = [1, 1]} : vector<16x64xf32> to vector<16x8xf32>
    %331 = vector.extract_strided_slice %164 {offsets = [0, 16], sizes = [16, 8], strides = [1, 1]} : vector<16x64xf32> to vector<16x8xf32>
    %332 = vector.extract_strided_slice %174 {offsets = [0, 16], sizes = [16, 8], strides = [1, 1]} : vector<16x64xf32> to vector<16x8xf32>
    %333 = vector.extract_strided_slice %184 {offsets = [0, 16], sizes = [16, 8], strides = [1, 1]} : vector<16x64xf32> to vector<16x8xf32>
    %334 = tpu.concatenate %330, %331, %332, %333 in 1 : vector<16x8xf32>, vector<16x8xf32>, vector<16x8xf32>, vector<16x8xf32> -> vector<16x32xf32>
    %cst_63 = arith.constant dense<0.000000e+00> : vector<8x32xf32>
    %335 = tpu.matmul %329, %334, %cst_63 {dimension_numbers = #tpu.dot_dimension_numbers<[1], [0], [0], [1], [0, 0, 1, 1], [], []>} : vector<8x16xf32>, vector<16x32xf32>, vector<8x32xf32> -> vector<8x32xf32>
    %336 = vector.extract_strided_slice %335 {offsets = [0, 0], sizes = [8, 8], strides = [1, 1]} : vector<8x32xf32> to vector<8x8xf32>
    %337 = vector.extract_strided_slice %335 {offsets = [0, 8], sizes = [8, 8], strides = [1, 1]} : vector<8x32xf32> to vector<8x8xf32>
    %338 = vector.extract_strided_slice %335 {offsets = [0, 16], sizes = [8, 8], strides = [1, 1]} : vector<8x32xf32> to vector<8x8xf32>
    %339 = vector.extract_strided_slice %335 {offsets = [0, 24], sizes = [8, 8], strides = [1, 1]} : vector<8x32xf32> to vector<8x8xf32>
    %340 = vector.extract_strided_slice %94 {offsets = [0, 12], sizes = [8, 4], strides = [1, 1]} : vector<8x32xf32> to vector<8x4xf32>
    %341 = vector.extract_strided_slice %106 {offsets = [0, 12], sizes = [8, 4], strides = [1, 1]} : vector<8x32xf32> to vector<8x4xf32>
    %342 = vector.extract_strided_slice %118 {offsets = [0, 12], sizes = [8, 4], strides = [1, 1]} : vector<8x32xf32> to vector<8x4xf32>
    %343 = vector.extract_strided_slice %130 {offsets = [0, 12], sizes = [16, 4], strides = [1, 1]} : vector<16x32xf32> to vector<16x4xf32>
    %344 = vector.extract_strided_slice %142 {offsets = [0, 12], sizes = [16, 4], strides = [1, 1]} : vector<16x32xf32> to vector<16x4xf32>
    %345 = vector.extract_strided_slice %154 {offsets = [0, 12], sizes = [16, 4], strides = [1, 1]} : vector<16x32xf32> to vector<16x4xf32>
    %346 = arith.mulf %340, %340 : vector<8x4xf32>
    %347 = arith.mulf %341, %341 : vector<8x4xf32>
    %348 = arith.addf %346, %347 : vector<8x4xf32>
    %349 = arith.mulf %342, %342 : vector<8x4xf32>
    %350 = arith.addf %348, %349 : vector<8x4xf32>
    %cst_64 = arith.constant dense<0.000000e+00> : vector<8xf32>
    %351 = vector.multi_reduction <add>, %350, %cst_64 [1] : vector<8x4xf32> to vector<8xf32>
    %352 = vector.shape_cast %351 : vector<8xf32> to vector<8x1xf32>
    %353 = arith.mulf %343, %343 : vector<16x4xf32>
    %354 = arith.mulf %344, %344 : vector<16x4xf32>
    %355 = arith.addf %353, %354 : vector<16x4xf32>
    %356 = arith.mulf %345, %345 : vector<16x4xf32>
    %357 = arith.addf %355, %356 : vector<16x4xf32>
    %cst_65 = arith.constant dense<0.000000e+00> : vector<16xf32>
    %358 = vector.multi_reduction <add>, %357, %cst_65 [1] : vector<16x4xf32> to vector<16xf32>
    %359 = vector.shape_cast %358 : vector<16xf32> to vector<16x1xf32>
    %360 = vector.extract_strided_slice %45 {offsets = [0, 24], sizes = [8, 8], strides = [1, 1]} : vector<8x64xf32> to vector<8x8xf32>
    %cst_66 = arith.constant 2.000000e+00 : f32
    %361 = vector.broadcast %cst_66 : f32 to vector<8x4xf32>
    %362 = arith.mulf %361, %340 : vector<8x4xf32>
    %cst_67 = arith.constant 2.000000e+00 : f32
    %363 = vector.broadcast %cst_67 : f32 to vector<8x4xf32>
    %364 = arith.mulf %363, %341 : vector<8x4xf32>
    %cst_68 = arith.constant 2.000000e+00 : f32
    %365 = vector.broadcast %cst_68 : f32 to vector<8x4xf32>
    %366 = arith.mulf %365, %342 : vector<8x4xf32>
    %367 = tpu.concatenate %360, %362, %364, %366, %352, %185 in 1 : vector<8x8xf32>, vector<8x4xf32>, vector<8x4xf32>, vector<8x4xf32>, vector<8x1xf32>, vector<8x1xf32> -> vector<8x22xf32>
    %368 = vector.extract_strided_slice %46 {offsets = [0, 24], sizes = [16, 8], strides = [1, 1]} : vector<16x64xf32> to vector<16x8xf32>
    %369 = tpu.concatenate %368, %343, %344, %345, %186, %359 in 1 : vector<16x8xf32>, vector<16x4xf32>, vector<16x4xf32>, vector<16x4xf32>, vector<16x1xf32>, vector<16x1xf32> -> vector<16x22xf32>
    %cst_69 = arith.constant dense<0.000000e+00> : vector<8x16xf32>
    %370 = tpu.matmul %367, %369, %cst_69 {dimension_numbers = #tpu.dot_dimension_numbers<[1], [1], [0], [0], [0, 0, 1, 0], [], []>} : vector<8x22xf32>, vector<16x22xf32>, vector<8x16xf32> -> vector<8x16xf32>
    %cst_70 = arith.constant dense<0xFF800000> : vector<8xf32>
    %371 = vector.multi_reduction <maximumf>, %370, %cst_70 [1] : vector<8x16xf32> to vector<8xf32>
    %372 = vector.shape_cast %371 : vector<8xf32> to vector<8x1xf32>
    %373 = vector.broadcast %372 : vector<8x1xf32> to vector<8x16xf32>
    %374 = arith.subf %370, %373 : vector<8x16xf32>
    %375 = math.exp %374 : vector<8x16xf32>
    %cst_71 = arith.constant dense<0.000000e+00> : vector<8xf32>
    %376 = vector.multi_reduction <add>, %375, %cst_71 [1] : vector<8x16xf32> to vector<8xf32>
    %377 = vector.shape_cast %376 : vector<8xf32> to vector<8x1xf32>
    %378 = tpu.reciprocal %377 {approx = true} : vector<8x1xf32> -> vector<8x1xf32>
    %379 = vector.broadcast %378 : vector<8x1xf32> to vector<8x16xf32>
    %380 = arith.mulf %375, %379 : vector<8x16xf32>
    %381 = vector.extract_strided_slice %47 {offsets = [0, 24], sizes = [16, 8], strides = [1, 1]} : vector<16x64xf32> to vector<16x8xf32>
    %382 = vector.extract_strided_slice %164 {offsets = [0, 24], sizes = [16, 8], strides = [1, 1]} : vector<16x64xf32> to vector<16x8xf32>
    %383 = vector.extract_strided_slice %174 {offsets = [0, 24], sizes = [16, 8], strides = [1, 1]} : vector<16x64xf32> to vector<16x8xf32>
    %384 = vector.extract_strided_slice %184 {offsets = [0, 24], sizes = [16, 8], strides = [1, 1]} : vector<16x64xf32> to vector<16x8xf32>
    %385 = tpu.concatenate %381, %382, %383, %384 in 1 : vector<16x8xf32>, vector<16x8xf32>, vector<16x8xf32>, vector<16x8xf32> -> vector<16x32xf32>
    %cst_72 = arith.constant dense<0.000000e+00> : vector<8x32xf32>
    %386 = tpu.matmul %380, %385, %cst_72 {dimension_numbers = #tpu.dot_dimension_numbers<[1], [0], [0], [1], [0, 0, 1, 1], [], []>} : vector<8x16xf32>, vector<16x32xf32>, vector<8x32xf32> -> vector<8x32xf32>
    %387 = vector.extract_strided_slice %386 {offsets = [0, 0], sizes = [8, 8], strides = [1, 1]} : vector<8x32xf32> to vector<8x8xf32>
    %388 = vector.extract_strided_slice %386 {offsets = [0, 8], sizes = [8, 8], strides = [1, 1]} : vector<8x32xf32> to vector<8x8xf32>
    %389 = vector.extract_strided_slice %386 {offsets = [0, 16], sizes = [8, 8], strides = [1, 1]} : vector<8x32xf32> to vector<8x8xf32>
    %390 = vector.extract_strided_slice %386 {offsets = [0, 24], sizes = [8, 8], strides = [1, 1]} : vector<8x32xf32> to vector<8x8xf32>
    %391 = vector.extract_strided_slice %94 {offsets = [0, 16], sizes = [8, 4], strides = [1, 1]} : vector<8x32xf32> to vector<8x4xf32>
    %392 = vector.extract_strided_slice %106 {offsets = [0, 16], sizes = [8, 4], strides = [1, 1]} : vector<8x32xf32> to vector<8x4xf32>
    %393 = vector.extract_strided_slice %118 {offsets = [0, 16], sizes = [8, 4], strides = [1, 1]} : vector<8x32xf32> to vector<8x4xf32>
    %394 = vector.extract_strided_slice %130 {offsets = [0, 16], sizes = [16, 4], strides = [1, 1]} : vector<16x32xf32> to vector<16x4xf32>
    %395 = vector.extract_strided_slice %142 {offsets = [0, 16], sizes = [16, 4], strides = [1, 1]} : vector<16x32xf32> to vector<16x4xf32>
    %396 = vector.extract_strided_slice %154 {offsets = [0, 16], sizes = [16, 4], strides = [1, 1]} : vector<16x32xf32> to vector<16x4xf32>
    %397 = arith.mulf %391, %391 : vector<8x4xf32>
    %398 = arith.mulf %392, %392 : vector<8x4xf32>
    %399 = arith.addf %397, %398 : vector<8x4xf32>
    %400 = arith.mulf %393, %393 : vector<8x4xf32>
    %401 = arith.addf %399, %400 : vector<8x4xf32>
    %cst_73 = arith.constant dense<0.000000e+00> : vector<8xf32>
    %402 = vector.multi_reduction <add>, %401, %cst_73 [1] : vector<8x4xf32> to vector<8xf32>
    %403 = vector.shape_cast %402 : vector<8xf32> to vector<8x1xf32>
    %404 = arith.mulf %394, %394 : vector<16x4xf32>
    %405 = arith.mulf %395, %395 : vector<16x4xf32>
    %406 = arith.addf %404, %405 : vector<16x4xf32>
    %407 = arith.mulf %396, %396 : vector<16x4xf32>
    %408 = arith.addf %406, %407 : vector<16x4xf32>
    %cst_74 = arith.constant dense<0.000000e+00> : vector<16xf32>
    %409 = vector.multi_reduction <add>, %408, %cst_74 [1] : vector<16x4xf32> to vector<16xf32>
    %410 = vector.shape_cast %409 : vector<16xf32> to vector<16x1xf32>
    %411 = vector.extract_strided_slice %45 {offsets = [0, 32], sizes = [8, 8], strides = [1, 1]} : vector<8x64xf32> to vector<8x8xf32>
    %cst_75 = arith.constant 2.000000e+00 : f32
    %412 = vector.broadcast %cst_75 : f32 to vector<8x4xf32>
    %413 = arith.mulf %412, %391 : vector<8x4xf32>
    %cst_76 = arith.constant 2.000000e+00 : f32
    %414 = vector.broadcast %cst_76 : f32 to vector<8x4xf32>
    %415 = arith.mulf %414, %392 : vector<8x4xf32>
    %cst_77 = arith.constant 2.000000e+00 : f32
    %416 = vector.broadcast %cst_77 : f32 to vector<8x4xf32>
    %417 = arith.mulf %416, %393 : vector<8x4xf32>
    %418 = tpu.concatenate %411, %413, %415, %417, %403, %185 in 1 : vector<8x8xf32>, vector<8x4xf32>, vector<8x4xf32>, vector<8x4xf32>, vector<8x1xf32>, vector<8x1xf32> -> vector<8x22xf32>
    %419 = vector.extract_strided_slice %46 {offsets = [0, 32], sizes = [16, 8], strides = [1, 1]} : vector<16x64xf32> to vector<16x8xf32>
    %420 = tpu.concatenate %419, %394, %395, %396, %186, %410 in 1 : vector<16x8xf32>, vector<16x4xf32>, vector<16x4xf32>, vector<16x4xf32>, vector<16x1xf32>, vector<16x1xf32> -> vector<16x22xf32>
    %cst_78 = arith.constant dense<0.000000e+00> : vector<8x16xf32>
    %421 = tpu.matmul %418, %420, %cst_78 {dimension_numbers = #tpu.dot_dimension_numbers<[1], [1], [0], [0], [0, 0, 1, 0], [], []>} : vector<8x22xf32>, vector<16x22xf32>, vector<8x16xf32> -> vector<8x16xf32>
    %cst_79 = arith.constant dense<0xFF800000> : vector<8xf32>
    %422 = vector.multi_reduction <maximumf>, %421, %cst_79 [1] : vector<8x16xf32> to vector<8xf32>
    %423 = vector.shape_cast %422 : vector<8xf32> to vector<8x1xf32>
    %424 = vector.broadcast %423 : vector<8x1xf32> to vector<8x16xf32>
    %425 = arith.subf %421, %424 : vector<8x16xf32>
    %426 = math.exp %425 : vector<8x16xf32>
    %cst_80 = arith.constant dense<0.000000e+00> : vector<8xf32>
    %427 = vector.multi_reduction <add>, %426, %cst_80 [1] : vector<8x16xf32> to vector<8xf32>
    %428 = vector.shape_cast %427 : vector<8xf32> to vector<8x1xf32>
    %429 = tpu.reciprocal %428 {approx = true} : vector<8x1xf32> -> vector<8x1xf32>
    %430 = vector.broadcast %429 : vector<8x1xf32> to vector<8x16xf32>
    %431 = arith.mulf %426, %430 : vector<8x16xf32>
    %432 = vector.extract_strided_slice %47 {offsets = [0, 32], sizes = [16, 8], strides = [1, 1]} : vector<16x64xf32> to vector<16x8xf32>
    %433 = vector.extract_strided_slice %164 {offsets = [0, 32], sizes = [16, 8], strides = [1, 1]} : vector<16x64xf32> to vector<16x8xf32>
    %434 = vector.extract_strided_slice %174 {offsets = [0, 32], sizes = [16, 8], strides = [1, 1]} : vector<16x64xf32> to vector<16x8xf32>
    %435 = vector.extract_strided_slice %184 {offsets = [0, 32], sizes = [16, 8], strides = [1, 1]} : vector<16x64xf32> to vector<16x8xf32>
    %436 = tpu.concatenate %432, %433, %434, %435 in 1 : vector<16x8xf32>, vector<16x8xf32>, vector<16x8xf32>, vector<16x8xf32> -> vector<16x32xf32>
    %cst_81 = arith.constant dense<0.000000e+00> : vector<8x32xf32>
    %437 = tpu.matmul %431, %436, %cst_81 {dimension_numbers = #tpu.dot_dimension_numbers<[1], [0], [0], [1], [0, 0, 1, 1], [], []>} : vector<8x16xf32>, vector<16x32xf32>, vector<8x32xf32> -> vector<8x32xf32>
    %438 = vector.extract_strided_slice %437 {offsets = [0, 0], sizes = [8, 8], strides = [1, 1]} : vector<8x32xf32> to vector<8x8xf32>
    %439 = vector.extract_strided_slice %437 {offsets = [0, 8], sizes = [8, 8], strides = [1, 1]} : vector<8x32xf32> to vector<8x8xf32>
    %440 = vector.extract_strided_slice %437 {offsets = [0, 16], sizes = [8, 8], strides = [1, 1]} : vector<8x32xf32> to vector<8x8xf32>
    %441 = vector.extract_strided_slice %437 {offsets = [0, 24], sizes = [8, 8], strides = [1, 1]} : vector<8x32xf32> to vector<8x8xf32>
    %442 = vector.extract_strided_slice %94 {offsets = [0, 20], sizes = [8, 4], strides = [1, 1]} : vector<8x32xf32> to vector<8x4xf32>
    %443 = vector.extract_strided_slice %106 {offsets = [0, 20], sizes = [8, 4], strides = [1, 1]} : vector<8x32xf32> to vector<8x4xf32>
    %444 = vector.extract_strided_slice %118 {offsets = [0, 20], sizes = [8, 4], strides = [1, 1]} : vector<8x32xf32> to vector<8x4xf32>
    %445 = vector.extract_strided_slice %130 {offsets = [0, 20], sizes = [16, 4], strides = [1, 1]} : vector<16x32xf32> to vector<16x4xf32>
    %446 = vector.extract_strided_slice %142 {offsets = [0, 20], sizes = [16, 4], strides = [1, 1]} : vector<16x32xf32> to vector<16x4xf32>
    %447 = vector.extract_strided_slice %154 {offsets = [0, 20], sizes = [16, 4], strides = [1, 1]} : vector<16x32xf32> to vector<16x4xf32>
    %448 = arith.mulf %442, %442 : vector<8x4xf32>
    %449 = arith.mulf %443, %443 : vector<8x4xf32>
    %450 = arith.addf %448, %449 : vector<8x4xf32>
    %451 = arith.mulf %444, %444 : vector<8x4xf32>
    %452 = arith.addf %450, %451 : vector<8x4xf32>
    %cst_82 = arith.constant dense<0.000000e+00> : vector<8xf32>
    %453 = vector.multi_reduction <add>, %452, %cst_82 [1] : vector<8x4xf32> to vector<8xf32>
    %454 = vector.shape_cast %453 : vector<8xf32> to vector<8x1xf32>
    %455 = arith.mulf %445, %445 : vector<16x4xf32>
    %456 = arith.mulf %446, %446 : vector<16x4xf32>
    %457 = arith.addf %455, %456 : vector<16x4xf32>
    %458 = arith.mulf %447, %447 : vector<16x4xf32>
    %459 = arith.addf %457, %458 : vector<16x4xf32>
    %cst_83 = arith.constant dense<0.000000e+00> : vector<16xf32>
    %460 = vector.multi_reduction <add>, %459, %cst_83 [1] : vector<16x4xf32> to vector<16xf32>
    %461 = vector.shape_cast %460 : vector<16xf32> to vector<16x1xf32>
    %462 = vector.extract_strided_slice %45 {offsets = [0, 40], sizes = [8, 8], strides = [1, 1]} : vector<8x64xf32> to vector<8x8xf32>
    %cst_84 = arith.constant 2.000000e+00 : f32
    %463 = vector.broadcast %cst_84 : f32 to vector<8x4xf32>
    %464 = arith.mulf %463, %442 : vector<8x4xf32>
    %cst_85 = arith.constant 2.000000e+00 : f32
    %465 = vector.broadcast %cst_85 : f32 to vector<8x4xf32>
    %466 = arith.mulf %465, %443 : vector<8x4xf32>
    %cst_86 = arith.constant 2.000000e+00 : f32
    %467 = vector.broadcast %cst_86 : f32 to vector<8x4xf32>
    %468 = arith.mulf %467, %444 : vector<8x4xf32>
    %469 = tpu.concatenate %462, %464, %466, %468, %454, %185 in 1 : vector<8x8xf32>, vector<8x4xf32>, vector<8x4xf32>, vector<8x4xf32>, vector<8x1xf32>, vector<8x1xf32> -> vector<8x22xf32>
    %470 = vector.extract_strided_slice %46 {offsets = [0, 40], sizes = [16, 8], strides = [1, 1]} : vector<16x64xf32> to vector<16x8xf32>
    %471 = tpu.concatenate %470, %445, %446, %447, %186, %461 in 1 : vector<16x8xf32>, vector<16x4xf32>, vector<16x4xf32>, vector<16x4xf32>, vector<16x1xf32>, vector<16x1xf32> -> vector<16x22xf32>
    %cst_87 = arith.constant dense<0.000000e+00> : vector<8x16xf32>
    %472 = tpu.matmul %469, %471, %cst_87 {dimension_numbers = #tpu.dot_dimension_numbers<[1], [1], [0], [0], [0, 0, 1, 0], [], []>} : vector<8x22xf32>, vector<16x22xf32>, vector<8x16xf32> -> vector<8x16xf32>
    %cst_88 = arith.constant dense<0xFF800000> : vector<8xf32>
    %473 = vector.multi_reduction <maximumf>, %472, %cst_88 [1] : vector<8x16xf32> to vector<8xf32>
    %474 = vector.shape_cast %473 : vector<8xf32> to vector<8x1xf32>
    %475 = vector.broadcast %474 : vector<8x1xf32> to vector<8x16xf32>
    %476 = arith.subf %472, %475 : vector<8x16xf32>
    %477 = math.exp %476 : vector<8x16xf32>
    %cst_89 = arith.constant dense<0.000000e+00> : vector<8xf32>
    %478 = vector.multi_reduction <add>, %477, %cst_89 [1] : vector<8x16xf32> to vector<8xf32>
    %479 = vector.shape_cast %478 : vector<8xf32> to vector<8x1xf32>
    %480 = tpu.reciprocal %479 {approx = true} : vector<8x1xf32> -> vector<8x1xf32>
    %481 = vector.broadcast %480 : vector<8x1xf32> to vector<8x16xf32>
    %482 = arith.mulf %477, %481 : vector<8x16xf32>
    %483 = vector.extract_strided_slice %47 {offsets = [0, 40], sizes = [16, 8], strides = [1, 1]} : vector<16x64xf32> to vector<16x8xf32>
    %484 = vector.extract_strided_slice %164 {offsets = [0, 40], sizes = [16, 8], strides = [1, 1]} : vector<16x64xf32> to vector<16x8xf32>
    %485 = vector.extract_strided_slice %174 {offsets = [0, 40], sizes = [16, 8], strides = [1, 1]} : vector<16x64xf32> to vector<16x8xf32>
    %486 = vector.extract_strided_slice %184 {offsets = [0, 40], sizes = [16, 8], strides = [1, 1]} : vector<16x64xf32> to vector<16x8xf32>
    %487 = tpu.concatenate %483, %484, %485, %486 in 1 : vector<16x8xf32>, vector<16x8xf32>, vector<16x8xf32>, vector<16x8xf32> -> vector<16x32xf32>
    %cst_90 = arith.constant dense<0.000000e+00> : vector<8x32xf32>
    %488 = tpu.matmul %482, %487, %cst_90 {dimension_numbers = #tpu.dot_dimension_numbers<[1], [0], [0], [1], [0, 0, 1, 1], [], []>} : vector<8x16xf32>, vector<16x32xf32>, vector<8x32xf32> -> vector<8x32xf32>
    %489 = vector.extract_strided_slice %488 {offsets = [0, 0], sizes = [8, 8], strides = [1, 1]} : vector<8x32xf32> to vector<8x8xf32>
    %490 = vector.extract_strided_slice %488 {offsets = [0, 8], sizes = [8, 8], strides = [1, 1]} : vector<8x32xf32> to vector<8x8xf32>
    %491 = vector.extract_strided_slice %488 {offsets = [0, 16], sizes = [8, 8], strides = [1, 1]} : vector<8x32xf32> to vector<8x8xf32>
    %492 = vector.extract_strided_slice %488 {offsets = [0, 24], sizes = [8, 8], strides = [1, 1]} : vector<8x32xf32> to vector<8x8xf32>
    %493 = vector.extract_strided_slice %94 {offsets = [0, 24], sizes = [8, 4], strides = [1, 1]} : vector<8x32xf32> to vector<8x4xf32>
    %494 = vector.extract_strided_slice %106 {offsets = [0, 24], sizes = [8, 4], strides = [1, 1]} : vector<8x32xf32> to vector<8x4xf32>
    %495 = vector.extract_strided_slice %118 {offsets = [0, 24], sizes = [8, 4], strides = [1, 1]} : vector<8x32xf32> to vector<8x4xf32>
    %496 = vector.extract_strided_slice %130 {offsets = [0, 24], sizes = [16, 4], strides = [1, 1]} : vector<16x32xf32> to vector<16x4xf32>
    %497 = vector.extract_strided_slice %142 {offsets = [0, 24], sizes = [16, 4], strides = [1, 1]} : vector<16x32xf32> to vector<16x4xf32>
    %498 = vector.extract_strided_slice %154 {offsets = [0, 24], sizes = [16, 4], strides = [1, 1]} : vector<16x32xf32> to vector<16x4xf32>
    %499 = arith.mulf %493, %493 : vector<8x4xf32>
    %500 = arith.mulf %494, %494 : vector<8x4xf32>
    %501 = arith.addf %499, %500 : vector<8x4xf32>
    %502 = arith.mulf %495, %495 : vector<8x4xf32>
    %503 = arith.addf %501, %502 : vector<8x4xf32>
    %cst_91 = arith.constant dense<0.000000e+00> : vector<8xf32>
    %504 = vector.multi_reduction <add>, %503, %cst_91 [1] : vector<8x4xf32> to vector<8xf32>
    %505 = vector.shape_cast %504 : vector<8xf32> to vector<8x1xf32>
    %506 = arith.mulf %496, %496 : vector<16x4xf32>
    %507 = arith.mulf %497, %497 : vector<16x4xf32>
    %508 = arith.addf %506, %507 : vector<16x4xf32>
    %509 = arith.mulf %498, %498 : vector<16x4xf32>
    %510 = arith.addf %508, %509 : vector<16x4xf32>
    %cst_92 = arith.constant dense<0.000000e+00> : vector<16xf32>
    %511 = vector.multi_reduction <add>, %510, %cst_92 [1] : vector<16x4xf32> to vector<16xf32>
    %512 = vector.shape_cast %511 : vector<16xf32> to vector<16x1xf32>
    %513 = vector.extract_strided_slice %45 {offsets = [0, 48], sizes = [8, 8], strides = [1, 1]} : vector<8x64xf32> to vector<8x8xf32>
    %cst_93 = arith.constant 2.000000e+00 : f32
    %514 = vector.broadcast %cst_93 : f32 to vector<8x4xf32>
    %515 = arith.mulf %514, %493 : vector<8x4xf32>
    %cst_94 = arith.constant 2.000000e+00 : f32
    %516 = vector.broadcast %cst_94 : f32 to vector<8x4xf32>
    %517 = arith.mulf %516, %494 : vector<8x4xf32>
    %cst_95 = arith.constant 2.000000e+00 : f32
    %518 = vector.broadcast %cst_95 : f32 to vector<8x4xf32>
    %519 = arith.mulf %518, %495 : vector<8x4xf32>
    %520 = tpu.concatenate %513, %515, %517, %519, %505, %185 in 1 : vector<8x8xf32>, vector<8x4xf32>, vector<8x4xf32>, vector<8x4xf32>, vector<8x1xf32>, vector<8x1xf32> -> vector<8x22xf32>
    %521 = vector.extract_strided_slice %46 {offsets = [0, 48], sizes = [16, 8], strides = [1, 1]} : vector<16x64xf32> to vector<16x8xf32>
    %522 = tpu.concatenate %521, %496, %497, %498, %186, %512 in 1 : vector<16x8xf32>, vector<16x4xf32>, vector<16x4xf32>, vector<16x4xf32>, vector<16x1xf32>, vector<16x1xf32> -> vector<16x22xf32>
    %cst_96 = arith.constant dense<0.000000e+00> : vector<8x16xf32>
    %523 = tpu.matmul %520, %522, %cst_96 {dimension_numbers = #tpu.dot_dimension_numbers<[1], [1], [0], [0], [0, 0, 1, 0], [], []>} : vector<8x22xf32>, vector<16x22xf32>, vector<8x16xf32> -> vector<8x16xf32>
    %cst_97 = arith.constant dense<0xFF800000> : vector<8xf32>
    %524 = vector.multi_reduction <maximumf>, %523, %cst_97 [1] : vector<8x16xf32> to vector<8xf32>
    %525 = vector.shape_cast %524 : vector<8xf32> to vector<8x1xf32>
    %526 = vector.broadcast %525 : vector<8x1xf32> to vector<8x16xf32>
    %527 = arith.subf %523, %526 : vector<8x16xf32>
    %528 = math.exp %527 : vector<8x16xf32>
    %cst_98 = arith.constant dense<0.000000e+00> : vector<8xf32>
    %529 = vector.multi_reduction <add>, %528, %cst_98 [1] : vector<8x16xf32> to vector<8xf32>
    %530 = vector.shape_cast %529 : vector<8xf32> to vector<8x1xf32>
    %531 = tpu.reciprocal %530 {approx = true} : vector<8x1xf32> -> vector<8x1xf32>
    %532 = vector.broadcast %531 : vector<8x1xf32> to vector<8x16xf32>
    %533 = arith.mulf %528, %532 : vector<8x16xf32>
    %534 = vector.extract_strided_slice %47 {offsets = [0, 48], sizes = [16, 8], strides = [1, 1]} : vector<16x64xf32> to vector<16x8xf32>
    %535 = vector.extract_strided_slice %164 {offsets = [0, 48], sizes = [16, 8], strides = [1, 1]} : vector<16x64xf32> to vector<16x8xf32>
    %536 = vector.extract_strided_slice %174 {offsets = [0, 48], sizes = [16, 8], strides = [1, 1]} : vector<16x64xf32> to vector<16x8xf32>
    %537 = vector.extract_strided_slice %184 {offsets = [0, 48], sizes = [16, 8], strides = [1, 1]} : vector<16x64xf32> to vector<16x8xf32>
    %538 = tpu.concatenate %534, %535, %536, %537 in 1 : vector<16x8xf32>, vector<16x8xf32>, vector<16x8xf32>, vector<16x8xf32> -> vector<16x32xf32>
    %cst_99 = arith.constant dense<0.000000e+00> : vector<8x32xf32>
    %539 = tpu.matmul %533, %538, %cst_99 {dimension_numbers = #tpu.dot_dimension_numbers<[1], [0], [0], [1], [0, 0, 1, 1], [], []>} : vector<8x16xf32>, vector<16x32xf32>, vector<8x32xf32> -> vector<8x32xf32>
    %540 = vector.extract_strided_slice %539 {offsets = [0, 0], sizes = [8, 8], strides = [1, 1]} : vector<8x32xf32> to vector<8x8xf32>
    %541 = vector.extract_strided_slice %539 {offsets = [0, 8], sizes = [8, 8], strides = [1, 1]} : vector<8x32xf32> to vector<8x8xf32>
    %542 = vector.extract_strided_slice %539 {offsets = [0, 16], sizes = [8, 8], strides = [1, 1]} : vector<8x32xf32> to vector<8x8xf32>
    %543 = vector.extract_strided_slice %539 {offsets = [0, 24], sizes = [8, 8], strides = [1, 1]} : vector<8x32xf32> to vector<8x8xf32>
    %544 = vector.extract_strided_slice %94 {offsets = [0, 28], sizes = [8, 4], strides = [1, 1]} : vector<8x32xf32> to vector<8x4xf32>
    %545 = vector.extract_strided_slice %106 {offsets = [0, 28], sizes = [8, 4], strides = [1, 1]} : vector<8x32xf32> to vector<8x4xf32>
    %546 = vector.extract_strided_slice %118 {offsets = [0, 28], sizes = [8, 4], strides = [1, 1]} : vector<8x32xf32> to vector<8x4xf32>
    %547 = vector.extract_strided_slice %130 {offsets = [0, 28], sizes = [16, 4], strides = [1, 1]} : vector<16x32xf32> to vector<16x4xf32>
    %548 = vector.extract_strided_slice %142 {offsets = [0, 28], sizes = [16, 4], strides = [1, 1]} : vector<16x32xf32> to vector<16x4xf32>
    %549 = vector.extract_strided_slice %154 {offsets = [0, 28], sizes = [16, 4], strides = [1, 1]} : vector<16x32xf32> to vector<16x4xf32>
    %550 = arith.mulf %544, %544 : vector<8x4xf32>
    %551 = arith.mulf %545, %545 : vector<8x4xf32>
    %552 = arith.addf %550, %551 : vector<8x4xf32>
    %553 = arith.mulf %546, %546 : vector<8x4xf32>
    %554 = arith.addf %552, %553 : vector<8x4xf32>
    %cst_100 = arith.constant dense<0.000000e+00> : vector<8xf32>
    %555 = vector.multi_reduction <add>, %554, %cst_100 [1] : vector<8x4xf32> to vector<8xf32>
    %556 = vector.shape_cast %555 : vector<8xf32> to vector<8x1xf32>
    %557 = arith.mulf %547, %547 : vector<16x4xf32>
    %558 = arith.mulf %548, %548 : vector<16x4xf32>
    %559 = arith.addf %557, %558 : vector<16x4xf32>
    %560 = arith.mulf %549, %549 : vector<16x4xf32>
    %561 = arith.addf %559, %560 : vector<16x4xf32>
    %cst_101 = arith.constant dense<0.000000e+00> : vector<16xf32>
    %562 = vector.multi_reduction <add>, %561, %cst_101 [1] : vector<16x4xf32> to vector<16xf32>
    %563 = vector.shape_cast %562 : vector<16xf32> to vector<16x1xf32>
    %564 = vector.extract_strided_slice %45 {offsets = [0, 56], sizes = [8, 8], strides = [1, 1]} : vector<8x64xf32> to vector<8x8xf32>
    %cst_102 = arith.constant 2.000000e+00 : f32
    %565 = vector.broadcast %cst_102 : f32 to vector<8x4xf32>
    %566 = arith.mulf %565, %544 : vector<8x4xf32>
    %cst_103 = arith.constant 2.000000e+00 : f32
    %567 = vector.broadcast %cst_103 : f32 to vector<8x4xf32>
    %568 = arith.mulf %567, %545 : vector<8x4xf32>
    %cst_104 = arith.constant 2.000000e+00 : f32
    %569 = vector.broadcast %cst_104 : f32 to vector<8x4xf32>
    %570 = arith.mulf %569, %546 : vector<8x4xf32>
    %571 = tpu.concatenate %564, %566, %568, %570, %556, %185 in 1 : vector<8x8xf32>, vector<8x4xf32>, vector<8x4xf32>, vector<8x4xf32>, vector<8x1xf32>, vector<8x1xf32> -> vector<8x22xf32>
    %572 = vector.extract_strided_slice %46 {offsets = [0, 56], sizes = [16, 8], strides = [1, 1]} : vector<16x64xf32> to vector<16x8xf32>
    %573 = tpu.concatenate %572, %547, %548, %549, %186, %563 in 1 : vector<16x8xf32>, vector<16x4xf32>, vector<16x4xf32>, vector<16x4xf32>, vector<16x1xf32>, vector<16x1xf32> -> vector<16x22xf32>
    %cst_105 = arith.constant dense<0.000000e+00> : vector<8x16xf32>
    %574 = tpu.matmul %571, %573, %cst_105 {dimension_numbers = #tpu.dot_dimension_numbers<[1], [1], [0], [0], [0, 0, 1, 0], [], []>} : vector<8x22xf32>, vector<16x22xf32>, vector<8x16xf32> -> vector<8x16xf32>
    %cst_106 = arith.constant dense<0xFF800000> : vector<8xf32>
    %575 = vector.multi_reduction <maximumf>, %574, %cst_106 [1] : vector<8x16xf32> to vector<8xf32>
    %576 = vector.shape_cast %575 : vector<8xf32> to vector<8x1xf32>
    %577 = vector.broadcast %576 : vector<8x1xf32> to vector<8x16xf32>
    %578 = arith.subf %574, %577 : vector<8x16xf32>
    %579 = math.exp %578 : vector<8x16xf32>
    %cst_107 = arith.constant dense<0.000000e+00> : vector<8xf32>
    %580 = vector.multi_reduction <add>, %579, %cst_107 [1] : vector<8x16xf32> to vector<8xf32>
    %581 = vector.shape_cast %580 : vector<8xf32> to vector<8x1xf32>
    %582 = tpu.reciprocal %581 {approx = true} : vector<8x1xf32> -> vector<8x1xf32>
    %583 = vector.broadcast %582 : vector<8x1xf32> to vector<8x16xf32>
    %584 = arith.mulf %579, %583 : vector<8x16xf32>
    %585 = vector.extract_strided_slice %47 {offsets = [0, 56], sizes = [16, 8], strides = [1, 1]} : vector<16x64xf32> to vector<16x8xf32>
    %586 = vector.extract_strided_slice %164 {offsets = [0, 56], sizes = [16, 8], strides = [1, 1]} : vector<16x64xf32> to vector<16x8xf32>
    %587 = vector.extract_strided_slice %174 {offsets = [0, 56], sizes = [16, 8], strides = [1, 1]} : vector<16x64xf32> to vector<16x8xf32>
    %588 = vector.extract_strided_slice %184 {offsets = [0, 56], sizes = [16, 8], strides = [1, 1]} : vector<16x64xf32> to vector<16x8xf32>
    %589 = tpu.concatenate %585, %586, %587, %588 in 1 : vector<16x8xf32>, vector<16x8xf32>, vector<16x8xf32>, vector<16x8xf32> -> vector<16x32xf32>
    %cst_108 = arith.constant dense<0.000000e+00> : vector<8x32xf32>
    %590 = tpu.matmul %584, %589, %cst_108 {dimension_numbers = #tpu.dot_dimension_numbers<[1], [0], [0], [1], [0, 0, 1, 1], [], []>} : vector<8x16xf32>, vector<16x32xf32>, vector<8x32xf32> -> vector<8x32xf32>
    %591 = vector.extract_strided_slice %590 {offsets = [0, 0], sizes = [8, 8], strides = [1, 1]} : vector<8x32xf32> to vector<8x8xf32>
    %592 = vector.extract_strided_slice %590 {offsets = [0, 8], sizes = [8, 8], strides = [1, 1]} : vector<8x32xf32> to vector<8x8xf32>
    %593 = vector.extract_strided_slice %590 {offsets = [0, 16], sizes = [8, 8], strides = [1, 1]} : vector<8x32xf32> to vector<8x8xf32>
    %594 = vector.extract_strided_slice %590 {offsets = [0, 24], sizes = [8, 8], strides = [1, 1]} : vector<8x32xf32> to vector<8x8xf32>
    %595 = tpu.concatenate %234, %285, %336, %387, %438, %489, %540, %591 in 1 : vector<8x8xf32>, vector<8x8xf32>, vector<8x8xf32>, vector<8x8xf32>, vector<8x8xf32>, vector<8x8xf32>, vector<8x8xf32>, vector<8x8xf32> -> vector<8x64xf32>
    %596 = tpu.concatenate %235, %286, %337, %388, %439, %490, %541, %592 in 1 : vector<8x8xf32>, vector<8x8xf32>, vector<8x8xf32>, vector<8x8xf32>, vector<8x8xf32>, vector<8x8xf32>, vector<8x8xf32>, vector<8x8xf32> -> vector<8x64xf32>
    %597 = tpu.concatenate %236, %287, %338, %389, %440, %491, %542, %593 in 1 : vector<8x8xf32>, vector<8x8xf32>, vector<8x8xf32>, vector<8x8xf32>, vector<8x8xf32>, vector<8x8xf32>, vector<8x8xf32>, vector<8x8xf32> -> vector<8x64xf32>
    %598 = tpu.concatenate %237, %288, %339, %390, %441, %492, %543, %594 in 1 : vector<8x8xf32>, vector<8x8xf32>, vector<8x8xf32>, vector<8x8xf32>, vector<8x8xf32>, vector<8x8xf32>, vector<8x8xf32>, vector<8x8xf32> -> vector<8x64xf32>
    %599 = vector.broadcast %68 : vector<8x1xf32> to vector<8x64xf32>
    %600 = arith.subf %596, %599 : vector<8x64xf32>
    %601 = vector.broadcast %69 : vector<8x1xf32> to vector<8x64xf32>
    %602 = arith.subf %597, %601 : vector<8x64xf32>
    %603 = vector.broadcast %70 : vector<8x1xf32> to vector<8x64xf32>
    %604 = arith.subf %598, %603 : vector<8x64xf32>
    %605 = vector.broadcast %59 : vector<8x1xf32> to vector<8x64xf32>
    %606 = arith.mulf %605, %600 : vector<8x64xf32>
    %607 = vector.broadcast %62 : vector<8x1xf32> to vector<8x64xf32>
    %608 = arith.mulf %607, %602 : vector<8x64xf32>
    %609 = arith.addf %606, %608 : vector<8x64xf32>
    %610 = vector.broadcast %65 : vector<8x1xf32> to vector<8x64xf32>
    %611 = arith.mulf %610, %604 : vector<8x64xf32>
    %612 = arith.addf %609, %611 : vector<8x64xf32>
    %613 = vector.broadcast %60 : vector<8x1xf32> to vector<8x64xf32>
    %614 = arith.mulf %613, %600 : vector<8x64xf32>
    %615 = vector.broadcast %63 : vector<8x1xf32> to vector<8x64xf32>
    %616 = arith.mulf %615, %602 : vector<8x64xf32>
    %617 = arith.addf %614, %616 : vector<8x64xf32>
    %618 = vector.broadcast %66 : vector<8x1xf32> to vector<8x64xf32>
    %619 = arith.mulf %618, %604 : vector<8x64xf32>
    %620 = arith.addf %617, %619 : vector<8x64xf32>
    %621 = vector.broadcast %61 : vector<8x1xf32> to vector<8x64xf32>
    %622 = arith.mulf %621, %600 : vector<8x64xf32>
    %623 = vector.broadcast %64 : vector<8x1xf32> to vector<8x64xf32>
    %624 = arith.mulf %623, %602 : vector<8x64xf32>
    %625 = arith.addf %622, %624 : vector<8x64xf32>
    %626 = vector.broadcast %67 : vector<8x1xf32> to vector<8x64xf32>
    %627 = arith.mulf %626, %604 : vector<8x64xf32>
    %628 = arith.addf %625, %627 : vector<8x64xf32>
    %629 = arith.mulf %612, %612 : vector<8x64xf32>
    %630 = arith.mulf %620, %620 : vector<8x64xf32>
    %631 = arith.addf %629, %630 : vector<8x64xf32>
    %632 = arith.mulf %628, %628 : vector<8x64xf32>
    %633 = arith.addf %631, %632 : vector<8x64xf32>
    %cst_109 = arith.constant 9.99999993E-9 : f32
    %634 = vector.broadcast %cst_109 : f32 to vector<8x64xf32>
    %635 = arith.addf %633, %634 : vector<8x64xf32>
    %636 = math.sqrt %635 : vector<8x64xf32>
    %637 = tpu.concatenate %595, %612, %620, %628, %636 in 1 : vector<8x64xf32>, vector<8x64xf32>, vector<8x64xf32>, vector<8x64xf32>, vector<8x64xf32> -> vector<8x320xf32>
    %c0_110 = arith.constant 0 : index
    %c0_111 = arith.constant 0 : index
    %c0_112 = arith.constant 0 : index
    %638 = vector.load %arg12[%c0_110, %c0_111, %c0_112] : memref<1x320x32xf32, #tpu.memory_space<vmem>>, vector<1x320x32xf32>
    %639 = vector.shape_cast %638 : vector<1x320x32xf32> to vector<320x32xf32>
    %cst_113 = arith.constant dense<0.000000e+00> : vector<8x32xf32>
    %640 = tpu.matmul %637, %639, %cst_113 {dimension_numbers = #tpu.dot_dimension_numbers<[1], [0], [0], [1], [0, 0, 1, 1], [], []>} : vector<8x320xf32>, vector<320x32xf32>, vector<8x32xf32> -> vector<8x32xf32>
    %641 = arith.addf %3, %640 : vector<8x32xf32>
    %c0_114 = arith.constant 0 : index
    %c0_115 = arith.constant 0 : index
    %c0_116 = arith.constant 0 : index
    %642 = vector.load %arg13[%c0_114, %c0_115, %c0_116] : memref<1x1x32xf32, #tpu.memory_space<vmem>>, vector<1x1x32xf32>
    %643 = vector.shape_cast %642 : vector<1x1x32xf32> to vector<1x32xf32>
    %644 = vector.broadcast %643 : vector<1x32xf32> to vector<8x32xf32>
    %645 = arith.addf %641, %644 : vector<8x32xf32>
    %cst_117 = arith.constant dense<0.000000e+00> : vector<8xf32>
    %646 = vector.multi_reduction <add>, %645, %cst_117 [1] : vector<8x32xf32> to vector<8xf32>
    %647 = vector.shape_cast %646 : vector<8xf32> to vector<8x1xf32>
    %cst_118 = arith.constant 3.200000e+01 : f32
    %648 = vector.broadcast %cst_118 : f32 to vector<8x1xf32>
    %649 = arith.divf %647, %648 : vector<8x1xf32>
    %650 = vector.broadcast %649 : vector<8x1xf32> to vector<8x32xf32>
    %651 = arith.subf %645, %650 : vector<8x32xf32>
    %652 = arith.mulf %651, %651 : vector<8x32xf32>
    %cst_119 = arith.constant dense<0.000000e+00> : vector<8xf32>
    %653 = vector.multi_reduction <add>, %652, %cst_119 [1] : vector<8x32xf32> to vector<8xf32>
    %654 = vector.shape_cast %653 : vector<8xf32> to vector<8x1xf32>
    %cst_120 = arith.constant 3.200000e+01 : f32
    %655 = vector.broadcast %cst_120 : f32 to vector<8x1xf32>
    %656 = arith.divf %654, %655 : vector<8x1xf32>
    %657 = vector.broadcast %649 : vector<8x1xf32> to vector<8x32xf32>
    %658 = arith.subf %645, %657 : vector<8x32xf32>
    %cst_121 = arith.constant 9.99999974E-6 : f32
    %659 = vector.broadcast %cst_121 : f32 to vector<8x1xf32>
    %660 = arith.addf %656, %659 : vector<8x1xf32>
    %661 = math.rsqrt %660 : vector<8x1xf32>
    %662 = vector.broadcast %661 : vector<8x1xf32> to vector<8x32xf32>
    %663 = arith.mulf %658, %662 : vector<8x32xf32>
    %c0_122 = arith.constant 0 : index
    %c0_123 = arith.constant 0 : index
    %c0_124 = arith.constant 0 : index
    %664 = vector.load %arg14[%c0_122, %c0_123, %c0_124] : memref<1x1x32xf32, #tpu.memory_space<vmem>>, vector<1x1x32xf32>
    %665 = vector.shape_cast %664 : vector<1x1x32xf32> to vector<1x32xf32>
    %666 = vector.broadcast %665 : vector<1x32xf32> to vector<8x32xf32>
    %667 = arith.mulf %663, %666 : vector<8x32xf32>
    %c0_125 = arith.constant 0 : index
    %c0_126 = arith.constant 0 : index
    %c0_127 = arith.constant 0 : index
    %668 = vector.load %arg15[%c0_125, %c0_126, %c0_127] : memref<1x1x32xf32, #tpu.memory_space<vmem>>, vector<1x1x32xf32>
    %669 = vector.shape_cast %668 : vector<1x1x32xf32> to vector<1x32xf32>
    %670 = vector.broadcast %669 : vector<1x32xf32> to vector<8x32xf32>
    %671 = arith.addf %667, %670 : vector<8x32xf32>
    %c0_128 = arith.constant 0 : index
    %c0_129 = arith.constant 0 : index
    %c0_130 = arith.constant 0 : index
    %672 = vector.load %arg16[%c0_128, %c0_129, %c0_130] : memref<1x32x128xf32, #tpu.memory_space<vmem>>, vector<1x32x128xf32>
    %673 = vector.shape_cast %672 : vector<1x32x128xf32> to vector<32x128xf32>
    %cst_131 = arith.constant dense<0.000000e+00> : vector<8x128xf32>
    %674 = tpu.matmul %671, %673, %cst_131 {dimension_numbers = #tpu.dot_dimension_numbers<[1], [0], [0], [1], [0, 0, 1, 1], [], []>} : vector<8x32xf32>, vector<32x128xf32>, vector<8x128xf32> -> vector<8x128xf32>
    %c0_132 = arith.constant 0 : index
    %c0_133 = arith.constant 0 : index
    %c0_134 = arith.constant 0 : index
    %675 = vector.load %arg17[%c0_132, %c0_133, %c0_134] : memref<1x1x128xf32, #tpu.memory_space<vmem>>, vector<1x1x128xf32>
    %676 = vector.shape_cast %675 : vector<1x1x128xf32> to vector<1x128xf32>
    %677 = vector.broadcast %676 : vector<1x128xf32> to vector<8x128xf32>
    %678 = arith.addf %674, %677 : vector<8x128xf32>
    %cst_135 = arith.constant 0.000000e+00 : f32
    %679 = vector.broadcast %cst_135 : f32 to vector<8x128xf32>
    %680 = arith.maximumf %678, %679 : vector<8x128xf32>
    %c0_136 = arith.constant 0 : index
    %c0_137 = arith.constant 0 : index
    %c0_138 = arith.constant 0 : index
    %681 = vector.load %arg18[%c0_136, %c0_137, %c0_138] : memref<1x128x32xf32, #tpu.memory_space<vmem>>, vector<1x128x32xf32>
    %682 = vector.shape_cast %681 : vector<1x128x32xf32> to vector<128x32xf32>
    %cst_139 = arith.constant dense<0.000000e+00> : vector<8x32xf32>
    %683 = tpu.matmul %680, %682, %cst_139 {dimension_numbers = #tpu.dot_dimension_numbers<[1], [0], [0], [1], [0, 0, 1, 1], [], []>} : vector<8x128xf32>, vector<128x32xf32>, vector<8x32xf32> -> vector<8x32xf32>
    %684 = arith.addf %645, %683 : vector<8x32xf32>
    %c0_140 = arith.constant 0 : index
    %c0_141 = arith.constant 0 : index
    %c0_142 = arith.constant 0 : index
    %685 = vector.load %arg19[%c0_140, %c0_141, %c0_142] : memref<1x1x32xf32, #tpu.memory_space<vmem>>, vector<1x1x32xf32>
    %686 = vector.shape_cast %685 : vector<1x1x32xf32> to vector<1x32xf32>
    %687 = vector.broadcast %686 : vector<1x32xf32> to vector<8x32xf32>
    %688 = arith.addf %684, %687 : vector<8x32xf32>
    %689 = tpu.concatenate %688, %4 in 0 : vector<8x32xf32>, vector<16x32xf32> -> vector<24x32xf32>
    %c0_143 = arith.constant 0 : index
    %c0_144 = arith.constant 0 : index
    %c0_145 = arith.constant 0 : index
    %690 = vector.load %arg20[%c0_143, %c0_144, %c0_145] : memref<1x32x32xf32, #tpu.memory_space<vmem>>, vector<1x32x32xf32>
    %691 = vector.shape_cast %690 : vector<1x32x32xf32> to vector<32x32xf32>
    %cst_146 = arith.constant dense<0.000000e+00> : vector<24x32xf32>
    %692 = tpu.matmul %689, %691, %cst_146 {dimension_numbers = #tpu.dot_dimension_numbers<[1], [0], [0], [1], [0, 0, 1, 1], [], []>} : vector<24x32xf32>, vector<32x32xf32>, vector<24x32xf32> -> vector<24x32xf32>
    %c0_147 = arith.constant 0 : index
    %c0_148 = arith.constant 0 : index
    %c0_149 = arith.constant 0 : index
    %693 = vector.load %arg21[%c0_147, %c0_148, %c0_149] : memref<1x1x32xf32, #tpu.memory_space<vmem>>, vector<1x1x32xf32>
    %694 = vector.shape_cast %693 : vector<1x1x32xf32> to vector<1x32xf32>
    %695 = vector.broadcast %694 : vector<1x32xf32> to vector<24x32xf32>
    %696 = arith.addf %692, %695 : vector<24x32xf32>
    %cst_150 = arith.constant 0.353553385 : f32
    %697 = vector.broadcast %cst_150 : f32 to vector<24x32xf32>
    %698 = arith.mulf %696, %697 : vector<24x32xf32>
    %c0_151 = arith.constant 0 : index
    %c0_152 = arith.constant 0 : index
    %c0_153 = arith.constant 0 : index
    %699 = vector.load %arg22[%c0_151, %c0_152, %c0_153] : memref<1x32x64xf32, #tpu.memory_space<vmem>>, vector<1x32x64xf32>
    %700 = vector.shape_cast %699 : vector<1x32x64xf32> to vector<32x64xf32>
    %cst_154 = arith.constant dense<0.000000e+00> : vector<8x64xf32>
    %701 = tpu.matmul %6, %700, %cst_154 {dimension_numbers = #tpu.dot_dimension_numbers<[1], [0], [0], [1], [0, 0, 1, 1], [], []>} : vector<8x32xf32>, vector<32x64xf32>, vector<8x64xf32> -> vector<8x64xf32>
    %c0_155 = arith.constant 0 : index
    %c0_156 = arith.constant 0 : index
    %c0_157 = arith.constant 0 : index
    %702 = vector.load %arg23[%c0_155, %c0_156, %c0_157] : memref<1x1x64xf32, #tpu.memory_space<vmem>>, vector<1x1x64xf32>
    %703 = vector.shape_cast %702 : vector<1x1x64xf32> to vector<1x64xf32>
    %704 = vector.broadcast %703 : vector<1x64xf32> to vector<8x64xf32>
    %705 = arith.addf %701, %704 : vector<8x64xf32>
    %706 = vector.extract_strided_slice %705 {offsets = [0, 0], sizes = [8, 32], strides = [1, 1]} : vector<8x64xf32> to vector<8x32xf32>
    %707 = vector.extract_strided_slice %705 {offsets = [0, 32], sizes = [8, 32], strides = [1, 1]} : vector<8x64xf32> to vector<8x32xf32>
    %708 = vector.extract_strided_slice %698 {offsets = [0, 0], sizes = [24, 8], strides = [1, 1]} : vector<24x32xf32> to vector<24x8xf32>
    %709 = vector.extract_strided_slice %706 {offsets = [0, 0], sizes = [8, 8], strides = [1, 1]} : vector<8x32xf32> to vector<8x8xf32>
    %cst_158 = arith.constant dense<0.000000e+00> : vector<24x8xf32>
    %710 = tpu.matmul %708, %709, %cst_158 {dimension_numbers = #tpu.dot_dimension_numbers<[1], [1], [0], [0], [0, 0, 1, 0], [], []>} : vector<24x8xf32>, vector<8x8xf32>, vector<24x8xf32> -> vector<24x8xf32>
    %cst_159 = arith.constant dense<0xFF800000> : vector<24xf32>
    %711 = vector.multi_reduction <maximumf>, %710, %cst_159 [1] : vector<24x8xf32> to vector<24xf32>
    %712 = vector.shape_cast %711 : vector<24xf32> to vector<24x1xf32>
    %713 = vector.broadcast %712 : vector<24x1xf32> to vector<24x8xf32>
    %714 = arith.subf %710, %713 : vector<24x8xf32>
    %715 = math.exp %714 : vector<24x8xf32>
    %cst_160 = arith.constant dense<0.000000e+00> : vector<24xf32>
    %716 = vector.multi_reduction <add>, %715, %cst_160 [1] : vector<24x8xf32> to vector<24xf32>
    %717 = vector.shape_cast %716 : vector<24xf32> to vector<24x1xf32>
    %718 = tpu.reciprocal %717 {approx = true} : vector<24x1xf32> -> vector<24x1xf32>
    %719 = vector.broadcast %718 : vector<24x1xf32> to vector<24x8xf32>
    %720 = arith.mulf %715, %719 : vector<24x8xf32>
    %721 = vector.extract_strided_slice %707 {offsets = [0, 0], sizes = [8, 8], strides = [1, 1]} : vector<8x32xf32> to vector<8x8xf32>
    %cst_161 = arith.constant dense<0.000000e+00> : vector<24x8xf32>
    %722 = tpu.matmul %720, %721, %cst_161 {dimension_numbers = #tpu.dot_dimension_numbers<[1], [0], [0], [1], [0, 0, 1, 1], [], []>} : vector<24x8xf32>, vector<8x8xf32>, vector<24x8xf32> -> vector<24x8xf32>
    %723 = vector.extract_strided_slice %698 {offsets = [0, 8], sizes = [24, 8], strides = [1, 1]} : vector<24x32xf32> to vector<24x8xf32>
    %724 = vector.extract_strided_slice %706 {offsets = [0, 8], sizes = [8, 8], strides = [1, 1]} : vector<8x32xf32> to vector<8x8xf32>
    %cst_162 = arith.constant dense<0.000000e+00> : vector<24x8xf32>
    %725 = tpu.matmul %723, %724, %cst_162 {dimension_numbers = #tpu.dot_dimension_numbers<[1], [1], [0], [0], [0, 0, 1, 0], [], []>} : vector<24x8xf32>, vector<8x8xf32>, vector<24x8xf32> -> vector<24x8xf32>
    %cst_163 = arith.constant dense<0xFF800000> : vector<24xf32>
    %726 = vector.multi_reduction <maximumf>, %725, %cst_163 [1] : vector<24x8xf32> to vector<24xf32>
    %727 = vector.shape_cast %726 : vector<24xf32> to vector<24x1xf32>
    %728 = vector.broadcast %727 : vector<24x1xf32> to vector<24x8xf32>
    %729 = arith.subf %725, %728 : vector<24x8xf32>
    %730 = math.exp %729 : vector<24x8xf32>
    %cst_164 = arith.constant dense<0.000000e+00> : vector<24xf32>
    %731 = vector.multi_reduction <add>, %730, %cst_164 [1] : vector<24x8xf32> to vector<24xf32>
    %732 = vector.shape_cast %731 : vector<24xf32> to vector<24x1xf32>
    %733 = tpu.reciprocal %732 {approx = true} : vector<24x1xf32> -> vector<24x1xf32>
    %734 = vector.broadcast %733 : vector<24x1xf32> to vector<24x8xf32>
    %735 = arith.mulf %730, %734 : vector<24x8xf32>
    %736 = vector.extract_strided_slice %707 {offsets = [0, 8], sizes = [8, 8], strides = [1, 1]} : vector<8x32xf32> to vector<8x8xf32>
    %cst_165 = arith.constant dense<0.000000e+00> : vector<24x8xf32>
    %737 = tpu.matmul %735, %736, %cst_165 {dimension_numbers = #tpu.dot_dimension_numbers<[1], [0], [0], [1], [0, 0, 1, 1], [], []>} : vector<24x8xf32>, vector<8x8xf32>, vector<24x8xf32> -> vector<24x8xf32>
    %738 = vector.extract_strided_slice %698 {offsets = [0, 16], sizes = [24, 8], strides = [1, 1]} : vector<24x32xf32> to vector<24x8xf32>
    %739 = vector.extract_strided_slice %706 {offsets = [0, 16], sizes = [8, 8], strides = [1, 1]} : vector<8x32xf32> to vector<8x8xf32>
    %cst_166 = arith.constant dense<0.000000e+00> : vector<24x8xf32>
    %740 = tpu.matmul %738, %739, %cst_166 {dimension_numbers = #tpu.dot_dimension_numbers<[1], [1], [0], [0], [0, 0, 1, 0], [], []>} : vector<24x8xf32>, vector<8x8xf32>, vector<24x8xf32> -> vector<24x8xf32>
    %cst_167 = arith.constant dense<0xFF800000> : vector<24xf32>
    %741 = vector.multi_reduction <maximumf>, %740, %cst_167 [1] : vector<24x8xf32> to vector<24xf32>
    %742 = vector.shape_cast %741 : vector<24xf32> to vector<24x1xf32>
    %743 = vector.broadcast %742 : vector<24x1xf32> to vector<24x8xf32>
    %744 = arith.subf %740, %743 : vector<24x8xf32>
    %745 = math.exp %744 : vector<24x8xf32>
    %cst_168 = arith.constant dense<0.000000e+00> : vector<24xf32>
    %746 = vector.multi_reduction <add>, %745, %cst_168 [1] : vector<24x8xf32> to vector<24xf32>
    %747 = vector.shape_cast %746 : vector<24xf32> to vector<24x1xf32>
    %748 = tpu.reciprocal %747 {approx = true} : vector<24x1xf32> -> vector<24x1xf32>
    %749 = vector.broadcast %748 : vector<24x1xf32> to vector<24x8xf32>
    %750 = arith.mulf %745, %749 : vector<24x8xf32>
    %751 = vector.extract_strided_slice %707 {offsets = [0, 16], sizes = [8, 8], strides = [1, 1]} : vector<8x32xf32> to vector<8x8xf32>
    %cst_169 = arith.constant dense<0.000000e+00> : vector<24x8xf32>
    %752 = tpu.matmul %750, %751, %cst_169 {dimension_numbers = #tpu.dot_dimension_numbers<[1], [0], [0], [1], [0, 0, 1, 1], [], []>} : vector<24x8xf32>, vector<8x8xf32>, vector<24x8xf32> -> vector<24x8xf32>
    %753 = vector.extract_strided_slice %698 {offsets = [0, 24], sizes = [24, 8], strides = [1, 1]} : vector<24x32xf32> to vector<24x8xf32>
    %754 = vector.extract_strided_slice %706 {offsets = [0, 24], sizes = [8, 8], strides = [1, 1]} : vector<8x32xf32> to vector<8x8xf32>
    %cst_170 = arith.constant dense<0.000000e+00> : vector<24x8xf32>
    %755 = tpu.matmul %753, %754, %cst_170 {dimension_numbers = #tpu.dot_dimension_numbers<[1], [1], [0], [0], [0, 0, 1, 0], [], []>} : vector<24x8xf32>, vector<8x8xf32>, vector<24x8xf32> -> vector<24x8xf32>
    %cst_171 = arith.constant dense<0xFF800000> : vector<24xf32>
    %756 = vector.multi_reduction <maximumf>, %755, %cst_171 [1] : vector<24x8xf32> to vector<24xf32>
    %757 = vector.shape_cast %756 : vector<24xf32> to vector<24x1xf32>
    %758 = vector.broadcast %757 : vector<24x1xf32> to vector<24x8xf32>
    %759 = arith.subf %755, %758 : vector<24x8xf32>
    %760 = math.exp %759 : vector<24x8xf32>
    %cst_172 = arith.constant dense<0.000000e+00> : vector<24xf32>
    %761 = vector.multi_reduction <add>, %760, %cst_172 [1] : vector<24x8xf32> to vector<24xf32>
    %762 = vector.shape_cast %761 : vector<24xf32> to vector<24x1xf32>
    %763 = tpu.reciprocal %762 {approx = true} : vector<24x1xf32> -> vector<24x1xf32>
    %764 = vector.broadcast %763 : vector<24x1xf32> to vector<24x8xf32>
    %765 = arith.mulf %760, %764 : vector<24x8xf32>
    %766 = vector.extract_strided_slice %707 {offsets = [0, 24], sizes = [8, 8], strides = [1, 1]} : vector<8x32xf32> to vector<8x8xf32>
    %cst_173 = arith.constant dense<0.000000e+00> : vector<24x8xf32>
    %767 = tpu.matmul %765, %766, %cst_173 {dimension_numbers = #tpu.dot_dimension_numbers<[1], [0], [0], [1], [0, 0, 1, 1], [], []>} : vector<24x8xf32>, vector<8x8xf32>, vector<24x8xf32> -> vector<24x8xf32>
    %768 = tpu.concatenate %722, %737, %752, %767 in 1 : vector<24x8xf32>, vector<24x8xf32>, vector<24x8xf32>, vector<24x8xf32> -> vector<24x32xf32>
    %c0_174 = arith.constant 0 : index
    %c0_175 = arith.constant 0 : index
    %c0_176 = arith.constant 0 : index
    %769 = vector.load %arg24[%c0_174, %c0_175, %c0_176] : memref<1x32x32xf32, #tpu.memory_space<vmem>>, vector<1x32x32xf32>
    %770 = vector.shape_cast %769 : vector<1x32x32xf32> to vector<32x32xf32>
    %cst_177 = arith.constant dense<0.000000e+00> : vector<24x32xf32>
    %771 = tpu.matmul %768, %770, %cst_177 {dimension_numbers = #tpu.dot_dimension_numbers<[1], [0], [0], [1], [0, 0, 1, 1], [], []>} : vector<24x32xf32>, vector<32x32xf32>, vector<24x32xf32> -> vector<24x32xf32>
    %c0_178 = arith.constant 0 : index
    %c0_179 = arith.constant 0 : index
    %c0_180 = arith.constant 0 : index
    %772 = vector.load %arg25[%c0_178, %c0_179, %c0_180] : memref<1x1x32xf32, #tpu.memory_space<vmem>>, vector<1x1x32xf32>
    %773 = vector.shape_cast %772 : vector<1x1x32xf32> to vector<1x32xf32>
    %774 = vector.broadcast %773 : vector<1x32xf32> to vector<24x32xf32>
    %775 = arith.addf %771, %774 : vector<24x32xf32>
    %776 = arith.addf %689, %775 : vector<24x32xf32>
    %cst_181 = arith.constant dense<0.000000e+00> : vector<24xf32>
    %777 = vector.multi_reduction <add>, %776, %cst_181 [1] : vector<24x32xf32> to vector<24xf32>
    %778 = vector.shape_cast %777 : vector<24xf32> to vector<24x1xf32>
    %cst_182 = arith.constant 3.200000e+01 : f32
    %779 = vector.broadcast %cst_182 : f32 to vector<24x1xf32>
    %780 = arith.divf %778, %779 : vector<24x1xf32>
    %781 = vector.broadcast %780 : vector<24x1xf32> to vector<24x32xf32>
    %782 = arith.subf %776, %781 : vector<24x32xf32>
    %783 = arith.mulf %782, %782 : vector<24x32xf32>
    %cst_183 = arith.constant dense<0.000000e+00> : vector<24xf32>
    %784 = vector.multi_reduction <add>, %783, %cst_183 [1] : vector<24x32xf32> to vector<24xf32>
    %785 = vector.shape_cast %784 : vector<24xf32> to vector<24x1xf32>
    %cst_184 = arith.constant 3.200000e+01 : f32
    %786 = vector.broadcast %cst_184 : f32 to vector<24x1xf32>
    %787 = arith.divf %785, %786 : vector<24x1xf32>
    %788 = vector.broadcast %780 : vector<24x1xf32> to vector<24x32xf32>
    %789 = arith.subf %776, %788 : vector<24x32xf32>
    %cst_185 = arith.constant 9.99999974E-6 : f32
    %790 = vector.broadcast %cst_185 : f32 to vector<24x1xf32>
    %791 = arith.addf %787, %790 : vector<24x1xf32>
    %792 = math.rsqrt %791 : vector<24x1xf32>
    %793 = vector.broadcast %792 : vector<24x1xf32> to vector<24x32xf32>
    %794 = arith.mulf %789, %793 : vector<24x32xf32>
    %c0_186 = arith.constant 0 : index
    %c0_187 = arith.constant 0 : index
    %c0_188 = arith.constant 0 : index
    %795 = vector.load %arg26[%c0_186, %c0_187, %c0_188] : memref<1x1x32xf32, #tpu.memory_space<vmem>>, vector<1x1x32xf32>
    %796 = vector.shape_cast %795 : vector<1x1x32xf32> to vector<1x32xf32>
    %797 = vector.broadcast %796 : vector<1x32xf32> to vector<24x32xf32>
    %798 = arith.mulf %794, %797 : vector<24x32xf32>
    %c0_189 = arith.constant 0 : index
    %c0_190 = arith.constant 0 : index
    %c0_191 = arith.constant 0 : index
    %799 = vector.load %arg27[%c0_189, %c0_190, %c0_191] : memref<1x1x32xf32, #tpu.memory_space<vmem>>, vector<1x1x32xf32>
    %800 = vector.shape_cast %799 : vector<1x1x32xf32> to vector<1x32xf32>
    %801 = vector.broadcast %800 : vector<1x32xf32> to vector<24x32xf32>
    %802 = arith.addf %798, %801 : vector<24x32xf32>
    %c0_192 = arith.constant 0 : index
    %c0_193 = arith.constant 0 : index
    %c0_194 = arith.constant 0 : index
    %803 = vector.load %arg28[%c0_192, %c0_193, %c0_194] : memref<1x32x128xf32, #tpu.memory_space<vmem>>, vector<1x32x128xf32>
    %804 = vector.shape_cast %803 : vector<1x32x128xf32> to vector<32x128xf32>
    %cst_195 = arith.constant dense<0.000000e+00> : vector<24x128xf32>
    %805 = tpu.matmul %802, %804, %cst_195 {dimension_numbers = #tpu.dot_dimension_numbers<[1], [0], [0], [1], [0, 0, 1, 1], [], []>} : vector<24x32xf32>, vector<32x128xf32>, vector<24x128xf32> -> vector<24x128xf32>
    %c0_196 = arith.constant 0 : index
    %c0_197 = arith.constant 0 : index
    %c0_198 = arith.constant 0 : index
    %806 = vector.load %arg29[%c0_196, %c0_197, %c0_198] : memref<1x1x128xf32, #tpu.memory_space<vmem>>, vector<1x1x128xf32>
    %807 = vector.shape_cast %806 : vector<1x1x128xf32> to vector<1x128xf32>
    %808 = vector.broadcast %807 : vector<1x128xf32> to vector<24x128xf32>
    %809 = arith.addf %805, %808 : vector<24x128xf32>
    %cst_199 = arith.constant 0.000000e+00 : f32
    %810 = vector.broadcast %cst_199 : f32 to vector<24x128xf32>
    %811 = arith.maximumf %809, %810 : vector<24x128xf32>
    %c0_200 = arith.constant 0 : index
    %c0_201 = arith.constant 0 : index
    %c0_202 = arith.constant 0 : index
    %812 = vector.load %arg30[%c0_200, %c0_201, %c0_202] : memref<1x128x32xf32, #tpu.memory_space<vmem>>, vector<1x128x32xf32>
    %813 = vector.shape_cast %812 : vector<1x128x32xf32> to vector<128x32xf32>
    %cst_203 = arith.constant dense<0.000000e+00> : vector<24x32xf32>
    %814 = tpu.matmul %811, %813, %cst_203 {dimension_numbers = #tpu.dot_dimension_numbers<[1], [0], [0], [1], [0, 0, 1, 1], [], []>} : vector<24x128xf32>, vector<128x32xf32>, vector<24x32xf32> -> vector<24x32xf32>
    %815 = arith.addf %802, %814 : vector<24x32xf32>
    %c0_204 = arith.constant 0 : index
    %c0_205 = arith.constant 0 : index
    %c0_206 = arith.constant 0 : index
    %816 = vector.load %arg31[%c0_204, %c0_205, %c0_206] : memref<1x1x32xf32, #tpu.memory_space<vmem>>, vector<1x1x32xf32>
    %817 = vector.shape_cast %816 : vector<1x1x32xf32> to vector<1x32xf32>
    %818 = vector.broadcast %817 : vector<1x32xf32> to vector<24x32xf32>
    %819 = arith.addf %815, %818 : vector<24x32xf32>
    %cst_207 = arith.constant dense<0.000000e+00> : vector<24xf32>
    %820 = vector.multi_reduction <add>, %819, %cst_207 [1] : vector<24x32xf32> to vector<24xf32>
    %821 = vector.shape_cast %820 : vector<24xf32> to vector<24x1xf32>
    %cst_208 = arith.constant 3.200000e+01 : f32
    %822 = vector.broadcast %cst_208 : f32 to vector<24x1xf32>
    %823 = arith.divf %821, %822 : vector<24x1xf32>
    %824 = vector.broadcast %823 : vector<24x1xf32> to vector<24x32xf32>
    %825 = arith.subf %819, %824 : vector<24x32xf32>
    %826 = arith.mulf %825, %825 : vector<24x32xf32>
    %cst_209 = arith.constant dense<0.000000e+00> : vector<24xf32>
    %827 = vector.multi_reduction <add>, %826, %cst_209 [1] : vector<24x32xf32> to vector<24xf32>
    %828 = vector.shape_cast %827 : vector<24xf32> to vector<24x1xf32>
    %cst_210 = arith.constant 3.200000e+01 : f32
    %829 = vector.broadcast %cst_210 : f32 to vector<24x1xf32>
    %830 = arith.divf %828, %829 : vector<24x1xf32>
    %831 = vector.broadcast %823 : vector<24x1xf32> to vector<24x32xf32>
    %832 = arith.subf %819, %831 : vector<24x32xf32>
    %cst_211 = arith.constant 9.99999974E-6 : f32
    %833 = vector.broadcast %cst_211 : f32 to vector<24x1xf32>
    %834 = arith.addf %830, %833 : vector<24x1xf32>
    %835 = math.rsqrt %834 : vector<24x1xf32>
    %836 = vector.broadcast %835 : vector<24x1xf32> to vector<24x32xf32>
    %837 = arith.mulf %832, %836 : vector<24x32xf32>
    %c0_212 = arith.constant 0 : index
    %c0_213 = arith.constant 0 : index
    %c0_214 = arith.constant 0 : index
    %838 = vector.load %arg32[%c0_212, %c0_213, %c0_214] : memref<1x1x32xf32, #tpu.memory_space<vmem>>, vector<1x1x32xf32>
    %839 = vector.shape_cast %838 : vector<1x1x32xf32> to vector<1x32xf32>
    %840 = vector.broadcast %839 : vector<1x32xf32> to vector<24x32xf32>
    %841 = arith.mulf %837, %840 : vector<24x32xf32>
    %c0_215 = arith.constant 0 : index
    %c0_216 = arith.constant 0 : index
    %c0_217 = arith.constant 0 : index
    %842 = vector.load %arg33[%c0_215, %c0_216, %c0_217] : memref<1x1x32xf32, #tpu.memory_space<vmem>>, vector<1x1x32xf32>
    %843 = vector.shape_cast %842 : vector<1x1x32xf32> to vector<1x32xf32>
    %844 = vector.broadcast %843 : vector<1x32xf32> to vector<24x32xf32>
    %845 = arith.addf %841, %844 : vector<24x32xf32>
    %846 = vector.extract_strided_slice %845 {offsets = [0, 0], sizes = [8, 32], strides = [1, 1]} : vector<24x32xf32> to vector<8x32xf32>
    %847 = vector.extract_strided_slice %845 {offsets = [8, 0], sizes = [16, 32], strides = [1, 1]} : vector<24x32xf32> to vector<16x32xf32>
    %c0_218 = arith.constant 0 : index
    %c0_219 = arith.constant 0 : index
    %848 = vector.load %arg36[%c0_218, %c0_219] : memref<8x32xf32, #tpu.memory_space<vmem>>, vector<8x32xf32>
    tpu.vector_store %arg36[%c0_218, %c0_219], %846 {strides = array<i32>} : memref<8x32xf32, #tpu.memory_space<vmem>>, vector<8x32xf32>,
    %c0_220 = arith.constant 0 : index
    %c0_221 = arith.constant 0 : index
    %849 = vector.load %arg37[%c0_220, %c0_221] : memref<16x32xf32, #tpu.memory_space<vmem>>, vector<16x32xf32>
    tpu.vector_store %arg37[%c0_220, %c0_221], %847 {strides = array<i32>} : memref<16x32xf32, #tpu.memory_space<vmem>>, vector<16x32xf32>,
    %c0_222 = arith.constant 0 : index
    %c0_223 = arith.constant 0 : index
    %c0_224 = arith.constant 0 : index
    %850 = vector.load %arg34[%c0_222, %c0_223, %c0_224] : memref<1x8x32xf32, #tpu.memory_space<vmem>>, vector<1x8x32xf32>
    %851 = vector.shape_cast %850 : vector<1x8x32xf32> to vector<8x32xf32>
    %852 = vector.shape_cast %846 : vector<8x32xf32> to vector<1x8x32xf32>
    tpu.vector_store %arg34[%c0_222, %c0_223, %c0_224], %852 {strides = array<i32>} : memref<1x8x32xf32, #tpu.memory_space<vmem>>, vector<1x8x32xf32>,
    %c0_225 = arith.constant 0 : index
    %c0_226 = arith.constant 0 : index
    %c0_227 = arith.constant 0 : index
    %853 = vector.load %arg35[%c0_225, %c0_226, %c0_227] : memref<1x16x32xf32, #tpu.memory_space<vmem>>, vector<1x16x32xf32>
    %854 = vector.shape_cast %853 : vector<1x16x32xf32> to vector<16x32xf32>
    %855 = vector.shape_cast %847 : vector<16x32xf32> to vector<1x16x32xf32>
    tpu.vector_store %arg35[%c0_225, %c0_226, %c0_227], %855 {strides = array<i32>} : memref<1x16x32xf32, #tpu.memory_space<vmem>>, vector<1x16x32xf32>,
    return
  }
  func.func @transform_0(%arg0: i32, %arg1: i32) -> (i32, i32, i32) {
    %c0_i32 = arith.constant 0 : i32
    %c0_i32_0 = arith.constant 0 : i32
    %c0_i32_1 = arith.constant 0 : i32
    return %arg0, %c0_i32, %c0_i32_0 : i32, i32, i32
  }
  func.func @transform_1(%arg0: i32, %arg1: i32) -> (i32, i32, i32) {
    %c0_i32 = arith.constant 0 : i32
    %c0_i32_0 = arith.constant 0 : i32
    %c0_i32_1 = arith.constant 0 : i32
    return %arg0, %c0_i32, %c0_i32_0 : i32, i32, i32
  }
  func.func @transform_2(%arg0: i32, %arg1: i32) -> (i32, i32, i32) {
    %c0_i32 = arith.constant 0 : i32
    %c0_i32_0 = arith.constant 0 : i32
    %c0_i32_1 = arith.constant 0 : i32
    return %arg0, %c0_i32, %c0_i32_0 : i32, i32, i32
  }
  func.func @transform_3(%arg0: i32, %arg1: i32) -> (i32, i32, i32) {
    %c0_i32 = arith.constant 0 : i32
    %c0_i32_0 = arith.constant 0 : i32
    %c0_i32_1 = arith.constant 0 : i32
    return %arg0, %c0_i32, %c0_i32_0 : i32, i32, i32
  }
  func.func @transform_4(%arg0: i32, %arg1: i32) -> (i32, i32, i32) {
    %c0_i32 = arith.constant 0 : i32
    %c0_i32_0 = arith.constant 0 : i32
    %c0_i32_1 = arith.constant 0 : i32
    return %arg0, %c0_i32, %c0_i32_0 : i32, i32, i32
  }
  func.func @transform_5(%arg0: i32, %arg1: i32) -> (i32, i32, i32) {
    %c0_i32 = arith.constant 0 : i32
    %c0_i32_0 = arith.constant 0 : i32
    %c0_i32_1 = arith.constant 0 : i32
    return %arg1, %c0_i32, %c0_i32_0 : i32, i32, i32
  }
  func.func @transform_6(%arg0: i32, %arg1: i32) -> (i32, i32, i32) {
    %c0_i32 = arith.constant 0 : i32
    %c0_i32_0 = arith.constant 0 : i32
    %c0_i32_1 = arith.constant 0 : i32
    return %arg1, %c0_i32, %c0_i32_0 : i32, i32, i32
  }
  func.func @transform_7(%arg0: i32, %arg1: i32) -> (i32, i32, i32) {
    %c0_i32 = arith.constant 0 : i32
    %c0_i32_0 = arith.constant 0 : i32
    %c0_i32_1 = arith.constant 0 : i32
    return %arg1, %c0_i32, %c0_i32_0 : i32, i32, i32
  }
  func.func @transform_8(%arg0: i32, %arg1: i32) -> (i32, i32, i32) {
    %c0_i32 = arith.constant 0 : i32
    %c0_i32_0 = arith.constant 0 : i32
    %c0_i32_1 = arith.constant 0 : i32
    return %arg1, %c0_i32, %c0_i32_0 : i32, i32, i32
  }
  func.func @transform_9(%arg0: i32, %arg1: i32) -> (i32, i32, i32) {
    %c0_i32 = arith.constant 0 : i32
    %c0_i32_0 = arith.constant 0 : i32
    %c0_i32_1 = arith.constant 0 : i32
    return %arg1, %c0_i32, %c0_i32_0 : i32, i32, i32
  }
  func.func @transform_10(%arg0: i32, %arg1: i32) -> (i32, i32, i32) {
    %c0_i32 = arith.constant 0 : i32
    %c0_i32_0 = arith.constant 0 : i32
    %c0_i32_1 = arith.constant 0 : i32
    return %arg1, %c0_i32, %c0_i32_0 : i32, i32, i32
  }
  func.func @transform_11(%arg0: i32, %arg1: i32) -> (i32, i32, i32) {
    %c0_i32 = arith.constant 0 : i32
    %c0_i32_0 = arith.constant 0 : i32
    %c0_i32_1 = arith.constant 0 : i32
    return %arg1, %c0_i32, %c0_i32_0 : i32, i32, i32
  }
  func.func @transform_12(%arg0: i32, %arg1: i32) -> (i32, i32, i32) {
    %c0_i32 = arith.constant 0 : i32
    %c0_i32_0 = arith.constant 0 : i32
    %c0_i32_1 = arith.constant 0 : i32
    return %arg1, %c0_i32, %c0_i32_0 : i32, i32, i32
  }
  func.func @transform_13(%arg0: i32, %arg1: i32) -> (i32, i32, i32) {
    %c0_i32 = arith.constant 0 : i32
    %c0_i32_0 = arith.constant 0 : i32
    %c0_i32_1 = arith.constant 0 : i32
    return %arg1, %c0_i32, %c0_i32_0 : i32, i32, i32
  }
  func.func @transform_14(%arg0: i32, %arg1: i32) -> (i32, i32, i32) {
    %c0_i32 = arith.constant 0 : i32
    %c0_i32_0 = arith.constant 0 : i32
    %c0_i32_1 = arith.constant 0 : i32
    return %arg1, %c0_i32, %c0_i32_0 : i32, i32, i32
  }
  func.func @transform_15(%arg0: i32, %arg1: i32) -> (i32, i32, i32) {
    %c0_i32 = arith.constant 0 : i32
    %c0_i32_0 = arith.constant 0 : i32
    %c0_i32_1 = arith.constant 0 : i32
    return %arg1, %c0_i32, %c0_i32_0 : i32, i32, i32
  }
  func.func @transform_16(%arg0: i32, %arg1: i32) -> (i32, i32, i32) {
    %c0_i32 = arith.constant 0 : i32
    %c0_i32_0 = arith.constant 0 : i32
    %c0_i32_1 = arith.constant 0 : i32
    return %arg1, %c0_i32, %c0_i32_0 : i32, i32, i32
  }
  func.func @transform_17(%arg0: i32, %arg1: i32) -> (i32, i32, i32) {
    %c0_i32 = arith.constant 0 : i32
    %c0_i32_0 = arith.constant 0 : i32
    %c0_i32_1 = arith.constant 0 : i32
    return %arg1, %c0_i32, %c0_i32_0 : i32, i32, i32
  }
  func.func @transform_18(%arg0: i32, %arg1: i32) -> (i32, i32, i32) {
    %c0_i32 = arith.constant 0 : i32
    %c0_i32_0 = arith.constant 0 : i32
    %c0_i32_1 = arith.constant 0 : i32
    return %arg1, %c0_i32, %c0_i32_0 : i32, i32, i32
  }
  func.func @transform_19(%arg0: i32, %arg1: i32) -> (i32, i32, i32) {
    %c0_i32 = arith.constant 0 : i32
    %c0_i32_0 = arith.constant 0 : i32
    %c0_i32_1 = arith.constant 0 : i32
    return %arg1, %c0_i32, %c0_i32_0 : i32, i32, i32
  }
  func.func @transform_20(%arg0: i32, %arg1: i32) -> (i32, i32, i32) {
    %c0_i32 = arith.constant 0 : i32
    %c0_i32_0 = arith.constant 0 : i32
    %c0_i32_1 = arith.constant 0 : i32
    return %arg1, %c0_i32, %c0_i32_0 : i32, i32, i32
  }
  func.func @transform_21(%arg0: i32, %arg1: i32) -> (i32, i32, i32) {
    %c0_i32 = arith.constant 0 : i32
    %c0_i32_0 = arith.constant 0 : i32
    %c0_i32_1 = arith.constant 0 : i32
    return %arg1, %c0_i32, %c0_i32_0 : i32, i32, i32
  }
  func.func @transform_22(%arg0: i32, %arg1: i32) -> (i32, i32, i32) {
    %c0_i32 = arith.constant 0 : i32
    %c0_i32_0 = arith.constant 0 : i32
    %c0_i32_1 = arith.constant 0 : i32
    return %arg1, %c0_i32, %c0_i32_0 : i32, i32, i32
  }
  func.func @transform_23(%arg0: i32, %arg1: i32) -> (i32, i32, i32) {
    %c0_i32 = arith.constant 0 : i32
    %c0_i32_0 = arith.constant 0 : i32
    %c0_i32_1 = arith.constant 0 : i32
    return %arg1, %c0_i32, %c0_i32_0 : i32, i32, i32
  }
  func.func @transform_24(%arg0: i32, %arg1: i32) -> (i32, i32, i32) {
    %c0_i32 = arith.constant 0 : i32
    %c0_i32_0 = arith.constant 0 : i32
    %c0_i32_1 = arith.constant 0 : i32
    return %arg1, %c0_i32, %c0_i32_0 : i32, i32, i32
  }
  func.func @transform_25(%arg0: i32, %arg1: i32) -> (i32, i32, i32) {
    %c0_i32 = arith.constant 0 : i32
    %c0_i32_0 = arith.constant 0 : i32
    %c0_i32_1 = arith.constant 0 : i32
    return %arg1, %c0_i32, %c0_i32_0 : i32, i32, i32
  }
  func.func @transform_26(%arg0: i32, %arg1: i32) -> (i32, i32, i32) {
    %c0_i32 = arith.constant 0 : i32
    %c0_i32_0 = arith.constant 0 : i32
    %c0_i32_1 = arith.constant 0 : i32
    return %arg1, %c0_i32, %c0_i32_0 : i32, i32, i32
  }
  func.func @transform_27(%arg0: i32, %arg1: i32) -> (i32, i32, i32) {
    %c0_i32 = arith.constant 0 : i32
    %c0_i32_0 = arith.constant 0 : i32
    %c0_i32_1 = arith.constant 0 : i32
    return %arg1, %c0_i32, %c0_i32_0 : i32, i32, i32
  }
  func.func @transform_28(%arg0: i32, %arg1: i32) -> (i32, i32, i32) {
    %c0_i32 = arith.constant 0 : i32
    %c0_i32_0 = arith.constant 0 : i32
    %c0_i32_1 = arith.constant 0 : i32
    return %arg1, %c0_i32, %c0_i32_0 : i32, i32, i32
  }
  func.func @transform_29(%arg0: i32, %arg1: i32) -> (i32, i32, i32) {
    %c0_i32 = arith.constant 0 : i32
    %c0_i32_0 = arith.constant 0 : i32
    %c0_i32_1 = arith.constant 0 : i32
    return %arg1, %c0_i32, %c0_i32_0 : i32, i32, i32
  }
  func.func @transform_30(%arg0: i32, %arg1: i32) -> (i32, i32, i32) {
    %c0_i32 = arith.constant 0 : i32
    %c0_i32_0 = arith.constant 0 : i32
    %c0_i32_1 = arith.constant 0 : i32
    return %arg1, %c0_i32, %c0_i32_0 : i32, i32, i32
  }
  func.func @transform_31(%arg0: i32, %arg1: i32) -> (i32, i32, i32) {
    %c0_i32 = arith.constant 0 : i32
    %c0_i32_0 = arith.constant 0 : i32
    %c0_i32_1 = arith.constant 0 : i32
    return %arg1, %c0_i32, %c0_i32_0 : i32, i32, i32
  }
  func.func @transform_32(%arg0: i32, %arg1: i32) -> (i32, i32, i32) {
    %c0_i32 = arith.constant 0 : i32
    %c0_i32_0 = arith.constant 0 : i32
    %c0_i32_1 = arith.constant 0 : i32
    return %arg0, %c0_i32, %c0_i32_0 : i32, i32, i32
  }
  func.func @transform_33(%arg0: i32, %arg1: i32) -> (i32, i32, i32) {
    %c0_i32 = arith.constant 0 : i32
    %c0_i32_0 = arith.constant 0 : i32
    %c0_i32_1 = arith.constant 0 : i32
    return %arg0, %c0_i32, %c0_i32_0 : i32, i32, i32
  }
}

</mosaic_0001>

<llo_original>
// kernel: lang_enhanced_ipa_decoder.1
$region0: #{lang_enhanced_ipa_decoder.1}
  #allocation0 [shape = 'u32[]', space=smem, size = 0x4, offset = 0x4, fixed_abs, tag = 'smem constant byte address 0x4 - core index']
  #allocation1 [shape = 'u32[144,128]{1,0:T(1,128)}', space=vmem, size = 0x12000, scoped, tag = 'internal scratch']
  #allocation2 [shape = 'f32[8,32]{1,0:T(8,128)}', space=vmem, size = 0x1000, scoped, tag = 'scratch operand']
  #allocation3 [shape = 'f32[16,32]{1,0:T(8,128)}', space=vmem, size = 0x2000, scoped, tag = 'scratch operand']
  %s0 = inlined_call_operand.smem [shape: u32[34], index: -1, kind: input, shape index: {}]
  %s1 = sld [smem:[%s0]]
  %s2 = scalar_lea.smem %s0, 1
  %s3 = sld [smem:[%s2]]
  %s4 = scalar_lea.smem %s0, 2
  %s5 = sld [smem:[%s4]]
  %s6 = scalar_lea.smem %s0, 3
  %s7 = sld [smem:[%s6]]
  %s8 = scalar_lea.smem %s0, 4
  %s9 = sld [smem:[%s8]]
  %s10 = scalar_lea.smem %s0, 5
  %s11 = sld [smem:[%s10]]
  %s12 = scalar_lea.smem %s0, 6
  %s13 = sld [smem:[%s12]]
  %s14 = scalar_lea.smem %s0, 7
  %s15 = sld [smem:[%s14]]
  %s16 = scalar_lea.smem %s0, 8
  %s17 = sld [smem:[%s16]]
  %s18 = scalar_lea.smem %s0, 9
  %s19 = sld [smem:[%s18]]
  %s20 = scalar_lea.smem %s0, 10
  %s21 = sld [smem:[%s20]]
  %s22 = scalar_lea.smem %s0, 11
  %s23 = sld [smem:[%s22]]
  %s24 = scalar_lea.smem %s0, 12
  %s25 = sld [smem:[%s24]]
  %s26 = scalar_lea.smem %s0, 13
  %s27 = sld [smem:[%s26]]
  %s28 = scalar_lea.smem %s0, 14
  %s29 = sld [smem:[%s28]]
  %s30 = scalar_lea.smem %s0, 15
  %s31 = sld [smem:[%s30]]
  %s32 = scalar_lea.smem %s0, 16
  %s33 = sld [smem:[%s32]]
  %s34 = scalar_lea.smem %s0, 17
  %s35 = sld [smem:[%s34]]
  %s36 = scalar_lea.smem %s0, 18
  %s37 = sld [smem:[%s36]]
  %s38 = scalar_lea.smem %s0, 19
  %s39 = sld [smem:[%s38]]
  %s40 = scalar_lea.smem %s0, 20
  %s41 = sld [smem:[%s40]]
  %s42 = scalar_lea.smem %s0, 21
  %s43 = sld [smem:[%s42]]
  %s44 = scalar_lea.smem %s0, 22
  %s45 = sld [smem:[%s44]]
  %s46 = scalar_lea.smem %s0, 23
  %s47 = sld [smem:[%s46]]
  %s48 = scalar_lea.smem %s0, 24
  %s49 = sld [smem:[%s48]]
  %s50 = scalar_lea.smem %s0, 25
  %s51 = sld [smem:[%s50]]
  %s52 = scalar_lea.smem %s0, 26
  %s53 = sld [smem:[%s52]]
  %s54 = scalar_lea.smem %s0, 27
  %s55 = sld [smem:[%s54]]
  %s56 = scalar_lea.smem %s0, 28
  %s57 = sld [smem:[%s56]]
  %s58 = scalar_lea.smem %s0, 29
  %s59 = sld [smem:[%s58]]
  %s60 = scalar_lea.smem %s0, 30
  %s61 = sld [smem:[%s60]]
  %s62 = scalar_lea.smem %s0, 31
  %s63 = sld [smem:[%s62]]
  %s64 = scalar_lea.smem %s0, 32
  %s65 = sld [smem:[%s64]]
  %s66 = scalar_lea.smem %s0, 33
  %s67 = sld [smem:[%s66]]
  %68 = xla_tuple %s65, %s67
  %s69 = sld [smem:[#allocation0]]
  $region173: #{lang_enhanced_ipa_decoder.1} parent=0
    _
  %s71 = ssub.s32 1, %s69
  %s72 = scalar_select 0, %s71, %s69
  $region1: #{lang_enhanced_ipa_decoder.1} parent=0
    #allocation4 [shape = 'u8[8192]{0}', space=vmem, size = 0x2000, scoped, tag = 'output window, operand 0']
    #allocation5 [shape = 's32[2]{0}', space=sflag, size = 0x8, scoped, tag = 'scoped memory for lang_enhanced_ipa_decoder.1']
    #allocation6 [shape = 'u8[16384]{0}', space=vmem, size = 0x4000, scoped, tag = 'output window, operand 1']
    #allocation7 [shape = 's32[2]{0}', space=sflag, size = 0x8, scoped, tag = 'scoped memory for lang_enhanced_ipa_decoder.1']
    %73 = vsyncpa [#allocation5], 0
    %s74 = scalar_lea.sflag [#allocation5], 1
    %75 = vsyncpa %s74, 0
    %76 = vsyncpa [#allocation7], 0
    %s77 = scalar_lea.sflag [#allocation7], 1
    %78 = vsyncpa %s77, 0
    loop: start=0, step=1, limit=6
    $region2: #{lang_enhanced_ipa_decoder.1} parent=1 // loop_pre_header
      _
    $region3: #{lang_enhanced_ipa_decoder.1} parent=1 // loop_header
      %s80 = sphi 0, %s84
      %p81 = scmp.ge.s32.totalorder %s80, 6
      %s87 = sphi 0, %s99
      %s88 = sphi 0, %s95
      %s89 = sphi 0, %s87
      %s90 = sphi 0, %s88
      %s91 = sphi 0, %s89
      %s92 = sphi 0, %s90
      %s102 = sphi 0, %s104
      %s105 = sphi 0, %s102
      %s106 = sphi 0, %s105
      %s122 = sphi 0, %s106
      %s128 = sphi 0, %s130
      %s131 = sphi 0, %s128
      %s132 = sphi 0, %s131
      %s148 = sphi 0, %s132
      %s154 = sphi 0, %s156
      %s157 = sphi 0, %s154
      %s158 = sphi 0, %s157
      %s174 = sphi 0, %s158
      %s180 = sphi 0, %s182
      %s183 = sphi 0, %s180
      %s184 = sphi 0, %s183
      %s200 = sphi 0, %s184
      %s206 = sphi 0, %s208
      %s209 = sphi 0, %s206
      %s210 = sphi 0, %s209
      %s226 = sphi 0, %s210
      %s232 = sphi 0, %s234
      %s235 = sphi 0, %s232
      %s236 = sphi 0, %s235
      %s252 = sphi 0, %s236
      %s258 = sphi 0, %s260
      %s261 = sphi 0, %s258
      %s262 = sphi 0, %s261
      %s278 = sphi 0, %s262
      %s284 = sphi 0, %s286
      %s287 = sphi 0, %s284
      %s288 = sphi 0, %s287
      %s304 = sphi 0, %s288
      %s310 = sphi 0, %s312
      %s313 = sphi 0, %s310
      %s314 = sphi 0, %s313
      %s330 = sphi 0, %s314
      %s336 = sphi 0, %s338
      %s339 = sphi 0, %s336
      %s340 = sphi 0, %s339
      %s356 = sphi 0, %s340
      %s362 = sphi 0, %s364
      %s365 = sphi 0, %s362
      %s366 = sphi 0, %s365
      %s382 = sphi 0, %s366
      %s388 = sphi 0, %s390
      %s391 = sphi 0, %s388
      %s392 = sphi 0, %s391
      %s408 = sphi 0, %s392
      %s414 = sphi 0, %s416
      %s417 = sphi 0, %s414
      %s418 = sphi 0, %s417
      %s434 = sphi 0, %s418
      %s440 = sphi 0, %s442
      %s443 = sphi 0, %s440
      %s444 = sphi 0, %s443
      %s460 = sphi 0, %s444
      %s466 = sphi 0, %s468
      %s469 = sphi 0, %s466
      %s470 = sphi 0, %s469
      %s486 = sphi 0, %s470
      %s492 = sphi 0, %s494
      %s495 = sphi 0, %s492
      %s496 = sphi 0, %s495
      %s512 = sphi 0, %s496
      %s518 = sphi 0, %s520
      %s521 = sphi 0, %s518
      %s522 = sphi 0, %s521
      %s538 = sphi 0, %s522
      %s544 = sphi 0, %s546
      %s547 = sphi 0, %s544
      %s548 = sphi 0, %s547
      %s564 = sphi 0, %s548
      %s570 = sphi 0, %s572
      %s573 = sphi 0, %s570
      %s574 = sphi 0, %s573
      %s590 = sphi 0, %s574
      %s596 = sphi 0, %s598
      %s599 = sphi 0, %s596
      %s600 = sphi 0, %s599
      %s616 = sphi 0, %s600
      %s622 = sphi 0, %s624
      %s625 = sphi 0, %s622
      %s626 = sphi 0, %s625
      %s642 = sphi 0, %s626
      %s648 = sphi 0, %s650
      %s651 = sphi 0, %s648
      %s652 = sphi 0, %s651
      %s668 = sphi 0, %s652
      %s674 = sphi 0, %s676
      %s677 = sphi 0, %s674
      %s678 = sphi 0, %s677
      %s694 = sphi 0, %s678
      %s700 = sphi 0, %s702
      %s703 = sphi 0, %s700
      %s704 = sphi 0, %s703
      %s720 = sphi 0, %s704
      %s726 = sphi 0, %s728
      %s729 = sphi 0, %s726
      %s730 = sphi 0, %s729
      %s746 = sphi 0, %s730
      %s752 = sphi 0, %s754
      %s755 = sphi 0, %s752
      %s756 = sphi 0, %s755
      %s772 = sphi 0, %s756
      %s778 = sphi 0, %s780
      %s781 = sphi 0, %s778
      %s782 = sphi 0, %s781
      %s798 = sphi 0, %s782
      %s804 = sphi 0, %s806
      %s807 = sphi 0, %s804
      %s808 = sphi 0, %s807
      %s824 = sphi 0, %s808
      %s830 = sphi 0, %s832
      %s833 = sphi 0, %s830
      %s834 = sphi 0, %s833
      %s850 = sphi 0, %s834
      %s856 = sphi 0, %s858
      %s859 = sphi 0, %s856
      %s860 = sphi 0, %s859
      %s876 = sphi 0, %s860
      %s882 = sphi 0, %s884
      %s885 = sphi 0, %s882
      %s886 = sphi 0, %s885
      %s902 = sphi 0, %s886
      %s908 = sphi 0, %s910
      %s911 = sphi 0, %s908
      %s912 = sphi 0, %s911
      %s928 = sphi 0, %s912
      %s934 = sphi 0, %s936
      %s937 = sphi 0, %s934
      %s938 = sphi 0, %s937
      %s954 = sphi 0, %s938
      %s960 = sphi 0, %s962
      %s963 = sphi 0, %s960
      %s964 = sphi 0, %s963
      %s980 = sphi 0, %s964
    $region4: #{lang_enhanced_ipa_decoder.1} parent=1 // loop_header_branch
      %83 = sbr.rel (%p81) target = $region8
    $region5: #{lang_enhanced_ipa_decoder.1} parent=1 // loop_body
      %s85 = ssub.s32 %s80, 1
      %s86 = ssub.s32 %s80, 2
      %s93 = sadd.s32 1, %s88
      %p94 = scmp.ge.s32.totalorder %s93, 2
      %s95 = scalar_select %p94, 0, %s93
      %s96 = sadd.s32 1, %s87
      %s97 = scalar_select %p94, %s96, %s87
      %p98 = scmp.ge.s32.totalorder %s97, 2
      %s99 = scalar_select %p98, 0, %s97
      %s100 = ssub.s32 %s87, %s99
      %p101 = scmp.eq.s32.totalorder %s100, 0
      %s103 = sadd.s32 %s102, 1
      %s104 = scalar_select %p101, %s102, %s103
      %p107 = pneg %p101
      %p108 = scmp.eq.s32.totalorder %s80, 3
      %p109 = por %p107, %p108
      %p110 = scmp.ne.s32.totalorder %s102, %s105
      %p111 = scmp.eq.s32.totalorder %s80, 0
      %p112 = por %p110, %p111
      %p113 = scmp.ne.s32.totalorder %s102, %s105
      %p114 = scmp.eq.s32.totalorder %s85, 3
      %p115 = por %p113, %p114
      %p116 = scmp.ne.s32.totalorder %s105, %s106
      %p117 = scmp.eq.s32.totalorder %s85, 0
      %p118 = por %p116, %p117
      %p119 = scmp.ne.s32.totalorder %s105, %s106
      %p120 = scmp.eq.s32.totalorder %s86, 3
      %p121 = por %p119, %p120
      %p123 = scmp.ne.s32.totalorder %s106, %s122
      %p124 = scmp.eq.s32.totalorder %s86, 0
      %p125 = por %p123, %p124
      %s126 = ssub.s32 %s87, %s99
      %p127 = scmp.eq.s32.totalorder %s126, 0
      %s129 = sadd.s32 %s128, 1
      %s130 = scalar_select %p127, %s128, %s129
      %p133 = pneg %p127
      %p134 = scmp.eq.s32.totalorder %s80, 3
      %p135 = por %p133, %p134
      %p136 = scmp.ne.s32.totalorder %s128, %s131
      %p137 = scmp.eq.s32.totalorder %s80, 0
      %p138 = por %p136, %p137
      %p139 = scmp.ne.s32.totalorder %s128, %s131
      %p140 = scmp.eq.s32.totalorder %s85, 3
      %p141 = por %p139, %p140
      %p142 = scmp.ne.s32.totalorder %s131, %s132
      %p143 = scmp.eq.s32.totalorder %s85, 0
      %p144 = por %p142, %p143
      %p145 = scmp.ne.s32.totalorder %s131, %s132
      %p146 = scmp.eq.s32.totalorder %s86, 3
      %p147 = por %p145, %p146
      %p149 = scmp.ne.s32.totalorder %s132, %s148
      %p150 = scmp.eq.s32.totalorder %s86, 0
      %p151 = por %p149, %p150
      %s152 = ssub.s32 %s87, %s99
      %p153 = scmp.eq.s32.totalorder %s152, 0
      %s155 = sadd.s32 %s154, 1
      %s156 = scalar_select %p153, %s154, %s155
      %p159 = pneg %p153
      %p160 = scmp.eq.s32.totalorder %s80, 3
      %p161 = por %p159, %p160
      %p162 = scmp.ne.s32.totalorder %s154, %s157
      %p163 = scmp.eq.s32.totalorder %s80, 0
      %p164 = por %p162, %p163
      %p165 = scmp.ne.s32.totalorder %s154, %s157
      %p166 = scmp.eq.s32.totalorder %s85, 3
      %p167 = por %p165, %p166
      %p168 = scmp.ne.s32.totalorder %s157, %s158
      %p169 = scmp.eq.s32.totalorder %s85, 0
      %p170 = por %p168, %p169
      %p171 = scmp.ne.s32.totalorder %s157, %s158
      %p172 = scmp.eq.s32.totalorder %s86, 3
      %p173 = por %p171, %p172
      %p175 = scmp.ne.s32.totalorder %s158, %s174
      %p176 = scmp.eq.s32.totalorder %s86, 0
      %p177 = por %p175, %p176
      %s178 = ssub.s32 %s87, %s99
      %p179 = scmp.eq.s32.totalorder %s178, 0
      %s181 = sadd.s32 %s180, 1
      %s182 = scalar_select %p179, %s180, %s181
      %p185 = pneg %p179
      %p186 = scmp.eq.s32.totalorder %s80, 3
      %p187 = por %p185, %p186
      %p188 = scmp.ne.s32.totalorder %s180, %s183
      %p189 = scmp.eq.s32.totalorder %s80, 0
      %p190 = por %p188, %p189
      %p191 = scmp.ne.s32.totalorder %s180, %s183
      %p192 = scmp.eq.s32.totalorder %s85, 3
      %p193 = por %p191, %p192
      %p194 = scmp.ne.s32.totalorder %s183, %s184
      %p195 = scmp.eq.s32.totalorder %s85, 0
      %p196 = por %p194, %p195
      %p197 = scmp.ne.s32.totalorder %s183, %s184
      %p198 = scmp.eq.s32.totalorder %s86, 3
      %p199 = por %p197, %p198
      %p201 = scmp.ne.s32.totalorder %s184, %s200
      %p202 = scmp.eq.s32.totalorder %s86, 0
      %p203 = por %p201, %p202
      %s204 = ssub.s32 %s87, %s99
      %p205 = scmp.eq.s32.totalorder %s204, 0
      %s207 = sadd.s32 %s206, 1
      %s208 = scalar_select %p205, %s206, %s207
      %p211 = pneg %p205
      %p212 = scmp.eq.s32.totalorder %s80, 3
      %p213 = por %p211, %p212
      %p214 = scmp.ne.s32.totalorder %s206, %s209
      %p215 = scmp.eq.s32.totalorder %s80, 0
      %p216 = por %p214, %p215
      %p217 = scmp.ne.s32.totalorder %s206, %s209
      %p218 = scmp.eq.s32.totalorder %s85, 3
      %p219 = por %p217, %p218
      %p220 = scmp.ne.s32.totalorder %s209, %s210
      %p221 = scmp.eq.s32.totalorder %s85, 0
      %p222 = por %p220, %p221
      %p223 = scmp.ne.s32.totalorder %s209, %s210
      %p224 = scmp.eq.s32.totalorder %s86, 3
      %p225 = por %p223, %p224
      %p227 = scmp.ne.s32.totalorder %s210, %s226
      %p228 = scmp.eq.s32.totalorder %s86, 0
      %p229 = por %p227, %p228
      %s230 = ssub.s32 %s88, %s95
      %p231 = scmp.eq.s32.totalorder %s230, 0
      %s233 = sadd.s32 %s232, 1
      %s234 = scalar_select %p231, %s232, %s233
      %p237 = pneg %p231
      %p238 = scmp.eq.s32.totalorder %s80, 3
      %p239 = por %p237, %p238
      %p240 = scmp.ne.s32.totalorder %s232, %s235
      %p241 = scmp.eq.s32.totalorder %s80, 0
      %p242 = por %p240, %p241
      %p243 = scmp.ne.s32.totalorder %s232, %s235
      %p244 = scmp.eq.s32.totalorder %s85, 3
      %p245 = por %p243, %p244
      %p246 = scmp.ne.s32.totalorder %s235, %s236
      %p247 = scmp.eq.s32.totalorder %s85, 0
      %p248 = por %p246, %p247
      %p249 = scmp.ne.s32.totalorder %s235, %s236
      %p250 = scmp.eq.s32.totalorder %s86, 3
      %p251 = por %p249, %p250
      %p253 = scmp.ne.s32.totalorder %s236, %s252
      %p254 = scmp.eq.s32.totalorder %s86, 0
      %p255 = por %p253, %p254
      %s256 = ssub.s32 %s88, %s95
      %p257 = scmp.eq.s32.totalorder %s256, 0
      %s259 = sadd.s32 %s258, 1
      %s260 = scalar_select %p257, %s258, %s259
      %p263 = pneg %p257
      %p264 = scmp.eq.s32.totalorder %s80, 3
      %p265 = por %p263, %p264
      %p266 = scmp.ne.s32.totalorder %s258, %s261
      %p267 = scmp.eq.s32.totalorder %s80, 0
      %p268 = por %p266, %p267
      %p269 = scmp.ne.s32.totalorder %s258, %s261
      %p270 = scmp.eq.s32.totalorder %s85, 3
      %p271 = por %p269, %p270
      %p272 = scmp.ne.s32.totalorder %s261, %s262
      %p273 = scmp.eq.s32.totalorder %s85, 0
      %p274 = por %p272, %p273
      %p275 = scmp.ne.s32.totalorder %s261, %s262
      %p276 = scmp.eq.s32.totalorder %s86, 3
      %p277 = por %p275, %p276
      %p279 = scmp.ne.s32.totalorder %s262, %s278
      %p280 = scmp.eq.s32.totalorder %s86, 0
      %p281 = por %p279, %p280
      %s282 = ssub.s32 %s88, %s95
      %p283 = scmp.eq.s32.totalorder %s282, 0
      %s285 = sadd.s32 %s284, 1
      %s286 = scalar_select %p283, %s284, %s285
      %p289 = pneg %p283
      %p290 = scmp.eq.s32.totalorder %s80, 3
      %p291 = por %p289, %p290
      %p292 = scmp.ne.s32.totalorder %s284, %s287
      %p293 = scmp.eq.s32.totalorder %s80, 0
      %p294 = por %p292, %p293
      %p295 = scmp.ne.s32.totalorder %s284, %s287
      %p296 = scmp.eq.s32.totalorder %s85, 3
      %p297 = por %p295, %p296
      %p298 = scmp.ne.s32.totalorder %s287, %s288
      %p299 = scmp.eq.s32.totalorder %s85, 0
      %p300 = por %p298, %p299
      %p301 = scmp.ne.s32.totalorder %s287, %s288
      %p302 = scmp.eq.s32.totalorder %s86, 3
      %p303 = por %p301, %p302
      %p305 = scmp.ne.s32.totalorder %s288, %s304
      %p306 = scmp.eq.s32.totalorder %s86, 0
      %p307 = por %p305, %p306
      %s308 = ssub.s32 %s88, %s95
      %p309 = scmp.eq.s32.totalorder %s308, 0
      %s311 = sadd.s32 %s310, 1
      %s312 = scalar_select %p309, %s310, %s311
      %p315 = pneg %p309
      %p316 = scmp.eq.s32.totalorder %s80, 3
      %p317 = por %p315, %p316
      %p318 = scmp.ne.s32.totalorder %s310, %s313
      %p319 = scmp.eq.s32.totalorder %s80, 0
      %p320 = por %p318, %p319
      %p321 = scmp.ne.s32.totalorder %s310, %s313
      %p322 = scmp.eq.s32.totalorder %s85, 3
      %p323 = por %p321, %p322
      %p324 = scmp.ne.s32.totalorder %s313, %s314
      %p325 = scmp.eq.s32.totalorder %s85, 0
      %p326 = por %p324, %p325
      %p327 = scmp.ne.s32.totalorder %s313, %s314
      %p328 = scmp.eq.s32.totalorder %s86, 3
      %p329 = por %p327, %p328
      %p331 = scmp.ne.s32.totalorder %s314, %s330
      %p332 = scmp.eq.s32.totalorder %s86, 0
      %p333 = por %p331, %p332
      %s334 = ssub.s32 %s88, %s95
      %p335 = scmp.eq.s32.totalorder %s334, 0
      %s337 = sadd.s32 %s336, 1
      %s338 = scalar_select %p335, %s336, %s337
      %p341 = pneg %p335
      %p342 = scmp.eq.s32.totalorder %s80, 3
      %p343 = por %p341, %p342
      %p344 = scmp.ne.s32.totalorder %s336, %s339
      %p345 = scmp.eq.s32.totalorder %s80, 0
      %p346 = por %p344, %p345
      %p347 = scmp.ne.s32.totalorder %s336, %s339
      %p348 = scmp.eq.s32.totalorder %s85, 3
      %p349 = por %p347, %p348
      %p350 = scmp.ne.s32.totalorder %s339, %s340
      %p351 = scmp.eq.s32.totalorder %s85, 0
      %p352 = por %p350, %p351
      %p353 = scmp.ne.s32.totalorder %s339, %s340
      %p354 = scmp.eq.s32.totalorder %s86, 3
      %p355 = por %p353, %p354
      %p357 = scmp.ne.s32.totalorder %s340, %s356
      %p358 = scmp.eq.s32.totalorder %s86, 0
      %p359 = por %p357, %p358
      %s360 = ssub.s32 %s88, %s95
      %p361 = scmp.eq.s32.totalorder %s360, 0
      %s363 = sadd.s32 %s362, 1
      %s364 = scalar_select %p361, %s362, %s363
      %p367 = pneg %p361
      %p368 = scmp.eq.s32.totalorder %s80, 3
      %p369 = por %p367, %p368
      %p370 = scmp.ne.s32.totalorder %s362, %s365
      %p371 = scmp.eq.s32.totalorder %s80, 0
      %p372 = por %p370, %p371
      %p373 = scmp.ne.s32.totalorder %s362, %s365
      %p374 = scmp.eq.s32.totalorder %s85, 3
      %p375 = por %p373, %p374
      %p376 = scmp.ne.s32.totalorder %s365, %s366
      %p377 = scmp.eq.s32.totalorder %s85, 0
      %p378 = por %p376, %p377
      %p379 = scmp.ne.s32.totalorder %s365, %s366
      %p380 = scmp.eq.s32.totalorder %s86, 3
      %p381 = por %p379, %p380
      %p383 = scmp.ne.s32.totalorder %s366, %s382
      %p384 = scmp.eq.s32.totalorder %s86, 0
      %p385 = por %p383, %p384
      %s386 = ssub.s32 %s88, %s95
      %p387 = scmp.eq.s32.totalorder %s386, 0
      %s389 = sadd.s32 %s388, 1
      %s390 = scalar_select %p387, %s388, %s389
      %p393 = pneg %p387
      %p394 = scmp.eq.s32.totalorder %s80, 3
      %p395 = por %p393, %p394
      %p396 = scmp.ne.s32.totalorder %s388, %s391
      %p397 = scmp.eq.s32.totalorder %s80, 0
      %p398 = por %p396, %p397
      %p399 = scmp.ne.s32.totalorder %s388, %s391
      %p400 = scmp.eq.s32.totalorder %s85, 3
      %p401 = por %p399, %p400
      %p402 = scmp.ne.s32.totalorder %s391, %s392
      %p403 = scmp.eq.s32.totalorder %s85, 0
      %p404 = por %p402, %p403
      %p405 = scmp.ne.s32.totalorder %s391, %s392
      %p406 = scmp.eq.s32.totalorder %s86, 3
      %p407 = por %p405, %p406
      %p409 = scmp.ne.s32.totalorder %s392, %s408
      %p410 = scmp.eq.s32.totalorder %s86, 0
      %p411 = por %p409, %p410
      %s412 = ssub.s32 %s88, %s95
      %p413 = scmp.eq.s32.totalorder %s412, 0
      %s415 = sadd.s32 %s414, 1
      %s416 = scalar_select %p413, %s414, %s415
      %p419 = pneg %p413
      %p420 = scmp.eq.s32.totalorder %s80, 3
      %p421 = por %p419, %p420
      %p422 = scmp.ne.s32.totalorder %s414, %s417
      %p423 = scmp.eq.s32.totalorder %s80, 0
      %p424 = por %p422, %p423
      %p425 = scmp.ne.s32.totalorder %s414, %s417
      %p426 = scmp.eq.s32.totalorder %s85, 3
      %p427 = por %p425, %p426
      %p428 = scmp.ne.s32.totalorder %s417, %s418
      %p429 = scmp.eq.s32.totalorder %s85, 0
      %p430 = por %p428, %p429
      %p431 = scmp.ne.s32.totalorder %s417, %s418
      %p432 = scmp.eq.s32.totalorder %s86, 3
      %p433 = por %p431, %p432
      %p435 = scmp.ne.s32.totalorder %s418, %s434
      %p436 = scmp.eq.s32.totalorder %s86, 0
      %p437 = por %p435, %p436
      %s438 = ssub.s32 %s88, %s95
      %p439 = scmp.eq.s32.totalorder %s438, 0
      %s441 = sadd.s32 %s440, 1
      %s442 = scalar_select %p439, %s440, %s441
      %p445 = pneg %p439
      %p446 = scmp.eq.s32.totalorder %s80, 3
      %p447 = por %p445, %p446
      %p448 = scmp.ne.s32.totalorder %s440, %s443
      %p449 = scmp.eq.s32.totalorder %s80, 0
      %p450 = por %p448, %p449
      %p451 = scmp.ne.s32.totalorder %s440, %s443
      %p452 = scmp.eq.s32.totalorder %s85, 3
      %p453 = por %p451, %p452
      %p454 = scmp.ne.s32.totalorder %s443, %s444
      %p455 = scmp.eq.s32.totalorder %s85, 0
      %p456 = por %p454, %p455
      %p457 = scmp.ne.s32.totalorder %s443, %s444
      %p458 = scmp.eq.s32.totalorder %s86, 3
      %p459 = por %p457, %p458
      %p461 = scmp.ne.s32.totalorder %s444, %s460
      %p462 = scmp.eq.s32.totalorder %s86, 0
      %p463 = por %p461, %p462
      %s464 = ssub.s32 %s88, %s95
      %p465 = scmp.eq.s32.totalorder %s464, 0
      %s467 = sadd.s32 %s466, 1
      %s468 = scalar_select %p465, %s466, %s467
      %p471 = pneg %p465
      %p472 = scmp.eq.s32.totalorder %s80, 3
      %p473 = por %p471, %p472
      %p474 = scmp.ne.s32.totalorder %s466, %s469
      %p475 = scmp.eq.s32.totalorder %s80, 0
      %p476 = por %p474, %p475
      %p477 = scmp.ne.s32.totalorder %s466, %s469
      %p478 = scmp.eq.s32.totalorder %s85, 3
      %p479 = por %p477, %p478
      %p480 = scmp.ne.s32.totalorder %s469, %s470
      %p481 = scmp.eq.s32.totalorder %s85, 0
      %p482 = por %p480, %p481
      %p483 = scmp.ne.s32.totalorder %s469, %s470
      %p484 = scmp.eq.s32.totalorder %s86, 3
      %p485 = por %p483, %p484
      %p487 = scmp.ne.s32.totalorder %s470, %s486
      %p488 = scmp.eq.s32.totalorder %s86, 0
      %p489 = por %p487, %p488
      %s490 = ssub.s32 %s88, %s95
      %p491 = scmp.eq.s32.totalorder %s490, 0
      %s493 = sadd.s32 %s492, 1
      %s494 = scalar_select %p491, %s492, %s493
      %p497 = pneg %p491
      %p498 = scmp.eq.s32.totalorder %s80, 3
      %p499 = por %p497, %p498
      %p500 = scmp.ne.s32.totalorder %s492, %s495
      %p501 = scmp.eq.s32.totalorder %s80, 0
      %p502 = por %p500, %p501
      %p503 = scmp.ne.s32.totalorder %s492, %s495
      %p504 = scmp.eq.s32.totalorder %s85, 3
      %p505 = por %p503, %p504
      %p506 = scmp.ne.s32.totalorder %s495, %s496
      %p507 = scmp.eq.s32.totalorder %s85, 0
      %p508 = por %p506, %p507
      %p509 = scmp.ne.s32.totalorder %s495, %s496
      %p510 = scmp.eq.s32.totalorder %s86, 3
      %p511 = por %p509, %p510
      %p513 = scmp.ne.s32.totalorder %s496, %s512
      %p514 = scmp.eq.s32.totalorder %s86, 0
      %p515 = por %p513, %p514
      %s516 = ssub.s32 %s88, %s95
      %p517 = scmp.eq.s32.totalorder %s516, 0
      %s519 = sadd.s32 %s518, 1
      %s520 = scalar_select %p517, %s518, %s519
      %p523 = pneg %p517
      %p524 = scmp.eq.s32.totalorder %s80, 3
      %p525 = por %p523, %p524
      %p526 = scmp.ne.s32.totalorder %s518, %s521
      %p527 = scmp.eq.s32.totalorder %s80, 0
      %p528 = por %p526, %p527
      %p529 = scmp.ne.s32.totalorder %s518, %s521
      %p530 = scmp.eq.s32.totalorder %s85, 3
      %p531 = por %p529, %p530
      %p532 = scmp.ne.s32.totalorder %s521, %s522
      %p533 = scmp.eq.s32.totalorder %s85, 0
      %p534 = por %p532, %p533
      %p535 = scmp.ne.s32.totalorder %s521, %s522
      %p536 = scmp.eq.s32.totalorder %s86, 3
      %p537 = por %p535, %p536
      %p539 = scmp.ne.s32.totalorder %s522, %s538
      %p540 = scmp.eq.s32.totalorder %s86, 0
      %p541 = por %p539, %p540
      %s542 = ssub.s32 %s88, %s95
      %p543 = scmp.eq.s32.totalorder %s542, 0
      %s545 = sadd.s32 %s544, 1
      %s546 = scalar_select %p543, %s544, %s545
      %p549 = pneg %p543
      %p550 = scmp.eq.s32.totalorder %s80, 3
      %p551 = por %p549, %p550
      %p552 = scmp.ne.s32.totalorder %s544, %s547
      %p553 = scmp.eq.s32.totalorder %s80, 0
      %p554 = por %p552, %p553
      %p555 = scmp.ne.s32.totalorder %s544, %s547
      %p556 = scmp.eq.s32.totalorder %s85, 3
      %p557 = por %p555, %p556
      %p558 = scmp.ne.s32.totalorder %s547, %s548
      %p559 = scmp.eq.s32.totalorder %s85, 0
      %p560 = por %p558, %p559
      %p561 = scmp.ne.s32.totalorder %s547, %s548
      %p562 = scmp.eq.s32.totalorder %s86, 3
      %p563 = por %p561, %p562
      %p565 = scmp.ne.s32.totalorder %s548, %s564
      %p566 = scmp.eq.s32.totalorder %s86, 0
      %p567 = por %p565, %p566
      %s568 = ssub.s32 %s88, %s95
      %p569 = scmp.eq.s32.totalorder %s568, 0
      %s571 = sadd.s32 %s570, 1
      %s572 = scalar_select %p569, %s570, %s571
      %p575 = pneg %p569
      %p576 = scmp.eq.s32.totalorder %s80, 3
      %p577 = por %p575, %p576
      %p578 = scmp.ne.s32.totalorder %s570, %s573
      %p579 = scmp.eq.s32.totalorder %s80, 0
      %p580 = por %p578, %p579
      %p581 = scmp.ne.s32.totalorder %s570, %s573
      %p582 = scmp.eq.s32.totalorder %s85, 3
      %p583 = por %p581, %p582
      %p584 = scmp.ne.s32.totalorder %s573, %s574
      %p585 = scmp.eq.s32.totalorder %s85, 0
      %p586 = por %p584, %p585
      %p587 = scmp.ne.s32.totalorder %s573, %s574
      %p588 = scmp.eq.s32.totalorder %s86, 3
      %p589 = por %p587, %p588
      %p591 = scmp.ne.s32.totalorder %s574, %s590
      %p592 = scmp.eq.s32.totalorder %s86, 0
      %p593 = por %p591, %p592
      %s594 = ssub.s32 %s88, %s95
      %p595 = scmp.eq.s32.totalorder %s594, 0
      %s597 = sadd.s32 %s596, 1
      %s598 = scalar_select %p595, %s596, %s597
      %p601 = pneg %p595
      %p602 = scmp.eq.s32.totalorder %s80, 3
      %p603 = por %p601, %p602
      %p604 = scmp.ne.s32.totalorder %s596, %s599
      %p605 = scmp.eq.s32.totalorder %s80, 0
      %p606 = por %p604, %p605
      %p607 = scmp.ne.s32.totalorder %s596, %s599
      %p608 = scmp.eq.s32.totalorder %s85, 3
      %p609 = por %p607, %p608
      %p610 = scmp.ne.s32.totalorder %s599, %s600
      %p611 = scmp.eq.s32.totalorder %s85, 0
      %p612 = por %p610, %p611
      %p613 = scmp.ne.s32.totalorder %s599, %s600
      %p614 = scmp.eq.s32.totalorder %s86, 3
      %p615 = por %p613, %p614
      %p617 = scmp.ne.s32.totalorder %s600, %s616
      %p618 = scmp.eq.s32.totalorder %s86, 0
      %p619 = por %p617, %p618
      %s620 = ssub.s32 %s88, %s95
      %p621 = scmp.eq.s32.totalorder %s620, 0
      %s623 = sadd.s32 %s622, 1
      %s624 = scalar_select %p621, %s622, %s623
      %p627 = pneg %p621
      %p628 = scmp.eq.s32.totalorder %s80, 3
      %p629 = por %p627, %p628
      %p630 = scmp.ne.s32.totalorder %s622, %s625
      %p631 = scmp.eq.s32.totalorder %s80, 0
      %p632 = por %p630, %p631
      %p633 = scmp.ne.s32.totalorder %s622, %s625
      %p634 = scmp.eq.s32.totalorder %s85, 3
      %p635 = por %p633, %p634
      %p636 = scmp.ne.s32.totalorder %s625, %s626
      %p637 = scmp.eq.s32.totalorder %s85, 0
      %p638 = por %p636, %p637
      %p639 = scmp.ne.s32.totalorder %s625, %s626
      %p640 = scmp.eq.s32.totalorder %s86, 3
      %p641 = por %p639, %p640
      %p643 = scmp.ne.s32.totalorder %s626, %s642
      %p644 = scmp.eq.s32.totalorder %s86, 0
      %p645 = por %p643, %p644
      %s646 = ssub.s32 %s88, %s95
      %p647 = scmp.eq.s32.totalorder %s646, 0
      %s649 = sadd.s32 %s648, 1
      %s650 = scalar_select %p647, %s648, %s649
      %p653 = pneg %p647
      %p654 = scmp.eq.s32.totalorder %s80, 3
      %p655 = por %p653, %p654
      %p656 = scmp.ne.s32.totalorder %s648, %s651
      %p657 = scmp.eq.s32.totalorder %s80, 0
      %p658 = por %p656, %p657
      %p659 = scmp.ne.s32.totalorder %s648, %s651
      %p660 = scmp.eq.s32.totalorder %s85, 3
      %p661 = por %p659, %p660
      %p662 = scmp.ne.s32.totalorder %s651, %s652
      %p663 = scmp.eq.s32.totalorder %s85, 0
      %p664 = por %p662, %p663
      %p665 = scmp.ne.s32.totalorder %s651, %s652
      %p666 = scmp.eq.s32.totalorder %s86, 3
      %p667 = por %p665, %p666
      %p669 = scmp.ne.s32.totalorder %s652, %s668
      %p670 = scmp.eq.s32.totalorder %s86, 0
      %p671 = por %p669, %p670
      %s672 = ssub.s32 %s88, %s95
      %p673 = scmp.eq.s32.totalorder %s672, 0
      %s675 = sadd.s32 %s674, 1
      %s676 = scalar_select %p673, %s674, %s675
      %p679 = pneg %p673
      %p680 = scmp.eq.s32.totalorder %s80, 3
      %p681 = por %p679, %p680
      %p682 = scmp.ne.s32.totalorder %s674, %s677
      %p683 = scmp.eq.s32.totalorder %s80, 0
      %p684 = por %p682, %p683
      %p685 = scmp.ne.s32.totalorder %s674, %s677
      %p686 = scmp.eq.s32.totalorder %s85, 3
      %p687 = por %p685, %p686
      %p688 = scmp.ne.s32.totalorder %s677, %s678
      %p689 = scmp.eq.s32.totalorder %s85, 0
      %p690 = por %p688, %p689
      %p691 = scmp.ne.s32.totalorder %s677, %s678
      %p692 = scmp.eq.s32.totalorder %s86, 3
      %p693 = por %p691, %p692
      %p695 = scmp.ne.s32.totalorder %s678, %s694
      %p696 = scmp.eq.s32.totalorder %s86, 0
      %p697 = por %p695, %p696
      %s698 = ssub.s32 %s88, %s95
      %p699 = scmp.eq.s32.totalorder %s698, 0
      %s701 = sadd.s32 %s700, 1
      %s702 = scalar_select %p699, %s700, %s701
      %p705 = pneg %p699
      %p706 = scmp.eq.s32.totalorder %s80, 3
      %p707 = por %p705, %p706
      %p708 = scmp.ne.s32.totalorder %s700, %s703
      %p709 = scmp.eq.s32.totalorder %s80, 0
      %p710 = por %p708, %p709
      %p711 = scmp.ne.s32.totalorder %s700, %s703
      %p712 = scmp.eq.s32.totalorder %s85, 3
      %p713 = por %p711, %p712
      %p714 = scmp.ne.s32.totalorder %s703, %s704
      %p715 = scmp.eq.s32.totalorder %s85, 0
      %p716 = por %p714, %p715
      %p717 = scmp.ne.s32.totalorder %s703, %s704
      %p718 = scmp.eq.s32.totalorder %s86, 3
      %p719 = por %p717, %p718
      %p721 = scmp.ne.s32.totalorder %s704, %s720
      %p722 = scmp.eq.s32.totalorder %s86, 0
      %p723 = por %p721, %p722
      %s724 = ssub.s32 %s88, %s95
      %p725 = scmp.eq.s32.totalorder %s724, 0
      %s727 = sadd.s32 %s726, 1
      %s728 = scalar_select %p725, %s726, %s727
      %p731 = pneg %p725
      %p732 = scmp.eq.s32.totalorder %s80, 3
      %p733 = por %p731, %p732
      %p734 = scmp.ne.s32.totalorder %s726, %s729
      %p735 = scmp.eq.s32.totalorder %s80, 0
      %p736 = por %p734, %p735
      %p737 = scmp.ne.s32.totalorder %s726, %s729
      %p738 = scmp.eq.s32.totalorder %s85, 3
      %p739 = por %p737, %p738
      %p740 = scmp.ne.s32.totalorder %s729, %s730
      %p741 = scmp.eq.s32.totalorder %s85, 0
      %p742 = por %p740, %p741
      %p743 = scmp.ne.s32.totalorder %s729, %s730
      %p744 = scmp.eq.s32.totalorder %s86, 3
      %p745 = por %p743, %p744
      %p747 = scmp.ne.s32.totalorder %s730, %s746
      %p748 = scmp.eq.s32.totalorder %s86, 0
      %p749 = por %p747, %p748
      %s750 = ssub.s32 %s88, %s95
      %p751 = scmp.eq.s32.totalorder %s750, 0
      %s753 = sadd.s32 %s752, 1
      %s754 = scalar_select %p751, %s752, %s753
      %p757 = pneg %p751
      %p758 = scmp.eq.s32.totalorder %s80, 3
      %p759 = por %p757, %p758
      %p760 = scmp.ne.s32.totalorder %s752, %s755
      %p761 = scmp.eq.s32.totalorder %s80, 0
      %p762 = por %p760, %p761
      %p763 = scmp.ne.s32.totalorder %s752, %s755
      %p764 = scmp.eq.s32.totalorder %s85, 3
      %p765 = por %p763, %p764
      %p766 = scmp.ne.s32.totalorder %s755, %s756
      %p767 = scmp.eq.s32.totalorder %s85, 0
      %p768 = por %p766, %p767
      %p769 = scmp.ne.s32.totalorder %s755, %s756
      %p770 = scmp.eq.s32.totalorder %s86, 3
      %p771 = por %p769, %p770
      %p773 = scmp.ne.s32.totalorder %s756, %s772
      %p774 = scmp.eq.s32.totalorder %s86, 0
      %p775 = por %p773, %p774
      %s776 = ssub.s32 %s88, %s95
      %p777 = scmp.eq.s32.totalorder %s776, 0
      %s779 = sadd.s32 %s778, 1
      %s780 = scalar_select %p777, %s778, %s779
      %p783 = pneg %p777
      %p784 = scmp.eq.s32.totalorder %s80, 3
      %p785 = por %p783, %p784
      %p786 = scmp.ne.s32.totalorder %s778, %s781
      %p787 = scmp.eq.s32.totalorder %s80, 0
      %p788 = por %p786, %p787
      %p789 = scmp.ne.s32.totalorder %s778, %s781
      %p790 = scmp.eq.s32.totalorder %s85, 3
      %p791 = por %p789, %p790
      %p792 = scmp.ne.s32.totalorder %s781, %s782
      %p793 = scmp.eq.s32.totalorder %s85, 0
      %p794 = por %p792, %p793
      %p795 = scmp.ne.s32.totalorder %s781, %s782
      %p796 = scmp.eq.s32.totalorder %s86, 3
      %p797 = por %p795, %p796
      %p799 = scmp.ne.s32.totalorder %s782, %s798
      %p800 = scmp.eq.s32.totalorder %s86, 0
      %p801 = por %p799, %p800
      %s802 = ssub.s32 %s88, %s95
      %p803 = scmp.eq.s32.totalorder %s802, 0
      %s805 = sadd.s32 %s804, 1
      %s806 = scalar_select %p803, %s804, %s805
      %p809 = pneg %p803
      %p810 = scmp.eq.s32.totalorder %s80, 3
      %p811 = por %p809, %p810
      %p812 = scmp.ne.s32.totalorder %s804, %s807
      %p813 = scmp.eq.s32.totalorder %s80, 0
      %p814 = por %p812, %p813
      %p815 = scmp.ne.s32.totalorder %s804, %s807
      %p816 = scmp.eq.s32.totalorder %s85, 3
      %p817 = por %p815, %p816
      %p818 = scmp.ne.s32.totalorder %s807, %s808
      %p819 = scmp.eq.s32.totalorder %s85, 0
      %p820 = por %p818, %p819
      %p821 = scmp.ne.s32.totalorder %s807, %s808
      %p822 = scmp.eq.s32.totalorder %s86, 3
      %p823 = por %p821, %p822
      %p825 = scmp.ne.s32.totalorder %s808, %s824
      %p826 = scmp.eq.s32.totalorder %s86, 0
      %p827 = por %p825, %p826
      %s828 = ssub.s32 %s88, %s95
      %p829 = scmp.eq.s32.totalorder %s828, 0
      %s831 = sadd.s32 %s830, 1
      %s832 = scalar_select %p829, %s830, %s831
      %p835 = pneg %p829
      %p836 = scmp.eq.s32.totalorder %s80, 3
      %p837 = por %p835, %p836
      %p838 = scmp.ne.s32.totalorder %s830, %s833
      %p839 = scmp.eq.s32.totalorder %s80, 0
      %p840 = por %p838, %p839
      %p841 = scmp.ne.s32.totalorder %s830, %s833
      %p842 = scmp.eq.s32.totalorder %s85, 3
      %p843 = por %p841, %p842
      %p844 = scmp.ne.s32.totalorder %s833, %s834
      %p845 = scmp.eq.s32.totalorder %s85, 0
      %p846 = por %p844, %p845
      %p847 = scmp.ne.s32.totalorder %s833, %s834
      %p848 = scmp.eq.s32.totalorder %s86, 3
      %p849 = por %p847, %p848
      %p851 = scmp.ne.s32.totalorder %s834, %s850
      %p852 = scmp.eq.s32.totalorder %s86, 0
      %p853 = por %p851, %p852
      %s854 = ssub.s32 %s88, %s95
      %p855 = scmp.eq.s32.totalorder %s854, 0
      %s857 = sadd.s32 %s856, 1
      %s858 = scalar_select %p855, %s856, %s857
      %p861 = pneg %p855
      %p862 = scmp.eq.s32.totalorder %s80, 3
      %p863 = por %p861, %p862
      %p864 = scmp.ne.s32.totalorder %s856, %s859
      %p865 = scmp.eq.s32.totalorder %s80, 0
      %p866 = por %p864, %p865
      %p867 = scmp.ne.s32.totalorder %s856, %s859
      %p868 = scmp.eq.s32.totalorder %s85, 3
      %p869 = por %p867, %p868
      %p870 = scmp.ne.s32.totalorder %s859, %s860
      %p871 = scmp.eq.s32.totalorder %s85, 0
      %p872 = por %p870, %p871
      %p873 = scmp.ne.s32.totalorder %s859, %s860
      %p874 = scmp.eq.s32.totalorder %s86, 3
      %p875 = por %p873, %p874
      %p877 = scmp.ne.s32.totalorder %s860, %s876
      %p878 = scmp.eq.s32.totalorder %s86, 0
      %p879 = por %p877, %p878
      %s880 = ssub.s32 %s88, %s95
      %p881 = scmp.eq.s32.totalorder %s880, 0
      %s883 = sadd.s32 %s882, 1
      %s884 = scalar_select %p881, %s882, %s883
      %p887 = pneg %p881
      %p888 = scmp.eq.s32.totalorder %s80, 3
      %p889 = por %p887, %p888
      %p890 = scmp.ne.s32.totalorder %s882, %s885
      %p891 = scmp.eq.s32.totalorder %s80, 0
      %p892 = por %p890, %p891
      %p893 = scmp.ne.s32.totalorder %s882, %s885
      %p894 = scmp.eq.s32.totalorder %s85, 3
      %p895 = por %p893, %p894
      %p896 = scmp.ne.s32.totalorder %s885, %s886
      %p897 = scmp.eq.s32.totalorder %s85, 0
      %p898 = por %p896, %p897
      %p899 = scmp.ne.s32.totalorder %s885, %s886
      %p900 = scmp.eq.s32.totalorder %s86, 3
      %p901 = por %p899, %p900
      %p903 = scmp.ne.s32.totalorder %s886, %s902
      %p904 = scmp.eq.s32.totalorder %s86, 0
      %p905 = por %p903, %p904
      %s906 = ssub.s32 %s88, %s95
      %p907 = scmp.eq.s32.totalorder %s906, 0
      %s909 = sadd.s32 %s908, 1
      %s910 = scalar_select %p907, %s908, %s909
      %p913 = pneg %p907
      %p914 = scmp.eq.s32.totalorder %s80, 3
      %p915 = por %p913, %p914
      %p916 = scmp.ne.s32.totalorder %s908, %s911
      %p917 = scmp.eq.s32.totalorder %s80, 0
      %p918 = por %p916, %p917
      %p919 = scmp.ne.s32.totalorder %s908, %s911
      %p920 = scmp.eq.s32.totalorder %s85, 3
      %p921 = por %p919, %p920
      %p922 = scmp.ne.s32.totalorder %s911, %s912
      %p923 = scmp.eq.s32.totalorder %s85, 0
      %p924 = por %p922, %p923
      %p925 = scmp.ne.s32.totalorder %s911, %s912
      %p926 = scmp.eq.s32.totalorder %s86, 3
      %p927 = por %p925, %p926
      %p929 = scmp.ne.s32.totalorder %s912, %s928
      %p930 = scmp.eq.s32.totalorder %s86, 0
      %p931 = por %p929, %p930
      %s932 = ssub.s32 %s87, %s99
      %p933 = scmp.eq.s32.totalorder %s932, 0
      %s935 = sadd.s32 %s934, 1
      %s936 = scalar_select %p933, %s934, %s935
      %p939 = pneg %p933
      %p940 = scmp.eq.s32.totalorder %s80, 3
      %p941 = por %p939, %p940
      %p942 = scmp.ne.s32.totalorder %s934, %s937
      %p943 = scmp.eq.s32.totalorder %s80, 0
      %p944 = por %p942, %p943
      %p945 = scmp.ne.s32.totalorder %s934, %s937
      %p946 = scmp.eq.s32.totalorder %s85, 3
      %p947 = por %p945, %p946
      %p948 = scmp.ne.s32.totalorder %s937, %s938
      %p949 = scmp.eq.s32.totalorder %s85, 0
      %p950 = por %p948, %p949
      %p951 = scmp.ne.s32.totalorder %s937, %s938
      %p952 = scmp.eq.s32.totalorder %s86, 3
      %p953 = por %p951, %p952
      %p955 = scmp.ne.s32.totalorder %s938, %s954
      %p956 = scmp.eq.s32.totalorder %s86, 0
      %p957 = por %p955, %p956
      %s958 = ssub.s32 %s87, %s99
      %p959 = scmp.eq.s32.totalorder %s958, 0
      %s961 = sadd.s32 %s960, 1
      %s962 = scalar_select %p959, %s960, %s961
      %p965 = pneg %p959
      %p966 = scmp.eq.s32.totalorder %s80, 3
      %p967 = por %p965, %p966
      %p968 = scmp.ne.s32.totalorder %s960, %s963
      %p969 = scmp.eq.s32.totalorder %s80, 0
      %p970 = por %p968, %p969
      %p971 = scmp.ne.s32.totalorder %s960, %s963
      %p972 = scmp.eq.s32.totalorder %s85, 3
      %p973 = por %p971, %p972
      %p974 = scmp.ne.s32.totalorder %s963, %s964
      %p975 = scmp.eq.s32.totalorder %s85, 0
      %p976 = por %p974, %p975
      %p977 = scmp.ne.s32.totalorder %s963, %s964
      %p978 = scmp.eq.s32.totalorder %s86, 3
      %p979 = por %p977, %p978
      %p981 = scmp.ne.s32.totalorder %s964, %s980
      %p982 = scmp.eq.s32.totalorder %s86, 0
      %p983 = por %p981, %p982
      %p984 = scmp.le.s32.totalorder 1, %s80
      %p985 = scmp.lt.s32.totalorder %s80, 5
      %p986 = pnand %p984, %p985
      %p987 = pneg %p986
      // Predicated region
      $region9: #{lang_enhanced_ipa_decoder.1} parent=5 // pred_check
        _
      $region10: #{lang_enhanced_ipa_decoder.1} parent=5 // pred_check_branch
        %989 = sbr.rel (%p986) target = $region12
      $region11: #{lang_enhanced_ipa_decoder.1} parent=5 // pred_region
        %s990 = ssub.s32 %s80, 1
      $region12: #{lang_enhanced_ipa_decoder.1} parent=5 // pred_fallthru
        _
      %p991 = scmp.lt.s32.totalorder %s80, 4
      // Predicated region
      $region13: #{lang_enhanced_ipa_decoder.1} parent=5 // pred_check
        %p992 = pneg %p991
      $region14: #{lang_enhanced_ipa_decoder.1} parent=5 // pred_check_branch
        %994 = sbr.rel (%p992) target = $region16
      $region15: #{lang_enhanced_ipa_decoder.1} parent=5 // pred_region
        // Predicated region
        $region17: #{lang_enhanced_ipa_decoder.1} parent=15 // pred_check
          %p995 = pneg %p112
        $region18: #{lang_enhanced_ipa_decoder.1} parent=15 // pred_check_branch
          %997 = sbr.rel (%p995) target = $region20
        $region19: #{lang_enhanced_ipa_decoder.1} parent=15 // pred_region
          %p998 = scmp.lt.s32.totalorder %s87, 1
          %s999 = scalar_select %p998, %s87, 1
          %s1000 = smul.addr %s999, 8
          %s1001 = scalar_lea.vmem %s1, %s1000
        $region20: #{lang_enhanced_ipa_decoder.1} parent=15 // pred_fallthru
          _
        // Predicated region
        $region21: #{lang_enhanced_ipa_decoder.1} parent=15 // pred_check
          %p1002 = pneg %p138
        $region22: #{lang_enhanced_ipa_decoder.1} parent=15 // pred_check_branch
          %1004 = sbr.rel (%p1002) target = $region24
        $region23: #{lang_enhanced_ipa_decoder.1} parent=15 // pred_region
          %p1005 = scmp.lt.s32.totalorder %s87, 1
          %s1006 = scalar_select %p1005, %s87, 1
          %s1007 = smul.addr %s1006, 2
          %s1008 = smul.addr %s1007, 8
          %s1009 = scalar_lea.vmem %s3, %s1008
        $region24: #{lang_enhanced_ipa_decoder.1} parent=15 // pred_fallthru
          _
        // Predicated region
        $region25: #{lang_enhanced_ipa_decoder.1} parent=15 // pred_check
          %p1010 = pneg %p164
        $region26: #{lang_enhanced_ipa_decoder.1} parent=15 // pred_check_branch
          %1012 = sbr.rel (%p1010) target = $region28
        $region27: #{lang_enhanced_ipa_decoder.1} parent=15 // pred_region
          %p1013 = scmp.lt.s32.totalorder %s87, 1
          %s1014 = scalar_select %p1013, %s87, 1
          %s1015 = smul.addr %s1014, 8
          %s1016 = scalar_lea.vmem %s5, %s1015
        $region28: #{lang_enhanced_ipa_decoder.1} parent=15 // pred_fallthru
          _
        // Predicated region
        $region29: #{lang_enhanced_ipa_decoder.1} parent=15 // pred_check
          %p1017 = pneg %p190
        $region30: #{lang_enhanced_ipa_decoder.1} parent=15 // pred_check_branch
          %1019 = sbr.rel (%p1017) target = $region32
        $region31: #{lang_enhanced_ipa_decoder.1} parent=15 // pred_region
          %p1020 = scmp.lt.s32.totalorder %s87, 1
          %s1021 = scalar_select %p1020, %s87, 1
          %s1022 = smul.addr %s1021, 8
          %s1023 = scalar_lea.vmem %s7, %s1022
        $region32: #{lang_enhanced_ipa_decoder.1} parent=15 // pred_fallthru
          _
        // Predicated region
        $region33: #{lang_enhanced_ipa_decoder.1} parent=15 // pred_check
          %p1024 = pneg %p216
        $region34: #{lang_enhanced_ipa_decoder.1} parent=15 // pred_check_branch
          %1026 = sbr.rel (%p1024) target = $region36
        $region35: #{lang_enhanced_ipa_decoder.1} parent=15 // pred_region
          %p1027 = scmp.lt.s32.totalorder %s87, 1
          %s1028 = scalar_select %p1027, %s87, 1
          %s1029 = smul.addr %s1028, 2
          %s1030 = smul.addr %s1029, 8
          %s1031 = scalar_lea.vmem %s9, %s1030
        $region36: #{lang_enhanced_ipa_decoder.1} parent=15 // pred_fallthru
          _
        // Predicated region
        $region37: #{lang_enhanced_ipa_decoder.1} parent=15 // pred_check
          %p1032 = pneg %p242
        $region38: #{lang_enhanced_ipa_decoder.1} parent=15 // pred_check_branch
          %1034 = sbr.rel (%p1032) target = $region40
        $region39: #{lang_enhanced_ipa_decoder.1} parent=15 // pred_region
          %p1035 = scmp.lt.s32.totalorder %s88, 1
          %s1036 = scalar_select %p1035, %s88, 1
          %s1037 = scalar_lea.vmem %s11, %s1036
        $region40: #{lang_enhanced_ipa_decoder.1} parent=15 // pred_fallthru
          _
        // Predicated region
        $region41: #{lang_enhanced_ipa_decoder.1} parent=15 // pred_check
          %p1038 = pneg %p268
        $region42: #{lang_enhanced_ipa_decoder.1} parent=15 // pred_check_branch
          %1040 = sbr.rel (%p1038) target = $region44
        $region43: #{lang_enhanced_ipa_decoder.1} parent=15 // pred_region
          %p1041 = scmp.lt.s32.totalorder %s88, 1
          %s1042 = scalar_select %p1041, %s88, 1
          %s1043 = scalar_lea.vmem %s13, %s1042
        $region44: #{lang_enhanced_ipa_decoder.1} parent=15 // pred_fallthru
          _
        // Predicated region
        $region45: #{lang_enhanced_ipa_decoder.1} parent=15 // pred_check
          %p1044 = pneg %p294
        $region46: #{lang_enhanced_ipa_decoder.1} parent=15 // pred_check_branch
          %1046 = sbr.rel (%p1044) target = $region48
        $region47: #{lang_enhanced_ipa_decoder.1} parent=15 // pred_region
          %p1047 = scmp.lt.s32.totalorder %s88, 1
          %s1048 = scalar_select %p1047, %s88, 1
          %s1049 = smul.addr %s1048, 8
          %s1050 = smul.addr %s1049, 8
          %s1051 = scalar_lea.vmem %s15, %s1050
        $region48: #{lang_enhanced_ipa_decoder.1} parent=15 // pred_fallthru
          _
        // Predicated region
        $region49: #{lang_enhanced_ipa_decoder.1} parent=15 // pred_check
          %p1052 = pneg %p320
        $region50: #{lang_enhanced_ipa_decoder.1} parent=15 // pred_check_branch
          %1054 = sbr.rel (%p1052) target = $region52
        $region51: #{lang_enhanced_ipa_decoder.1} parent=15 // pred_region
          %p1055 = scmp.lt.s32.totalorder %s88, 1
          %s1056 = scalar_select %p1055, %s88, 1
          %s1057 = smul.addr %s1056, 16
          %s1058 = smul.addr %s1057, 8
          %s1059 = scalar_lea.vmem %s17, %s1058
        $region52: #{lang_enhanced_ipa_decoder.1} parent=15 // pred_fallthru
          _
        // Predicated region
        $region53: #{lang_enhanced_ipa_decoder.1} parent=15 // pred_check
          %p1060 = pneg %p346
        $region54: #{lang_enhanced_ipa_decoder.1} parent=15 // pred_check_branch
          %1062 = sbr.rel (%p1060) target = $region56
        $region55: #{lang_enhanced_ipa_decoder.1} parent=15 // pred_region
          %p1063 = scmp.lt.s32.totalorder %s88, 1
          %s1064 = scalar_select %p1063, %s88, 1
          %s1065 = scalar_lea.vmem %s19, %s1064
        $region56: #{lang_enhanced_ipa_decoder.1} parent=15 // pred_fallthru
          _
        // Predicated region
        $region57: #{lang_enhanced_ipa_decoder.1} parent=15 // pred_check
          %p1066 = pneg %p372
        $region58: #{lang_enhanced_ipa_decoder.1} parent=15 // pred_check_branch
          %1068 = sbr.rel (%p1066) target = $region60
        $region59: #{lang_enhanced_ipa_decoder.1} parent=15 // pred_region
          %p1069 = scmp.lt.s32.totalorder %s88, 1
          %s1070 = scalar_select %p1069, %s88, 1
          %s1071 = smul.addr %s1070, 40
          %s1072 = smul.addr %s1071, 8
          %s1073 = scalar_lea.vmem %s21, %s1072
        $region60: #{lang_enhanced_ipa_decoder.1} parent=15 // pred_fallthru
          _
        // Predicated region
        $region61: #{lang_enhanced_ipa_decoder.1} parent=15 // pred_check
          %p1074 = pneg %p398
        $region62: #{lang_enhanced_ipa_decoder.1} parent=15 // pred_check_branch
          %1076 = sbr.rel (%p1074) target = $region64
        $region63: #{lang_enhanced_ipa_decoder.1} parent=15 // pred_region
          %p1077 = scmp.lt.s32.totalorder %s88, 1
          %s1078 = scalar_select %p1077, %s88, 1
          %s1079 = scalar_lea.vmem %s23, %s1078
        $region64: #{lang_enhanced_ipa_decoder.1} parent=15 // pred_fallthru
          _
        // Predicated region
        $region65: #{lang_enhanced_ipa_decoder.1} parent=15 // pred_check
          %p1080 = pneg %p424
        $region66: #{lang_enhanced_ipa_decoder.1} parent=15 // pred_check_branch
          %1082 = sbr.rel (%p1080) target = $region68
        $region67: #{lang_enhanced_ipa_decoder.1} parent=15 // pred_region
          %p1083 = scmp.lt.s32.totalorder %s88, 1
          %s1084 = scalar_select %p1083, %s88, 1
          %s1085 = scalar_lea.vmem %s25, %s1084
        $region68: #{lang_enhanced_ipa_decoder.1} parent=15 // pred_fallthru
          _
        // Predicated region
        $region69: #{lang_enhanced_ipa_decoder.1} parent=15 // pred_check
          %p1086 = pneg %p450
        $region70: #{lang_enhanced_ipa_decoder.1} parent=15 // pred_check_branch
          %1088 = sbr.rel (%p1086) target = $region72
        $region71: #{lang_enhanced_ipa_decoder.1} parent=15 // pred_region
          %p1089 = scmp.lt.s32.totalorder %s88, 1
          %s1090 = scalar_select %p1089, %s88, 1
          %s1091 = scalar_lea.vmem %s27, %s1090
        $region72: #{lang_enhanced_ipa_decoder.1} parent=15 // pred_fallthru
          _
        // Predicated region
        $region73: #{lang_enhanced_ipa_decoder.1} parent=15 // pred_check
          %p1092 = pneg %p476
        $region74: #{lang_enhanced_ipa_decoder.1} parent=15 // pred_check_branch
          %1094 = sbr.rel (%p1092) target = $region76
        $region75: #{lang_enhanced_ipa_decoder.1} parent=15 // pred_region
          %p1095 = scmp.lt.s32.totalorder %s88, 1
          %s1096 = scalar_select %p1095, %s88, 1
          %s1097 = smul.addr %s1096, 4
          %s1098 = smul.addr %s1097, 8
          %s1099 = scalar_lea.vmem %s29, %s1098
        $region76: #{lang_enhanced_ipa_decoder.1} parent=15 // pred_fallthru
          _
        // Predicated region
        $region77: #{lang_enhanced_ipa_decoder.1} parent=15 // pred_check
          %p1100 = pneg %p502
        $region78: #{lang_enhanced_ipa_decoder.1} parent=15 // pred_check_branch
          %1102 = sbr.rel (%p1100) target = $region80
        $region79: #{lang_enhanced_ipa_decoder.1} parent=15 // pred_region
          %p1103 = scmp.lt.s32.totalorder %s88, 1
          %s1104 = scalar_select %p1103, %s88, 1
          %s1105 = scalar_lea.vmem %s31, %s1104
        $region80: #{lang_enhanced_ipa_decoder.1} parent=15 // pred_fallthru
          _
        // Predicated region
        $region81: #{lang_enhanced_ipa_decoder.1} parent=15 // pred_check
          %p1106 = pneg %p528
        $region82: #{lang_enhanced_ipa_decoder.1} parent=15 // pred_check_branch
          %1108 = sbr.rel (%p1106) target = $region84
        $region83: #{lang_enhanced_ipa_decoder.1} parent=15 // pred_region
          %p1109 = scmp.lt.s32.totalorder %s88, 1
          %s1110 = scalar_select %p1109, %s88, 1
          %s1111 = smul.addr %s1110, 16
          %s1112 = smul.addr %s1111, 8
          %s1113 = scalar_lea.vmem %s33, %s1112
        $region84: #{lang_enhanced_ipa_decoder.1} parent=15 // pred_fallthru
          _
        // Predicated region
        $region85: #{lang_enhanced_ipa_decoder.1} parent=15 // pred_check
          %p1114 = pneg %p554
        $region86: #{lang_enhanced_ipa_decoder.1} parent=15 // pred_check_branch
          %1116 = sbr.rel (%p1114) target = $region88
        $region87: #{lang_enhanced_ipa_decoder.1} parent=15 // pred_region
          %p1117 = scmp.lt.s32.totalorder %s88, 1
          %s1118 = scalar_select %p1117, %s88, 1
          %s1119 = scalar_lea.vmem %s35, %s1118
        $region88: #{lang_enhanced_ipa_decoder.1} parent=15 // pred_fallthru
          _
        // Predicated region
        $region89: #{lang_enhanced_ipa_decoder.1} parent=15 // pred_check
          %p1120 = pneg %p580
        $region90: #{lang_enhanced_ipa_decoder.1} parent=15 // pred_check_branch
          %1122 = sbr.rel (%p1120) target = $region92
        $region91: #{lang_enhanced_ipa_decoder.1} parent=15 // pred_region
          %p1123 = scmp.lt.s32.totalorder %s88, 1
          %s1124 = scalar_select %p1123, %s88, 1
          %s1125 = smul.addr %s1124, 4
          %s1126 = smul.addr %s1125, 8
          %s1127 = scalar_lea.vmem %s37, %s1126
        $region92: #{lang_enhanced_ipa_decoder.1} parent=15 // pred_fallthru
          _
        // Predicated region
        $region93: #{lang_enhanced_ipa_decoder.1} parent=15 // pred_check
          %p1128 = pneg %p606
        $region94: #{lang_enhanced_ipa_decoder.1} parent=15 // pred_check_branch
          %1130 = sbr.rel (%p1128) target = $region96
        $region95: #{lang_enhanced_ipa_decoder.1} parent=15 // pred_region
          %p1131 = scmp.lt.s32.totalorder %s88, 1
          %s1132 = scalar_select %p1131, %s88, 1
          %s1133 = scalar_lea.vmem %s39, %s1132
        $region96: #{lang_enhanced_ipa_decoder.1} parent=15 // pred_fallthru
          _
        // Predicated region
        $region97: #{lang_enhanced_ipa_decoder.1} parent=15 // pred_check
          %p1134 = pneg %p632
        $region98: #{lang_enhanced_ipa_decoder.1} parent=15 // pred_check_branch
          %1136 = sbr.rel (%p1134) target = $region100
        $region99: #{lang_enhanced_ipa_decoder.1} parent=15 // pred_region
          %p1137 = scmp.lt.s32.totalorder %s88, 1
          %s1138 = scalar_select %p1137, %s88, 1
          %s1139 = smul.addr %s1138, 4
          %s1140 = smul.addr %s1139, 8
          %s1141 = scalar_lea.vmem %s41, %s1140
        $region100: #{lang_enhanced_ipa_decoder.1} parent=15 // pred_fallthru
          _
        // Predicated region
        $region101: #{lang_enhanced_ipa_decoder.1} parent=15 // pred_check
          %p1142 = pneg %p658
        $region102: #{lang_enhanced_ipa_decoder.1} parent=15 // pred_check_branch
          %1144 = sbr.rel (%p1142) target = $region104
        $region103: #{lang_enhanced_ipa_decoder.1} parent=15 // pred_region
          %p1145 = scmp.lt.s32.totalorder %s88, 1
          %s1146 = scalar_select %p1145, %s88, 1
          %s1147 = scalar_lea.vmem %s43, %s1146
        $region104: #{lang_enhanced_ipa_decoder.1} parent=15 // pred_fallthru
          _
        // Predicated region
        $region105: #{lang_enhanced_ipa_decoder.1} parent=15 // pred_check
          %p1148 = pneg %p684
        $region106: #{lang_enhanced_ipa_decoder.1} parent=15 // pred_check_branch
          %1150 = sbr.rel (%p1148) target = $region108
        $region107: #{lang_enhanced_ipa_decoder.1} parent=15 // pred_region
          %p1151 = scmp.lt.s32.totalorder %s88, 1
          %s1152 = scalar_select %p1151, %s88, 1
          %s1153 = smul.addr %s1152, 4
          %s1154 = smul.addr %s1153, 8
          %s1155 = scalar_lea.vmem %s45, %s1154
        $region108: #{lang_enhanced_ipa_decoder.1} parent=15 // pred_fallthru
          _
        // Predicated region
        $region109: #{lang_enhanced_ipa_decoder.1} parent=15 // pred_check
          %p1156 = pneg %p710
        $region110: #{lang_enhanced_ipa_decoder.1} parent=15 // pred_check_branch
          %1158 = sbr.rel (%p1156) target = $region112
        $region111: #{lang_enhanced_ipa_decoder.1} parent=15 // pred_region
          %p1159 = scmp.lt.s32.totalorder %s88, 1
          %s1160 = scalar_select %p1159, %s88, 1
          %s1161 = scalar_lea.vmem %s47, %s1160
        $region112: #{lang_enhanced_ipa_decoder.1} parent=15 // pred_fallthru
          _
        // Predicated region
        $region113: #{lang_enhanced_ipa_decoder.1} parent=15 // pred_check
          %p1162 = pneg %p736
        $region114: #{lang_enhanced_ipa_decoder.1} parent=15 // pred_check_branch
          %1164 = sbr.rel (%p1162) target = $region116
        $region115: #{lang_enhanced_ipa_decoder.1} parent=15 // pred_region
          %p1165 = scmp.lt.s32.totalorder %s88, 1
          %s1166 = scalar_select %p1165, %s88, 1
          %s1167 = scalar_lea.vmem %s49, %s1166
        $region116: #{lang_enhanced_ipa_decoder.1} parent=15 // pred_fallthru
          _
        // Predicated region
        $region117: #{lang_enhanced_ipa_decoder.1} parent=15 // pred_check
          %p1168 = pneg %p762
        $region118: #{lang_enhanced_ipa_decoder.1} parent=15 // pred_check_branch
          %1170 = sbr.rel (%p1168) target = $region120
        $region119: #{lang_enhanced_ipa_decoder.1} parent=15 // pred_region
          %p1171 = scmp.lt.s32.totalorder %s88, 1
          %s1172 = scalar_select %p1171, %s88, 1
          %s1173 = scalar_lea.vmem %s51, %s1172
        $region120: #{lang_enhanced_ipa_decoder.1} parent=15 // pred_fallthru
          _
        // Predicated region
        $region121: #{lang_enhanced_ipa_decoder.1} parent=15 // pred_check
          %p1174 = pneg %p788
        $region122: #{lang_enhanced_ipa_decoder.1} parent=15 // pred_check_branch
          %1176 = sbr.rel (%p1174) target = $region124
        $region123: #{lang_enhanced_ipa_decoder.1} parent=15 // pred_region
          %p1177 = scmp.lt.s32.totalorder %s88, 1
          %s1178 = scalar_select %p1177, %s88, 1
          %s1179 = smul.addr %s1178, 4
          %s1180 = smul.addr %s1179, 8
          %s1181 = scalar_lea.vmem %s53, %s1180
        $region124: #{lang_enhanced_ipa_decoder.1} parent=15 // pred_fallthru
          _
        // Predicated region
        $region125: #{lang_enhanced_ipa_decoder.1} parent=15 // pred_check
          %p1182 = pneg %p814
        $region126: #{lang_enhanced_ipa_decoder.1} parent=15 // pred_check_branch
          %1184 = sbr.rel (%p1182) target = $region128
        $region127: #{lang_enhanced_ipa_decoder.1} parent=15 // pred_region
          %p1185 = scmp.lt.s32.totalorder %s88, 1
          %s1186 = scalar_select %p1185, %s88, 1
          %s1187 = scalar_lea.vmem %s55, %s1186
        $region128: #{lang_enhanced_ipa_decoder.1} parent=15 // pred_fallthru
          _
        // Predicated region
        $region129: #{lang_enhanced_ipa_decoder.1} parent=15 // pred_check
          %p1188 = pneg %p840
        $region130: #{lang_enhanced_ipa_decoder.1} parent=15 // pred_check_branch
          %1190 = sbr.rel (%p1188) target = $region132
        $region131: #{lang_enhanced_ipa_decoder.1} parent=15 // pred_region
          %p1191 = scmp.lt.s32.totalorder %s88, 1
          %s1192 = scalar_select %p1191, %s88, 1
          %s1193 = smul.addr %s1192, 16
          %s1194 = smul.addr %s1193, 8
          %s1195 = scalar_lea.vmem %s57, %s1194
        $region132: #{lang_enhanced_ipa_decoder.1} parent=15 // pred_fallthru
          _
        // Predicated region
        $region133: #{lang_enhanced_ipa_decoder.1} parent=15 // pred_check
          %p1196 = pneg %p866
        $region134: #{lang_enhanced_ipa_decoder.1} parent=15 // pred_check_branch
          %1198 = sbr.rel (%p1196) target = $region136
        $region135: #{lang_enhanced_ipa_decoder.1} parent=15 // pred_region
          %p1199 = scmp.lt.s32.totalorder %s88, 1
          %s1200 = scalar_select %p1199, %s88, 1
          %s1201 = scalar_lea.vmem %s59, %s1200
        $region136: #{lang_enhanced_ipa_decoder.1} parent=15 // pred_fallthru
          _
        // Predicated region
        $region137: #{lang_enhanced_ipa_decoder.1} parent=15 // pred_check
          %p1202 = pneg %p892
        $region138: #{lang_enhanced_ipa_decoder.1} parent=15 // pred_check_branch
          %1204 = sbr.rel (%p1202) target = $region140
        $region139: #{lang_enhanced_ipa_decoder.1} parent=15 // pred_region
          %p1205 = scmp.lt.s32.totalorder %s88, 1
          %s1206 = scalar_select %p1205, %s88, 1
          %s1207 = scalar_lea.vmem %s61, %s1206
        $region140: #{lang_enhanced_ipa_decoder.1} parent=15 // pred_fallthru
          _
        // Predicated region
        $region141: #{lang_enhanced_ipa_decoder.1} parent=15 // pred_check
          %p1208 = pneg %p918
        $region142: #{lang_enhanced_ipa_decoder.1} parent=15 // pred_check_branch
          %1210 = sbr.rel (%p1208) target = $region144
        $region143: #{lang_enhanced_ipa_decoder.1} parent=15 // pred_region
          %p1211 = scmp.lt.s32.totalorder %s88, 1
          %s1212 = scalar_select %p1211, %s88, 1
          %s1213 = scalar_lea.vmem %s63, %s1212
        $region144: #{lang_enhanced_ipa_decoder.1} parent=15 // pred_fallthru
          _
      $region16: #{lang_enhanced_ipa_decoder.1} parent=5 // pred_fallthru
        _
      %p1214 = scmp.le.s32.totalorder 1, %s80
      %p1215 = scmp.lt.s32.totalorder %s80, 5
      %p1216 = pnand %p1214, %p1215
      %p1217 = pneg %p1216
      // Predicated region
      $region145: #{lang_enhanced_ipa_decoder.1} parent=5 // pred_check
        _
      $region146: #{lang_enhanced_ipa_decoder.1} parent=5 // pred_check_branch
        %1219 = sbr.rel (%p1216) target = $region148
      $region147: #{lang_enhanced_ipa_decoder.1} parent=5 // pred_region
        %s1220 = ssub.s32 %s80, 1
        %p1221 = scmp.lt.s32.totalorder %s89, 1
        %s1222 = scalar_select %p1221, %s89, 1
        %s1223 = smul.addr %s1222, 8
        %s1224 = scalar_lea.vmem %s1, %s1223
        %p1225 = pneg %p118
        %p1226 = pneg %p115
        %p1227 = scmp.lt.s32.totalorder %s89, 1
        %s1228 = scalar_select %p1227, %s89, 1
        %s1229 = smul.addr %s1228, 2
        %s1230 = smul.addr %s1229, 8
        %s1231 = scalar_lea.vmem %s3, %s1230
        %p1232 = pneg %p144
        %p1233 = pneg %p141
        %p1234 = scmp.lt.s32.totalorder %s89, 1
        %s1235 = scalar_select %p1234, %s89, 1
        %s1236 = smul.addr %s1235, 8
        %s1237 = scalar_lea.vmem %s5, %s1236
        %p1238 = pneg %p170
        %p1239 = pneg %p167
        %p1240 = scmp.lt.s32.totalorder %s89, 1
        %s1241 = scalar_select %p1240, %s89, 1
        %s1242 = smul.addr %s1241, 8
        %s1243 = scalar_lea.vmem %s7, %s1242
        %p1244 = pneg %p196
        %p1245 = pneg %p193
        %p1246 = scmp.lt.s32.totalorder %s89, 1
        %s1247 = scalar_select %p1246, %s89, 1
        %s1248 = smul.addr %s1247, 2
        %s1249 = smul.addr %s1248, 8
        %s1250 = scalar_lea.vmem %s9, %s1249
        %p1251 = pneg %p222
        %p1252 = pneg %p219
        %p1253 = scmp.lt.s32.totalorder %s90, 1
        %s1254 = scalar_select %p1253, %s90, 1
        %s1255 = scalar_lea.vmem %s11, %s1254
        %p1256 = pneg %p248
        %p1257 = pneg %p245
        %p1258 = scmp.lt.s32.totalorder %s90, 1
        %s1259 = scalar_select %p1258, %s90, 1
        %s1260 = scalar_lea.vmem %s13, %s1259
        %p1261 = pneg %p274
        %p1262 = pneg %p271
        %p1263 = scmp.lt.s32.totalorder %s90, 1
        %s1264 = scalar_select %p1263, %s90, 1
        %s1265 = smul.addr %s1264, 8
        %s1266 = smul.addr %s1265, 8
        %s1267 = scalar_lea.vmem %s15, %s1266
        %p1268 = pneg %p300
        %p1269 = pneg %p297
        %p1270 = scmp.lt.s32.totalorder %s90, 1
        %s1271 = scalar_select %p1270, %s90, 1
        %s1272 = smul.addr %s1271, 16
        %s1273 = smul.addr %s1272, 8
        %s1274 = scalar_lea.vmem %s17, %s1273
        %p1275 = pneg %p326
        %p1276 = pneg %p323
        %p1277 = scmp.lt.s32.totalorder %s90, 1
        %s1278 = scalar_select %p1277, %s90, 1
        %s1279 = scalar_lea.vmem %s19, %s1278
        %p1280 = pneg %p352
        %p1281 = pneg %p349
        %p1282 = scmp.lt.s32.totalorder %s90, 1
        %s1283 = scalar_select %p1282, %s90, 1
        %s1284 = smul.addr %s1283, 40
        %s1285 = smul.addr %s1284, 8
        %s1286 = scalar_lea.vmem %s21, %s1285
        %p1287 = pneg %p378
        %p1288 = pneg %p375
        %p1289 = scmp.lt.s32.totalorder %s90, 1
        %s1290 = scalar_select %p1289, %s90, 1
        %s1291 = scalar_lea.vmem %s23, %s1290
        %p1292 = pneg %p404
        %p1293 = pneg %p401
        %p1294 = scmp.lt.s32.totalorder %s90, 1
        %s1295 = scalar_select %p1294, %s90, 1
        %s1296 = scalar_lea.vmem %s25, %s1295
        %p1297 = pneg %p430
        %p1298 = pneg %p427
        %p1299 = scmp.lt.s32.totalorder %s90, 1
        %s1300 = scalar_select %p1299, %s90, 1
        %s1301 = scalar_lea.vmem %s27, %s1300
        %p1302 = pneg %p456
        %p1303 = pneg %p453
        %p1304 = scmp.lt.s32.totalorder %s90, 1
        %s1305 = scalar_select %p1304, %s90, 1
        %s1306 = smul.addr %s1305, 4
        %s1307 = smul.addr %s1306, 8
        %s1308 = scalar_lea.vmem %s29, %s1307
        %p1309 = pneg %p482
        %p1310 = pneg %p479
        %p1311 = scmp.lt.s32.totalorder %s90, 1
        %s1312 = scalar_select %p1311, %s90, 1
        %s1313 = scalar_lea.vmem %s31, %s1312
        %p1314 = pneg %p508
        %p1315 = pneg %p505
        %p1316 = scmp.lt.s32.totalorder %s90, 1
        %s1317 = scalar_select %p1316, %s90, 1
        %s1318 = smul.addr %s1317, 16
        %s1319 = smul.addr %s1318, 8
        %s1320 = scalar_lea.vmem %s33, %s1319
        %p1321 = pneg %p534
        %p1322 = pneg %p531
        %p1323 = scmp.lt.s32.totalorder %s90, 1
        %s1324 = scalar_select %p1323, %s90, 1
        %s1325 = scalar_lea.vmem %s35, %s1324
        %p1326 = pneg %p560
        %p1327 = pneg %p557
        %p1328 = scmp.lt.s32.totalorder %s90, 1
        %s1329 = scalar_select %p1328, %s90, 1
        %s1330 = smul.addr %s1329, 4
        %s1331 = smul.addr %s1330, 8
        %s1332 = scalar_lea.vmem %s37, %s1331
        %p1333 = pneg %p586
        %p1334 = pneg %p583
        %p1335 = scmp.lt.s32.totalorder %s90, 1
        %s1336 = scalar_select %p1335, %s90, 1
        %s1337 = scalar_lea.vmem %s39, %s1336
        %p1338 = pneg %p612
        %p1339 = pneg %p609
        %p1340 = scmp.lt.s32.totalorder %s90, 1
        %s1341 = scalar_select %p1340, %s90, 1
        %s1342 = smul.addr %s1341, 4
        %s1343 = smul.addr %s1342, 8
        %s1344 = scalar_lea.vmem %s41, %s1343
        %p1345 = pneg %p638
        %p1346 = pneg %p635
        %p1347 = scmp.lt.s32.totalorder %s90, 1
        %s1348 = scalar_select %p1347, %s90, 1
        %s1349 = scalar_lea.vmem %s43, %s1348
        %p1350 = pneg %p664
        %p1351 = pneg %p661
        %p1352 = scmp.lt.s32.totalorder %s90, 1
        %s1353 = scalar_select %p1352, %s90, 1
        %s1354 = smul.addr %s1353, 4
        %s1355 = smul.addr %s1354, 8
        %s1356 = scalar_lea.vmem %s45, %s1355
        %p1357 = pneg %p690
        %p1358 = pneg %p687
        %p1359 = scmp.lt.s32.totalorder %s90, 1
        %s1360 = scalar_select %p1359, %s90, 1
        %s1361 = scalar_lea.vmem %s47, %s1360
        %p1362 = pneg %p716
        %p1363 = pneg %p713
        %p1364 = scmp.lt.s32.totalorder %s90, 1
        %s1365 = scalar_select %p1364, %s90, 1
        %s1366 = scalar_lea.vmem %s49, %s1365
        %p1367 = pneg %p742
        %p1368 = pneg %p739
        %p1369 = scmp.lt.s32.totalorder %s90, 1
        %s1370 = scalar_select %p1369, %s90, 1
        %s1371 = scalar_lea.vmem %s51, %s1370
        %p1372 = pneg %p768
        %p1373 = pneg %p765
        %p1374 = scmp.lt.s32.totalorder %s90, 1
        %s1375 = scalar_select %p1374, %s90, 1
        %s1376 = smul.addr %s1375, 4
        %s1377 = smul.addr %s1376, 8
        %s1378 = scalar_lea.vmem %s53, %s1377
        %p1379 = pneg %p794
        %p1380 = pneg %p791
        %p1381 = scmp.lt.s32.totalorder %s90, 1
        %s1382 = scalar_select %p1381, %s90, 1
        %s1383 = scalar_lea.vmem %s55, %s1382
        %p1384 = pneg %p820
        %p1385 = pneg %p817
        %p1386 = scmp.lt.s32.totalorder %s90, 1
        %s1387 = scalar_select %p1386, %s90, 1
        %s1388 = smul.addr %s1387, 16
        %s1389 = smul.addr %s1388, 8
        %s1390 = scalar_lea.vmem %s57, %s1389
        %p1391 = pneg %p846
        %p1392 = pneg %p843
        %p1393 = scmp.lt.s32.totalorder %s90, 1
        %s1394 = scalar_select %p1393, %s90, 1
        %s1395 = scalar_lea.vmem %s59, %s1394
        %p1396 = pneg %p872
        %p1397 = pneg %p869
        %p1398 = scmp.lt.s32.totalorder %s90, 1
        %s1399 = scalar_select %p1398, %s90, 1
        %s1400 = scalar_lea.vmem %s61, %s1399
        %p1401 = pneg %p898
        %p1402 = pneg %p895
        %p1403 = scmp.lt.s32.totalorder %s90, 1
        %s1404 = scalar_select %p1403, %s90, 1
        %s1405 = scalar_lea.vmem %s63, %s1404
        %p1406 = pneg %p924
        %p1407 = pneg %p921
        %p1408 = pneg %p950
        %p1409 = pneg %p947
        %s1410 = sand.u32 %s937, 1
        %s1411 = scalar_lea.sflag [#allocation5], %s1410
        %s1412 = sand.u32 %s937, 1
        %s1413 = smul.addr %s1412, 8
        %s1414 = scalar_lea.vmem [#allocation4], %s1413
        %p1415 = pneg %p976
        %p1416 = pneg %p973
        %s1417 = sand.u32 %s963, 1
        %s1418 = scalar_lea.sflag [#allocation7], %s1417
        %s1419 = sand.u32 %s963, 1
        %s1420 = smul.addr %s1419, 16
        %s1421 = scalar_lea.vmem [#allocation6], %s1420
        %p1422 = scmp.lt.s32.totalorder %s89, 1
        %s1423 = scalar_select %p1422, %s89, 1
        %s1424 = smul.addr %s1423, 8
        %s1425 = scalar_lea.vmem %s1, %s1424
        %p1426 = scmp.lt.s32.totalorder %s89, 1
        %s1427 = scalar_select %p1426, %s89, 1
        %s1428 = smul.addr %s1427, 2
        %s1429 = smul.addr %s1428, 8
        %s1430 = scalar_lea.vmem %s3, %s1429
        %p1431 = scmp.lt.s32.totalorder %s89, 1
        %s1432 = scalar_select %p1431, %s89, 1
        %s1433 = smul.addr %s1432, 8
        %s1434 = scalar_lea.vmem %s5, %s1433
        %p1435 = scmp.lt.s32.totalorder %s89, 1
        %s1436 = scalar_select %p1435, %s89, 1
        %s1437 = smul.addr %s1436, 8
        %s1438 = scalar_lea.vmem %s7, %s1437
        %p1439 = scmp.lt.s32.totalorder %s89, 1
        %s1440 = scalar_select %p1439, %s89, 1
        %s1441 = smul.addr %s1440, 2
        %s1442 = smul.addr %s1441, 8
        %s1443 = scalar_lea.vmem %s9, %s1442
        %p1444 = scmp.lt.s32.totalorder %s90, 1
        %s1445 = scalar_select %p1444, %s90, 1
        %s1446 = scalar_lea.vmem %s11, %s1445
        %p1447 = scmp.lt.s32.totalorder %s90, 1
        %s1448 = scalar_select %p1447, %s90, 1
        %s1449 = scalar_lea.vmem %s13, %s1448
        %p1450 = scmp.lt.s32.totalorder %s90, 1
        %s1451 = scalar_select %p1450, %s90, 1
        %s1452 = smul.addr %s1451, 8
        %s1453 = smul.addr %s1452, 8
        %s1454 = scalar_lea.vmem %s15, %s1453
        %p1455 = scmp.lt.s32.totalorder %s90, 1
        %s1456 = scalar_select %p1455, %s90, 1
        %s1457 = smul.addr %s1456, 16
        %s1458 = smul.addr %s1457, 8
        %s1459 = scalar_lea.vmem %s17, %s1458
        %p1460 = scmp.lt.s32.totalorder %s90, 1
        %s1461 = scalar_select %p1460, %s90, 1
        %s1462 = scalar_lea.vmem %s19, %s1461
        %p1463 = scmp.lt.s32.totalorder %s90, 1
        %s1464 = scalar_select %p1463, %s90, 1
        %s1465 = smul.addr %s1464, 40
        %s1466 = smul.addr %s1465, 8
        %s1467 = scalar_lea.vmem %s21, %s1466
        %p1468 = scmp.lt.s32.totalorder %s90, 1
        %s1469 = scalar_select %p1468, %s90, 1
        %s1470 = scalar_lea.vmem %s23, %s1469
        %p1471 = scmp.lt.s32.totalorder %s90, 1
        %s1472 = scalar_select %p1471, %s90, 1
        %s1473 = scalar_lea.vmem %s25, %s1472
        %p1474 = scmp.lt.s32.totalorder %s90, 1
        %s1475 = scalar_select %p1474, %s90, 1
        %s1476 = scalar_lea.vmem %s27, %s1475
        %p1477 = scmp.lt.s32.totalorder %s90, 1
        %s1478 = scalar_select %p1477, %s90, 1
        %s1479 = smul.addr %s1478, 4
        %s1480 = smul.addr %s1479, 8
        %s1481 = scalar_lea.vmem %s29, %s1480
        %p1482 = scmp.lt.s32.totalorder %s90, 1
        %s1483 = scalar_select %p1482, %s90, 1
        %s1484 = scalar_lea.vmem %s31, %s1483
        %p1485 = scmp.lt.s32.totalorder %s90, 1
        %s1486 = scalar_select %p1485, %s90, 1
        %s1487 = smul.addr %s1486, 16
        %s1488 = smul.addr %s1487, 8
        %s1489 = scalar_lea.vmem %s33, %s1488
        %p1490 = scmp.lt.s32.totalorder %s90, 1
        %s1491 = scalar_select %p1490, %s90, 1
        %s1492 = scalar_lea.vmem %s35, %s1491
        %p1493 = scmp.lt.s32.totalorder %s90, 1
        %s1494 = scalar_select %p1493, %s90, 1
        %s1495 = smul.addr %s1494, 4
        %s1496 = smul.addr %s1495, 8
        %s1497 = scalar_lea.vmem %s37, %s1496
        %p1498 = scmp.lt.s32.totalorder %s90, 1
        %s1499 = scalar_select %p1498, %s90, 1
        %s1500 = scalar_lea.vmem %s39, %s1499
        %p1501 = scmp.lt.s32.totalorder %s90, 1
        %s1502 = scalar_select %p1501, %s90, 1
        %s1503 = smul.addr %s1502, 4
        %s1504 = smul.addr %s1503, 8
        %s1505 = scalar_lea.vmem %s41, %s1504
        %p1506 = scmp.lt.s32.totalorder %s90, 1
        %s1507 = scalar_select %p1506, %s90, 1
        %s1508 = scalar_lea.vmem %s43, %s1507
        %p1509 = scmp.lt.s32.totalorder %s90, 1
        %s1510 = scalar_select %p1509, %s90, 1
        %s1511 = smul.addr %s1510, 4
        %s1512 = smul.addr %s1511, 8
        %s1513 = scalar_lea.vmem %s45, %s1512
        %p1514 = scmp.lt.s32.totalorder %s90, 1
        %s1515 = scalar_select %p1514, %s90, 1
        %s1516 = scalar_lea.vmem %s47, %s1515
        %p1517 = scmp.lt.s32.totalorder %s90, 1
        %s1518 = scalar_select %p1517, %s90, 1
        %s1519 = scalar_lea.vmem %s49, %s1518
        %p1520 = scmp.lt.s32.totalorder %s90, 1
        %s1521 = scalar_select %p1520, %s90, 1
        %s1522 = scalar_lea.vmem %s51, %s1521
        %p1523 = scmp.lt.s32.totalorder %s90, 1
        %s1524 = scalar_select %p1523, %s90, 1
        %s1525 = smul.addr %s1524, 4
        %s1526 = smul.addr %s1525, 8
        %s1527 = scalar_lea.vmem %s53, %s1526
        %p1528 = scmp.lt.s32.totalorder %s90, 1
        %s1529 = scalar_select %p1528, %s90, 1
        %s1530 = scalar_lea.vmem %s55, %s1529
        %p1531 = scmp.lt.s32.totalorder %s90, 1
        %s1532 = scalar_select %p1531, %s90, 1
        %s1533 = smul.addr %s1532, 16
        %s1534 = smul.addr %s1533, 8
        %s1535 = scalar_lea.vmem %s57, %s1534
        %p1536 = scmp.lt.s32.totalorder %s90, 1
        %s1537 = scalar_select %p1536, %s90, 1
        %s1538 = scalar_lea.vmem %s59, %s1537
        %p1539 = scmp.lt.s32.totalorder %s90, 1
        %s1540 = scalar_select %p1539, %s90, 1
        %s1541 = scalar_lea.vmem %s61, %s1540
        %p1542 = scmp.lt.s32.totalorder %s90, 1
        %s1543 = scalar_select %p1542, %s90, 1
        %s1544 = scalar_lea.vmem %s63, %s1543
        %p1545 = scmp.eq.s32.totalorder %s90, 0
        // Predicated region
        $region149: #{lang_enhanced_ipa_decoder.1} parent=147 // pred_check
          %p1546 = pneg %p1545
        $region150: #{lang_enhanced_ipa_decoder.1} parent=147 // pred_check_branch
          %1548 = sbr.rel (%p1546) target = $region152
        $region151: #{lang_enhanced_ipa_decoder.1} parent=147 // pred_region
          %v1549 = vld [vmem:[%s1425] sm:$0xff]
          %vm1550 = vcmask 261120
          %1551 = vst.msk [vmem:[#allocation2] sm:$0xff] %vm1550, %v1549
          %v1552 = vld [vmem:[%s1430] sm:$0xff]
          %v1553 = vld [vmem:[%s1430 + $0x8] sm:$0xff]
          %1554 = vst.msk [vmem:[#allocation3] sm:$0xff] %vm1550, %v1552
          %1555 = vst.msk [vmem:[#allocation3 + $0x8] sm:$0xff] %vm1550, %v1553
        $region152: #{lang_enhanced_ipa_decoder.1} parent=147 // pred_fallthru
          _
        %v1556 = vld [vmem:[#allocation2] sm:$0xff]
        %v1557 = vld [vmem:[#allocation3] sm:$0xff]
        %v1558 = vld [vmem:[#allocation3 + $0x8] sm:$0xff]
        %v1559 = vld [vmem:[%s1434] sm:$0xff]
        %v1560 = vld [vmem:[%s1438] sm:$0xff]
        %v1561 = vld [vmem:[%s1443] sm:$0xff]
        %v1562 = vld [vmem:[%s1443 + $0x8] sm:$0xff]
        %vm1563 = vcmask 261120
        %v1564 = vsel %vm1563, %v1556, 0.0
        %1565 = vadd.xlane.f32.xlu0 %v1564
        %v1566 = vpop.xlane.xlu0 %1565
        %v1567 = vrcp.pop 32.0
        %v1568 = vmul.f32 %v1566, %v1567
        %v1569 = vsub.f32 %v1556, %v1568
        %v1570 = vmul.f32 %v1569, %v1569
        %v1571 = vsel %vm1563, %v1570, 0.0
        %1572 = vadd.xlane.f32.xlu0 %v1571
        %v1573 = vpop.xlane.xlu0 %1572
        %v1574 = vmul.f32 %v1573, %v1567
        %v1575 = vadd.f32 %v1574, 1e-05
        %v1576 = vrsqrt.pop %v1575
        %v1577 = vmul.f32 %v1569, %v1576
        %v1578 = vld [vmem:[%s1446] sm:$0x1]
        %v1580 = vlaneseq
        %v1581 = vshrl.u32 %v1580, 7
        %v1582 = vsub.s32 0, %v1581
        %v1583 = vrot.slane %v1578, %v1582
        %v1585 = vmul.f32 %v1577, %v1583
        %v1586 = vld [vmem:[%s1449] sm:$0x1]
        %v1588 = vlaneseq
        %v1589 = vshrl.u32 %v1588, 7
        %v1590 = vsub.s32 0, %v1589
        %v1591 = vrot.slane %v1586, %v1590
        %v1593 = vadd.f32 %v1585, %v1591
        %v1594 = vld [vmem:[%s1454] sm:$0xff]
        %v1595 = vld [vmem:[%s1454 + $0x8] sm:$0xff]
        %v1596 = vld [vmem:[%s1454 + $0x10] sm:$0xff]
        %v1597 = vld [vmem:[%s1454 + $0x18] sm:$0xff]
        %v1598 = vld [vmem:[%s1454 + $0x20] sm:$0xff]
        %v1599 = vld [vmem:[%s1454 + $0x28] sm:$0xff]
        %v1600 = vld [vmem:[%s1454 + $0x30] sm:$0xff]
        %v1601 = vld [vmem:[%s1454 + $0x38] sm:$0xff]
        %v1603 = vsel %vm1563, %v1593, 0
        %1605 = vmatprep.subr.mxu0 %v1595
        %1606 = vmatpush1.msra.mxu0 %v1594
        %1607 = vmatprep.subr.mxu0 %v1597
        %1608 = vmatpush1.msra.mxu0 %v1596
        %1609 = vmatprep.subr.mxu0 %v1599
        %1610 = vmatpush1.msra.mxu0 %v1598
        %1611 = vmatprep.subr.mxu0 %v1601
        %1612 = vmatpush1.msra.mxu0 %v1600
        %1613 = vmatprep.subr.mxu0 0.0
        %1614 = vmatpush1.msra.mxu0 0.0
        %1615 = vmatprep.subr.mxu0 0.0
        %1616 = vmatpush1.msra.mxu0 0.0
        %1617 = vmatprep.subr.mxu0 0.0
        %1618 = vmatpush1.msra.mxu0 0.0
        %1619 = vmatprep.subr.mxu0 0.0
        %1620 = vmatpush1.msra.mxu0 0.0
        %1621 = vmatprep.subr.mxu0 0.0
        %1622 = vmatpush1.msra.mxu0 0.0
        %1623 = vmatprep.subr.mxu0 0.0
        %1624 = vmatpush1.msra.mxu0 0.0
        %1625 = vmatprep.subr.mxu0 0.0
        %1626 = vmatpush1.msra.mxu0 0.0
        %1627 = vmatprep.subr.mxu0 0.0
        %1628 = vmatpush1.msra.mxu0 0.0
        %1629 = vmatprep.subr.mxu0 0.0
        %1630 = vmatpush1.msra.mxu0 0.0
        %1631 = vmatprep.subr.mxu0 0.0
        %1632 = vmatpush1.msra.mxu0 0.0
        %1633 = vmatprep.subr.mxu0 0.0
        %1634 = vmatpush1.msra.mxu0 0.0
        %1635 = vmatprep.subr.mxu0 0.0
        %1636 = vmatpush1.msra.mxu0 0.0
        %1637 = vmatprep.subr.mxu0 0.0
        %1638 = vmatpush1.msra.mxu0 0.0
        %1639 = vmatprep.subr.mxu0 0.0
        %1640 = vmatpush1.msra.mxu0 0.0
        %1641 = vmatprep.subr.mxu0 0.0
        %1642 = vmatpush1.msra.mxu0 0.0
        %1643 = vmatprep.subr.mxu0 0.0
        %1644 = vmatpush1.msra.mxu0 0.0
        %1645 = vmatprep.subr.mxu0 0.0
        %1646 = vmatpush1.msra.mxu0 0.0
        %1647 = vmatprep.subr.mxu0 0.0
        %1648 = vmatpush1.msra.mxu0 0.0
        %1649 = vmatprep.subr.mxu0 0.0
        %1650 = vmatpush1.msra.mxu0 0.0
        %1651 = vmatprep.subr.mxu0 0.0
        %1652 = vmatpush1.msra.mxu0 0.0
        %1653 = vmatprep.subr.mxu0 0.0
        %1654 = vmatpush1.msra.mxu0 0.0
        %1655 = vmatprep.subr.mxu0 0.0
        %1656 = vmatpush1.msra.mxu0 0.0
        %1657 = vmatprep.subr.mxu0 0.0
        %1658 = vmatpush1.msra.mxu0 0.0
        %1659 = vmatprep.subr.mxu0 0.0
        %1660 = vmatpush1.msra.mxu0 0.0
        %1661 = vmatprep.subr.mxu0 0.0
        %1662 = vmatpush1.msra.mxu0 0.0
        %1663 = vmatprep.subr.mxu0 0.0
        %1664 = vmatpush1.msra.mxu0 0.0
        %1665 = vmatprep.subr.mxu0 0.0
        %1666 = vmatpush1.msra.mxu0 0.0
        %1667 = vmatprep.subr.mxu0 0.0
        %1668 = vmatpush1.msra.mxu0 0.0
        %1669 = vmatprep.mubr.f32.mxu0 0.0
        %1670 = vmatmul.mubr.f32.gmra.mrb[0].mxu0 %v1603
        %v1671 = vpop.f32.mrb[0].mxu0
        %v1672 = vadd.f32 0.0, %v1671
        %v1673 = vpop.f32.mrb[0].mxu0
        %v1674 = vadd.f32 0.0, %v1673
        %1675 = vdwg.mxu0
        %v1676 = vld [vmem:[%s1459] sm:$0xff]
        %v1677 = vld [vmem:[%s1459 + $0x8] sm:$0xff]
        %v1678 = vld [vmem:[%s1459 + $0x10] sm:$0xff]
        %v1679 = vld [vmem:[%s1459 + $0x18] sm:$0xff]
        %v1680 = vld [vmem:[%s1459 + $0x20] sm:$0xff]
        %v1681 = vld [vmem:[%s1459 + $0x28] sm:$0xff]
        %v1682 = vld [vmem:[%s1459 + $0x30] sm:$0xff]
        %v1683 = vld [vmem:[%s1459 + $0x38] sm:$0xff]
        %v1684 = vld [vmem:[%s1459 + $0x40] sm:$0xff]
        %v1685 = vld [vmem:[%s1459 + $0x48] sm:$0xff]
        %v1686 = vld [vmem:[%s1459 + $0x50] sm:$0xff]
        %v1687 = vld [vmem:[%s1459 + $0x58] sm:$0xff]
        %v1688 = vld [vmem:[%s1459 + $0x60] sm:$0xff]
        %v1689 = vld [vmem:[%s1459 + $0x68] sm:$0xff]
        %v1690 = vld [vmem:[%s1459 + $0x70] sm:$0xff]
        %v1691 = vld [vmem:[%s1459 + $0x78] sm:$0xff]
        %v1693 = vsel %vm1563, %v1557, 0
        %v1696 = vsel %vm1563, %v1558, 0
        %1698 = vmatprep.subr.mxu0 %v1677
        %1699 = vmatpush1.msra.mxu0 %v1676
        %1700 = vmatprep.subr.mxu0 %v1681
        %1701 = vmatpush1.msra.mxu0 %v1680
        %1702 = vmatprep.subr.mxu0 %v1685
        %1703 = vmatpush1.msra.mxu0 %v1684
        %1704 = vmatprep.subr.mxu0 %v1689
        %1705 = vmatpush1.msra.mxu0 %v1688
        %1706 = vmatprep.subr.mxu0 0.0
        %1707 = vmatpush1.msra.mxu0 0.0
        %1708 = vmatprep.subr.mxu0 0.0
        %1709 = vmatpush1.msra.mxu0 0.0
        %1710 = vmatprep.subr.mxu0 0.0
        %1711 = vmatpush1.msra.mxu0 0.0
        %1712 = vmatprep.subr.mxu0 0.0
        %1713 = vmatpush1.msra.mxu0 0.0
        %1714 = vmatprep.subr.mxu0 0.0
        %1715 = vmatpush1.msra.mxu0 0.0
        %1716 = vmatprep.subr.mxu0 0.0
        %1717 = vmatpush1.msra.mxu0 0.0
        %1718 = vmatprep.subr.mxu0 0.0
        %1719 = vmatpush1.msra.mxu0 0.0
        %1720 = vmatprep.subr.mxu0 0.0
        %1721 = vmatpush1.msra.mxu0 0.0
        %1722 = vmatprep.subr.mxu0 0.0
        %1723 = vmatpush1.msra.mxu0 0.0
        %1724 = vmatprep.subr.mxu0 0.0
        %1725 = vmatpush1.msra.mxu0 0.0
        %1726 = vmatprep.subr.mxu0 0.0
        %1727 = vmatpush1.msra.mxu0 0.0
        %1728 = vmatprep.subr.mxu0 0.0
        %1729 = vmatpush1.msra.mxu0 0.0
        %1730 = vmatprep.subr.mxu0 0.0
        %1731 = vmatpush1.msra.mxu0 0.0
        %1732 = vmatprep.subr.mxu0 0.0
        %1733 = vmatpush1.msra.mxu0 0.0
        %1734 = vmatprep.subr.mxu0 0.0
        %1735 = vmatpush1.msra.mxu0 0.0
        %1736 = vmatprep.subr.mxu0 0.0
        %1737 = vmatpush1.msra.mxu0 0.0
        %1738 = vmatprep.subr.mxu0 0.0
        %1739 = vmatpush1.msra.mxu0 0.0
        %1740 = vmatprep.subr.mxu0 0.0
        %1741 = vmatpush1.msra.mxu0 0.0
        %1742 = vmatprep.subr.mxu0 0.0
        %1743 = vmatpush1.msra.mxu0 0.0
        %1744 = vmatprep.subr.mxu0 0.0
        %1745 = vmatpush1.msra.mxu0 0.0
        %1746 = vmatprep.subr.mxu0 0.0
        %1747 = vmatpush1.msra.mxu0 0.0
        %1748 = vmatprep.subr.mxu0 0.0
        %1749 = vmatpush1.msra.mxu0 0.0
        %1750 = vmatprep.subr.mxu0 0.0
        %1751 = vmatpush1.msra.mxu0 0.0
        %1752 = vmatprep.subr.mxu0 0.0
        %1753 = vmatpush1.msra.mxu0 0.0
        %1754 = vmatprep.subr.mxu0 0.0
        %1755 = vmatpush1.msra.mxu0 0.0
        %1756 = vmatprep.subr.mxu0 0.0
        %1757 = vmatpush1.msra.mxu0 0.0
        %1758 = vmatprep.subr.mxu0 0.0
        %1759 = vmatpush1.msra.mxu0 0.0
        %1760 = vmatprep.subr.mxu0 0.0
        %1761 = vmatpush1.msra.mxu0 0.0
        %1762 = vmatprep.mubr.f32.mxu0 0.0
        %1763 = vmatmul.mubr.f32.gmra.mrb[0].mxu0 %v1693
        %v1764 = vpop.f32.mrb[0].mxu0
        %v1765 = vadd.f32 0.0, %v1764
        %v1766 = vpop.f32.mrb[0].mxu0
        %v1767 = vadd.f32 0.0, %v1766
        %1768 = vmatprep.mubr.f32.mxu0 0.0
        %1769 = vmatmul.mubr.f32.gmra.mrb[0].mxu0 %v1696
        %v1770 = vpop.f32.mrb[0].mxu0
        %v1771 = vadd.f32 0.0, %v1770
        %v1772 = vpop.f32.mrb[0].mxu0
        %v1773 = vadd.f32 0.0, %v1772
        %1774 = vdwg.mxu0
        %1775 = vmatprep.subr.mxu0 %v1679
        %1776 = vmatpush1.msra.mxu0 %v1678
        %1777 = vmatprep.subr.mxu0 %v1683
        %1778 = vmatpush1.msra.mxu0 %v1682
        %1779 = vmatprep.subr.mxu0 %v1687
        %1780 = vmatpush1.msra.mxu0 %v1686
        %1781 = vmatprep.subr.mxu0 %v1691
        %1782 = vmatpush1.msra.mxu0 %v1690
        %1783 = vmatprep.subr.mxu0 0.0
        %1784 = vmatpush1.msra.mxu0 0.0
        %1785 = vmatprep.subr.mxu0 0.0
        %1786 = vmatpush1.msra.mxu0 0.0
        %1787 = vmatprep.subr.mxu0 0.0
        %1788 = vmatpush1.msra.mxu0 0.0
        %1789 = vmatprep.subr.mxu0 0.0
        %1790 = vmatpush1.msra.mxu0 0.0
        %1791 = vmatprep.subr.mxu0 0.0
        %1792 = vmatpush1.msra.mxu0 0.0
        %1793 = vmatprep.subr.mxu0 0.0
        %1794 = vmatpush1.msra.mxu0 0.0
        %1795 = vmatprep.subr.mxu0 0.0
        %1796 = vmatpush1.msra.mxu0 0.0
        %1797 = vmatprep.subr.mxu0 0.0
        %1798 = vmatpush1.msra.mxu0 0.0
        %1799 = vmatprep.subr.mxu0 0.0
        %1800 = vmatpush1.msra.mxu0 0.0
        %1801 = vmatprep.subr.mxu0 0.0
        %1802 = vmatpush1.msra.mxu0 0.0
        %1803 = vmatprep.subr.mxu0 0.0
        %1804 = vmatpush1.msra.mxu0 0.0
        %1805 = vmatprep.subr.mxu0 0.0
        %1806 = vmatpush1.msra.mxu0 0.0
        %1807 = vmatprep.subr.mxu0 0.0
        %1808 = vmatpush1.msra.mxu0 0.0
        %1809 = vmatprep.subr.mxu0 0.0
        %1810 = vmatpush1.msra.mxu0 0.0
        %1811 = vmatprep.subr.mxu0 0.0
        %1812 = vmatpush1.msra.mxu0 0.0
        %1813 = vmatprep.subr.mxu0 0.0
        %1814 = vmatpush1.msra.mxu0 0.0
        %1815 = vmatprep.subr.mxu0 0.0
        %1816 = vmatpush1.msra.mxu0 0.0
        %1817 = vmatprep.subr.mxu0 0.0
        %1818 = vmatpush1.msra.mxu0 0.0
        %1819 = vmatprep.subr.mxu0 0.0
        %1820 = vmatpush1.msra.mxu0 0.0
        %1821 = vmatprep.subr.mxu0 0.0
        %1822 = vmatpush1.msra.mxu0 0.0
        %1823 = vmatprep.subr.mxu0 0.0
        %1824 = vmatpush1.msra.mxu0 0.0
        %1825 = vmatprep.subr.mxu0 0.0
        %1826 = vmatpush1.msra.mxu0 0.0
        %1827 = vmatprep.subr.mxu0 0.0
        %1828 = vmatpush1.msra.mxu0 0.0
        %1829 = vmatprep.subr.mxu0 0.0
        %1830 = vmatpush1.msra.mxu0 0.0
        %1831 = vmatprep.subr.mxu0 0.0
        %1832 = vmatpush1.msra.mxu0 0.0
        %1833 = vmatprep.subr.mxu0 0.0
        %1834 = vmatpush1.msra.mxu0 0.0
        %1835 = vmatprep.subr.mxu0 0.0
        %1836 = vmatpush1.msra.mxu0 0.0
        %1837 = vmatprep.subr.mxu0 0.0
        %1838 = vmatpush1.msra.mxu0 0.0
        %1839 = vmatprep.mubr.f32.mxu0 0.0
        %1840 = vmatmul.mubr.f32.gmra.mrb[0].mxu0 %v1693
        %v1841 = vpop.f32.mrb[0].mxu0
        %v1842 = vadd.f32 0.0, %v1841
        %v1843 = vpop.f32.mrb[0].mxu0
        %v1844 = vadd.f32 0.0, %v1843
        %1845 = vmatprep.mubr.f32.mxu0 0.0
        %1846 = vmatmul.mubr.f32.gmra.mrb[0].mxu0 %v1696
        %v1847 = vpop.f32.mrb[0].mxu0
        %v1848 = vadd.f32 0.0, %v1847
        %v1849 = vpop.f32.mrb[0].mxu0
        %v1850 = vadd.f32 0.0, %v1849
        %1851 = vdwg.mxu0
        %v1852 = vmul.f32 %v1672, 0.25
        %v1853 = vld [vmem:[%s1462] sm:$0x1]
        %1855 = vset.pattern.permute.xlu0 0
        %1856 = vperm.xlu0 %1855, %v1560
        %v1857 = vpop.permute.xlu0 %1856
        %v1859 = vmul.f32 %v1857, %v1672
        %1860 = vset.pattern.permute.xlu0 1
        %1861 = vperm.xlu0 %1860, %v1560
        %v1862 = vpop.permute.xlu0 %1861
        %v1864 = vmul.f32 %v1862, %v1672
        %1866 = vrot.lane.b32.xlu0 %v1864, 96
        %v1867 = vpop.permute.xlu0 %1866
        %v1869 = vadd.f32 %v1859, %v1867
        %1870 = vset.pattern.permute.xlu0 2
        %1871 = vperm.xlu0 %1870, %v1560
        %v1872 = vpop.permute.xlu0 %1871
        %v1874 = vmul.f32 %v1872, %v1674
        %1876 = vrot.lane.b32.xlu0 %v1874, 64
        %v1877 = vpop.permute.xlu0 %1876
        %v1879 = vadd.f32 %v1869, %v1877
        %1880 = vset.pattern.permute.xlu0 9
        %1881 = vperm.xlu0 %1880, %v1560
        %v1882 = vpop.permute.xlu0 %1881
        %v1884 = vadd.f32 %v1879, %v1882
        %v1886 = vlaneseq
        %v1887 = vshrl.u32 %v1886, 7
        %v1888 = vsub.s32 0, %v1887
        %v1889 = vrot.slane %v1853, %v1888
        %1890 = vrot.lane.b32.xlu0 %v1889, 64
        %v1891 = vpop.permute.xlu0 %1890
        %v1893 = vmul.f32 %v1884, %v1891
        %1894 = vset.pattern.permute.xlu0 3
        %1895 = vperm.xlu0 %1894, %v1560
        %v1896 = vpop.permute.xlu0 %1895
        %v1898 = vmul.f32 %v1896, %v1672
        %1899 = vset.pattern.permute.xlu0 4
        %1900 = vperm.xlu0 %1899, %v1560
        %v1901 = vpop.permute.xlu0 %1900
        %v1903 = vmul.f32 %v1901, %v1672
        %1905 = vrot.lane.b32.xlu0 %v1903, 96
        %v1906 = vpop.permute.xlu0 %1905
        %v1908 = vadd.f32 %v1898, %v1906
        %1909 = vset.pattern.permute.xlu0 5
        %1910 = vperm.xlu0 %1909, %v1560
        %v1911 = vpop.permute.xlu0 %1910
        %v1913 = vmul.f32 %v1911, %v1674
        %1915 = vrot.lane.b32.xlu0 %v1913, 64
        %v1916 = vpop.permute.xlu0 %1915
        %v1918 = vadd.f32 %v1908, %v1916
        %1919 = vset.pattern.permute.xlu0 10
        %1920 = vperm.xlu0 %1919, %v1560
        %v1921 = vpop.permute.xlu0 %1920
        %v1923 = vadd.f32 %v1918, %v1921
        %v1924 = vmul.f32 %v1923, %v1891
        %1925 = vset.pattern.permute.xlu0 6
        %1926 = vperm.xlu0 %1925, %v1560
        %v1927 = vpop.permute.xlu0 %1926
        %v1929 = vmul.f32 %v1927, %v1672
        %1930 = vset.pattern.permute.xlu0 7
        %1931 = vperm.xlu0 %1930, %v1560
        %v1932 = vpop.permute.xlu0 %1931
        %v1934 = vmul.f32 %v1932, %v1672
        %1936 = vrot.lane.b32.xlu0 %v1934, 96
        %v1937 = vpop.permute.xlu0 %1936
        %v1939 = vadd.f32 %v1929, %v1937
        %1940 = vset.pattern.permute.xlu0 8
        %1941 = vperm.xlu0 %1940, %v1560
        %v1942 = vpop.permute.xlu0 %1941
        %v1944 = vmul.f32 %v1942, %v1674
        %1946 = vrot.lane.b32.xlu0 %v1944, 64
        %v1947 = vpop.permute.xlu0 %1946
        %v1949 = vadd.f32 %v1939, %v1947
        %1950 = vset.pattern.permute.xlu0 11
        %1951 = vperm.xlu0 %1950, %v1560
        %v1952 = vpop.permute.xlu0 %1951
        %v1954 = vadd.f32 %v1949, %v1952
        %v1955 = vmul.f32 %v1954, %v1891
        %1957 = vset.pattern.permute.xlu0 0
        %1958 = vperm.xlu0 %1957, %v1561
        %v1959 = vpop.permute.xlu0 %1958
        %1962 = vset.pattern.permute.xlu0 0
        %1963 = vperm.xlu0 %1962, %v1562
        %v1964 = vpop.permute.xlu0 %1963
        %v1966 = vmul.f32 %v1959, %v1767
        %v1967 = vmul.f32 %v1964, %v1773
        %1968 = vset.pattern.permute.xlu0 1
        %1969 = vperm.xlu0 %1968, %v1561
        %v1970 = vpop.permute.xlu0 %1969
        %1972 = vset.pattern.permute.xlu0 1
        %1973 = vperm.xlu0 %1972, %v1562
        %v1974 = vpop.permute.xlu0 %1973
        %v1976 = vmul.f32 %v1970, %v1767
        %v1977 = vmul.f32 %v1974, %v1773
        %1980 = vrot.lane.b32.xlu0 %v1976, 96
        %v1981 = vpop.permute.xlu0 %1980
        %1982 = vrot.lane.b32.xlu0 %v1977, 96
        %v1983 = vpop.permute.xlu0 %1982
        %v1986 = vadd.f32 %v1966, %v1981
        %v1987 = vadd.f32 %v1967, %v1983
        %1988 = vset.pattern.permute.xlu0 2
        %1989 = vperm.xlu0 %1988, %v1561
        %v1990 = vpop.permute.xlu0 %1989
        %1992 = vset.pattern.permute.xlu0 2
        %1993 = vperm.xlu0 %1992, %v1562
        %v1994 = vpop.permute.xlu0 %1993
        %v1996 = vmul.f32 %v1990, %v1767
        %v1997 = vmul.f32 %v1994, %v1773
        %2000 = vrot.lane.b32.xlu0 %v1996, 64
        %v2001 = vpop.permute.xlu0 %2000
        %2002 = vrot.lane.b32.xlu0 %v1997, 64
        %v2003 = vpop.permute.xlu0 %2002
        %v2006 = vadd.f32 %v1986, %v2001
        %v2007 = vadd.f32 %v1987, %v2003
        %2008 = vset.pattern.permute.xlu0 9
        %2009 = vperm.xlu0 %2008, %v1561
        %v2010 = vpop.permute.xlu0 %2009
        %2012 = vset.pattern.permute.xlu0 9
        %2013 = vperm.xlu0 %2012, %v1562
        %v2014 = vpop.permute.xlu0 %2013
        %v2016 = vadd.f32 %v2006, %v2010
        %v2017 = vadd.f32 %v2007, %v2014
        %v2019 = vmul.f32 %v2016, %v1889
        %v2020 = vmul.f32 %v2017, %v1889
        %2021 = vset.pattern.permute.xlu0 3
        %2022 = vperm.xlu0 %2021, %v1561
        %v2023 = vpop.permute.xlu0 %2022
        %2025 = vset.pattern.permute.xlu0 3
        %2026 = vperm.xlu0 %2025, %v1562
        %v2027 = vpop.permute.xlu0 %2026
        %v2029 = vmul.f32 %v2023, %v1767
        %v2030 = vmul.f32 %v2027, %v1773
        %2031 = vset.pattern.permute.xlu0 4
        %2032 = vperm.xlu0 %2031, %v1561
        %v2033 = vpop.permute.xlu0 %2032
        %2035 = vset.pattern.permute.xlu0 4
        %2036 = vperm.xlu0 %2035, %v1562
        %v2037 = vpop.permute.xlu0 %2036
        %v2039 = vmul.f32 %v2033, %v1767
        %v2040 = vmul.f32 %v2037, %v1773
        %2043 = vrot.lane.b32.xlu0 %v2039, 96
        %v2044 = vpop.permute.xlu0 %2043
        %2045 = vrot.lane.b32.xlu0 %v2040, 96
        %v2046 = vpop.permute.xlu0 %2045
        %v2049 = vadd.f32 %v2029, %v2044
        %v2050 = vadd.f32 %v2030, %v2046
        %2051 = vset.pattern.permute.xlu0 5
        %2052 = vperm.xlu0 %2051, %v1561
        %v2053 = vpop.permute.xlu0 %2052
        %2055 = vset.pattern.permute.xlu0 5
        %2056 = vperm.xlu0 %2055, %v1562
        %v2057 = vpop.permute.xlu0 %2056
        %v2059 = vmul.f32 %v2053, %v1767
        %v2060 = vmul.f32 %v2057, %v1773
        %2063 = vrot.lane.b32.xlu0 %v2059, 64
        %v2064 = vpop.permute.xlu0 %2063
        %2065 = vrot.lane.b32.xlu0 %v2060, 64
        %v2066 = vpop.permute.xlu0 %2065
        %v2069 = vadd.f32 %v2049, %v2064
        %v2070 = vadd.f32 %v2050, %v2066
        %2071 = vset.pattern.permute.xlu0 10
        %2072 = vperm.xlu0 %2071, %v1561
        %v2073 = vpop.permute.xlu0 %2072
        %2075 = vset.pattern.permute.xlu0 10
        %2076 = vperm.xlu0 %2075, %v1562
        %v2077 = vpop.permute.xlu0 %2076
        %v2079 = vadd.f32 %v2069, %v2073
        %v2080 = vadd.f32 %v2070, %v2077
        %v2081 = vmul.f32 %v2079, %v1889
        %v2082 = vmul.f32 %v2080, %v1889
        %2083 = vset.pattern.permute.xlu0 6
        %2084 = vperm.xlu0 %2083, %v1561
        %v2085 = vpop.permute.xlu0 %2084
        %2087 = vset.pattern.permute.xlu0 6
        %2088 = vperm.xlu0 %2087, %v1562
        %v2089 = vpop.permute.xlu0 %2088
        %v2091 = vmul.f32 %v2085, %v1767
        %v2092 = vmul.f32 %v2089, %v1773
        %2093 = vset.pattern.permute.xlu0 7
        %2094 = vperm.xlu0 %2093, %v1561
        %v2095 = vpop.permute.xlu0 %2094
        %2097 = vset.pattern.permute.xlu0 7
        %2098 = vperm.xlu0 %2097, %v1562
        %v2099 = vpop.permute.xlu0 %2098
        %v2101 = vmul.f32 %v2095, %v1767
        %v2102 = vmul.f32 %v2099, %v1773
        %2105 = vrot.lane.b32.xlu0 %v2101, 96
        %v2106 = vpop.permute.xlu0 %2105
        %2107 = vrot.lane.b32.xlu0 %v2102, 96
        %v2108 = vpop.permute.xlu0 %2107
        %v2111 = vadd.f32 %v2091, %v2106
        %v2112 = vadd.f32 %v2092, %v2108
        %2113 = vset.pattern.permute.xlu0 8
        %2114 = vperm.xlu0 %2113, %v1561
        %v2115 = vpop.permute.xlu0 %2114
        %2117 = vset.pattern.permute.xlu0 8
        %2118 = vperm.xlu0 %2117, %v1562
        %v2119 = vpop.permute.xlu0 %2118
        %v2121 = vmul.f32 %v2115, %v1767
        %v2122 = vmul.f32 %v2119, %v1773
        %2125 = vrot.lane.b32.xlu0 %v2121, 64
        %v2126 = vpop.permute.xlu0 %2125
        %2127 = vrot.lane.b32.xlu0 %v2122, 64
        %v2128 = vpop.permute.xlu0 %2127
        %v2131 = vadd.f32 %v2111, %v2126
        %v2132 = vadd.f32 %v2112, %v2128
        %2133 = vset.pattern.permute.xlu0 11
        %2134 = vperm.xlu0 %2133, %v1561
        %v2135 = vpop.permute.xlu0 %2134
        %2137 = vset.pattern.permute.xlu0 11
        %2138 = vperm.xlu0 %2137, %v1562
        %v2139 = vpop.permute.xlu0 %2138
        %v2141 = vadd.f32 %v2131, %v2135
        %v2142 = vadd.f32 %v2132, %v2139
        %v2143 = vmul.f32 %v2141, %v1889
        %v2144 = vmul.f32 %v2142, %v1889
        %v2145 = vmul.f32 %v1959, %v1842
        %v2146 = vmul.f32 %v1964, %v1848
        %v2147 = vmul.f32 %v1970, %v1842
        %v2148 = vmul.f32 %v1974, %v1848
        %2151 = vrot.lane.b32.xlu0 %v2147, 64
        %v2152 = vpop.permute.xlu0 %2151
        %2153 = vrot.lane.b32.xlu0 %v2148, 64
        %v2154 = vpop.permute.xlu0 %2153
        %v2157 = vadd.f32 %v1966, %v2152
        %v2158 = vadd.f32 %v2145, %v2152
        %v2159 = vadd.f32 %v1967, %v2154
        %v2160 = vadd.f32 %v2146, %v2154
        %v2161 = vmul.f32 %v1990, %v1842
        %v2162 = vmul.f32 %v1990, %v1844
        %v2163 = vmul.f32 %v1994, %v1848
        %v2164 = vmul.f32 %v1994, %v1850
        %v2165 = vadd.f32 %v2157, %v2161
        %v2166 = vadd.f32 %v2158, %v2162
        %v2167 = vadd.f32 %v2159, %v2163
        %v2168 = vadd.f32 %v2160, %v2164
        %v2169 = vadd.f32 %v2165, %v2010
        %v2170 = vadd.f32 %v2166, %v2010
        %v2171 = vadd.f32 %v2167, %v2014
        %v2172 = vadd.f32 %v2168, %v2014
        %v2173 = vmul.f32 %v2023, %v1842
        %v2174 = vmul.f32 %v2027, %v1848
        %v2175 = vmul.f32 %v2033, %v1842
        %v2176 = vmul.f32 %v2037, %v1848
        %2179 = vrot.lane.b32.xlu0 %v2175, 64
        %v2180 = vpop.permute.xlu0 %2179
        %2181 = vrot.lane.b32.xlu0 %v2176, 64
        %v2182 = vpop.permute.xlu0 %2181
        %v2185 = vadd.f32 %v2029, %v2180
        %v2186 = vadd.f32 %v2173, %v2180
        %v2187 = vadd.f32 %v2030, %v2182
        %v2188 = vadd.f32 %v2174, %v2182
        %v2189 = vmul.f32 %v2053, %v1842
        %v2190 = vmul.f32 %v2053, %v1844
        %v2191 = vmul.f32 %v2057, %v1848
        %v2192 = vmul.f32 %v2057, %v1850
        %v2193 = vadd.f32 %v2185, %v2189
        %v2194 = vadd.f32 %v2186, %v2190
        %v2195 = vadd.f32 %v2187, %v2191
        %v2196 = vadd.f32 %v2188, %v2192
        %v2197 = vadd.f32 %v2193, %v2073
        %v2198 = vadd.f32 %v2194, %v2073
        %v2199 = vadd.f32 %v2195, %v2077
        %v2200 = vadd.f32 %v2196, %v2077
        %v2201 = vmul.f32 %v2085, %v1842
        %v2202 = vmul.f32 %v2089, %v1848
        %v2203 = vmul.f32 %v2095, %v1842
        %v2204 = vmul.f32 %v2099, %v1848
        %2207 = vrot.lane.b32.xlu0 %v2203, 64
        %v2208 = vpop.permute.xlu0 %2207
        %2209 = vrot.lane.b32.xlu0 %v2204, 64
        %v2210 = vpop.permute.xlu0 %2209
        %v2213 = vadd.f32 %v2091, %v2208
        %v2214 = vadd.f32 %v2201, %v2208
        %v2215 = vadd.f32 %v2092, %v2210
        %v2216 = vadd.f32 %v2202, %v2210
        %v2217 = vmul.f32 %v2115, %v1842
        %v2218 = vmul.f32 %v2115, %v1844
        %v2219 = vmul.f32 %v2119, %v1848
        %v2220 = vmul.f32 %v2119, %v1850
        %v2221 = vadd.f32 %v2213, %v2217
        %v2222 = vadd.f32 %v2214, %v2218
        %v2223 = vadd.f32 %v2215, %v2219
        %v2224 = vadd.f32 %v2216, %v2220
        %v2225 = vadd.f32 %v2221, %v2135
        %v2226 = vadd.f32 %v2222, %v2135
        %v2227 = vadd.f32 %v2223, %v2139
        %v2228 = vadd.f32 %v2224, %v2139
        %v2229 = vmul.f32 %v1893, %v1893
        %v2230 = vmul.f32 %v1924, %v1924
        %v2231 = vadd.f32 %v2229, %v2230
        %v2232 = vmul.f32 %v1955, %v1955
        %v2233 = vadd.f32 %v2231, %v2232
        %2235 = vrot.lane.b32.xlu0 %v2233, 64
        %v2236 = vpop.permute.xlu0 %2235
        %vm2238 = vcmask 31744
        %v2239 = vsel %vm2238, %v2236, 0.0
        %2240 = vadd.xlane.f32.xlu0 %v2239
        %v2241 = vpop.xlane.xlu0 %2240
        %v2242 = vmul.f32 %v2019, %v2019
        %v2243 = vmul.f32 %v2020, %v2020
        %v2244 = vmul.f32 %v2081, %v2081
        %v2245 = vmul.f32 %v2082, %v2082
        %v2246 = vadd.f32 %v2242, %v2244
        %v2247 = vadd.f32 %v2243, %v2245
        %v2248 = vmul.f32 %v2143, %v2143
        %v2249 = vmul.f32 %v2144, %v2144
        %v2250 = vadd.f32 %v2246, %v2248
        %v2251 = vadd.f32 %v2247, %v2249
        %v2252 = vsel %vm2238, %v2250, 0.0
        %2253 = vadd.xlane.f32.xlu0 %v2252
        %v2254 = vpop.xlane.xlu0 %2253
        %v2255 = vsel %vm2238, %v2251, 0.0
        %2256 = vadd.xlane.f32.xlu0 %v2255
        %v2257 = vpop.xlane.xlu0 %2256
        %v2258 = vmul.f32 %v1893, 2.0
        %v2259 = vmul.f32 %v1924, 2.0
        %v2260 = vmul.f32 %v1955, 2.0
        %2262 = vrot.lane.b32.xlu0 %v2258, 72
        %v2263 = vpop.permute.xlu0 %2262
        %2266 = vrot.lane.b32.xlu0 %v2259, 76
        %v2267 = vpop.permute.xlu0 %2266
        %2270 = vrot.lane.b32.xlu0 %v2260, 80
        %v2271 = vpop.permute.xlu0 %2270
        %vm2273 = vcmask 64512
        %v2274 = vsel %vm2273, %v1852, %v2263
        %vm2275 = vcmask 97280
        %v2276 = vsel %vm2275, %v2274, %v2267
        %vm2277 = vcmask 130048
        %v2278 = vsel %vm2277, %v2276, %v2271
        %vm2279 = vcmask 162816
        %v2280 = vsel %vm2279, %v2278, %v2241
        %vm2281 = vcmask 171008
        %v2282 = vsel %vm2281, %v2280, -1.0
        %2285 = vrot.lane.b32.xlu0 %v2019, 8
        %v2286 = vpop.permute.xlu0 %2285
        %2287 = vrot.lane.b32.xlu0 %v2020, 8
        %v2288 = vpop.permute.xlu0 %2287
        %2293 = vrot.lane.b32.xlu0 %v2081, 12
        %v2294 = vpop.permute.xlu0 %2293
        %2295 = vrot.lane.b32.xlu0 %v2082, 12
        %v2296 = vpop.permute.xlu0 %2295
        %2301 = vrot.lane.b32.xlu0 %v2143, 16
        %v2302 = vpop.permute.xlu0 %2301
        %2303 = vrot.lane.b32.xlu0 %v2144, 16
        %v2304 = vpop.permute.xlu0 %2303
        %v2307 = vsel %vm2273, %v1765, %v2286
        %v2308 = vsel %vm2273, %v1771, %v2288
        %v2309 = vsel %vm2275, %v2307, %v2294
        %v2310 = vsel %vm2275, %v2308, %v2296
        %v2311 = vsel %vm2277, %v2309, %v2302
        %v2312 = vsel %vm2277, %v2310, %v2304
        %v2313 = vsel %vm2279, %v2311, -1.0
        %v2314 = vsel %vm2279, %v2312, -1.0
        %v2315 = vsel %vm2281, %v2313, %v2254
        %v2316 = vsel %vm2281, %v2314, %v2257
        %vm2317 = vcmask 179200
        %v2319 = vsel %vm2317, %v2282, 0
        %v2322 = vsel %vm2317, %v2315, 0
        %v2325 = vsel %vm2317, %v2316, 0
        %2327 = vmatprep.subr.mxu0 0.0
        %2328 = vmatpush1.xpose.msra.mxu0 %v2322
        %2329 = vmatprep.subr.mxu0 0.0
        %2330 = vmatpush1.xpose.msra.mxu0 %v2325
        %2331 = vmatprep.subr.mxu0 0.0
        %2332 = vmatpush1.xpose.msra.mxu0 0.0
        %2333 = vmatprep.subr.mxu0 0.0
        %2334 = vmatpush1.xpose.msra.mxu0 0.0
        %2335 = vmatprep.subr.mxu0 0.0
        %2336 = vmatpush1.xpose.msra.mxu0 0.0
        %2337 = vmatprep.subr.mxu0 0.0
        %2338 = vmatpush1.xpose.msra.mxu0 0.0
        %2339 = vmatprep.subr.mxu0 0.0
        %2340 = vmatpush1.xpose.msra.mxu0 0.0
        %2341 = vmatprep.subr.mxu0 0.0
        %2342 = vmatpush1.xpose.msra.mxu0 0.0
        %2343 = vmatprep.subr.mxu0 0.0
        %2344 = vmatpush1.xpose.msra.mxu0 0.0
        %2345 = vmatprep.subr.mxu0 0.0
        %2346 = vmatpush1.xpose.msra.mxu0 0.0
        %2347 = vmatprep.subr.mxu0 0.0
        %2348 = vmatpush1.xpose.msra.mxu0 0.0
        %2349 = vmatprep.subr.mxu0 0.0
        %2350 = vmatpush1.xpose.msra.mxu0 0.0
        %2351 = vmatprep.subr.mxu0 0.0
        %2352 = vmatpush1.xpose.msra.mxu0 0.0
        %2353 = vmatprep.subr.mxu0 0.0
        %2354 = vmatpush1.xpose.msra.mxu0 0.0
        %2355 = vmatprep.subr.mxu0 0.0
        %2356 = vmatpush1.xpose.msra.mxu0 0.0
        %2357 = vmatprep.subr.mxu0 0.0
        %2358 = vmatpush1.xpose.msra.mxu0 0.0
        %2359 = vmatprep.subr.mxu0 0.0
        %2360 = vmatpush1.xpose.msra.mxu0 0.0
        %2361 = vmatprep.subr.mxu0 0.0
        %2362 = vmatpush1.xpose.msra.mxu0 0.0
        %2363 = vmatprep.subr.mxu0 0.0
        %2364 = vmatpush1.xpose.msra.mxu0 0.0
        %2365 = vmatprep.subr.mxu0 0.0
        %2366 = vmatpush1.xpose.msra.mxu0 0.0
        %2367 = vmatprep.subr.mxu0 0.0
        %2368 = vmatpush1.xpose.msra.mxu0 0.0
        %2369 = vmatprep.subr.mxu0 0.0
        %2370 = vmatpush1.xpose.msra.mxu0 0.0
        %2371 = vmatprep.subr.mxu0 0.0
        %2372 = vmatpush1.xpose.msra.mxu0 0.0
        %2373 = vmatprep.subr.mxu0 0.0
        %2374 = vmatpush1.xpose.msra.mxu0 0.0
        %2375 = vmatprep.subr.mxu0 0.0
        %2376 = vmatpush1.xpose.msra.mxu0 0.0
        %2377 = vmatprep.subr.mxu0 0.0
        %2378 = vmatpush1.xpose.msra.mxu0 0.0
        %2379 = vmatprep.subr.mxu0 0.0
        %2380 = vmatpush1.xpose.msra.mxu0 0.0
        %2381 = vmatprep.subr.mxu0 0.0
        %2382 = vmatpush1.xpose.msra.mxu0 0.0
        %2383 = vmatprep.subr.mxu0 0.0
        %2384 = vmatpush1.xpose.msra.mxu0 0.0
        %2385 = vmatprep.subr.mxu0 0.0
        %2386 = vmatpush1.xpose.msra.mxu0 0.0
        %2387 = vmatprep.subr.mxu0 0.0
        %2388 = vmatpush1.xpose.msra.mxu0 0.0
        %2389 = vmatprep.subr.mxu0 0.0
        %2390 = vmatpush1.xpose.msra.mxu0 0.0
        %2391 = vmatprep.mubr.f32.mxu0 0.0
        %2392 = vmatmul.mubr.f32.gmra.mrb[0].mxu0 %v2319
        %v2393 = vpop.f32.mrb[0].mxu0
        %v2394 = vadd.f32 0.0, %v2393
        %v2395 = vpop.f32.mrb[0].mxu0
        %2396 = vdwg.mxu0
        %v2397 = vsel %vm2277, %v2394, -inf
        %2398 = vmax.xlane.f32.xlu0 %v2397
        %v2399 = vpop.xlane.xlu0 %2398
        %v2400 = vsub.f32 %v2394, %v2399
        %v2401 = vmul.f32 %v2400, 1.442695
        %v2402 = vpow.pop %v2401
        %v2403 = vsel %vm2277, %v2402, 0.0
        %2404 = vadd.xlane.f32.xlu0 %v2403
        %v2405 = vpop.xlane.xlu0 %2404
        %v2406 = vrcp.pop %v2405
        %v2407 = vmul.f32 %v2402, %v2406
        %2410 = vrot.lane.b32.xlu0 %v1765, 64
        %v2411 = vpop.permute.xlu0 %2410
        %2412 = vrot.lane.b32.xlu0 %v1771, 64
        %v2413 = vpop.permute.xlu0 %2412
        %2418 = vrot.lane.b32.xlu0 %v2169, 40
        %v2419 = vpop.permute.xlu0 %2418
        %2420 = vrot.lane.b32.xlu0 %v2171, 40
        %v2421 = vpop.permute.xlu0 %2420
        %2426 = vrot.lane.b32.xlu0 %v2197, 48
        %v2427 = vpop.permute.xlu0 %2426
        %2428 = vrot.lane.b32.xlu0 %v2199, 48
        %v2429 = vpop.permute.xlu0 %2428
        %2434 = vrot.lane.b32.xlu0 %v2225, 56
        %v2435 = vpop.permute.xlu0 %2434
        %2436 = vrot.lane.b32.xlu0 %v2227, 56
        %v2437 = vpop.permute.xlu0 %2436
        %v2440 = vsel %vm2273, %v2411, %v2419
        %v2441 = vsel %vm2273, %v2413, %v2421
        %v2442 = vsel %vm2277, %v2440, %v2427
        %v2443 = vsel %vm2277, %v2441, %v2429
        %vm2444 = vcmask 195584
        %v2445 = vsel %vm2444, %v2442, %v2435
        %v2446 = vsel %vm2444, %v2443, %v2437
        %v2448 = vsel %vm2277, %v2407, 0
        %2450 = vmatprep.subr.mxu0 0.0
        %2451 = vmatpush1.msra.mxu0 %v2445
        %2452 = vmatprep.subr.mxu0 0.0
        %2453 = vmatpush1.msra.mxu0 %v2446
        %2454 = vmatprep.subr.mxu0 0.0
        %2455 = vmatpush1.msra.mxu0 0.0
        %2456 = vmatprep.subr.mxu0 0.0
        %2457 = vmatpush1.msra.mxu0 0.0
        %2458 = vmatprep.subr.mxu0 0.0
        %2459 = vmatpush1.msra.mxu0 0.0
        %2460 = vmatprep.subr.mxu0 0.0
        %2461 = vmatpush1.msra.mxu0 0.0
        %2462 = vmatprep.subr.mxu0 0.0
        %2463 = vmatpush1.msra.mxu0 0.0
        %2464 = vmatprep.subr.mxu0 0.0
        %2465 = vmatpush1.msra.mxu0 0.0
        %2466 = vmatprep.subr.mxu0 0.0
        %2467 = vmatpush1.msra.mxu0 0.0
        %2468 = vmatprep.subr.mxu0 0.0
        %2469 = vmatpush1.msra.mxu0 0.0
        %2470 = vmatprep.subr.mxu0 0.0
        %2471 = vmatpush1.msra.mxu0 0.0
        %2472 = vmatprep.subr.mxu0 0.0
        %2473 = vmatpush1.msra.mxu0 0.0
        %2474 = vmatprep.subr.mxu0 0.0
        %2475 = vmatpush1.msra.mxu0 0.0
        %2476 = vmatprep.subr.mxu0 0.0
        %2477 = vmatpush1.msra.mxu0 0.0
        %2478 = vmatprep.subr.mxu0 0.0
        %2479 = vmatpush1.msra.mxu0 0.0
        %2480 = vmatprep.subr.mxu0 0.0
        %2481 = vmatpush1.msra.mxu0 0.0
        %2482 = vmatprep.subr.mxu0 0.0
        %2483 = vmatpush1.msra.mxu0 0.0
        %2484 = vmatprep.subr.mxu0 0.0
        %2485 = vmatpush1.msra.mxu0 0.0
        %2486 = vmatprep.subr.mxu0 0.0
        %2487 = vmatpush1.msra.mxu0 0.0
        %2488 = vmatprep.subr.mxu0 0.0
        %2489 = vmatpush1.msra.mxu0 0.0
        %2490 = vmatprep.subr.mxu0 0.0
        %2491 = vmatpush1.msra.mxu0 0.0
        %2492 = vmatprep.subr.mxu0 0.0
        %2493 = vmatpush1.msra.mxu0 0.0
        %2494 = vmatprep.subr.mxu0 0.0
        %2495 = vmatpush1.msra.mxu0 0.0
        %2496 = vmatprep.subr.mxu0 0.0
        %2497 = vmatpush1.msra.mxu0 0.0
        %2498 = vmatprep.subr.mxu0 0.0
        %2499 = vmatpush1.msra.mxu0 0.0
        %2500 = vmatprep.subr.mxu0 0.0
        %2501 = vmatpush1.msra.mxu0 0.0
        %2502 = vmatprep.subr.mxu0 0.0
        %2503 = vmatpush1.msra.mxu0 0.0
        %2504 = vmatprep.subr.mxu0 0.0
        %2505 = vmatpush1.msra.mxu0 0.0
        %2506 = vmatprep.subr.mxu0 0.0
        %2507 = vmatpush1.msra.mxu0 0.0
        %2508 = vmatprep.subr.mxu0 0.0
        %2509 = vmatpush1.msra.mxu0 0.0
        %2510 = vmatprep.subr.mxu0 0.0
        %2511 = vmatpush1.msra.mxu0 0.0
        %2512 = vmatprep.subr.mxu0 0.0
        %2513 = vmatpush1.msra.mxu0 0.0
        %2514 = vmatprep.mubr.f32.mxu0 0.0
        %2515 = vmatmul.mubr.f32.gmra.mrb[0].mxu0 %v2448
        %v2516 = vpop.f32.mrb[0].mxu0
        %v2517 = vadd.f32 0.0, %v2516
        %v2518 = vpop.f32.mrb[0].mxu0
        %2519 = vdwg.mxu0
        %2520 = vrot.lane.b32.xlu0 %v2233, 60
        %v2521 = vpop.permute.xlu0 %2520
        %v2523 = vsel %vm2238, %v2521, 0.0
        %2524 = vadd.xlane.f32.xlu0 %v2523
        %v2525 = vpop.xlane.xlu0 %2524
        %2528 = vrot.lane.b32.xlu0 %v2250, 124
        %v2529 = vpop.permute.xlu0 %2528
        %2530 = vrot.lane.b32.xlu0 %v2251, 124
        %v2531 = vpop.permute.xlu0 %2530
        %v2534 = vsel %vm2238, %v2529, 0.0
        %2535 = vadd.xlane.f32.xlu0 %v2534
        %v2536 = vpop.xlane.xlu0 %2535
        %v2537 = vsel %vm2238, %v2531, 0.0
        %2538 = vadd.xlane.f32.xlu0 %v2537
        %v2539 = vpop.xlane.xlu0 %2538
        %2541 = vrot.lane.b32.xlu0 %v1852, 120
        %v2542 = vpop.permute.xlu0 %2541
        %2544 = vrot.lane.b32.xlu0 %v2258, 68
        %v2545 = vpop.permute.xlu0 %2544
        %2547 = vrot.lane.b32.xlu0 %v2259, 72
        %v2548 = vpop.permute.xlu0 %2547
        %2550 = vrot.lane.b32.xlu0 %v2260, 76
        %v2551 = vpop.permute.xlu0 %2550
        %v2553 = vsel %vm2273, %v2542, %v2545
        %v2554 = vsel %vm2275, %v2553, %v2548
        %v2555 = vsel %vm2277, %v2554, %v2551
        %v2556 = vsel %vm2279, %v2555, %v2525
        %v2557 = vsel %vm2281, %v2556, -1.0
        %2558 = vrot.lane.b32.xlu0 %v1765, 120
        %v2559 = vpop.permute.xlu0 %2558
        %2560 = vrot.lane.b32.xlu0 %v1771, 120
        %v2561 = vpop.permute.xlu0 %2560
        %2564 = vrot.lane.b32.xlu0 %v2019, 4
        %v2565 = vpop.permute.xlu0 %2564
        %2566 = vrot.lane.b32.xlu0 %v2020, 4
        %v2567 = vpop.permute.xlu0 %2566
        %2570 = vrot.lane.b32.xlu0 %v2081, 8
        %v2571 = vpop.permute.xlu0 %2570
        %2572 = vrot.lane.b32.xlu0 %v2082, 8
        %v2573 = vpop.permute.xlu0 %2572
        %2576 = vrot.lane.b32.xlu0 %v2143, 12
        %v2577 = vpop.permute.xlu0 %2576
        %2578 = vrot.lane.b32.xlu0 %v2144, 12
        %v2579 = vpop.permute.xlu0 %2578
        %v2582 = vsel %vm2273, %v2559, %v2565
        %v2583 = vsel %vm2273, %v2561, %v2567
        %v2584 = vsel %vm2275, %v2582, %v2571
        %v2585 = vsel %vm2275, %v2583, %v2573
        %v2586 = vsel %vm2277, %v2584, %v2577
        %v2587 = vsel %vm2277, %v2585, %v2579
        %v2588 = vsel %vm2279, %v2586, -1.0
        %v2589 = vsel %vm2279, %v2587, -1.0
        %v2590 = vsel %vm2281, %v2588, %v2536
        %v2591 = vsel %vm2281, %v2589, %v2539
        %v2593 = vsel %vm2317, %v2557, 0
        %v2596 = vsel %vm2317, %v2590, 0
        %v2599 = vsel %vm2317, %v2591, 0
        %2601 = vmatprep.subr.mxu0 0.0
        %2602 = vmatpush1.xpose.msra.mxu0 %v2596
        %2603 = vmatprep.subr.mxu0 0.0
        %2604 = vmatpush1.xpose.msra.mxu0 %v2599
        %2605 = vmatprep.subr.mxu0 0.0
        %2606 = vmatpush1.xpose.msra.mxu0 0.0
        %2607 = vmatprep.subr.mxu0 0.0
        %2608 = vmatpush1.xpose.msra.mxu0 0.0
        %2609 = vmatprep.subr.mxu0 0.0
        %2610 = vmatpush1.xpose.msra.mxu0 0.0
        %2611 = vmatprep.subr.mxu0 0.0
        %2612 = vmatpush1.xpose.msra.mxu0 0.0
        %2613 = vmatprep.subr.mxu0 0.0
        %2614 = vmatpush1.xpose.msra.mxu0 0.0
        %2615 = vmatprep.subr.mxu0 0.0
        %2616 = vmatpush1.xpose.msra.mxu0 0.0
        %2617 = vmatprep.subr.mxu0 0.0
        %2618 = vmatpush1.xpose.msra.mxu0 0.0
        %2619 = vmatprep.subr.mxu0 0.0
        %2620 = vmatpush1.xpose.msra.mxu0 0.0
        %2621 = vmatprep.subr.mxu0 0.0
        %2622 = vmatpush1.xpose.msra.mxu0 0.0
        %2623 = vmatprep.subr.mxu0 0.0
        %2624 = vmatpush1.xpose.msra.mxu0 0.0
        %2625 = vmatprep.subr.mxu0 0.0
        %2626 = vmatpush1.xpose.msra.mxu0 0.0
        %2627 = vmatprep.subr.mxu0 0.0
        %2628 = vmatpush1.xpose.msra.mxu0 0.0
        %2629 = vmatprep.subr.mxu0 0.0
        %2630 = vmatpush1.xpose.msra.mxu0 0.0
        %2631 = vmatprep.subr.mxu0 0.0
        %2632 = vmatpush1.xpose.msra.mxu0 0.0
        %2633 = vmatprep.subr.mxu0 0.0
        %2634 = vmatpush1.xpose.msra.mxu0 0.0
        %2635 = vmatprep.subr.mxu0 0.0
        %2636 = vmatpush1.xpose.msra.mxu0 0.0
        %2637 = vmatprep.subr.mxu0 0.0
        %2638 = vmatpush1.xpose.msra.mxu0 0.0
        %2639 = vmatprep.subr.mxu0 0.0
        %2640 = vmatpush1.xpose.msra.mxu0 0.0
        %2641 = vmatprep.subr.mxu0 0.0
        %2642 = vmatpush1.xpose.msra.mxu0 0.0
        %2643 = vmatprep.subr.mxu0 0.0
        %2644 = vmatpush1.xpose.msra.mxu0 0.0
        %2645 = vmatprep.subr.mxu0 0.0
        %2646 = vmatpush1.xpose.msra.mxu0 0.0
        %2647 = vmatprep.subr.mxu0 0.0
        %2648 = vmatpush1.xpose.msra.mxu0 0.0
        %2649 = vmatprep.subr.mxu0 0.0
        %2650 = vmatpush1.xpose.msra.mxu0 0.0
        %2651 = vmatprep.subr.mxu0 0.0
        %2652 = vmatpush1.xpose.msra.mxu0 0.0
        %2653 = vmatprep.subr.mxu0 0.0
        %2654 = vmatpush1.xpose.msra.mxu0 0.0
        %2655 = vmatprep.subr.mxu0 0.0
        %2656 = vmatpush1.xpose.msra.mxu0 0.0
        %2657 = vmatprep.subr.mxu0 0.0
        %2658 = vmatpush1.xpose.msra.mxu0 0.0
        %2659 = vmatprep.subr.mxu0 0.0
        %2660 = vmatpush1.xpose.msra.mxu0 0.0
        %2661 = vmatprep.subr.mxu0 0.0
        %2662 = vmatpush1.xpose.msra.mxu0 0.0
        %2663 = vmatprep.subr.mxu0 0.0
        %2664 = vmatpush1.xpose.msra.mxu0 0.0
        %2665 = vmatprep.mubr.f32.mxu0 0.0
        %2666 = vmatmul.mubr.f32.gmra.mrb[0].mxu0 %v2593
        %v2667 = vpop.f32.mrb[0].mxu0
        %v2668 = vadd.f32 0.0, %v2667
        %v2669 = vpop.f32.mrb[0].mxu0
        %2670 = vdwg.mxu0
        %v2671 = vsel %vm2277, %v2668, -inf
        %2672 = vmax.xlane.f32.xlu0 %v2671
        %v2673 = vpop.xlane.xlu0 %2672
        %v2674 = vsub.f32 %v2668, %v2673
        %v2675 = vmul.f32 %v2674, 1.442695
        %v2676 = vpow.pop %v2675
        %v2677 = vsel %vm2277, %v2676, 0.0
        %2678 = vadd.xlane.f32.xlu0 %v2677
        %v2679 = vpop.xlane.xlu0 %2678
        %v2680 = vrcp.pop %v2679
        %v2681 = vmul.f32 %v2676, %v2680
        %2682 = vrot.lane.b32.xlu0 %v1765, 56
        %v2683 = vpop.permute.xlu0 %2682
        %2684 = vrot.lane.b32.xlu0 %v1771, 56
        %v2685 = vpop.permute.xlu0 %2684
        %2688 = vrot.lane.b32.xlu0 %v2169, 32
        %v2689 = vpop.permute.xlu0 %2688
        %2690 = vrot.lane.b32.xlu0 %v2171, 32
        %v2691 = vpop.permute.xlu0 %2690
        %2694 = vrot.lane.b32.xlu0 %v2197, 40
        %v2695 = vpop.permute.xlu0 %2694
        %2696 = vrot.lane.b32.xlu0 %v2199, 40
        %v2697 = vpop.permute.xlu0 %2696
        %2700 = vrot.lane.b32.xlu0 %v2225, 48
        %v2701 = vpop.permute.xlu0 %2700
        %2702 = vrot.lane.b32.xlu0 %v2227, 48
        %v2703 = vpop.permute.xlu0 %2702
        %v2706 = vsel %vm2273, %v2683, %v2689
        %v2707 = vsel %vm2273, %v2685, %v2691
        %v2708 = vsel %vm2277, %v2706, %v2695
        %v2709 = vsel %vm2277, %v2707, %v2697
        %v2710 = vsel %vm2444, %v2708, %v2701
        %v2711 = vsel %vm2444, %v2709, %v2703
        %v2713 = vsel %vm2277, %v2681, 0
        %2715 = vmatprep.subr.mxu0 0.0
        %2716 = vmatpush1.msra.mxu0 %v2710
        %2717 = vmatprep.subr.mxu0 0.0
        %2718 = vmatpush1.msra.mxu0 %v2711
        %2719 = vmatprep.subr.mxu0 0.0
        %2720 = vmatpush1.msra.mxu0 0.0
        %2721 = vmatprep.subr.mxu0 0.0
        %2722 = vmatpush1.msra.mxu0 0.0
        %2723 = vmatprep.subr.mxu0 0.0
        %2724 = vmatpush1.msra.mxu0 0.0
        %2725 = vmatprep.subr.mxu0 0.0
        %2726 = vmatpush1.msra.mxu0 0.0
        %2727 = vmatprep.subr.mxu0 0.0
        %2728 = vmatpush1.msra.mxu0 0.0
        %2729 = vmatprep.subr.mxu0 0.0
        %2730 = vmatpush1.msra.mxu0 0.0
        %2731 = vmatprep.subr.mxu0 0.0
        %2732 = vmatpush1.msra.mxu0 0.0
        %2733 = vmatprep.subr.mxu0 0.0
        %2734 = vmatpush1.msra.mxu0 0.0
        %2735 = vmatprep.subr.mxu0 0.0
        %2736 = vmatpush1.msra.mxu0 0.0
        %2737 = vmatprep.subr.mxu0 0.0
        %2738 = vmatpush1.msra.mxu0 0.0
        %2739 = vmatprep.subr.mxu0 0.0
        %2740 = vmatpush1.msra.mxu0 0.0
        %2741 = vmatprep.subr.mxu0 0.0
        %2742 = vmatpush1.msra.mxu0 0.0
        %2743 = vmatprep.subr.mxu0 0.0
        %2744 = vmatpush1.msra.mxu0 0.0
        %2745 = vmatprep.subr.mxu0 0.0
        %2746 = vmatpush1.msra.mxu0 0.0
        %2747 = vmatprep.subr.mxu0 0.0
        %2748 = vmatpush1.msra.mxu0 0.0
        %2749 = vmatprep.subr.mxu0 0.0
        %2750 = vmatpush1.msra.mxu0 0.0
        %2751 = vmatprep.subr.mxu0 0.0
        %2752 = vmatpush1.msra.mxu0 0.0
        %2753 = vmatprep.subr.mxu0 0.0
        %2754 = vmatpush1.msra.mxu0 0.0
        %2755 = vmatprep.subr.mxu0 0.0
        %2756 = vmatpush1.msra.mxu0 0.0
        %2757 = vmatprep.subr.mxu0 0.0
        %2758 = vmatpush1.msra.mxu0 0.0
        %2759 = vmatprep.subr.mxu0 0.0
        %2760 = vmatpush1.msra.mxu0 0.0
        %2761 = vmatprep.subr.mxu0 0.0
        %2762 = vmatpush1.msra.mxu0 0.0
        %2763 = vmatprep.subr.mxu0 0.0
        %2764 = vmatpush1.msra.mxu0 0.0
        %2765 = vmatprep.subr.mxu0 0.0
        %2766 = vmatpush1.msra.mxu0 0.0
        %2767 = vmatprep.subr.mxu0 0.0
        %2768 = vmatpush1.msra.mxu0 0.0
        %2769 = vmatprep.subr.mxu0 0.0
        %2770 = vmatpush1.msra.mxu0 0.0
        %2771 = vmatprep.subr.mxu0 0.0
        %2772 = vmatpush1.msra.mxu0 0.0
        %2773 = vmatprep.subr.mxu0 0.0
        %2774 = vmatpush1.msra.mxu0 0.0
        %2775 = vmatprep.subr.mxu0 0.0
        %2776 = vmatpush1.msra.mxu0 0.0
        %2777 = vmatprep.subr.mxu0 0.0
        %2778 = vmatpush1.msra.mxu0 0.0
        %2779 = vmatprep.mubr.f32.mxu0 0.0
        %2780 = vmatmul.mubr.f32.gmra.mrb[0].mxu0 %v2713
        %v2781 = vpop.f32.mrb[0].mxu0
        %v2782 = vadd.f32 0.0, %v2781
        %v2783 = vpop.f32.mrb[0].mxu0
        %2784 = vdwg.mxu0
        %2785 = vrot.lane.b32.xlu0 %v2233, 56
        %v2786 = vpop.permute.xlu0 %2785
        %v2788 = vsel %vm2238, %v2786, 0.0
        %2789 = vadd.xlane.f32.xlu0 %v2788
        %v2790 = vpop.xlane.xlu0 %2789
        %2791 = vrot.lane.b32.xlu0 %v2250, 120
        %v2792 = vpop.permute.xlu0 %2791
        %2793 = vrot.lane.b32.xlu0 %v2251, 120
        %v2794 = vpop.permute.xlu0 %2793
        %v2797 = vsel %vm2238, %v2792, 0.0
        %2798 = vadd.xlane.f32.xlu0 %v2797
        %v2799 = vpop.xlane.xlu0 %2798
        %v2800 = vsel %vm2238, %v2794, 0.0
        %2801 = vadd.xlane.f32.xlu0 %v2800
        %v2802 = vpop.xlane.xlu0 %2801
        %2803 = vrot.lane.b32.xlu0 %v1852, 112
        %v2804 = vpop.permute.xlu0 %2803
        %2806 = vrot.lane.b32.xlu0 %v2258, 64
        %v2807 = vpop.permute.xlu0 %2806
        %2809 = vrot.lane.b32.xlu0 %v2259, 68
        %v2810 = vpop.permute.xlu0 %2809
        %2812 = vrot.lane.b32.xlu0 %v2260, 72
        %v2813 = vpop.permute.xlu0 %2812
        %v2815 = vsel %vm2273, %v2804, %v2807
        %v2816 = vsel %vm2275, %v2815, %v2810
        %v2817 = vsel %vm2277, %v2816, %v2813
        %v2818 = vsel %vm2279, %v2817, %v2790
        %v2819 = vsel %vm2281, %v2818, -1.0
        %2820 = vrot.lane.b32.xlu0 %v1765, 112
        %v2821 = vpop.permute.xlu0 %2820
        %2822 = vrot.lane.b32.xlu0 %v1771, 112
        %v2823 = vpop.permute.xlu0 %2822
        %2826 = vrot.lane.b32.xlu0 %v2081, 4
        %v2827 = vpop.permute.xlu0 %2826
        %2828 = vrot.lane.b32.xlu0 %v2082, 4
        %v2829 = vpop.permute.xlu0 %2828
        %2832 = vrot.lane.b32.xlu0 %v2143, 8
        %v2833 = vpop.permute.xlu0 %2832
        %2834 = vrot.lane.b32.xlu0 %v2144, 8
        %v2835 = vpop.permute.xlu0 %2834
        %v2838 = vsel %vm2273, %v2821, %v2019
        %v2839 = vsel %vm2273, %v2823, %v2020
        %v2840 = vsel %vm2275, %v2838, %v2827
        %v2841 = vsel %vm2275, %v2839, %v2829
        %v2842 = vsel %vm2277, %v2840, %v2833
        %v2843 = vsel %vm2277, %v2841, %v2835
        %v2844 = vsel %vm2279, %v2842, -1.0
        %v2845 = vsel %vm2279, %v2843, -1.0
        %v2846 = vsel %vm2281, %v2844, %v2799
        %v2847 = vsel %vm2281, %v2845, %v2802
        %v2849 = vsel %vm2317, %v2819, 0
        %v2852 = vsel %vm2317, %v2846, 0
        %v2855 = vsel %vm2317, %v2847, 0
        %2857 = vmatprep.subr.mxu0 0.0
        %2858 = vmatpush1.xpose.msra.mxu0 %v2852
        %2859 = vmatprep.subr.mxu0 0.0
        %2860 = vmatpush1.xpose.msra.mxu0 %v2855
        %2861 = vmatprep.subr.mxu0 0.0
        %2862 = vmatpush1.xpose.msra.mxu0 0.0
        %2863 = vmatprep.subr.mxu0 0.0
        %2864 = vmatpush1.xpose.msra.mxu0 0.0
        %2865 = vmatprep.subr.mxu0 0.0
        %2866 = vmatpush1.xpose.msra.mxu0 0.0
        %2867 = vmatprep.subr.mxu0 0.0
        %2868 = vmatpush1.xpose.msra.mxu0 0.0
        %2869 = vmatprep.subr.mxu0 0.0
        %2870 = vmatpush1.xpose.msra.mxu0 0.0
        %2871 = vmatprep.subr.mxu0 0.0
        %2872 = vmatpush1.xpose.msra.mxu0 0.0
        %2873 = vmatprep.subr.mxu0 0.0
        %2874 = vmatpush1.xpose.msra.mxu0 0.0
        %2875 = vmatprep.subr.mxu0 0.0
        %2876 = vmatpush1.xpose.msra.mxu0 0.0
        %2877 = vmatprep.subr.mxu0 0.0
        %2878 = vmatpush1.xpose.msra.mxu0 0.0
        %2879 = vmatprep.subr.mxu0 0.0
        %2880 = vmatpush1.xpose.msra.mxu0 0.0
        %2881 = vmatprep.subr.mxu0 0.0
        %2882 = vmatpush1.xpose.msra.mxu0 0.0
        %2883 = vmatprep.subr.mxu0 0.0
        %2884 = vmatpush1.xpose.msra.mxu0 0.0
        %2885 = vmatprep.subr.mxu0 0.0
        %2886 = vmatpush1.xpose.msra.mxu0 0.0
        %2887 = vmatprep.subr.mxu0 0.0
        %2888 = vmatpush1.xpose.msra.mxu0 0.0
        %2889 = vmatprep.subr.mxu0 0.0
        %2890 = vmatpush1.xpose.msra.mxu0 0.0
        %2891 = vmatprep.subr.mxu0 0.0
        %2892 = vmatpush1.xpose.msra.mxu0 0.0
        %2893 = vmatprep.subr.mxu0 0.0
        %2894 = vmatpush1.xpose.msra.mxu0 0.0
        %2895 = vmatprep.subr.mxu0 0.0
        %2896 = vmatpush1.xpose.msra.mxu0 0.0
        %2897 = vmatprep.subr.mxu0 0.0
        %2898 = vmatpush1.xpose.msra.mxu0 0.0
        %2899 = vmatprep.subr.mxu0 0.0
        %2900 = vmatpush1.xpose.msra.mxu0 0.0
        %2901 = vmatprep.subr.mxu0 0.0
        %2902 = vmatpush1.xpose.msra.mxu0 0.0
        %2903 = vmatprep.subr.mxu0 0.0
        %2904 = vmatpush1.xpose.msra.mxu0 0.0
        %2905 = vmatprep.subr.mxu0 0.0
        %2906 = vmatpush1.xpose.msra.mxu0 0.0
        %2907 = vmatprep.subr.mxu0 0.0
        %2908 = vmatpush1.xpose.msra.mxu0 0.0
        %2909 = vmatprep.subr.mxu0 0.0
        %2910 = vmatpush1.xpose.msra.mxu0 0.0
        %2911 = vmatprep.subr.mxu0 0.0
        %2912 = vmatpush1.xpose.msra.mxu0 0.0
        %2913 = vmatprep.subr.mxu0 0.0
        %2914 = vmatpush1.xpose.msra.mxu0 0.0
        %2915 = vmatprep.subr.mxu0 0.0
        %2916 = vmatpush1.xpose.msra.mxu0 0.0
        %2917 = vmatprep.subr.mxu0 0.0
        %2918 = vmatpush1.xpose.msra.mxu0 0.0
        %2919 = vmatprep.subr.mxu0 0.0
        %2920 = vmatpush1.xpose.msra.mxu0 0.0
        %2921 = vmatprep.mubr.f32.mxu0 0.0
        %2922 = vmatmul.mubr.f32.gmra.mrb[0].mxu0 %v2849
        %v2923 = vpop.f32.mrb[0].mxu0
        %v2924 = vadd.f32 0.0, %v2923
        %v2925 = vpop.f32.mrb[0].mxu0
        %2926 = vdwg.mxu0
        %v2927 = vsel %vm2277, %v2924, -inf
        %2928 = vmax.xlane.f32.xlu0 %v2927
        %v2929 = vpop.xlane.xlu0 %2928
        %v2930 = vsub.f32 %v2924, %v2929
        %v2931 = vmul.f32 %v2930, 1.442695
        %v2932 = vpow.pop %v2931
        %v2933 = vsel %vm2277, %v2932, 0.0
        %2934 = vadd.xlane.f32.xlu0 %v2933
        %v2935 = vpop.xlane.xlu0 %2934
        %v2936 = vrcp.pop %v2935
        %v2937 = vmul.f32 %v2932, %v2936
        %2938 = vrot.lane.b32.xlu0 %v1765, 48
        %v2939 = vpop.permute.xlu0 %2938
        %2940 = vrot.lane.b32.xlu0 %v1771, 48
        %v2941 = vpop.permute.xlu0 %2940
        %2944 = vrot.lane.b32.xlu0 %v2169, 24
        %v2945 = vpop.permute.xlu0 %2944
        %2946 = vrot.lane.b32.xlu0 %v2171, 24
        %v2947 = vpop.permute.xlu0 %2946
        %2950 = vrot.lane.b32.xlu0 %v2197, 32
        %v2951 = vpop.permute.xlu0 %2950
        %2952 = vrot.lane.b32.xlu0 %v2199, 32
        %v2953 = vpop.permute.xlu0 %2952
        %2956 = vrot.lane.b32.xlu0 %v2225, 40
        %v2957 = vpop.permute.xlu0 %2956
        %2958 = vrot.lane.b32.xlu0 %v2227, 40
        %v2959 = vpop.permute.xlu0 %2958
        %v2962 = vsel %vm2273, %v2939, %v2945
        %v2963 = vsel %vm2273, %v2941, %v2947
        %v2964 = vsel %vm2277, %v2962, %v2951
        %v2965 = vsel %vm2277, %v2963, %v2953
        %v2966 = vsel %vm2444, %v2964, %v2957
        %v2967 = vsel %vm2444, %v2965, %v2959
        %v2969 = vsel %vm2277, %v2937, 0
        %2971 = vmatprep.subr.mxu0 0.0
        %2972 = vmatpush1.msra.mxu0 %v2966
        %2973 = vmatprep.subr.mxu0 0.0
        %2974 = vmatpush1.msra.mxu0 %v2967
        %2975 = vmatprep.subr.mxu0 0.0
        %2976 = vmatpush1.msra.mxu0 0.0
        %2977 = vmatprep.subr.mxu0 0.0
        %2978 = vmatpush1.msra.mxu0 0.0
        %2979 = vmatprep.subr.mxu0 0.0
        %2980 = vmatpush1.msra.mxu0 0.0
        %2981 = vmatprep.subr.mxu0 0.0
        %2982 = vmatpush1.msra.mxu0 0.0
        %2983 = vmatprep.subr.mxu0 0.0
        %2984 = vmatpush1.msra.mxu0 0.0
        %2985 = vmatprep.subr.mxu0 0.0
        %2986 = vmatpush1.msra.mxu0 0.0
        %2987 = vmatprep.subr.mxu0 0.0
        %2988 = vmatpush1.msra.mxu0 0.0
        %2989 = vmatprep.subr.mxu0 0.0
        %2990 = vmatpush1.msra.mxu0 0.0
        %2991 = vmatprep.subr.mxu0 0.0
        %2992 = vmatpush1.msra.mxu0 0.0
        %2993 = vmatprep.subr.mxu0 0.0
        %2994 = vmatpush1.msra.mxu0 0.0
        %2995 = vmatprep.subr.mxu0 0.0
        %2996 = vmatpush1.msra.mxu0 0.0
        %2997 = vmatprep.subr.mxu0 0.0
        %2998 = vmatpush1.msra.mxu0 0.0
        %2999 = vmatprep.subr.mxu0 0.0
        %3000 = vmatpush1.msra.mxu0 0.0
        %3001 = vmatprep.subr.mxu0 0.0
        %3002 = vmatpush1.msra.mxu0 0.0
        %3003 = vmatprep.subr.mxu0 0.0
        %3004 = vmatpush1.msra.mxu0 0.0
        %3005 = vmatprep.subr.mxu0 0.0
        %3006 = vmatpush1.msra.mxu0 0.0
        %3007 = vmatprep.subr.mxu0 0.0
        %3008 = vmatpush1.msra.mxu0 0.0
        %3009 = vmatprep.subr.mxu0 0.0
        %3010 = vmatpush1.msra.mxu0 0.0
        %3011 = vmatprep.subr.mxu0 0.0
        %3012 = vmatpush1.msra.mxu0 0.0
        %3013 = vmatprep.subr.mxu0 0.0
        %3014 = vmatpush1.msra.mxu0 0.0
        %3015 = vmatprep.subr.mxu0 0.0
        %3016 = vmatpush1.msra.mxu0 0.0
        %3017 = vmatprep.subr.mxu0 0.0
        %3018 = vmatpush1.msra.mxu0 0.0
        %3019 = vmatprep.subr.mxu0 0.0
        %3020 = vmatpush1.msra.mxu0 0.0
        %3021 = vmatprep.subr.mxu0 0.0
        %3022 = vmatpush1.msra.mxu0 0.0
        %3023 = vmatprep.subr.mxu0 0.0
        %3024 = vmatpush1.msra.mxu0 0.0
        %3025 = vmatprep.subr.mxu0 0.0
        %3026 = vmatpush1.msra.mxu0 0.0
        %3027 = vmatprep.subr.mxu0 0.0
        %3028 = vmatpush1.msra.mxu0 0.0
        %3029 = vmatprep.subr.mxu0 0.0
        %3030 = vmatpush1.msra.mxu0 0.0
        %3031 = vmatprep.subr.mxu0 0.0
        %3032 = vmatpush1.msra.mxu0 0.0
        %3033 = vmatprep.subr.mxu0 0.0
        %3034 = vmatpush1.msra.mxu0 0.0
        %3035 = vmatprep.mubr.f32.mxu0 0.0
        %3036 = vmatmul.mubr.f32.gmra.mrb[0].mxu0 %v2969
        %v3037 = vpop.f32.mrb[0].mxu0
        %v3038 = vadd.f32 0.0, %v3037
        %v3039 = vpop.f32.mrb[0].mxu0
        %3040 = vdwg.mxu0
        %3041 = vrot.lane.b32.xlu0 %v2233, 52
        %v3042 = vpop.permute.xlu0 %3041
        %v3044 = vsel %vm2238, %v3042, 0.0
        %3045 = vadd.xlane.f32.xlu0 %v3044
        %v3046 = vpop.xlane.xlu0 %3045
        %3047 = vrot.lane.b32.xlu0 %v2250, 116
        %v3048 = vpop.permute.xlu0 %3047
        %3049 = vrot.lane.b32.xlu0 %v2251, 116
        %v3050 = vpop.permute.xlu0 %3049
        %v3053 = vsel %vm2238, %v3048, 0.0
        %3054 = vadd.xlane.f32.xlu0 %v3053
        %v3055 = vpop.xlane.xlu0 %3054
        %v3056 = vsel %vm2238, %v3050, 0.0
        %3057 = vadd.xlane.f32.xlu0 %v3056
        %v3058 = vpop.xlane.xlu0 %3057
        %3059 = vrot.lane.b32.xlu0 %v1852, 104
        %v3060 = vpop.permute.xlu0 %3059
        %3062 = vrot.lane.b32.xlu0 %v2258, 60
        %v3063 = vpop.permute.xlu0 %3062
        %3065 = vrot.lane.b32.xlu0 %v2259, 64
        %v3066 = vpop.permute.xlu0 %3065
        %3068 = vrot.lane.b32.xlu0 %v2260, 68
        %v3069 = vpop.permute.xlu0 %3068
        %v3071 = vsel %vm2273, %v3060, %v3063
        %v3072 = vsel %vm2275, %v3071, %v3066
        %v3073 = vsel %vm2277, %v3072, %v3069
        %v3074 = vsel %vm2279, %v3073, %v3046
        %v3075 = vsel %vm2281, %v3074, -1.0
        %3076 = vrot.lane.b32.xlu0 %v1765, 104
        %v3077 = vpop.permute.xlu0 %3076
        %3078 = vrot.lane.b32.xlu0 %v1771, 104
        %v3079 = vpop.permute.xlu0 %3078
        %3082 = vrot.lane.b32.xlu0 %v2019, 124
        %v3083 = vpop.permute.xlu0 %3082
        %3084 = vrot.lane.b32.xlu0 %v2020, 124
        %v3085 = vpop.permute.xlu0 %3084
        %3088 = vrot.lane.b32.xlu0 %v2143, 4
        %v3089 = vpop.permute.xlu0 %3088
        %3090 = vrot.lane.b32.xlu0 %v2144, 4
        %v3091 = vpop.permute.xlu0 %3090
        %v3094 = vsel %vm2273, %v3077, %v3083
        %v3095 = vsel %vm2273, %v3079, %v3085
        %v3096 = vsel %vm2275, %v3094, %v2081
        %v3097 = vsel %vm2275, %v3095, %v2082
        %v3098 = vsel %vm2277, %v3096, %v3089
        %v3099 = vsel %vm2277, %v3097, %v3091
        %v3100 = vsel %vm2279, %v3098, -1.0
        %v3101 = vsel %vm2279, %v3099, -1.0
        %v3102 = vsel %vm2281, %v3100, %v3055
        %v3103 = vsel %vm2281, %v3101, %v3058
        %v3105 = vsel %vm2317, %v3075, 0
        %v3108 = vsel %vm2317, %v3102, 0
        %v3111 = vsel %vm2317, %v3103, 0
        %3113 = vmatprep.subr.mxu0 0.0
        %3114 = vmatpush1.xpose.msra.mxu0 %v3108
        %3115 = vmatprep.subr.mxu0 0.0
        %3116 = vmatpush1.xpose.msra.mxu0 %v3111
        %3117 = vmatprep.subr.mxu0 0.0
        %3118 = vmatpush1.xpose.msra.mxu0 0.0
        %3119 = vmatprep.subr.mxu0 0.0
        %3120 = vmatpush1.xpose.msra.mxu0 0.0
        %3121 = vmatprep.subr.mxu0 0.0
        %3122 = vmatpush1.xpose.msra.mxu0 0.0
        %3123 = vmatprep.subr.mxu0 0.0
        %3124 = vmatpush1.xpose.msra.mxu0 0.0
        %3125 = vmatprep.subr.mxu0 0.0
        %3126 = vmatpush1.xpose.msra.mxu0 0.0
        %3127 = vmatprep.subr.mxu0 0.0
        %3128 = vmatpush1.xpose.msra.mxu0 0.0
        %3129 = vmatprep.subr.mxu0 0.0
        %3130 = vmatpush1.xpose.msra.mxu0 0.0
        %3131 = vmatprep.subr.mxu0 0.0
        %3132 = vmatpush1.xpose.msra.mxu0 0.0
        %3133 = vmatprep.subr.mxu0 0.0
        %3134 = vmatpush1.xpose.msra.mxu0 0.0
        %3135 = vmatprep.subr.mxu0 0.0
        %3136 = vmatpush1.xpose.msra.mxu0 0.0
        %3137 = vmatprep.subr.mxu0 0.0
        %3138 = vmatpush1.xpose.msra.mxu0 0.0
        %3139 = vmatprep.subr.mxu0 0.0
        %3140 = vmatpush1.xpose.msra.mxu0 0.0
        %3141 = vmatprep.subr.mxu0 0.0
        %3142 = vmatpush1.xpose.msra.mxu0 0.0
        %3143 = vmatprep.subr.mxu0 0.0
        %3144 = vmatpush1.xpose.msra.mxu0 0.0
        %3145 = vmatprep.subr.mxu0 0.0
        %3146 = vmatpush1.xpose.msra.mxu0 0.0
        %3147 = vmatprep.subr.mxu0 0.0
        %3148 = vmatpush1.xpose.msra.mxu0 0.0
        %3149 = vmatprep.subr.mxu0 0.0
        %3150 = vmatpush1.xpose.msra.mxu0 0.0
        %3151 = vmatprep.subr.mxu0 0.0
        %3152 = vmatpush1.xpose.msra.mxu0 0.0
        %3153 = vmatprep.subr.mxu0 0.0
        %3154 = vmatpush1.xpose.msra.mxu0 0.0
        %3155 = vmatprep.subr.mxu0 0.0
        %3156 = vmatpush1.xpose.msra.mxu0 0.0
        %3157 = vmatprep.subr.mxu0 0.0
        %3158 = vmatpush1.xpose.msra.mxu0 0.0
        %3159 = vmatprep.subr.mxu0 0.0
        %3160 = vmatpush1.xpose.msra.mxu0 0.0
        %3161 = vmatprep.subr.mxu0 0.0
        %3162 = vmatpush1.xpose.msra.mxu0 0.0
        %3163 = vmatprep.subr.mxu0 0.0
        %3164 = vmatpush1.xpose.msra.mxu0 0.0
        %3165 = vmatprep.subr.mxu0 0.0
        %3166 = vmatpush1.xpose.msra.mxu0 0.0
        %3167 = vmatprep.subr.mxu0 0.0
        %3168 = vmatpush1.xpose.msra.mxu0 0.0
        %3169 = vmatprep.subr.mxu0 0.0
        %3170 = vmatpush1.xpose.msra.mxu0 0.0
        %3171 = vmatprep.subr.mxu0 0.0
        %3172 = vmatpush1.xpose.msra.mxu0 0.0
        %3173 = vmatprep.subr.mxu0 0.0
        %3174 = vmatpush1.xpose.msra.mxu0 0.0
        %3175 = vmatprep.subr.mxu0 0.0
        %3176 = vmatpush1.xpose.msra.mxu0 0.0
        %3177 = vmatprep.mubr.f32.mxu0 0.0
        %3178 = vmatmul.mubr.f32.gmra.mrb[0].mxu0 %v3105
        %v3179 = vpop.f32.mrb[0].mxu0
        %v3180 = vadd.f32 0.0, %v3179
        %v3181 = vpop.f32.mrb[0].mxu0
        %3182 = vdwg.mxu0
        %v3183 = vsel %vm2277, %v3180, -inf
        %3184 = vmax.xlane.f32.xlu0 %v3183
        %v3185 = vpop.xlane.xlu0 %3184
        %v3186 = vsub.f32 %v3180, %v3185
        %v3187 = vmul.f32 %v3186, 1.442695
        %v3188 = vpow.pop %v3187
        %v3189 = vsel %vm2277, %v3188, 0.0
        %3190 = vadd.xlane.f32.xlu0 %v3189
        %v3191 = vpop.xlane.xlu0 %3190
        %v3192 = vrcp.pop %v3191
        %v3193 = vmul.f32 %v3188, %v3192
        %3194 = vrot.lane.b32.xlu0 %v1765, 40
        %v3195 = vpop.permute.xlu0 %3194
        %3196 = vrot.lane.b32.xlu0 %v1771, 40
        %v3197 = vpop.permute.xlu0 %3196
        %3200 = vrot.lane.b32.xlu0 %v2169, 16
        %v3201 = vpop.permute.xlu0 %3200
        %3202 = vrot.lane.b32.xlu0 %v2171, 16
        %v3203 = vpop.permute.xlu0 %3202
        %3206 = vrot.lane.b32.xlu0 %v2197, 24
        %v3207 = vpop.permute.xlu0 %3206
        %3208 = vrot.lane.b32.xlu0 %v2199, 24
        %v3209 = vpop.permute.xlu0 %3208
        %3212 = vrot.lane.b32.xlu0 %v2225, 32
        %v3213 = vpop.permute.xlu0 %3212
        %3214 = vrot.lane.b32.xlu0 %v2227, 32
        %v3215 = vpop.permute.xlu0 %3214
        %v3218 = vsel %vm2273, %v3195, %v3201
        %v3219 = vsel %vm2273, %v3197, %v3203
        %v3220 = vsel %vm2277, %v3218, %v3207
        %v3221 = vsel %vm2277, %v3219, %v3209
        %v3222 = vsel %vm2444, %v3220, %v3213
        %v3223 = vsel %vm2444, %v3221, %v3215
        %v3225 = vsel %vm2277, %v3193, 0
        %3227 = vmatprep.subr.mxu0 0.0
        %3228 = vmatpush1.msra.mxu0 %v3222
        %3229 = vmatprep.subr.mxu0 0.0
        %3230 = vmatpush1.msra.mxu0 %v3223
        %3231 = vmatprep.subr.mxu0 0.0
        %3232 = vmatpush1.msra.mxu0 0.0
        %3233 = vmatprep.subr.mxu0 0.0
        %3234 = vmatpush1.msra.mxu0 0.0
        %3235 = vmatprep.subr.mxu0 0.0
        %3236 = vmatpush1.msra.mxu0 0.0
        %3237 = vmatprep.subr.mxu0 0.0
        %3238 = vmatpush1.msra.mxu0 0.0
        %3239 = vmatprep.subr.mxu0 0.0
        %3240 = vmatpush1.msra.mxu0 0.0
        %3241 = vmatprep.subr.mxu0 0.0
        %3242 = vmatpush1.msra.mxu0 0.0
        %3243 = vmatprep.subr.mxu0 0.0
        %3244 = vmatpush1.msra.mxu0 0.0
        %3245 = vmatprep.subr.mxu0 0.0
        %3246 = vmatpush1.msra.mxu0 0.0
        %3247 = vmatprep.subr.mxu0 0.0
        %3248 = vmatpush1.msra.mxu0 0.0
        %3249 = vmatprep.subr.mxu0 0.0
        %3250 = vmatpush1.msra.mxu0 0.0
        %3251 = vmatprep.subr.mxu0 0.0
        %3252 = vmatpush1.msra.mxu0 0.0
        %3253 = vmatprep.subr.mxu0 0.0
        %3254 = vmatpush1.msra.mxu0 0.0
        %3255 = vmatprep.subr.mxu0 0.0
        %3256 = vmatpush1.msra.mxu0 0.0
        %3257 = vmatprep.subr.mxu0 0.0
        %3258 = vmatpush1.msra.mxu0 0.0
        %3259 = vmatprep.subr.mxu0 0.0
        %3260 = vmatpush1.msra.mxu0 0.0
        %3261 = vmatprep.subr.mxu0 0.0
        %3262 = vmatpush1.msra.mxu0 0.0
        %3263 = vmatprep.subr.mxu0 0.0
        %3264 = vmatpush1.msra.mxu0 0.0
        %3265 = vmatprep.subr.mxu0 0.0
        %3266 = vmatpush1.msra.mxu0 0.0
        %3267 = vmatprep.subr.mxu0 0.0
        %3268 = vmatpush1.msra.mxu0 0.0
        %3269 = vmatprep.subr.mxu0 0.0
        %3270 = vmatpush1.msra.mxu0 0.0
        %3271 = vmatprep.subr.mxu0 0.0
        %3272 = vmatpush1.msra.mxu0 0.0
        %3273 = vmatprep.subr.mxu0 0.0
        %3274 = vmatpush1.msra.mxu0 0.0
        %3275 = vmatprep.subr.mxu0 0.0
        %3276 = vmatpush1.msra.mxu0 0.0
        %3277 = vmatprep.subr.mxu0 0.0
        %3278 = vmatpush1.msra.mxu0 0.0
        %3279 = vmatprep.subr.mxu0 0.0
        %3280 = vmatpush1.msra.mxu0 0.0
        %3281 = vmatprep.subr.mxu0 0.0
        %3282 = vmatpush1.msra.mxu0 0.0
        %3283 = vmatprep.subr.mxu0 0.0
        %3284 = vmatpush1.msra.mxu0 0.0
        %3285 = vmatprep.subr.mxu0 0.0
        %3286 = vmatpush1.msra.mxu0 0.0
        %3287 = vmatprep.subr.mxu0 0.0
        %3288 = vmatpush1.msra.mxu0 0.0
        %3289 = vmatprep.subr.mxu0 0.0
        %3290 = vmatpush1.msra.mxu0 0.0
        %3291 = vmatprep.mubr.f32.mxu0 0.0
        %3292 = vmatmul.mubr.f32.gmra.mrb[0].mxu0 %v3225
        %v3293 = vpop.f32.mrb[0].mxu0
        %v3294 = vadd.f32 0.0, %v3293
        %v3295 = vpop.f32.mrb[0].mxu0
        %3296 = vdwg.mxu0
        %3297 = vrot.lane.b32.xlu0 %v2233, 48
        %v3298 = vpop.permute.xlu0 %3297
        %v3300 = vsel %vm2238, %v3298, 0.0
        %3301 = vadd.xlane.f32.xlu0 %v3300
        %v3302 = vpop.xlane.xlu0 %3301
        %3303 = vrot.lane.b32.xlu0 %v2250, 112
        %v3304 = vpop.permute.xlu0 %3303
        %3305 = vrot.lane.b32.xlu0 %v2251, 112
        %v3306 = vpop.permute.xlu0 %3305
        %v3309 = vsel %vm2238, %v3304, 0.0
        %3310 = vadd.xlane.f32.xlu0 %v3309
        %v3311 = vpop.xlane.xlu0 %3310
        %v3312 = vsel %vm2238, %v3306, 0.0
        %3313 = vadd.xlane.f32.xlu0 %v3312
        %v3314 = vpop.xlane.xlu0 %3313
        %3315 = vrot.lane.b32.xlu0 %v1852, 96
        %v3316 = vpop.permute.xlu0 %3315
        %3318 = vrot.lane.b32.xlu0 %v2258, 56
        %v3319 = vpop.permute.xlu0 %3318
        %3321 = vrot.lane.b32.xlu0 %v2259, 60
        %v3322 = vpop.permute.xlu0 %3321
        %3324 = vrot.lane.b32.xlu0 %v2260, 64
        %v3325 = vpop.permute.xlu0 %3324
        %v3327 = vsel %vm2273, %v3316, %v3319
        %v3328 = vsel %vm2275, %v3327, %v3322
        %v3329 = vsel %vm2277, %v3328, %v3325
        %v3330 = vsel %vm2279, %v3329, %v3302
        %v3331 = vsel %vm2281, %v3330, -1.0
        %3332 = vrot.lane.b32.xlu0 %v1765, 96
        %v3333 = vpop.permute.xlu0 %3332
        %3334 = vrot.lane.b32.xlu0 %v1771, 96
        %v3335 = vpop.permute.xlu0 %3334
        %3338 = vrot.lane.b32.xlu0 %v2019, 120
        %v3339 = vpop.permute.xlu0 %3338
        %3340 = vrot.lane.b32.xlu0 %v2020, 120
        %v3341 = vpop.permute.xlu0 %3340
        %3344 = vrot.lane.b32.xlu0 %v2081, 124
        %v3345 = vpop.permute.xlu0 %3344
        %3346 = vrot.lane.b32.xlu0 %v2082, 124
        %v3347 = vpop.permute.xlu0 %3346
        %v3350 = vsel %vm2273, %v3333, %v3339
        %v3351 = vsel %vm2273, %v3335, %v3341
        %v3352 = vsel %vm2275, %v3350, %v3345
        %v3353 = vsel %vm2275, %v3351, %v3347
        %v3354 = vsel %vm2277, %v3352, %v2143
        %v3355 = vsel %vm2277, %v3353, %v2144
        %v3356 = vsel %vm2279, %v3354, -1.0
        %v3357 = vsel %vm2279, %v3355, -1.0
        %v3358 = vsel %vm2281, %v3356, %v3311
        %v3359 = vsel %vm2281, %v3357, %v3314
        %v3361 = vsel %vm2317, %v3331, 0
        %v3364 = vsel %vm2317, %v3358, 0
        %v3367 = vsel %vm2317, %v3359, 0
        %3369 = vmatprep.subr.mxu0 0.0
        %3370 = vmatpush1.xpose.msra.mxu0 %v3364
        %3371 = vmatprep.subr.mxu0 0.0
        %3372 = vmatpush1.xpose.msra.mxu0 %v3367
        %3373 = vmatprep.subr.mxu0 0.0
        %3374 = vmatpush1.xpose.msra.mxu0 0.0
        %3375 = vmatprep.subr.mxu0 0.0
        %3376 = vmatpush1.xpose.msra.mxu0 0.0
        %3377 = vmatprep.subr.mxu0 0.0
        %3378 = vmatpush1.xpose.msra.mxu0 0.0
        %3379 = vmatprep.subr.mxu0 0.0
        %3380 = vmatpush1.xpose.msra.mxu0 0.0
        %3381 = vmatprep.subr.mxu0 0.0
        %3382 = vmatpush1.xpose.msra.mxu0 0.0
        %3383 = vmatprep.subr.mxu0 0.0
        %3384 = vmatpush1.xpose.msra.mxu0 0.0
        %3385 = vmatprep.subr.mxu0 0.0
        %3386 = vmatpush1.xpose.msra.mxu0 0.0
        %3387 = vmatprep.subr.mxu0 0.0
        %3388 = vmatpush1.xpose.msra.mxu0 0.0
        %3389 = vmatprep.subr.mxu0 0.0
        %3390 = vmatpush1.xpose.msra.mxu0 0.0
        %3391 = vmatprep.subr.mxu0 0.0
        %3392 = vmatpush1.xpose.msra.mxu0 0.0
        %3393 = vmatprep.subr.mxu0 0.0
        %3394 = vmatpush1.xpose.msra.mxu0 0.0
        %3395 = vmatprep.subr.mxu0 0.0
        %3396 = vmatpush1.xpose.msra.mxu0 0.0
        %3397 = vmatprep.subr.mxu0 0.0
        %3398 = vmatpush1.xpose.msra.mxu0 0.0
        %3399 = vmatprep.subr.mxu0 0.0
        %3400 = vmatpush1.xpose.msra.mxu0 0.0
        %3401 = vmatprep.subr.mxu0 0.0
        %3402 = vmatpush1.xpose.msra.mxu0 0.0
        %3403 = vmatprep.subr.mxu0 0.0
        %3404 = vmatpush1.xpose.msra.mxu0 0.0
        %3405 = vmatprep.subr.mxu0 0.0
        %3406 = vmatpush1.xpose.msra.mxu0 0.0
        %3407 = vmatprep.subr.mxu0 0.0
        %3408 = vmatpush1.xpose.msra.mxu0 0.0
        %3409 = vmatprep.subr.mxu0 0.0
        %3410 = vmatpush1.xpose.msra.mxu0 0.0
        %3411 = vmatprep.subr.mxu0 0.0
        %3412 = vmatpush1.xpose.msra.mxu0 0.0
        %3413 = vmatprep.subr.mxu0 0.0
        %3414 = vmatpush1.xpose.msra.mxu0 0.0
        %3415 = vmatprep.subr.mxu0 0.0
        %3416 = vmatpush1.xpose.msra.mxu0 0.0
        %3417 = vmatprep.subr.mxu0 0.0
        %3418 = vmatpush1.xpose.msra.mxu0 0.0
        %3419 = vmatprep.subr.mxu0 0.0
        %3420 = vmatpush1.xpose.msra.mxu0 0.0
        %3421 = vmatprep.subr.mxu0 0.0
        %3422 = vmatpush1.xpose.msra.mxu0 0.0
        %3423 = vmatprep.subr.mxu0 0.0
        %3424 = vmatpush1.xpose.msra.mxu0 0.0
        %3425 = vmatprep.subr.mxu0 0.0
        %3426 = vmatpush1.xpose.msra.mxu0 0.0
        %3427 = vmatprep.subr.mxu0 0.0
        %3428 = vmatpush1.xpose.msra.mxu0 0.0
        %3429 = vmatprep.subr.mxu0 0.0
        %3430 = vmatpush1.xpose.msra.mxu0 0.0
        %3431 = vmatprep.subr.mxu0 0.0
        %3432 = vmatpush1.xpose.msra.mxu0 0.0
        %3433 = vmatprep.mubr.f32.mxu0 0.0
        %3434 = vmatmul.mubr.f32.gmra.mrb[0].mxu0 %v3361
        %v3435 = vpop.f32.mrb[0].mxu0
        %v3436 = vadd.f32 0.0, %v3435
        %v3437 = vpop.f32.mrb[0].mxu0
        %3438 = vdwg.mxu0
        %v3439 = vsel %vm2277, %v3436, -inf
        %3440 = vmax.xlane.f32.xlu0 %v3439
        %v3441 = vpop.xlane.xlu0 %3440
        %v3442 = vsub.f32 %v3436, %v3441
        %v3443 = vmul.f32 %v3442, 1.442695
        %v3444 = vpow.pop %v3443
        %v3445 = vsel %vm2277, %v3444, 0.0
        %3446 = vadd.xlane.f32.xlu0 %v3445
        %v3447 = vpop.xlane.xlu0 %3446
        %v3448 = vrcp.pop %v3447
        %v3449 = vmul.f32 %v3444, %v3448
        %3450 = vrot.lane.b32.xlu0 %v1765, 32
        %v3451 = vpop.permute.xlu0 %3450
        %3452 = vrot.lane.b32.xlu0 %v1771, 32
        %v3453 = vpop.permute.xlu0 %3452
        %3458 = vrot.lane.b32.xlu0 %v2170, 8
        %v3459 = vpop.permute.xlu0 %3458
        %3460 = vrot.lane.b32.xlu0 %v2172, 8
        %v3461 = vpop.permute.xlu0 %3460
        %3466 = vrot.lane.b32.xlu0 %v2198, 16
        %v3467 = vpop.permute.xlu0 %3466
        %3468 = vrot.lane.b32.xlu0 %v2200, 16
        %v3469 = vpop.permute.xlu0 %3468
        %3474 = vrot.lane.b32.xlu0 %v2226, 24
        %v3475 = vpop.permute.xlu0 %3474
        %3476 = vrot.lane.b32.xlu0 %v2228, 24
        %v3477 = vpop.permute.xlu0 %3476
        %v3480 = vsel %vm2273, %v3451, %v3459
        %v3481 = vsel %vm2273, %v3453, %v3461
        %v3482 = vsel %vm2277, %v3480, %v3467
        %v3483 = vsel %vm2277, %v3481, %v3469
        %v3484 = vsel %vm2444, %v3482, %v3475
        %v3485 = vsel %vm2444, %v3483, %v3477
        %v3487 = vsel %vm2277, %v3449, 0
        %3489 = vmatprep.subr.mxu0 0.0
        %3490 = vmatpush1.msra.mxu0 %v3484
        %3491 = vmatprep.subr.mxu0 0.0
        %3492 = vmatpush1.msra.mxu0 %v3485
        %3493 = vmatprep.subr.mxu0 0.0
        %3494 = vmatpush1.msra.mxu0 0.0
        %3495 = vmatprep.subr.mxu0 0.0
        %3496 = vmatpush1.msra.mxu0 0.0
        %3497 = vmatprep.subr.mxu0 0.0
        %3498 = vmatpush1.msra.mxu0 0.0
        %3499 = vmatprep.subr.mxu0 0.0
        %3500 = vmatpush1.msra.mxu0 0.0
        %3501 = vmatprep.subr.mxu0 0.0
        %3502 = vmatpush1.msra.mxu0 0.0
        %3503 = vmatprep.subr.mxu0 0.0
        %3504 = vmatpush1.msra.mxu0 0.0
        %3505 = vmatprep.subr.mxu0 0.0
        %3506 = vmatpush1.msra.mxu0 0.0
        %3507 = vmatprep.subr.mxu0 0.0
        %3508 = vmatpush1.msra.mxu0 0.0
        %3509 = vmatprep.subr.mxu0 0.0
        %3510 = vmatpush1.msra.mxu0 0.0
        %3511 = vmatprep.subr.mxu0 0.0
        %3512 = vmatpush1.msra.mxu0 0.0
        %3513 = vmatprep.subr.mxu0 0.0
        %3514 = vmatpush1.msra.mxu0 0.0
        %3515 = vmatprep.subr.mxu0 0.0
        %3516 = vmatpush1.msra.mxu0 0.0
        %3517 = vmatprep.subr.mxu0 0.0
        %3518 = vmatpush1.msra.mxu0 0.0
        %3519 = vmatprep.subr.mxu0 0.0
        %3520 = vmatpush1.msra.mxu0 0.0
        %3521 = vmatprep.subr.mxu0 0.0
        %3522 = vmatpush1.msra.mxu0 0.0
        %3523 = vmatprep.subr.mxu0 0.0
        %3524 = vmatpush1.msra.mxu0 0.0
        %3525 = vmatprep.subr.mxu0 0.0
        %3526 = vmatpush1.msra.mxu0 0.0
        %3527 = vmatprep.subr.mxu0 0.0
        %3528 = vmatpush1.msra.mxu0 0.0
        %3529 = vmatprep.subr.mxu0 0.0
        %3530 = vmatpush1.msra.mxu0 0.0
        %3531 = vmatprep.subr.mxu0 0.0
        %3532 = vmatpush1.msra.mxu0 0.0
        %3533 = vmatprep.subr.mxu0 0.0
        %3534 = vmatpush1.msra.mxu0 0.0
        %3535 = vmatprep.subr.mxu0 0.0
        %3536 = vmatpush1.msra.mxu0 0.0
        %3537 = vmatprep.subr.mxu0 0.0
        %3538 = vmatpush1.msra.mxu0 0.0
        %3539 = vmatprep.subr.mxu0 0.0
        %3540 = vmatpush1.msra.mxu0 0.0
        %3541 = vmatprep.subr.mxu0 0.0
        %3542 = vmatpush1.msra.mxu0 0.0
        %3543 = vmatprep.subr.mxu0 0.0
        %3544 = vmatpush1.msra.mxu0 0.0
        %3545 = vmatprep.subr.mxu0 0.0
        %3546 = vmatpush1.msra.mxu0 0.0
        %3547 = vmatprep.subr.mxu0 0.0
        %3548 = vmatpush1.msra.mxu0 0.0
        %3549 = vmatprep.subr.mxu0 0.0
        %3550 = vmatpush1.msra.mxu0 0.0
        %3551 = vmatprep.subr.mxu0 0.0
        %3552 = vmatpush1.msra.mxu0 0.0
        %3553 = vmatprep.mubr.f32.mxu0 0.0
        %3554 = vmatmul.mubr.f32.gmra.mrb[0].mxu0 %v3487
        %v3555 = vpop.f32.mrb[0].mxu0
        %v3556 = vadd.f32 0.0, %v3555
        %v3557 = vpop.f32.mrb[0].mxu0
        %3558 = vdwg.mxu0
        %3559 = vrot.lane.b32.xlu0 %v2233, 44
        %v3560 = vpop.permute.xlu0 %3559
        %v3562 = vsel %vm2238, %v3560, 0.0
        %3563 = vadd.xlane.f32.xlu0 %v3562
        %v3564 = vpop.xlane.xlu0 %3563
        %3565 = vrot.lane.b32.xlu0 %v2250, 108
        %v3566 = vpop.permute.xlu0 %3565
        %3567 = vrot.lane.b32.xlu0 %v2251, 108
        %v3568 = vpop.permute.xlu0 %3567
        %v3571 = vsel %vm2238, %v3566, 0.0
        %3572 = vadd.xlane.f32.xlu0 %v3571
        %v3573 = vpop.xlane.xlu0 %3572
        %v3574 = vsel %vm2238, %v3568, 0.0
        %3575 = vadd.xlane.f32.xlu0 %v3574
        %v3576 = vpop.xlane.xlu0 %3575
        %3577 = vrot.lane.b32.xlu0 %v1852, 88
        %v3578 = vpop.permute.xlu0 %3577
        %3580 = vrot.lane.b32.xlu0 %v2258, 52
        %v3581 = vpop.permute.xlu0 %3580
        %3583 = vrot.lane.b32.xlu0 %v2259, 56
        %v3584 = vpop.permute.xlu0 %3583
        %3586 = vrot.lane.b32.xlu0 %v2260, 60
        %v3587 = vpop.permute.xlu0 %3586
        %v3589 = vsel %vm2273, %v3578, %v3581
        %v3590 = vsel %vm2275, %v3589, %v3584
        %v3591 = vsel %vm2277, %v3590, %v3587
        %v3592 = vsel %vm2279, %v3591, %v3564
        %v3593 = vsel %vm2281, %v3592, -1.0
        %3594 = vrot.lane.b32.xlu0 %v1765, 88
        %v3595 = vpop.permute.xlu0 %3594
        %3596 = vrot.lane.b32.xlu0 %v1771, 88
        %v3597 = vpop.permute.xlu0 %3596
        %3600 = vrot.lane.b32.xlu0 %v2019, 116
        %v3601 = vpop.permute.xlu0 %3600
        %3602 = vrot.lane.b32.xlu0 %v2020, 116
        %v3603 = vpop.permute.xlu0 %3602
        %3606 = vrot.lane.b32.xlu0 %v2081, 120
        %v3607 = vpop.permute.xlu0 %3606
        %3608 = vrot.lane.b32.xlu0 %v2082, 120
        %v3609 = vpop.permute.xlu0 %3608
        %3612 = vrot.lane.b32.xlu0 %v2143, 124
        %v3613 = vpop.permute.xlu0 %3612
        %3614 = vrot.lane.b32.xlu0 %v2144, 124
        %v3615 = vpop.permute.xlu0 %3614
        %v3618 = vsel %vm2273, %v3595, %v3601
        %v3619 = vsel %vm2273, %v3597, %v3603
        %v3620 = vsel %vm2275, %v3618, %v3607
        %v3621 = vsel %vm2275, %v3619, %v3609
        %v3622 = vsel %vm2277, %v3620, %v3613
        %v3623 = vsel %vm2277, %v3621, %v3615
        %v3624 = vsel %vm2279, %v3622, -1.0
        %v3625 = vsel %vm2279, %v3623, -1.0
        %v3626 = vsel %vm2281, %v3624, %v3573
        %v3627 = vsel %vm2281, %v3625, %v3576
        %v3629 = vsel %vm2317, %v3593, 0
        %v3632 = vsel %vm2317, %v3626, 0
        %v3635 = vsel %vm2317, %v3627, 0
        %3637 = vmatprep.subr.mxu0 0.0
        %3638 = vmatpush1.xpose.msra.mxu0 %v3632
        %3639 = vmatprep.subr.mxu0 0.0
        %3640 = vmatpush1.xpose.msra.mxu0 %v3635
        %3641 = vmatprep.subr.mxu0 0.0
        %3642 = vmatpush1.xpose.msra.mxu0 0.0
        %3643 = vmatprep.subr.mxu0 0.0
        %3644 = vmatpush1.xpose.msra.mxu0 0.0
        %3645 = vmatprep.subr.mxu0 0.0
        %3646 = vmatpush1.xpose.msra.mxu0 0.0
        %3647 = vmatprep.subr.mxu0 0.0
        %3648 = vmatpush1.xpose.msra.mxu0 0.0
        %3649 = vmatprep.subr.mxu0 0.0
        %3650 = vmatpush1.xpose.msra.mxu0 0.0
        %3651 = vmatprep.subr.mxu0 0.0
        %3652 = vmatpush1.xpose.msra.mxu0 0.0
        %3653 = vmatprep.subr.mxu0 0.0
        %3654 = vmatpush1.xpose.msra.mxu0 0.0
        %3655 = vmatprep.subr.mxu0 0.0
        %3656 = vmatpush1.xpose.msra.mxu0 0.0
        %3657 = vmatprep.subr.mxu0 0.0
        %3658 = vmatpush1.xpose.msra.mxu0 0.0
        %3659 = vmatprep.subr.mxu0 0.0
        %3660 = vmatpush1.xpose.msra.mxu0 0.0
        %3661 = vmatprep.subr.mxu0 0.0
        %3662 = vmatpush1.xpose.msra.mxu0 0.0
        %3663 = vmatprep.subr.mxu0 0.0
        %3664 = vmatpush1.xpose.msra.mxu0 0.0
        %3665 = vmatprep.subr.mxu0 0.0
        %3666 = vmatpush1.xpose.msra.mxu0 0.0
        %3667 = vmatprep.subr.mxu0 0.0
        %3668 = vmatpush1.xpose.msra.mxu0 0.0
        %3669 = vmatprep.subr.mxu0 0.0
        %3670 = vmatpush1.xpose.msra.mxu0 0.0
        %3671 = vmatprep.subr.mxu0 0.0
        %3672 = vmatpush1.xpose.msra.mxu0 0.0
        %3673 = vmatprep.subr.mxu0 0.0
        %3674 = vmatpush1.xpose.msra.mxu0 0.0
        %3675 = vmatprep.subr.mxu0 0.0
        %3676 = vmatpush1.xpose.msra.mxu0 0.0
        %3677 = vmatprep.subr.mxu0 0.0
        %3678 = vmatpush1.xpose.msra.mxu0 0.0
        %3679 = vmatprep.subr.mxu0 0.0
        %3680 = vmatpush1.xpose.msra.mxu0 0.0
        %3681 = vmatprep.subr.mxu0 0.0
        %3682 = vmatpush1.xpose.msra.mxu0 0.0
        %3683 = vmatprep.subr.mxu0 0.0
        %3684 = vmatpush1.xpose.msra.mxu0 0.0
        %3685 = vmatprep.subr.mxu0 0.0
        %3686 = vmatpush1.xpose.msra.mxu0 0.0
        %3687 = vmatprep.subr.mxu0 0.0
        %3688 = vmatpush1.xpose.msra.mxu0 0.0
        %3689 = vmatprep.subr.mxu0 0.0
        %3690 = vmatpush1.xpose.msra.mxu0 0.0
        %3691 = vmatprep.subr.mxu0 0.0
        %3692 = vmatpush1.xpose.msra.mxu0 0.0
        %3693 = vmatprep.subr.mxu0 0.0
        %3694 = vmatpush1.xpose.msra.mxu0 0.0
        %3695 = vmatprep.subr.mxu0 0.0
        %3696 = vmatpush1.xpose.msra.mxu0 0.0
        %3697 = vmatprep.subr.mxu0 0.0
        %3698 = vmatpush1.xpose.msra.mxu0 0.0
        %3699 = vmatprep.subr.mxu0 0.0
        %3700 = vmatpush1.xpose.msra.mxu0 0.0
        %3701 = vmatprep.mubr.f32.mxu0 0.0
        %3702 = vmatmul.mubr.f32.gmra.mrb[0].mxu0 %v3629
        %v3703 = vpop.f32.mrb[0].mxu0
        %v3704 = vadd.f32 0.0, %v3703
        %v3705 = vpop.f32.mrb[0].mxu0
        %3706 = vdwg.mxu0
        %v3707 = vsel %vm2277, %v3704, -inf
        %3708 = vmax.xlane.f32.xlu0 %v3707
        %v3709 = vpop.xlane.xlu0 %3708
        %v3710 = vsub.f32 %v3704, %v3709
        %v3711 = vmul.f32 %v3710, 1.442695
        %v3712 = vpow.pop %v3711
        %v3713 = vsel %vm2277, %v3712, 0.0
        %3714 = vadd.xlane.f32.xlu0 %v3713
        %v3715 = vpop.xlane.xlu0 %3714
        %v3716 = vrcp.pop %v3715
        %v3717 = vmul.f32 %v3712, %v3716
        %3718 = vrot.lane.b32.xlu0 %v1765, 24
        %v3719 = vpop.permute.xlu0 %3718
        %3720 = vrot.lane.b32.xlu0 %v1771, 24
        %v3721 = vpop.permute.xlu0 %3720
        %3724 = vrot.lane.b32.xlu0 %v2198, 8
        %v3725 = vpop.permute.xlu0 %3724
        %3726 = vrot.lane.b32.xlu0 %v2200, 8
        %v3727 = vpop.permute.xlu0 %3726
        %3730 = vrot.lane.b32.xlu0 %v2226, 16
        %v3731 = vpop.permute.xlu0 %3730
        %3732 = vrot.lane.b32.xlu0 %v2228, 16
        %v3733 = vpop.permute.xlu0 %3732
        %v3736 = vsel %vm2273, %v3719, %v2170
        %v3737 = vsel %vm2273, %v3721, %v2172
        %v3738 = vsel %vm2277, %v3736, %v3725
        %v3739 = vsel %vm2277, %v3737, %v3727
        %v3740 = vsel %vm2444, %v3738, %v3731
        %v3741 = vsel %vm2444, %v3739, %v3733
        %v3743 = vsel %vm2277, %v3717, 0
        %3745 = vmatprep.subr.mxu0 0.0
        %3746 = vmatpush1.msra.mxu0 %v3740
        %3747 = vmatprep.subr.mxu0 0.0
        %3748 = vmatpush1.msra.mxu0 %v3741
        %3749 = vmatprep.subr.mxu0 0.0
        %3750 = vmatpush1.msra.mxu0 0.0
        %3751 = vmatprep.subr.mxu0 0.0
        %3752 = vmatpush1.msra.mxu0 0.0
        %3753 = vmatprep.subr.mxu0 0.0
        %3754 = vmatpush1.msra.mxu0 0.0
        %3755 = vmatprep.subr.mxu0 0.0
        %3756 = vmatpush1.msra.mxu0 0.0
        %3757 = vmatprep.subr.mxu0 0.0
        %3758 = vmatpush1.msra.mxu0 0.0
        %3759 = vmatprep.subr.mxu0 0.0
        %3760 = vmatpush1.msra.mxu0 0.0
        %3761 = vmatprep.subr.mxu0 0.0
        %3762 = vmatpush1.msra.mxu0 0.0
        %3763 = vmatprep.subr.mxu0 0.0
        %3764 = vmatpush1.msra.mxu0 0.0
        %3765 = vmatprep.subr.mxu0 0.0
        %3766 = vmatpush1.msra.mxu0 0.0
        %3767 = vmatprep.subr.mxu0 0.0
        %3768 = vmatpush1.msra.mxu0 0.0
        %3769 = vmatprep.subr.mxu0 0.0
        %3770 = vmatpush1.msra.mxu0 0.0
        %3771 = vmatprep.subr.mxu0 0.0
        %3772 = vmatpush1.msra.mxu0 0.0
        %3773 = vmatprep.subr.mxu0 0.0
        %3774 = vmatpush1.msra.mxu0 0.0
        %3775 = vmatprep.subr.mxu0 0.0
        %3776 = vmatpush1.msra.mxu0 0.0
        %3777 = vmatprep.subr.mxu0 0.0
        %3778 = vmatpush1.msra.mxu0 0.0
        %3779 = vmatprep.subr.mxu0 0.0
        %3780 = vmatpush1.msra.mxu0 0.0
        %3781 = vmatprep.subr.mxu0 0.0
        %3782 = vmatpush1.msra.mxu0 0.0
        %3783 = vmatprep.subr.mxu0 0.0
        %3784 = vmatpush1.msra.mxu0 0.0
        %3785 = vmatprep.subr.mxu0 0.0
        %3786 = vmatpush1.msra.mxu0 0.0
        %3787 = vmatprep.subr.mxu0 0.0
        %3788 = vmatpush1.msra.mxu0 0.0
        %3789 = vmatprep.subr.mxu0 0.0
        %3790 = vmatpush1.msra.mxu0 0.0
        %3791 = vmatprep.subr.mxu0 0.0
        %3792 = vmatpush1.msra.mxu0 0.0
        %3793 = vmatprep.subr.mxu0 0.0
        %3794 = vmatpush1.msra.mxu0 0.0
        %3795 = vmatprep.subr.mxu0 0.0
        %3796 = vmatpush1.msra.mxu0 0.0
        %3797 = vmatprep.subr.mxu0 0.0
        %3798 = vmatpush1.msra.mxu0 0.0
        %3799 = vmatprep.subr.mxu0 0.0
        %3800 = vmatpush1.msra.mxu0 0.0
        %3801 = vmatprep.subr.mxu0 0.0
        %3802 = vmatpush1.msra.mxu0 0.0
        %3803 = vmatprep.subr.mxu0 0.0
        %3804 = vmatpush1.msra.mxu0 0.0
        %3805 = vmatprep.subr.mxu0 0.0
        %3806 = vmatpush1.msra.mxu0 0.0
        %3807 = vmatprep.subr.mxu0 0.0
        %3808 = vmatpush1.msra.mxu0 0.0
        %3809 = vmatprep.mubr.f32.mxu0 0.0
        %3810 = vmatmul.mubr.f32.gmra.mrb[0].mxu0 %v3743
        %v3811 = vpop.f32.mrb[0].mxu0
        %v3812 = vadd.f32 0.0, %v3811
        %v3813 = vpop.f32.mrb[0].mxu0
        %3814 = vdwg.mxu0
        %3815 = vrot.lane.b32.xlu0 %v2233, 40
        %v3816 = vpop.permute.xlu0 %3815
        %v3818 = vsel %vm2238, %v3816, 0.0
        %3819 = vadd.xlane.f32.xlu0 %v3818
        %v3820 = vpop.xlane.xlu0 %3819
        %3821 = vrot.lane.b32.xlu0 %v2250, 104
        %v3822 = vpop.permute.xlu0 %3821
        %3823 = vrot.lane.b32.xlu0 %v2251, 104
        %v3824 = vpop.permute.xlu0 %3823
        %v3827 = vsel %vm2238, %v3822, 0.0
        %3828 = vadd.xlane.f32.xlu0 %v3827
        %v3829 = vpop.xlane.xlu0 %3828
        %v3830 = vsel %vm2238, %v3824, 0.0
        %3831 = vadd.xlane.f32.xlu0 %v3830
        %v3832 = vpop.xlane.xlu0 %3831
        %3833 = vrot.lane.b32.xlu0 %v1852, 80
        %v3834 = vpop.permute.xlu0 %3833
        %3836 = vrot.lane.b32.xlu0 %v2258, 48
        %v3837 = vpop.permute.xlu0 %3836
        %3839 = vrot.lane.b32.xlu0 %v2259, 52
        %v3840 = vpop.permute.xlu0 %3839
        %3842 = vrot.lane.b32.xlu0 %v2260, 56
        %v3843 = vpop.permute.xlu0 %3842
        %v3845 = vsel %vm2273, %v3834, %v3837
        %v3846 = vsel %vm2275, %v3845, %v3840
        %v3847 = vsel %vm2277, %v3846, %v3843
        %v3848 = vsel %vm2279, %v3847, %v3820
        %v3849 = vsel %vm2281, %v3848, -1.0
        %3850 = vrot.lane.b32.xlu0 %v1765, 80
        %v3851 = vpop.permute.xlu0 %3850
        %3852 = vrot.lane.b32.xlu0 %v1771, 80
        %v3853 = vpop.permute.xlu0 %3852
        %3856 = vrot.lane.b32.xlu0 %v2019, 112
        %v3857 = vpop.permute.xlu0 %3856
        %3858 = vrot.lane.b32.xlu0 %v2020, 112
        %v3859 = vpop.permute.xlu0 %3858
        %3862 = vrot.lane.b32.xlu0 %v2081, 116
        %v3863 = vpop.permute.xlu0 %3862
        %3864 = vrot.lane.b32.xlu0 %v2082, 116
        %v3865 = vpop.permute.xlu0 %3864
        %3868 = vrot.lane.b32.xlu0 %v2143, 120
        %v3869 = vpop.permute.xlu0 %3868
        %3870 = vrot.lane.b32.xlu0 %v2144, 120
        %v3871 = vpop.permute.xlu0 %3870
        %v3874 = vsel %vm2273, %v3851, %v3857
        %v3875 = vsel %vm2273, %v3853, %v3859
        %v3876 = vsel %vm2275, %v3874, %v3863
        %v3877 = vsel %vm2275, %v3875, %v3865
        %v3878 = vsel %vm2277, %v3876, %v3869
        %v3879 = vsel %vm2277, %v3877, %v3871
        %v3880 = vsel %vm2279, %v3878, -1.0
        %v3881 = vsel %vm2279, %v3879, -1.0
        %v3882 = vsel %vm2281, %v3880, %v3829
        %v3883 = vsel %vm2281, %v3881, %v3832
        %v3885 = vsel %vm2317, %v3849, 0
        %v3888 = vsel %vm2317, %v3882, 0
        %v3891 = vsel %vm2317, %v3883, 0
        %3893 = vmatprep.subr.mxu0 0.0
        %3894 = vmatpush1.xpose.msra.mxu0 %v3888
        %3895 = vmatprep.subr.mxu0 0.0
        %3896 = vmatpush1.xpose.msra.mxu0 %v3891
        %3897 = vmatprep.subr.mxu0 0.0
        %3898 = vmatpush1.xpose.msra.mxu0 0.0
        %3899 = vmatprep.subr.mxu0 0.0
        %3900 = vmatpush1.xpose.msra.mxu0 0.0
        %3901 = vmatprep.subr.mxu0 0.0
        %3902 = vmatpush1.xpose.msra.mxu0 0.0
        %3903 = vmatprep.subr.mxu0 0.0
        %3904 = vmatpush1.xpose.msra.mxu0 0.0
        %3905 = vmatprep.subr.mxu0 0.0
        %3906 = vmatpush1.xpose.msra.mxu0 0.0
        %3907 = vmatprep.subr.mxu0 0.0
        %3908 = vmatpush1.xpose.msra.mxu0 0.0
        %3909 = vmatprep.subr.mxu0 0.0
        %3910 = vmatpush1.xpose.msra.mxu0 0.0
        %3911 = vmatprep.subr.mxu0 0.0
        %3912 = vmatpush1.xpose.msra.mxu0 0.0
        %3913 = vmatprep.subr.mxu0 0.0
        %3914 = vmatpush1.xpose.msra.mxu0 0.0
        %3915 = vmatprep.subr.mxu0 0.0
        %3916 = vmatpush1.xpose.msra.mxu0 0.0
        %3917 = vmatprep.subr.mxu0 0.0
        %3918 = vmatpush1.xpose.msra.mxu0 0.0
        %3919 = vmatprep.subr.mxu0 0.0
        %3920 = vmatpush1.xpose.msra.mxu0 0.0
        %3921 = vmatprep.subr.mxu0 0.0
        %3922 = vmatpush1.xpose.msra.mxu0 0.0
        %3923 = vmatprep.subr.mxu0 0.0
        %3924 = vmatpush1.xpose.msra.mxu0 0.0
        %3925 = vmatprep.subr.mxu0 0.0
        %3926 = vmatpush1.xpose.msra.mxu0 0.0
        %3927 = vmatprep.subr.mxu0 0.0
        %3928 = vmatpush1.xpose.msra.mxu0 0.0
        %3929 = vmatprep.subr.mxu0 0.0
        %3930 = vmatpush1.xpose.msra.mxu0 0.0
        %3931 = vmatprep.subr.mxu0 0.0
        %3932 = vmatpush1.xpose.msra.mxu0 0.0
        %3933 = vmatprep.subr.mxu0 0.0
        %3934 = vmatpush1.xpose.msra.mxu0 0.0
        %3935 = vmatprep.subr.mxu0 0.0
        %3936 = vmatpush1.xpose.msra.mxu0 0.0
        %3937 = vmatprep.subr.mxu0 0.0
        %3938 = vmatpush1.xpose.msra.mxu0 0.0
        %3939 = vmatprep.subr.mxu0 0.0
        %3940 = vmatpush1.xpose.msra.mxu0 0.0
        %3941 = vmatprep.subr.mxu0 0.0
        %3942 = vmatpush1.xpose.msra.mxu0 0.0
        %3943 = vmatprep.subr.mxu0 0.0
        %3944 = vmatpush1.xpose.msra.mxu0 0.0
        %3945 = vmatprep.subr.mxu0 0.0
        %3946 = vmatpush1.xpose.msra.mxu0 0.0
        %3947 = vmatprep.subr.mxu0 0.0
        %3948 = vmatpush1.xpose.msra.mxu0 0.0
        %3949 = vmatprep.subr.mxu0 0.0
        %3950 = vmatpush1.xpose.msra.mxu0 0.0
        %3951 = vmatprep.subr.mxu0 0.0
        %3952 = vmatpush1.xpose.msra.mxu0 0.0
        %3953 = vmatprep.subr.mxu0 0.0
        %3954 = vmatpush1.xpose.msra.mxu0 0.0
        %3955 = vmatprep.subr.mxu0 0.0
        %3956 = vmatpush1.xpose.msra.mxu0 0.0
        %3957 = vmatprep.mubr.f32.mxu0 0.0
        %3958 = vmatmul.mubr.f32.gmra.mrb[0].mxu0 %v3885
        %v3959 = vpop.f32.mrb[0].mxu0
        %v3960 = vadd.f32 0.0, %v3959
        %v3961 = vpop.f32.mrb[0].mxu0
        %3962 = vdwg.mxu0
        %v3963 = vsel %vm2277, %v3960, -inf
        %3964 = vmax.xlane.f32.xlu0 %v3963
        %v3965 = vpop.xlane.xlu0 %3964
        %v3966 = vsub.f32 %v3960, %v3965
        %v3967 = vmul.f32 %v3966, 1.442695
        %v3968 = vpow.pop %v3967
        %v3969 = vsel %vm2277, %v3968, 0.0
        %3970 = vadd.xlane.f32.xlu0 %v3969
        %v3971 = vpop.xlane.xlu0 %3970
        %v3972 = vrcp.pop %v3971
        %v3973 = vmul.f32 %v3968, %v3972
        %3974 = vrot.lane.b32.xlu0 %v1765, 16
        %v3975 = vpop.permute.xlu0 %3974
        %3976 = vrot.lane.b32.xlu0 %v1771, 16
        %v3977 = vpop.permute.xlu0 %3976
        %3980 = vrot.lane.b32.xlu0 %v2170, 120
        %v3981 = vpop.permute.xlu0 %3980
        %3982 = vrot.lane.b32.xlu0 %v2172, 120
        %v3983 = vpop.permute.xlu0 %3982
        %3986 = vrot.lane.b32.xlu0 %v2226, 8
        %v3987 = vpop.permute.xlu0 %3986
        %3988 = vrot.lane.b32.xlu0 %v2228, 8
        %v3989 = vpop.permute.xlu0 %3988
        %v3992 = vsel %vm2273, %v3975, %v3981
        %v3993 = vsel %vm2273, %v3977, %v3983
        %v3994 = vsel %vm2277, %v3992, %v2198
        %v3995 = vsel %vm2277, %v3993, %v2200
        %v3996 = vsel %vm2444, %v3994, %v3987
        %v3997 = vsel %vm2444, %v3995, %v3989
        %v3999 = vsel %vm2277, %v3973, 0
        %4001 = vmatprep.subr.mxu0 0.0
        %4002 = vmatpush1.msra.mxu0 %v3996
        %4003 = vmatprep.subr.mxu0 0.0
        %4004 = vmatpush1.msra.mxu0 %v3997
        %4005 = vmatprep.subr.mxu0 0.0
        %4006 = vmatpush1.msra.mxu0 0.0
        %4007 = vmatprep.subr.mxu0 0.0
        %4008 = vmatpush1.msra.mxu0 0.0
        %4009 = vmatprep.subr.mxu0 0.0
        %4010 = vmatpush1.msra.mxu0 0.0
        %4011 = vmatprep.subr.mxu0 0.0
        %4012 = vmatpush1.msra.mxu0 0.0
        %4013 = vmatprep.subr.mxu0 0.0
        %4014 = vmatpush1.msra.mxu0 0.0
        %4015 = vmatprep.subr.mxu0 0.0
        %4016 = vmatpush1.msra.mxu0 0.0
        %4017 = vmatprep.subr.mxu0 0.0
        %4018 = vmatpush1.msra.mxu0 0.0
        %4019 = vmatprep.subr.mxu0 0.0
        %4020 = vmatpush1.msra.mxu0 0.0
        %4021 = vmatprep.subr.mxu0 0.0
        %4022 = vmatpush1.msra.mxu0 0.0
        %4023 = vmatprep.subr.mxu0 0.0
        %4024 = vmatpush1.msra.mxu0 0.0
        %4025 = vmatprep.subr.mxu0 0.0
        %4026 = vmatpush1.msra.mxu0 0.0
        %4027 = vmatprep.subr.mxu0 0.0
        %4028 = vmatpush1.msra.mxu0 0.0
        %4029 = vmatprep.subr.mxu0 0.0
        %4030 = vmatpush1.msra.mxu0 0.0
        %4031 = vmatprep.subr.mxu0 0.0
        %4032 = vmatpush1.msra.mxu0 0.0
        %4033 = vmatprep.subr.mxu0 0.0
        %4034 = vmatpush1.msra.mxu0 0.0
        %4035 = vmatprep.subr.mxu0 0.0
        %4036 = vmatpush1.msra.mxu0 0.0
        %4037 = vmatprep.subr.mxu0 0.0
        %4038 = vmatpush1.msra.mxu0 0.0
        %4039 = vmatprep.subr.mxu0 0.0
        %4040 = vmatpush1.msra.mxu0 0.0
        %4041 = vmatprep.subr.mxu0 0.0
        %4042 = vmatpush1.msra.mxu0 0.0
        %4043 = vmatprep.subr.mxu0 0.0
        %4044 = vmatpush1.msra.mxu0 0.0
        %4045 = vmatprep.subr.mxu0 0.0
        %4046 = vmatpush1.msra.mxu0 0.0
        %4047 = vmatprep.subr.mxu0 0.0
        %4048 = vmatpush1.msra.mxu0 0.0
        %4049 = vmatprep.subr.mxu0 0.0
        %4050 = vmatpush1.msra.mxu0 0.0
        %4051 = vmatprep.subr.mxu0 0.0
        %4052 = vmatpush1.msra.mxu0 0.0
        %4053 = vmatprep.subr.mxu0 0.0
        %4054 = vmatpush1.msra.mxu0 0.0
        %4055 = vmatprep.subr.mxu0 0.0
        %4056 = vmatpush1.msra.mxu0 0.0
        %4057 = vmatprep.subr.mxu0 0.0
        %4058 = vmatpush1.msra.mxu0 0.0
        %4059 = vmatprep.subr.mxu0 0.0
        %4060 = vmatpush1.msra.mxu0 0.0
        %4061 = vmatprep.subr.mxu0 0.0
        %4062 = vmatpush1.msra.mxu0 0.0
        %4063 = vmatprep.subr.mxu0 0.0
        %4064 = vmatpush1.msra.mxu0 0.0
        %4065 = vmatprep.mubr.f32.mxu0 0.0
        %4066 = vmatmul.mubr.f32.gmra.mrb[0].mxu0 %v3999
        %v4067 = vpop.f32.mrb[0].mxu0
        %v4068 = vadd.f32 0.0, %v4067
        %v4069 = vpop.f32.mrb[0].mxu0
        %4070 = vdwg.mxu0
        %4071 = vrot.lane.b32.xlu0 %v2233, 36
        %v4072 = vpop.permute.xlu0 %4071
        %v4074 = vsel %vm2238, %v4072, 0.0
        %4075 = vadd.xlane.f32.xlu0 %v4074
        %v4076 = vpop.xlane.xlu0 %4075
        %4077 = vrot.lane.b32.xlu0 %v2250, 100
        %v4078 = vpop.permute.xlu0 %4077
        %4079 = vrot.lane.b32.xlu0 %v2251, 100
        %v4080 = vpop.permute.xlu0 %4079
        %v4083 = vsel %vm2238, %v4078, 0.0
        %4084 = vadd.xlane.f32.xlu0 %v4083
        %v4085 = vpop.xlane.xlu0 %4084
        %v4086 = vsel %vm2238, %v4080, 0.0
        %4087 = vadd.xlane.f32.xlu0 %v4086
        %v4088 = vpop.xlane.xlu0 %4087
        %4089 = vrot.lane.b32.xlu0 %v1852, 72
        %v4090 = vpop.permute.xlu0 %4089
        %4092 = vrot.lane.b32.xlu0 %v2258, 44
        %v4093 = vpop.permute.xlu0 %4092
        %4095 = vrot.lane.b32.xlu0 %v2259, 48
        %v4096 = vpop.permute.xlu0 %4095
        %4098 = vrot.lane.b32.xlu0 %v2260, 52
        %v4099 = vpop.permute.xlu0 %4098
        %v4101 = vsel %vm2273, %v4090, %v4093
        %v4102 = vsel %vm2275, %v4101, %v4096
        %v4103 = vsel %vm2277, %v4102, %v4099
        %v4104 = vsel %vm2279, %v4103, %v4076
        %v4105 = vsel %vm2281, %v4104, -1.0
        %4106 = vrot.lane.b32.xlu0 %v1765, 72
        %v4107 = vpop.permute.xlu0 %4106
        %4108 = vrot.lane.b32.xlu0 %v1771, 72
        %v4109 = vpop.permute.xlu0 %4108
        %4112 = vrot.lane.b32.xlu0 %v2019, 108
        %v4113 = vpop.permute.xlu0 %4112
        %4114 = vrot.lane.b32.xlu0 %v2020, 108
        %v4115 = vpop.permute.xlu0 %4114
        %4118 = vrot.lane.b32.xlu0 %v2081, 112
        %v4119 = vpop.permute.xlu0 %4118
        %4120 = vrot.lane.b32.xlu0 %v2082, 112
        %v4121 = vpop.permute.xlu0 %4120
        %4124 = vrot.lane.b32.xlu0 %v2143, 116
        %v4125 = vpop.permute.xlu0 %4124
        %4126 = vrot.lane.b32.xlu0 %v2144, 116
        %v4127 = vpop.permute.xlu0 %4126
        %v4130 = vsel %vm2273, %v4107, %v4113
        %v4131 = vsel %vm2273, %v4109, %v4115
        %v4132 = vsel %vm2275, %v4130, %v4119
        %v4133 = vsel %vm2275, %v4131, %v4121
        %v4134 = vsel %vm2277, %v4132, %v4125
        %v4135 = vsel %vm2277, %v4133, %v4127
        %v4136 = vsel %vm2279, %v4134, -1.0
        %v4137 = vsel %vm2279, %v4135, -1.0
        %v4138 = vsel %vm2281, %v4136, %v4085
        %v4139 = vsel %vm2281, %v4137, %v4088
        %v4141 = vsel %vm2317, %v4105, 0
        %v4144 = vsel %vm2317, %v4138, 0
        %v4147 = vsel %vm2317, %v4139, 0
        %4149 = vmatprep.subr.mxu0 0.0
        %4150 = vmatpush1.xpose.msra.mxu0 %v4144
        %4151 = vmatprep.subr.mxu0 0.0
        %4152 = vmatpush1.xpose.msra.mxu0 %v4147
        %4153 = vmatprep.subr.mxu0 0.0
        %4154 = vmatpush1.xpose.msra.mxu0 0.0
        %4155 = vmatprep.subr.mxu0 0.0
        %4156 = vmatpush1.xpose.msra.mxu0 0.0
        %4157 = vmatprep.subr.mxu0 0.0
        %4158 = vmatpush1.xpose.msra.mxu0 0.0
        %4159 = vmatprep.subr.mxu0 0.0
        %4160 = vmatpush1.xpose.msra.mxu0 0.0
        %4161 = vmatprep.subr.mxu0 0.0
        %4162 = vmatpush1.xpose.msra.mxu0 0.0
        %4163 = vmatprep.subr.mxu0 0.0
        %4164 = vmatpush1.xpose.msra.mxu0 0.0
        %4165 = vmatprep.subr.mxu0 0.0
        %4166 = vmatpush1.xpose.msra.mxu0 0.0
        %4167 = vmatprep.subr.mxu0 0.0
        %4168 = vmatpush1.xpose.msra.mxu0 0.0
        %4169 = vmatprep.subr.mxu0 0.0
        %4170 = vmatpush1.xpose.msra.mxu0 0.0
        %4171 = vmatprep.subr.mxu0 0.0
        %4172 = vmatpush1.xpose.msra.mxu0 0.0
        %4173 = vmatprep.subr.mxu0 0.0
        %4174 = vmatpush1.xpose.msra.mxu0 0.0
        %4175 = vmatprep.subr.mxu0 0.0
        %4176 = vmatpush1.xpose.msra.mxu0 0.0
        %4177 = vmatprep.subr.mxu0 0.0
        %4178 = vmatpush1.xpose.msra.mxu0 0.0
        %4179 = vmatprep.subr.mxu0 0.0
        %4180 = vmatpush1.xpose.msra.mxu0 0.0
        %4181 = vmatprep.subr.mxu0 0.0
        %4182 = vmatpush1.xpose.msra.mxu0 0.0
        %4183 = vmatprep.subr.mxu0 0.0
        %4184 = vmatpush1.xpose.msra.mxu0 0.0
        %4185 = vmatprep.subr.mxu0 0.0
        %4186 = vmatpush1.xpose.msra.mxu0 0.0
        %4187 = vmatprep.subr.mxu0 0.0
        %4188 = vmatpush1.xpose.msra.mxu0 0.0
        %4189 = vmatprep.subr.mxu0 0.0
        %4190 = vmatpush1.xpose.msra.mxu0 0.0
        %4191 = vmatprep.subr.mxu0 0.0
        %4192 = vmatpush1.xpose.msra.mxu0 0.0
        %4193 = vmatprep.subr.mxu0 0.0
        %4194 = vmatpush1.xpose.msra.mxu0 0.0
        %4195 = vmatprep.subr.mxu0 0.0
        %4196 = vmatpush1.xpose.msra.mxu0 0.0
        %4197 = vmatprep.subr.mxu0 0.0
        %4198 = vmatpush1.xpose.msra.mxu0 0.0
        %4199 = vmatprep.subr.mxu0 0.0
        %4200 = vmatpush1.xpose.msra.mxu0 0.0
        %4201 = vmatprep.subr.mxu0 0.0
        %4202 = vmatpush1.xpose.msra.mxu0 0.0
        %4203 = vmatprep.subr.mxu0 0.0
        %4204 = vmatpush1.xpose.msra.mxu0 0.0
        %4205 = vmatprep.subr.mxu0 0.0
        %4206 = vmatpush1.xpose.msra.mxu0 0.0
        %4207 = vmatprep.subr.mxu0 0.0
        %4208 = vmatpush1.xpose.msra.mxu0 0.0
        %4209 = vmatprep.subr.mxu0 0.0
        %4210 = vmatpush1.xpose.msra.mxu0 0.0
        %4211 = vmatprep.subr.mxu0 0.0
        %4212 = vmatpush1.xpose.msra.mxu0 0.0
        %4213 = vmatprep.mubr.f32.mxu0 0.0
        %4214 = vmatmul.mubr.f32.gmra.mrb[0].mxu0 %v4141
        %v4215 = vpop.f32.mrb[0].mxu0
        %v4216 = vadd.f32 0.0, %v4215
        %v4217 = vpop.f32.mrb[0].mxu0
        %4218 = vdwg.mxu0
        %v4219 = vsel %vm2277, %v4216, -inf
        %4220 = vmax.xlane.f32.xlu0 %v4219
        %v4221 = vpop.xlane.xlu0 %4220
        %v4222 = vsub.f32 %v4216, %v4221
        %v4223 = vmul.f32 %v4222, 1.442695
        %v4224 = vpow.pop %v4223
        %v4225 = vsel %vm2277, %v4224, 0.0
        %4226 = vadd.xlane.f32.xlu0 %v4225
        %v4227 = vpop.xlane.xlu0 %4226
        %v4228 = vrcp.pop %v4227
        %v4229 = vmul.f32 %v4224, %v4228
        %4230 = vrot.lane.b32.xlu0 %v1765, 8
        %v4231 = vpop.permute.xlu0 %4230
        %4232 = vrot.lane.b32.xlu0 %v1771, 8
        %v4233 = vpop.permute.xlu0 %4232
        %4236 = vrot.lane.b32.xlu0 %v2170, 112
        %v4237 = vpop.permute.xlu0 %4236
        %4238 = vrot.lane.b32.xlu0 %v2172, 112
        %v4239 = vpop.permute.xlu0 %4238
        %4242 = vrot.lane.b32.xlu0 %v2198, 120
        %v4243 = vpop.permute.xlu0 %4242
        %4244 = vrot.lane.b32.xlu0 %v2200, 120
        %v4245 = vpop.permute.xlu0 %4244
        %v4248 = vsel %vm2273, %v4231, %v4237
        %v4249 = vsel %vm2273, %v4233, %v4239
        %v4250 = vsel %vm2277, %v4248, %v4243
        %v4251 = vsel %vm2277, %v4249, %v4245
        %v4252 = vsel %vm2444, %v4250, %v2226
        %v4253 = vsel %vm2444, %v4251, %v2228
        %v4255 = vsel %vm2277, %v4229, 0
        %4257 = vmatprep.subr.mxu0 0.0
        %4258 = vmatpush1.msra.mxu0 %v4252
        %4259 = vmatprep.subr.mxu0 0.0
        %4260 = vmatpush1.msra.mxu0 %v4253
        %4261 = vmatprep.subr.mxu0 0.0
        %4262 = vmatpush1.msra.mxu0 0.0
        %4263 = vmatprep.subr.mxu0 0.0
        %4264 = vmatpush1.msra.mxu0 0.0
        %4265 = vmatprep.subr.mxu0 0.0
        %4266 = vmatpush1.msra.mxu0 0.0
        %4267 = vmatprep.subr.mxu0 0.0
        %4268 = vmatpush1.msra.mxu0 0.0
        %4269 = vmatprep.subr.mxu0 0.0
        %4270 = vmatpush1.msra.mxu0 0.0
        %4271 = vmatprep.subr.mxu0 0.0
        %4272 = vmatpush1.msra.mxu0 0.0
        %4273 = vmatprep.subr.mxu0 0.0
        %4274 = vmatpush1.msra.mxu0 0.0
        %4275 = vmatprep.subr.mxu0 0.0
        %4276 = vmatpush1.msra.mxu0 0.0
        %4277 = vmatprep.subr.mxu0 0.0
        %4278 = vmatpush1.msra.mxu0 0.0
        %4279 = vmatprep.subr.mxu0 0.0
        %4280 = vmatpush1.msra.mxu0 0.0
        %4281 = vmatprep.subr.mxu0 0.0
        %4282 = vmatpush1.msra.mxu0 0.0
        %4283 = vmatprep.subr.mxu0 0.0
        %4284 = vmatpush1.msra.mxu0 0.0
        %4285 = vmatprep.subr.mxu0 0.0
        %4286 = vmatpush1.msra.mxu0 0.0
        %4287 = vmatprep.subr.mxu0 0.0
        %4288 = vmatpush1.msra.mxu0 0.0
        %4289 = vmatprep.subr.mxu0 0.0
        %4290 = vmatpush1.msra.mxu0 0.0
        %4291 = vmatprep.subr.mxu0 0.0
        %4292 = vmatpush1.msra.mxu0 0.0
        %4293 = vmatprep.subr.mxu0 0.0
        %4294 = vmatpush1.msra.mxu0 0.0
        %4295 = vmatprep.subr.mxu0 0.0
        %4296 = vmatpush1.msra.mxu0 0.0
        %4297 = vmatprep.subr.mxu0 0.0
        %4298 = vmatpush1.msra.mxu0 0.0
        %4299 = vmatprep.subr.mxu0 0.0
        %4300 = vmatpush1.msra.mxu0 0.0
        %4301 = vmatprep.subr.mxu0 0.0
        %4302 = vmatpush1.msra.mxu0 0.0
        %4303 = vmatprep.subr.mxu0 0.0
        %4304 = vmatpush1.msra.mxu0 0.0
        %4305 = vmatprep.subr.mxu0 0.0
        %4306 = vmatpush1.msra.mxu0 0.0
        %4307 = vmatprep.subr.mxu0 0.0
        %4308 = vmatpush1.msra.mxu0 0.0
        %4309 = vmatprep.subr.mxu0 0.0
        %4310 = vmatpush1.msra.mxu0 0.0
        %4311 = vmatprep.subr.mxu0 0.0
        %4312 = vmatpush1.msra.mxu0 0.0
        %4313 = vmatprep.subr.mxu0 0.0
        %4314 = vmatpush1.msra.mxu0 0.0
        %4315 = vmatprep.subr.mxu0 0.0
        %4316 = vmatpush1.msra.mxu0 0.0
        %4317 = vmatprep.subr.mxu0 0.0
        %4318 = vmatpush1.msra.mxu0 0.0
        %4319 = vmatprep.subr.mxu0 0.0
        %4320 = vmatpush1.msra.mxu0 0.0
        %4321 = vmatprep.mubr.f32.mxu0 0.0
        %4322 = vmatmul.mubr.f32.gmra.mrb[0].mxu0 %v4255
        %v4323 = vpop.f32.mrb[0].mxu0
        %v4324 = vadd.f32 0.0, %v4323
        %v4325 = vpop.f32.mrb[0].mxu0
        %4326 = vdwg.mxu0
        %4328 = vrot.lane.b32.xlu0 %v2782, 8
        %v4329 = vpop.permute.xlu0 %4328
        %4332 = vrot.lane.b32.xlu0 %v3038, 16
        %v4333 = vpop.permute.xlu0 %4332
        %4336 = vrot.lane.b32.xlu0 %v3294, 24
        %v4337 = vpop.permute.xlu0 %4336
        %4340 = vrot.lane.b32.xlu0 %v3556, 32
        %v4341 = vpop.permute.xlu0 %4340
        %4344 = vrot.lane.b32.xlu0 %v3812, 40
        %v4345 = vpop.permute.xlu0 %4344
        %4348 = vrot.lane.b32.xlu0 %v4068, 48
        %v4349 = vpop.permute.xlu0 %4348
        %4352 = vrot.lane.b32.xlu0 %v4324, 56
        %v4353 = vpop.permute.xlu0 %4352
        %v4355 = vsel %vm2273, %v2517, %v4329
        %v4356 = vsel %vm2277, %v4355, %v4333
        %v4357 = vsel %vm2444, %v4356, %v4337
        %v4358 = vsel %vm1563, %v4357, %v4341
        %vm4359 = vcmask 326656
        %v4360 = vsel %vm4359, %v4358, %v4345
        %vm4361 = vcmask 392192
        %v4362 = vsel %vm4361, %v4360, %v4349
        %vm4363 = vcmask 457728
        %v4364 = vsel %vm4363, %v4362, %v4353
        %4366 = vrot.lane.b32.xlu0 %v2517, 120
        %v4367 = vpop.permute.xlu0 %4366
        %4369 = vrot.lane.b32.xlu0 %v3038, 8
        %v4370 = vpop.permute.xlu0 %4369
        %4372 = vrot.lane.b32.xlu0 %v3294, 16
        %v4373 = vpop.permute.xlu0 %4372
        %4375 = vrot.lane.b32.xlu0 %v3556, 24
        %v4376 = vpop.permute.xlu0 %4375
        %4378 = vrot.lane.b32.xlu0 %v3812, 32
        %v4379 = vpop.permute.xlu0 %4378
        %4381 = vrot.lane.b32.xlu0 %v4068, 40
        %v4382 = vpop.permute.xlu0 %4381
        %4384 = vrot.lane.b32.xlu0 %v4324, 48
        %v4385 = vpop.permute.xlu0 %4384
        %v4387 = vsel %vm2273, %v4367, %v2782
        %v4388 = vsel %vm2277, %v4387, %v4370
        %v4389 = vsel %vm2444, %v4388, %v4373
        %v4390 = vsel %vm1563, %v4389, %v4376
        %v4391 = vsel %vm4359, %v4390, %v4379
        %v4392 = vsel %vm4361, %v4391, %v4382
        %v4393 = vsel %vm4363, %v4392, %v4385
        %4394 = vrot.lane.b32.xlu0 %v2517, 112
        %v4395 = vpop.permute.xlu0 %4394
        %4397 = vrot.lane.b32.xlu0 %v2782, 120
        %v4398 = vpop.permute.xlu0 %4397
        %4400 = vrot.lane.b32.xlu0 %v3294, 8
        %v4401 = vpop.permute.xlu0 %4400
        %4403 = vrot.lane.b32.xlu0 %v3556, 16
        %v4404 = vpop.permute.xlu0 %4403
        %4406 = vrot.lane.b32.xlu0 %v3812, 24
        %v4407 = vpop.permute.xlu0 %4406
        %4409 = vrot.lane.b32.xlu0 %v4068, 32
        %v4410 = vpop.permute.xlu0 %4409
        %4412 = vrot.lane.b32.xlu0 %v4324, 40
        %v4413 = vpop.permute.xlu0 %4412
        %v4415 = vsel %vm2273, %v4395, %v4398
        %v4416 = vsel %vm2277, %v4415, %v3038
        %v4417 = vsel %vm2444, %v4416, %v4401
        %v4418 = vsel %vm1563, %v4417, %v4404
        %v4419 = vsel %vm4359, %v4418, %v4407
        %v4420 = vsel %vm4361, %v4419, %v4410
        %v4421 = vsel %vm4363, %v4420, %v4413
        %4422 = vrot.lane.b32.xlu0 %v2517, 104
        %v4423 = vpop.permute.xlu0 %4422
        %4425 = vrot.lane.b32.xlu0 %v2782, 112
        %v4426 = vpop.permute.xlu0 %4425
        %4428 = vrot.lane.b32.xlu0 %v3038, 120
        %v4429 = vpop.permute.xlu0 %4428
        %4431 = vrot.lane.b32.xlu0 %v3556, 8
        %v4432 = vpop.permute.xlu0 %4431
        %4434 = vrot.lane.b32.xlu0 %v3812, 16
        %v4435 = vpop.permute.xlu0 %4434
        %4437 = vrot.lane.b32.xlu0 %v4068, 24
        %v4438 = vpop.permute.xlu0 %4437
        %4440 = vrot.lane.b32.xlu0 %v4324, 32
        %v4441 = vpop.permute.xlu0 %4440
        %v4443 = vsel %vm2273, %v4423, %v4426
        %v4444 = vsel %vm2277, %v4443, %v4429
        %v4445 = vsel %vm2444, %v4444, %v3294
        %v4446 = vsel %vm1563, %v4445, %v4432
        %v4447 = vsel %vm4359, %v4446, %v4435
        %v4448 = vsel %vm4361, %v4447, %v4438
        %v4449 = vsel %vm4363, %v4448, %v4441
        %v4450 = vsub.f32 %v4393, %v1882
        %v4451 = vsub.f32 %v4421, %v1921
        %v4452 = vsub.f32 %v4449, %v1952
        %v4453 = vmul.f32 %v1857, %v4450
        %v4454 = vmul.f32 %v1896, %v4451
        %v4455 = vadd.f32 %v4453, %v4454
        %v4456 = vmul.f32 %v1927, %v4452
        %v4457 = vadd.f32 %v4455, %v4456
        %v4458 = vmul.f32 %v1862, %v4450
        %v4459 = vmul.f32 %v1901, %v4451
        %v4460 = vadd.f32 %v4458, %v4459
        %v4461 = vmul.f32 %v1932, %v4452
        %v4462 = vadd.f32 %v4460, %v4461
        %v4463 = vmul.f32 %v1872, %v4450
        %v4464 = vmul.f32 %v1911, %v4451
        %v4465 = vadd.f32 %v4463, %v4464
        %v4466 = vmul.f32 %v1942, %v4452
        %v4467 = vadd.f32 %v4465, %v4466
        %v4468 = vmul.f32 %v4457, %v4457
        %v4469 = vmul.f32 %v4462, %v4462
        %v4470 = vadd.f32 %v4468, %v4469
        %v4471 = vmul.f32 %v4467, %v4467
        %v4472 = vadd.f32 %v4470, %v4471
        %v4473 = vadd.f32 %v4472, 1e-08
        %v4474 = vrsqrt.pop %v4473
        %v4475 = vmul.f32 %v4473, %v4474
        %vm4476 = vcmp.eq.f32.partialorder %v4473, inf
        %v4477 = vsel %vm4476, %v4473, %v4475
        %vm4478 = vcmp.eq.f32.partialorder %v4473, 0.0
        %v4479 = vand.u32 %v4473, 2147483648
        %v4480 = vsel %vm4478, %v4479, %v4477
        %4482 = vrot.lane.b32.xlu0 %v4457, 64
        %v4483 = vpop.permute.xlu0 %4482
        %4486 = vrot.lane.b32.xlu0 %v4467, 64
        %v4487 = vpop.permute.xlu0 %4486
        %vm4489 = vcmask 523264
        %v4490 = vsel %vm4489, %v4364, %v4483
        %v4491 = vsel %vm4489, %v4462, %v4487
        %v4492 = vld [vmem:[%s1467] sm:$0xff]
        %v4493 = vld [vmem:[%s1467 + $0x8] sm:$0xff]
        %v4494 = vld [vmem:[%s1467 + $0x10] sm:$0xff]
        %v4495 = vld [vmem:[%s1467 + $0x18] sm:$0xff]
        %v4496 = vld [vmem:[%s1467 + $0x20] sm:$0xff]
        %v4497 = vld [vmem:[%s1467 + $0x28] sm:$0xff]
        %v4498 = vld [vmem:[%s1467 + $0x30] sm:$0xff]
        %v4499 = vld [vmem:[%s1467 + $0x38] sm:$0xff]
        %v4500 = vld [vmem:[%s1467 + $0x40] sm:$0xff]
        %v4501 = vld [vmem:[%s1467 + $0x48] sm:$0xff]
        %v4502 = vld [vmem:[%s1467 + $0x50] sm:$0xff]
        %v4503 = vld [vmem:[%s1467 + $0x58] sm:$0xff]
        %v4504 = vld [vmem:[%s1467 + $0x60] sm:$0xff]
        %v4505 = vld [vmem:[%s1467 + $0x68] sm:$0xff]
        %v4506 = vld [vmem:[%s1467 + $0x70] sm:$0xff]
        %v4507 = vld [vmem:[%s1467 + $0x78] sm:$0xff]
        %v4508 = vld [vmem:[%s1467 + $0x80] sm:$0xff]
        %v4509 = vld [vmem:[%s1467 + $0x88] sm:$0xff]
        %v4510 = vld [vmem:[%s1467 + $0x90] sm:$0xff]
        %v4511 = vld [vmem:[%s1467 + $0x98] sm:$0xff]
        %v4512 = vld [vmem:[%s1467 + $0xa0] sm:$0xff]
        %v4513 = vld [vmem:[%s1467 + $0xa8] sm:$0xff]
        %v4514 = vld [vmem:[%s1467 + $0xb0] sm:$0xff]
        %v4515 = vld [vmem:[%s1467 + $0xb8] sm:$0xff]
        %v4516 = vld [vmem:[%s1467 + $0xc0] sm:$0xff]
        %v4517 = vld [vmem:[%s1467 + $0xc8] sm:$0xff]
        %v4518 = vld [vmem:[%s1467 + $0xd0] sm:$0xff]
        %v4519 = vld [vmem:[%s1467 + $0xd8] sm:$0xff]
        %v4520 = vld [vmem:[%s1467 + $0xe0] sm:$0xff]
        %v4521 = vld [vmem:[%s1467 + $0xe8] sm:$0xff]
        %v4522 = vld [vmem:[%s1467 + $0xf0] sm:$0xff]
        %v4523 = vld [vmem:[%s1467 + $0xf8] sm:$0xff]
        %v4524 = vld [vmem:[%s1467 + $0x100] sm:$0xff]
        %v4525 = vld [vmem:[%s1467 + $0x108] sm:$0xff]
        %v4526 = vld [vmem:[%s1467 + $0x110] sm:$0xff]
        %v4527 = vld [vmem:[%s1467 + $0x118] sm:$0xff]
        %v4528 = vld [vmem:[%s1467 + $0x120] sm:$0xff]
        %v4529 = vld [vmem:[%s1467 + $0x128] sm:$0xff]
        %v4530 = vld [vmem:[%s1467 + $0x130] sm:$0xff]
        %v4531 = vld [vmem:[%s1467 + $0x138] sm:$0xff]
        %v4533 = vsel %vm4489, %v4480, 0
        %4535 = vmatprep.subr.mxu0 0.0
        %4536 = vmatpush1.msra.mxu0 %v4492
        %4537 = vmatprep.subr.mxu0 0.0
        %4538 = vmatpush1.msra.mxu0 %v4493
        %4539 = vmatprep.subr.mxu0 0.0
        %4540 = vmatpush1.msra.mxu0 %v4494
        %4541 = vmatprep.subr.mxu0 0.0
        %4542 = vmatpush1.msra.mxu0 %v4495
        %4543 = vmatprep.subr.mxu0 0.0
        %4544 = vmatpush1.msra.mxu0 %v4496
        %4545 = vmatprep.subr.mxu0 0.0
        %4546 = vmatpush1.msra.mxu0 %v4497
        %4547 = vmatprep.subr.mxu0 0.0
        %4548 = vmatpush1.msra.mxu0 %v4498
        %4549 = vmatprep.subr.mxu0 0.0
        %4550 = vmatpush1.msra.mxu0 %v4499
        %4551 = vmatprep.subr.mxu0 0.0
        %4552 = vmatpush1.msra.mxu0 %v4500
        %4553 = vmatprep.subr.mxu0 0.0
        %4554 = vmatpush1.msra.mxu0 %v4501
        %4555 = vmatprep.subr.mxu0 0.0
        %4556 = vmatpush1.msra.mxu0 %v4502
        %4557 = vmatprep.subr.mxu0 0.0
        %4558 = vmatpush1.msra.mxu0 %v4503
        %4559 = vmatprep.subr.mxu0 0.0
        %4560 = vmatpush1.msra.mxu0 %v4504
        %4561 = vmatprep.subr.mxu0 0.0
        %4562 = vmatpush1.msra.mxu0 %v4505
        %4563 = vmatprep.subr.mxu0 0.0
        %4564 = vmatpush1.msra.mxu0 %v4506
        %4565 = vmatprep.subr.mxu0 0.0
        %4566 = vmatpush1.msra.mxu0 %v4507
        %4567 = vmatprep.subr.mxu0 0.0
        %4568 = vmatpush1.msra.mxu0 %v4508
        %4569 = vmatprep.subr.mxu0 0.0
        %4570 = vmatpush1.msra.mxu0 %v4509
        %4571 = vmatprep.subr.mxu0 0.0
        %4572 = vmatpush1.msra.mxu0 %v4510
        %4573 = vmatprep.subr.mxu0 0.0
        %4574 = vmatpush1.msra.mxu0 %v4511
        %4575 = vmatprep.subr.mxu0 0.0
        %4576 = vmatpush1.msra.mxu0 %v4512
        %4577 = vmatprep.subr.mxu0 0.0
        %4578 = vmatpush1.msra.mxu0 %v4513
        %4579 = vmatprep.subr.mxu0 0.0
        %4580 = vmatpush1.msra.mxu0 %v4514
        %4581 = vmatprep.subr.mxu0 0.0
        %4582 = vmatpush1.msra.mxu0 %v4515
        %4583 = vmatprep.subr.mxu0 0.0
        %4584 = vmatpush1.msra.mxu0 %v4516
        %4585 = vmatprep.subr.mxu0 0.0
        %4586 = vmatpush1.msra.mxu0 %v4517
        %4587 = vmatprep.subr.mxu0 0.0
        %4588 = vmatpush1.msra.mxu0 %v4518
        %4589 = vmatprep.subr.mxu0 0.0
        %4590 = vmatpush1.msra.mxu0 %v4519
        %4591 = vmatprep.subr.mxu0 0.0
        %4592 = vmatpush1.msra.mxu0 %v4520
        %4593 = vmatprep.subr.mxu0 0.0
        %4594 = vmatpush1.msra.mxu0 %v4521
        %4595 = vmatprep.subr.mxu0 0.0
        %4596 = vmatpush1.msra.mxu0 %v4522
        %4597 = vmatprep.subr.mxu0 0.0
        %4598 = vmatpush1.msra.mxu0 %v4523
        %4599 = vmatprep.mubr.f32.mxu0 %v4491
        %4600 = vmatmul.mubr.f32.gmra.mrb[0].mxu0 %v4490
        %v4601 = vpop.f32.mrb[0].mxu0
        %v4602 = vadd.f32 0.0, %v4601
        %v4603 = vpop.f32.mrb[0].mxu0
        %4604 = vdwg.mxu0
        %4605 = vmatprep.subr.mxu0 0.0
        %4606 = vmatpush1.msra.mxu0 %v4524
        %4607 = vmatprep.subr.mxu0 0.0
        %4608 = vmatpush1.msra.mxu0 %v4525
        %4609 = vmatprep.subr.mxu0 0.0
        %4610 = vmatpush1.msra.mxu0 %v4526
        %4611 = vmatprep.subr.mxu0 0.0
        %4612 = vmatpush1.msra.mxu0 %v4527
        %4613 = vmatprep.subr.mxu0 0.0
        %4614 = vmatpush1.msra.mxu0 %v4528
        %4615 = vmatprep.subr.mxu0 0.0
        %4616 = vmatpush1.msra.mxu0 %v4529
        %4617 = vmatprep.subr.mxu0 0.0
        %4618 = vmatpush1.msra.mxu0 %v4530
        %4619 = vmatprep.subr.mxu0 0.0
        %4620 = vmatpush1.msra.mxu0 %v4531
        %4621 = vmatprep.subr.mxu0 0.0
        %4622 = vmatpush1.msra.mxu0 0.0
        %4623 = vmatprep.subr.mxu0 0.0
        %4624 = vmatpush1.msra.mxu0 0.0
        %4625 = vmatprep.subr.mxu0 0.0
        %4626 = vmatpush1.msra.mxu0 0.0
        %4627 = vmatprep.subr.mxu0 0.0
        %4628 = vmatpush1.msra.mxu0 0.0
        %4629 = vmatprep.subr.mxu0 0.0
        %4630 = vmatpush1.msra.mxu0 0.0
        %4631 = vmatprep.subr.mxu0 0.0
        %4632 = vmatpush1.msra.mxu0 0.0
        %4633 = vmatprep.subr.mxu0 0.0
        %4634 = vmatpush1.msra.mxu0 0.0
        %4635 = vmatprep.subr.mxu0 0.0
        %4636 = vmatpush1.msra.mxu0 0.0
        %4637 = vmatprep.subr.mxu0 0.0
        %4638 = vmatpush1.msra.mxu0 0.0
        %4639 = vmatprep.subr.mxu0 0.0
        %4640 = vmatpush1.msra.mxu0 0.0
        %4641 = vmatprep.subr.mxu0 0.0
        %4642 = vmatpush1.msra.mxu0 0.0
        %4643 = vmatprep.subr.mxu0 0.0
        %4644 = vmatpush1.msra.mxu0 0.0
        %4645 = vmatprep.subr.mxu0 0.0
        %4646 = vmatpush1.msra.mxu0 0.0
        %4647 = vmatprep.subr.mxu0 0.0
        %4648 = vmatpush1.msra.mxu0 0.0
        %4649 = vmatprep.subr.mxu0 0.0
        %4650 = vmatpush1.msra.mxu0 0.0
        %4651 = vmatprep.subr.mxu0 0.0
        %4652 = vmatpush1.msra.mxu0 0.0
        %4653 = vmatprep.subr.mxu0 0.0
        %4654 = vmatpush1.msra.mxu0 0.0
        %4655 = vmatprep.subr.mxu0 0.0
        %4656 = vmatpush1.msra.mxu0 0.0
        %4657 = vmatprep.subr.mxu0 0.0
        %4658 = vmatpush1.msra.mxu0 0.0
        %4659 = vmatprep.subr.mxu0 0.0
        %4660 = vmatpush1.msra.mxu0 0.0
        %4661 = vmatprep.subr.mxu0 0.0
        %4662 = vmatpush1.msra.mxu0 0.0
        %4663 = vmatprep.subr.mxu0 0.0
        %4664 = vmatpush1.msra.mxu0 0.0
        %4665 = vmatprep.subr.mxu0 0.0
        %4666 = vmatpush1.msra.mxu0 0.0
        %4667 = vmatprep.subr.mxu0 0.0
        %4668 = vmatpush1.msra.mxu0 0.0
        %4669 = vmatprep.mubr.f32.mxu0 0.0
        %4670 = vmatmul.mubr.f32.gmra.mrb[0].mxu0 %v4533
        %v4671 = vpop.f32.mrb[0].mxu0
        %v4672 = vadd.f32 %v4602, %v4671
        %v4673 = vpop.f32.mrb[0].mxu0
        %4674 = vdwg.mxu0
        %v4675 = vadd.f32 %v1556, %v4672
        %v4676 = vld [vmem:[%s1470] sm:$0x1]
        %v4678 = vlaneseq
        %v4679 = vshrl.u32 %v4678, 7
        %v4680 = vsub.s32 0, %v4679
        %v4681 = vrot.slane %v4676, %v4680
        %v4683 = vadd.f32 %v4675, %v4681
        %v4684 = vsel %vm1563, %v4683, 0.0
        %4685 = vadd.xlane.f32.xlu0 %v4684
        %v4686 = vpop.xlane.xlu0 %4685
        %v4687 = vmul.f32 %v4686, %v1567
        %v4688 = vsub.f32 %v4683, %v4687
        %v4689 = vmul.f32 %v4688, %v4688
        %v4690 = vsel %vm1563, %v4689, 0.0
        %4691 = vadd.xlane.f32.xlu0 %v4690
        %v4692 = vpop.xlane.xlu0 %4691
        %v4693 = vmul.f32 %v4692, %v1567
        %v4694 = vadd.f32 %v4693, 1e-05
        %v4695 = vrsqrt.pop %v4694
        %v4696 = vmul.f32 %v4688, %v4695
        %v4697 = vld [vmem:[%s1473] sm:$0x1]
        %v4699 = vlaneseq
        %v4700 = vshrl.u32 %v4699, 7
        %v4701 = vsub.s32 0, %v4700
        %v4702 = vrot.slane %v4697, %v4701
        %v4704 = vmul.f32 %v4696, %v4702
        %v4705 = vld [vmem:[%s1476] sm:$0x1]
        %v4707 = vlaneseq
        %v4708 = vshrl.u32 %v4707, 7
        %v4709 = vsub.s32 0, %v4708
        %v4710 = vrot.slane %v4705, %v4709
        %v4712 = vadd.f32 %v4704, %v4710
        %v4713 = vld [vmem:[%s1481] sm:$0xff]
        %v4714 = vld [vmem:[%s1481 + $0x8] sm:$0xff]
        %v4715 = vld [vmem:[%s1481 + $0x10] sm:$0xff]
        %v4716 = vld [vmem:[%s1481 + $0x18] sm:$0xff]
        %v4717 = vld [vmem:[%s1484] sm:$0x1]
        %v4719 = vlaneseq
        %v4720 = vshrl.u32 %v4719, 7
        %v4721 = vsub.s32 0, %v4720
        %v4722 = vrot.slane %v4717, %v4721
        %v4725 = vsel %vm1563, %v4712, 0
        %4727 = vmatprep.subr.mxu0 0.0
        %4728 = vmatpush1.msra.mxu0 %v4713
        %4729 = vmatprep.subr.mxu0 0.0
        %4730 = vmatpush1.msra.mxu0 %v4714
        %4731 = vmatprep.subr.mxu0 0.0
        %4732 = vmatpush1.msra.mxu0 %v4715
        %4733 = vmatprep.subr.mxu0 0.0
        %4734 = vmatpush1.msra.mxu0 %v4716
        %4735 = vmatprep.subr.mxu0 0.0
        %4736 = vmatpush1.msra.mxu0 0.0
        %4737 = vmatprep.subr.mxu0 0.0
        %4738 = vmatpush1.msra.mxu0 0.0
        %4739 = vmatprep.subr.mxu0 0.0
        %4740 = vmatpush1.msra.mxu0 0.0
        %4741 = vmatprep.subr.mxu0 0.0
        %4742 = vmatpush1.msra.mxu0 0.0
        %4743 = vmatprep.subr.mxu0 0.0
        %4744 = vmatpush1.msra.mxu0 0.0
        %4745 = vmatprep.subr.mxu0 0.0
        %4746 = vmatpush1.msra.mxu0 0.0
        %4747 = vmatprep.subr.mxu0 0.0
        %4748 = vmatpush1.msra.mxu0 0.0
        %4749 = vmatprep.subr.mxu0 0.0
        %4750 = vmatpush1.msra.mxu0 0.0
        %4751 = vmatprep.subr.mxu0 0.0
        %4752 = vmatpush1.msra.mxu0 0.0
        %4753 = vmatprep.subr.mxu0 0.0
        %4754 = vmatpush1.msra.mxu0 0.0
        %4755 = vmatprep.subr.mxu0 0.0
        %4756 = vmatpush1.msra.mxu0 0.0
        %4757 = vmatprep.subr.mxu0 0.0
        %4758 = vmatpush1.msra.mxu0 0.0
        %4759 = vmatprep.subr.mxu0 0.0
        %4760 = vmatpush1.msra.mxu0 0.0
        %4761 = vmatprep.subr.mxu0 0.0
        %4762 = vmatpush1.msra.mxu0 0.0
        %4763 = vmatprep.subr.mxu0 0.0
        %4764 = vmatpush1.msra.mxu0 0.0
        %4765 = vmatprep.subr.mxu0 0.0
        %4766 = vmatpush1.msra.mxu0 0.0
        %4767 = vmatprep.subr.mxu0 0.0
        %4768 = vmatpush1.msra.mxu0 0.0
        %4769 = vmatprep.subr.mxu0 0.0
        %4770 = vmatpush1.msra.mxu0 0.0
        %4771 = vmatprep.subr.mxu0 0.0
        %4772 = vmatpush1.msra.mxu0 0.0
        %4773 = vmatprep.subr.mxu0 0.0
        %4774 = vmatpush1.msra.mxu0 0.0
        %4775 = vmatprep.subr.mxu0 0.0
        %4776 = vmatpush1.msra.mxu0 0.0
        %4777 = vmatprep.subr.mxu0 0.0
        %4778 = vmatpush1.msra.mxu0 0.0
        %4779 = vmatprep.subr.mxu0 0.0
        %4780 = vmatpush1.msra.mxu0 0.0
        %4781 = vmatprep.subr.mxu0 0.0
        %4782 = vmatpush1.msra.mxu0 0.0
        %4783 = vmatprep.subr.mxu0 0.0
        %4784 = vmatpush1.msra.mxu0 0.0
        %4785 = vmatprep.subr.mxu0 0.0
        %4786 = vmatpush1.msra.mxu0 0.0
        %4787 = vmatprep.subr.mxu0 0.0
        %4788 = vmatpush1.msra.mxu0 0.0
        %4789 = vmatprep.subr.mxu0 0.0
        %4790 = vmatpush1.msra.mxu0 0.0
        %4791 = vmatprep.mubr.f32.mxu0 0.0
        %4792 = vmatmul.mubr.f32.gmra.mrb[0].mxu0 %v4725
        %v4793 = vpop.f32.mrb[0].mxu0
        %v4794 = vadd.f32 %v4722, %v4793
        %v4795 = vpop.f32.mrb[0].mxu0
        %4796 = vdwg.mxu0
        %v4797 = vmax.f32 %v4794, 0.0
        %v4798 = vld [vmem:[%s1489] sm:$0xff]
        %v4799 = vld [vmem:[%s1489 + $0x8] sm:$0xff]
        %v4800 = vld [vmem:[%s1489 + $0x10] sm:$0xff]
        %v4801 = vld [vmem:[%s1489 + $0x18] sm:$0xff]
        %v4802 = vld [vmem:[%s1489 + $0x20] sm:$0xff]
        %v4803 = vld [vmem:[%s1489 + $0x28] sm:$0xff]
        %v4804 = vld [vmem:[%s1489 + $0x30] sm:$0xff]
        %v4805 = vld [vmem:[%s1489 + $0x38] sm:$0xff]
        %v4806 = vld [vmem:[%s1489 + $0x40] sm:$0xff]
        %v4807 = vld [vmem:[%s1489 + $0x48] sm:$0xff]
        %v4808 = vld [vmem:[%s1489 + $0x50] sm:$0xff]
        %v4809 = vld [vmem:[%s1489 + $0x58] sm:$0xff]
        %v4810 = vld [vmem:[%s1489 + $0x60] sm:$0xff]
        %v4811 = vld [vmem:[%s1489 + $0x68] sm:$0xff]
        %v4812 = vld [vmem:[%s1489 + $0x70] sm:$0xff]
        %v4813 = vld [vmem:[%s1489 + $0x78] sm:$0xff]
        %4814 = vmatprep.subr.mxu0 0.0
        %4815 = vmatpush1.msra.mxu0 %v4798
        %4816 = vmatprep.subr.mxu0 0.0
        %4817 = vmatpush1.msra.mxu0 %v4799
        %4818 = vmatprep.subr.mxu0 0.0
        %4819 = vmatpush1.msra.mxu0 %v4800
        %4820 = vmatprep.subr.mxu0 0.0
        %4821 = vmatpush1.msra.mxu0 %v4801
        %4822 = vmatprep.subr.mxu0 0.0
        %4823 = vmatpush1.msra.mxu0 %v4802
        %4824 = vmatprep.subr.mxu0 0.0
        %4825 = vmatpush1.msra.mxu0 %v4803
        %4826 = vmatprep.subr.mxu0 0.0
        %4827 = vmatpush1.msra.mxu0 %v4804
        %4828 = vmatprep.subr.mxu0 0.0
        %4829 = vmatpush1.msra.mxu0 %v4805
        %4830 = vmatprep.subr.mxu0 0.0
        %4831 = vmatpush1.msra.mxu0 %v4806
        %4832 = vmatprep.subr.mxu0 0.0
        %4833 = vmatpush1.msra.mxu0 %v4807
        %4834 = vmatprep.subr.mxu0 0.0
        %4835 = vmatpush1.msra.mxu0 %v4808
        %4836 = vmatprep.subr.mxu0 0.0
        %4837 = vmatpush1.msra.mxu0 %v4809
        %4838 = vmatprep.subr.mxu0 0.0
        %4839 = vmatpush1.msra.mxu0 %v4810
        %4840 = vmatprep.subr.mxu0 0.0
        %4841 = vmatpush1.msra.mxu0 %v4811
        %4842 = vmatprep.subr.mxu0 0.0
        %4843 = vmatpush1.msra.mxu0 %v4812
        %4844 = vmatprep.subr.mxu0 0.0
        %4845 = vmatpush1.msra.mxu0 %v4813
        %4846 = vmatprep.subr.mxu0 0.0
        %4847 = vmatpush1.msra.mxu0 0.0
        %4848 = vmatprep.subr.mxu0 0.0
        %4849 = vmatpush1.msra.mxu0 0.0
        %4850 = vmatprep.subr.mxu0 0.0
        %4851 = vmatpush1.msra.mxu0 0.0
        %4852 = vmatprep.subr.mxu0 0.0
        %4853 = vmatpush1.msra.mxu0 0.0
        %4854 = vmatprep.subr.mxu0 0.0
        %4855 = vmatpush1.msra.mxu0 0.0
        %4856 = vmatprep.subr.mxu0 0.0
        %4857 = vmatpush1.msra.mxu0 0.0
        %4858 = vmatprep.subr.mxu0 0.0
        %4859 = vmatpush1.msra.mxu0 0.0
        %4860 = vmatprep.subr.mxu0 0.0
        %4861 = vmatpush1.msra.mxu0 0.0
        %4862 = vmatprep.subr.mxu0 0.0
        %4863 = vmatpush1.msra.mxu0 0.0
        %4864 = vmatprep.subr.mxu0 0.0
        %4865 = vmatpush1.msra.mxu0 0.0
        %4866 = vmatprep.subr.mxu0 0.0
        %4867 = vmatpush1.msra.mxu0 0.0
        %4868 = vmatprep.subr.mxu0 0.0
        %4869 = vmatpush1.msra.mxu0 0.0
        %4870 = vmatprep.subr.mxu0 0.0
        %4871 = vmatpush1.msra.mxu0 0.0
        %4872 = vmatprep.subr.mxu0 0.0
        %4873 = vmatpush1.msra.mxu0 0.0
        %4874 = vmatprep.subr.mxu0 0.0
        %4875 = vmatpush1.msra.mxu0 0.0
        %4876 = vmatprep.subr.mxu0 0.0
        %4877 = vmatpush1.msra.mxu0 0.0
        %4878 = vmatprep.mubr.f32.mxu0 0.0
        %4879 = vmatmul.mubr.f32.gmra.mrb[0].mxu0 %v4797
        %v4880 = vpop.f32.mrb[0].mxu0
        %v4881 = vadd.f32 0.0, %v4880
        %v4882 = vpop.f32.mrb[0].mxu0
        %4883 = vdwg.mxu0
        %v4884 = vadd.f32 %v4683, %v4881
        %v4885 = vld [vmem:[%s1492] sm:$0x1]
        %v4887 = vlaneseq
        %v4888 = vshrl.u32 %v4887, 7
        %v4889 = vsub.s32 0, %v4888
        %v4890 = vrot.slane %v4885, %v4889
        %v4892 = vadd.f32 %v4884, %v4890
        %v4893 = vld [vmem:[%s1497] sm:$0xff]
        %v4894 = vld [vmem:[%s1497 + $0x8] sm:$0xff]
        %v4895 = vld [vmem:[%s1497 + $0x10] sm:$0xff]
        %v4896 = vld [vmem:[%s1497 + $0x18] sm:$0xff]
        %v4897 = vld [vmem:[%s1500] sm:$0x1]
        %v4899 = vlaneseq
        %v4900 = vshrl.u32 %v4899, 7
        %v4901 = vsub.s32 0, %v4900
        %v4902 = vrot.slane %v4897, %v4901
        %v4905 = vsel %vm1563, %v4892, 0
        %4907 = vmatprep.subr.mxu0 0.0
        %4908 = vmatpush1.msra.mxu0 %v4893
        %4909 = vmatprep.subr.mxu0 0.0
        %4910 = vmatpush1.msra.mxu0 %v4894
        %4911 = vmatprep.subr.mxu0 0.0
        %4912 = vmatpush1.msra.mxu0 %v4895
        %4913 = vmatprep.subr.mxu0 0.0
        %4914 = vmatpush1.msra.mxu0 %v4896
        %4915 = vmatprep.subr.mxu0 0.0
        %4916 = vmatpush1.msra.mxu0 0.0
        %4917 = vmatprep.subr.mxu0 0.0
        %4918 = vmatpush1.msra.mxu0 0.0
        %4919 = vmatprep.subr.mxu0 0.0
        %4920 = vmatpush1.msra.mxu0 0.0
        %4921 = vmatprep.subr.mxu0 0.0
        %4922 = vmatpush1.msra.mxu0 0.0
        %4923 = vmatprep.subr.mxu0 0.0
        %4924 = vmatpush1.msra.mxu0 0.0
        %4925 = vmatprep.subr.mxu0 0.0
        %4926 = vmatpush1.msra.mxu0 0.0
        %4927 = vmatprep.subr.mxu0 0.0
        %4928 = vmatpush1.msra.mxu0 0.0
        %4929 = vmatprep.subr.mxu0 0.0
        %4930 = vmatpush1.msra.mxu0 0.0
        %4931 = vmatprep.subr.mxu0 0.0
        %4932 = vmatpush1.msra.mxu0 0.0
        %4933 = vmatprep.subr.mxu0 0.0
        %4934 = vmatpush1.msra.mxu0 0.0
        %4935 = vmatprep.subr.mxu0 0.0
        %4936 = vmatpush1.msra.mxu0 0.0
        %4937 = vmatprep.subr.mxu0 0.0
        %4938 = vmatpush1.msra.mxu0 0.0
        %4939 = vmatprep.subr.mxu0 0.0
        %4940 = vmatpush1.msra.mxu0 0.0
        %4941 = vmatprep.subr.mxu0 0.0
        %4942 = vmatpush1.msra.mxu0 0.0
        %4943 = vmatprep.subr.mxu0 0.0
        %4944 = vmatpush1.msra.mxu0 0.0
        %4945 = vmatprep.subr.mxu0 0.0
        %4946 = vmatpush1.msra.mxu0 0.0
        %4947 = vmatprep.subr.mxu0 0.0
        %4948 = vmatpush1.msra.mxu0 0.0
        %4949 = vmatprep.subr.mxu0 0.0
        %4950 = vmatpush1.msra.mxu0 0.0
        %4951 = vmatprep.subr.mxu0 0.0
        %4952 = vmatpush1.msra.mxu0 0.0
        %4953 = vmatprep.subr.mxu0 0.0
        %4954 = vmatpush1.msra.mxu0 0.0
        %4955 = vmatprep.subr.mxu0 0.0
        %4956 = vmatpush1.msra.mxu0 0.0
        %4957 = vmatprep.subr.mxu0 0.0
        %4958 = vmatpush1.msra.mxu0 0.0
        %4959 = vmatprep.subr.mxu0 0.0
        %4960 = vmatpush1.msra.mxu0 0.0
        %4961 = vmatprep.subr.mxu0 0.0
        %4962 = vmatpush1.msra.mxu0 0.0
        %4963 = vmatprep.subr.mxu0 0.0
        %4964 = vmatpush1.msra.mxu0 0.0
        %4965 = vmatprep.subr.mxu0 0.0
        %4966 = vmatpush1.msra.mxu0 0.0
        %4967 = vmatprep.subr.mxu0 0.0
        %4968 = vmatpush1.msra.mxu0 0.0
        %4969 = vmatprep.subr.mxu0 0.0
        %4970 = vmatpush1.msra.mxu0 0.0
        %4971 = vmatprep.mubr.f32.mxu0 0.0
        %4972 = vmatmul.mubr.f32.gmra.mrb[0].mxu0 %v4905
        %v4973 = vpop.f32.mrb[0].mxu0
        %v4974 = vadd.f32 %v4902, %v4973
        %v4975 = vpop.f32.mrb[0].mxu0
        %4976 = vmatprep.mubr.f32.mxu0 0.0
        %4977 = vmatmul.mubr.f32.gmra.mrb[0].mxu0 %v1693
        %v4978 = vpop.f32.mrb[0].mxu0
        %v4979 = vadd.f32 %v4902, %v4978
        %v4980 = vpop.f32.mrb[0].mxu0
        %4981 = vmatprep.mubr.f32.mxu0 0.0
        %4982 = vmatmul.mubr.f32.gmra.mrb[0].mxu0 %v1696
        %v4983 = vpop.f32.mrb[0].mxu0
        %v4984 = vadd.f32 %v4902, %v4983
        %v4985 = vpop.f32.mrb[0].mxu0
        %4986 = vdwg.mxu0
        %v4987 = vmul.f32 %v4974, 0.35355338
        %v4988 = vmul.f32 %v4979, 0.35355338
        %v4989 = vmul.f32 %v4984, 0.35355338
        %v4990 = vld [vmem:[%s1505] sm:$0xff]
        %v4991 = vld [vmem:[%s1505 + $0x8] sm:$0xff]
        %v4992 = vld [vmem:[%s1505 + $0x10] sm:$0xff]
        %v4993 = vld [vmem:[%s1505 + $0x18] sm:$0xff]
        %v4994 = vld [vmem:[%s1508] sm:$0x1]
        %v4996 = vlaneseq
        %v4997 = vshrl.u32 %v4996, 7
        %v4998 = vsub.s32 0, %v4997
        %v4999 = vrot.slane %v4994, %v4998
        %v5002 = vsel %vm1563, %v1559, 0
        %5004 = vmatprep.subr.mxu0 0.0
        %5005 = vmatpush1.msra.mxu0 %v4990
        %5006 = vmatprep.subr.mxu0 0.0
        %5007 = vmatpush1.msra.mxu0 %v4991
        %5008 = vmatprep.subr.mxu0 0.0
        %5009 = vmatpush1.msra.mxu0 %v4992
        %5010 = vmatprep.subr.mxu0 0.0
        %5011 = vmatpush1.msra.mxu0 %v4993
        %5012 = vmatprep.subr.mxu0 0.0
        %5013 = vmatpush1.msra.mxu0 0.0
        %5014 = vmatprep.subr.mxu0 0.0
        %5015 = vmatpush1.msra.mxu0 0.0
        %5016 = vmatprep.subr.mxu0 0.0
        %5017 = vmatpush1.msra.mxu0 0.0
        %5018 = vmatprep.subr.mxu0 0.0
        %5019 = vmatpush1.msra.mxu0 0.0
        %5020 = vmatprep.subr.mxu0 0.0
        %5021 = vmatpush1.msra.mxu0 0.0
        %5022 = vmatprep.subr.mxu0 0.0
        %5023 = vmatpush1.msra.mxu0 0.0
        %5024 = vmatprep.subr.mxu0 0.0
        %5025 = vmatpush1.msra.mxu0 0.0
        %5026 = vmatprep.subr.mxu0 0.0
        %5027 = vmatpush1.msra.mxu0 0.0
        %5028 = vmatprep.subr.mxu0 0.0
        %5029 = vmatpush1.msra.mxu0 0.0
        %5030 = vmatprep.subr.mxu0 0.0
        %5031 = vmatpush1.msra.mxu0 0.0
        %5032 = vmatprep.subr.mxu0 0.0
        %5033 = vmatpush1.msra.mxu0 0.0
        %5034 = vmatprep.subr.mxu0 0.0
        %5035 = vmatpush1.msra.mxu0 0.0
        %5036 = vmatprep.subr.mxu0 0.0
        %5037 = vmatpush1.msra.mxu0 0.0
        %5038 = vmatprep.subr.mxu0 0.0
        %5039 = vmatpush1.msra.mxu0 0.0
        %5040 = vmatprep.subr.mxu0 0.0
        %5041 = vmatpush1.msra.mxu0 0.0
        %5042 = vmatprep.subr.mxu0 0.0
        %5043 = vmatpush1.msra.mxu0 0.0
        %5044 = vmatprep.subr.mxu0 0.0
        %5045 = vmatpush1.msra.mxu0 0.0
        %5046 = vmatprep.subr.mxu0 0.0
        %5047 = vmatpush1.msra.mxu0 0.0
        %5048 = vmatprep.subr.mxu0 0.0
        %5049 = vmatpush1.msra.mxu0 0.0
        %5050 = vmatprep.subr.mxu0 0.0
        %5051 = vmatpush1.msra.mxu0 0.0
        %5052 = vmatprep.subr.mxu0 0.0
        %5053 = vmatpush1.msra.mxu0 0.0
        %5054 = vmatprep.subr.mxu0 0.0
        %5055 = vmatpush1.msra.mxu0 0.0
        %5056 = vmatprep.subr.mxu0 0.0
        %5057 = vmatpush1.msra.mxu0 0.0
        %5058 = vmatprep.subr.mxu0 0.0
        %5059 = vmatpush1.msra.mxu0 0.0
        %5060 = vmatprep.subr.mxu0 0.0
        %5061 = vmatpush1.msra.mxu0 0.0
        %5062 = vmatprep.subr.mxu0 0.0
        %5063 = vmatpush1.msra.mxu0 0.0
        %5064 = vmatprep.subr.mxu0 0.0
        %5065 = vmatpush1.msra.mxu0 0.0
        %5066 = vmatprep.subr.mxu0 0.0
        %5067 = vmatpush1.msra.mxu0 0.0
        %5068 = vmatprep.mubr.f32.mxu0 0.0
        %5069 = vmatmul.mubr.f32.gmra.mrb[0].mxu0 %v5002
        %v5070 = vpop.f32.mrb[0].mxu0
        %v5071 = vadd.f32 %v4999, %v5070
        %v5072 = vpop.f32.mrb[0].mxu0
        %5073 = vdwg.mxu0
        %v5075 = vsel %vm2273, %v4987, 0
        %v5078 = vsel %vm2273, %v4988, 0
        %v5081 = vsel %vm2273, %v4989, 0
        %v5084 = vsel %vm2273, %v5071, 0
        %5086 = vmatprep.subr.mxu0 0.0
        %5087 = vmatpush1.xpose.msra.mxu0 %v5084
        %5088 = vmatprep.subr.mxu0 0.0
        %5089 = vmatpush1.xpose.msra.mxu0 0.0
        %5090 = vmatprep.subr.mxu0 0.0
        %5091 = vmatpush1.xpose.msra.mxu0 0.0
        %5092 = vmatprep.subr.mxu0 0.0
        %5093 = vmatpush1.xpose.msra.mxu0 0.0
        %5094 = vmatprep.subr.mxu0 0.0
        %5095 = vmatpush1.xpose.msra.mxu0 0.0
        %5096 = vmatprep.subr.mxu0 0.0
        %5097 = vmatpush1.xpose.msra.mxu0 0.0
        %5098 = vmatprep.subr.mxu0 0.0
        %5099 = vmatpush1.xpose.msra.mxu0 0.0
        %5100 = vmatprep.subr.mxu0 0.0
        %5101 = vmatpush1.xpose.msra.mxu0 0.0
        %5102 = vmatprep.subr.mxu0 0.0
        %5103 = vmatpush1.xpose.msra.mxu0 0.0
        %5104 = vmatprep.subr.mxu0 0.0
        %5105 = vmatpush1.xpose.msra.mxu0 0.0
        %5106 = vmatprep.subr.mxu0 0.0
        %5107 = vmatpush1.xpose.msra.mxu0 0.0
        %5108 = vmatprep.subr.mxu0 0.0
        %5109 = vmatpush1.xpose.msra.mxu0 0.0
        %5110 = vmatprep.subr.mxu0 0.0
        %5111 = vmatpush1.xpose.msra.mxu0 0.0
        %5112 = vmatprep.subr.mxu0 0.0
        %5113 = vmatpush1.xpose.msra.mxu0 0.0
        %5114 = vmatprep.subr.mxu0 0.0
        %5115 = vmatpush1.xpose.msra.mxu0 0.0
        %5116 = vmatprep.subr.mxu0 0.0
        %5117 = vmatpush1.xpose.msra.mxu0 0.0
        %5118 = vmatprep.subr.mxu0 0.0
        %5119 = vmatpush1.xpose.msra.mxu0 0.0
        %5120 = vmatprep.subr.mxu0 0.0
        %5121 = vmatpush1.xpose.msra.mxu0 0.0
        %5122 = vmatprep.subr.mxu0 0.0
        %5123 = vmatpush1.xpose.msra.mxu0 0.0
        %5124 = vmatprep.subr.mxu0 0.0
        %5125 = vmatpush1.xpose.msra.mxu0 0.0
        %5126 = vmatprep.subr.mxu0 0.0
        %5127 = vmatpush1.xpose.msra.mxu0 0.0
        %5128 = vmatprep.subr.mxu0 0.0
        %5129 = vmatpush1.xpose.msra.mxu0 0.0
        %5130 = vmatprep.subr.mxu0 0.0
        %5131 = vmatpush1.xpose.msra.mxu0 0.0
        %5132 = vmatprep.subr.mxu0 0.0
        %5133 = vmatpush1.xpose.msra.mxu0 0.0
        %5134 = vmatprep.subr.mxu0 0.0
        %5135 = vmatpush1.xpose.msra.mxu0 0.0
        %5136 = vmatprep.subr.mxu0 0.0
        %5137 = vmatpush1.xpose.msra.mxu0 0.0
        %5138 = vmatprep.subr.mxu0 0.0
        %5139 = vmatpush1.xpose.msra.mxu0 0.0
        %5140 = vmatprep.subr.mxu0 0.0
        %5141 = vmatpush1.xpose.msra.mxu0 0.0
        %5142 = vmatprep.subr.mxu0 0.0
        %5143 = vmatpush1.xpose.msra.mxu0 0.0
        %5144 = vmatprep.subr.mxu0 0.0
        %5145 = vmatpush1.xpose.msra.mxu0 0.0
        %5146 = vmatprep.subr.mxu0 0.0
        %5147 = vmatpush1.xpose.msra.mxu0 0.0
        %5148 = vmatprep.subr.mxu0 0.0
        %5149 = vmatpush1.xpose.msra.mxu0 0.0
        %5150 = vmatprep.mubr.f32.mxu0 0.0
        %5151 = vmatmul.mubr.f32.gmra.mrb[0].mxu0 %v5075
        %v5152 = vpop.f32.mrb[0].mxu0
        %v5153 = vadd.f32 0.0, %v5152
        %v5154 = vpop.f32.mrb[0].mxu0
        %5155 = vmatprep.mubr.f32.mxu0 0.0
        %5156 = vmatmul.mubr.f32.gmra.mrb[0].mxu0 %v5078
        %v5157 = vpop.f32.mrb[0].mxu0
        %v5158 = vadd.f32 0.0, %v5157
        %v5159 = vpop.f32.mrb[0].mxu0
        %5160 = vmatprep.mubr.f32.mxu0 0.0
        %5161 = vmatmul.mubr.f32.gmra.mrb[0].mxu0 %v5081
        %v5162 = vpop.f32.mrb[0].mxu0
        %v5163 = vadd.f32 0.0, %v5162
        %v5164 = vpop.f32.mrb[0].mxu0
        %5165 = vdwg.mxu0
        %v5166 = vsel %vm2273, %v5153, -inf
        %5167 = vmax.xlane.f32.xlu0 %v5166
        %v5168 = vpop.xlane.xlu0 %5167
        %v5169 = vsel %vm2273, %v5158, -inf
        %5170 = vmax.xlane.f32.xlu0 %v5169
        %v5171 = vpop.xlane.xlu0 %5170
        %v5172 = vsel %vm2273, %v5163, -inf
        %5173 = vmax.xlane.f32.xlu0 %v5172
        %v5174 = vpop.xlane.xlu0 %5173
        %v5175 = vsub.f32 %v5153, %v5168
        %v5176 = vsub.f32 %v5158, %v5171
        %v5177 = vsub.f32 %v5163, %v5174
        %v5178 = vmul.f32 %v5175, 1.442695
        %v5179 = vpow.pop %v5178
        %v5180 = vmul.f32 %v5176, 1.442695
        %v5181 = vpow.pop %v5180
        %v5182 = vmul.f32 %v5177, 1.442695
        %v5183 = vpow.pop %v5182
        %v5184 = vsel %vm2273, %v5179, 0.0
        %5185 = vadd.xlane.f32.xlu0 %v5184
        %v5186 = vpop.xlane.xlu0 %5185
        %v5187 = vsel %vm2273, %v5181, 0.0
        %5188 = vadd.xlane.f32.xlu0 %v5187
        %v5189 = vpop.xlane.xlu0 %5188
        %v5190 = vsel %vm2273, %v5183, 0.0
        %5191 = vadd.xlane.f32.xlu0 %v5190
        %v5192 = vpop.xlane.xlu0 %5191
        %v5193 = vrcp.pop %v5186
        %v5194 = vrcp.pop %v5189
        %v5195 = vrcp.pop %v5192
        %v5196 = vmul.f32 %v5179, %v5193
        %v5197 = vmul.f32 %v5181, %v5194
        %v5198 = vmul.f32 %v5183, %v5195
        %5199 = vrot.lane.b32.xlu0 %v5071, 96
        %v5200 = vpop.permute.xlu0 %5199
        %v5203 = vsel %vm2273, %v5196, 0
        %v5206 = vsel %vm2273, %v5197, 0
        %v5209 = vsel %vm2273, %v5198, 0
        %5211 = vmatprep.subr.mxu0 0.0
        %5212 = vmatpush1.msra.mxu0 %v5200
        %5213 = vmatprep.subr.mxu0 0.0
        %5214 = vmatpush1.msra.mxu0 0.0
        %5215 = vmatprep.subr.mxu0 0.0
        %5216 = vmatpush1.msra.mxu0 0.0
        %5217 = vmatprep.subr.mxu0 0.0
        %5218 = vmatpush1.msra.mxu0 0.0
        %5219 = vmatprep.subr.mxu0 0.0
        %5220 = vmatpush1.msra.mxu0 0.0
        %5221 = vmatprep.subr.mxu0 0.0
        %5222 = vmatpush1.msra.mxu0 0.0
        %5223 = vmatprep.subr.mxu0 0.0
        %5224 = vmatpush1.msra.mxu0 0.0
        %5225 = vmatprep.subr.mxu0 0.0
        %5226 = vmatpush1.msra.mxu0 0.0
        %5227 = vmatprep.subr.mxu0 0.0
        %5228 = vmatpush1.msra.mxu0 0.0
        %5229 = vmatprep.subr.mxu0 0.0
        %5230 = vmatpush1.msra.mxu0 0.0
        %5231 = vmatprep.subr.mxu0 0.0
        %5232 = vmatpush1.msra.mxu0 0.0
        %5233 = vmatprep.subr.mxu0 0.0
        %5234 = vmatpush1.msra.mxu0 0.0
        %5235 = vmatprep.subr.mxu0 0.0
        %5236 = vmatpush1.msra.mxu0 0.0
        %5237 = vmatprep.subr.mxu0 0.0
        %5238 = vmatpush1.msra.mxu0 0.0
        %5239 = vmatprep.subr.mxu0 0.0
        %5240 = vmatpush1.msra.mxu0 0.0
        %5241 = vmatprep.subr.mxu0 0.0
        %5242 = vmatpush1.msra.mxu0 0.0
        %5243 = vmatprep.subr.mxu0 0.0
        %5244 = vmatpush1.msra.mxu0 0.0
        %5245 = vmatprep.subr.mxu0 0.0
        %5246 = vmatpush1.msra.mxu0 0.0
        %5247 = vmatprep.subr.mxu0 0.0
        %5248 = vmatpush1.msra.mxu0 0.0
        %5249 = vmatprep.subr.mxu0 0.0
        %5250 = vmatpush1.msra.mxu0 0.0
        %5251 = vmatprep.subr.mxu0 0.0
        %5252 = vmatpush1.msra.mxu0 0.0
        %5253 = vmatprep.subr.mxu0 0.0
        %5254 = vmatpush1.msra.mxu0 0.0
        %5255 = vmatprep.subr.mxu0 0.0
        %5256 = vmatpush1.msra.mxu0 0.0
        %5257 = vmatprep.subr.mxu0 0.0
        %5258 = vmatpush1.msra.mxu0 0.0
        %5259 = vmatprep.subr.mxu0 0.0
        %5260 = vmatpush1.msra.mxu0 0.0
        %5261 = vmatprep.subr.mxu0 0.0
        %5262 = vmatpush1.msra.mxu0 0.0
        %5263 = vmatprep.subr.mxu0 0.0
        %5264 = vmatpush1.msra.mxu0 0.0
        %5265 = vmatprep.subr.mxu0 0.0
        %5266 = vmatpush1.msra.mxu0 0.0
        %5267 = vmatprep.subr.mxu0 0.0
        %5268 = vmatpush1.msra.mxu0 0.0
        %5269 = vmatprep.subr.mxu0 0.0
        %5270 = vmatpush1.msra.mxu0 0.0
        %5271 = vmatprep.subr.mxu0 0.0
        %5272 = vmatpush1.msra.mxu0 0.0
        %5273 = vmatprep.subr.mxu0 0.0
        %5274 = vmatpush1.msra.mxu0 0.0
        %5275 = vmatprep.mubr.f32.mxu0 0.0
        %5276 = vmatmul.mubr.f32.gmra.mrb[0].mxu0 %v5203
        %v5277 = vpop.f32.mrb[0].mxu0
        %v5278 = vadd.f32 0.0, %v5277
        %v5279 = vpop.f32.mrb[0].mxu0
        %5280 = vmatprep.mubr.f32.mxu0 0.0
        %5281 = vmatmul.mubr.f32.gmra.mrb[0].mxu0 %v5206
        %v5282 = vpop.f32.mrb[0].mxu0
        %v5283 = vadd.f32 0.0, %v5282
        %v5284 = vpop.f32.mrb[0].mxu0
        %5285 = vmatprep.mubr.f32.mxu0 0.0
        %5286 = vmatmul.mubr.f32.gmra.mrb[0].mxu0 %v5209
        %v5287 = vpop.f32.mrb[0].mxu0
        %v5288 = vadd.f32 0.0, %v5287
        %v5289 = vpop.f32.mrb[0].mxu0
        %5290 = vdwg.mxu0
        %5291 = vrot.lane.b32.xlu0 %v4987, 120
        %v5292 = vpop.permute.xlu0 %5291
        %5293 = vrot.lane.b32.xlu0 %v4988, 120
        %v5294 = vpop.permute.xlu0 %5293
        %5295 = vrot.lane.b32.xlu0 %v4989, 120
        %v5296 = vpop.permute.xlu0 %5295
        %5297 = vrot.lane.b32.xlu0 %v5071, 120
        %v5298 = vpop.permute.xlu0 %5297
        %v5299 = vsel %vm2273, %v5292, 0
        %v5301 = vsel %vm2273, %v5294, 0
        %v5303 = vsel %vm2273, %v5296, 0
        %v5305 = vsel %vm2273, %v5298, 0
        %5307 = vmatprep.subr.mxu0 0.0
        %5308 = vmatpush1.xpose.msra.mxu0 %v5305
        %5309 = vmatprep.subr.mxu0 0.0
        %5310 = vmatpush1.xpose.msra.mxu0 0.0
        %5311 = vmatprep.subr.mxu0 0.0
        %5312 = vmatpush1.xpose.msra.mxu0 0.0
        %5313 = vmatprep.subr.mxu0 0.0
        %5314 = vmatpush1.xpose.msra.mxu0 0.0
        %5315 = vmatprep.subr.mxu0 0.0
        %5316 = vmatpush1.xpose.msra.mxu0 0.0
        %5317 = vmatprep.subr.mxu0 0.0
        %5318 = vmatpush1.xpose.msra.mxu0 0.0
        %5319 = vmatprep.subr.mxu0 0.0
        %5320 = vmatpush1.xpose.msra.mxu0 0.0
        %5321 = vmatprep.subr.mxu0 0.0
        %5322 = vmatpush1.xpose.msra.mxu0 0.0
        %5323 = vmatprep.subr.mxu0 0.0
        %5324 = vmatpush1.xpose.msra.mxu0 0.0
        %5325 = vmatprep.subr.mxu0 0.0
        %5326 = vmatpush1.xpose.msra.mxu0 0.0
        %5327 = vmatprep.subr.mxu0 0.0
        %5328 = vmatpush1.xpose.msra.mxu0 0.0
        %5329 = vmatprep.subr.mxu0 0.0
        %5330 = vmatpush1.xpose.msra.mxu0 0.0
        %5331 = vmatprep.subr.mxu0 0.0
        %5332 = vmatpush1.xpose.msra.mxu0 0.0
        %5333 = vmatprep.subr.mxu0 0.0
        %5334 = vmatpush1.xpose.msra.mxu0 0.0
        %5335 = vmatprep.subr.mxu0 0.0
        %5336 = vmatpush1.xpose.msra.mxu0 0.0
        %5337 = vmatprep.subr.mxu0 0.0
        %5338 = vmatpush1.xpose.msra.mxu0 0.0
        %5339 = vmatprep.subr.mxu0 0.0
        %5340 = vmatpush1.xpose.msra.mxu0 0.0
        %5341 = vmatprep.subr.mxu0 0.0
        %5342 = vmatpush1.xpose.msra.mxu0 0.0
        %5343 = vmatprep.subr.mxu0 0.0
        %5344 = vmatpush1.xpose.msra.mxu0 0.0
        %5345 = vmatprep.subr.mxu0 0.0
        %5346 = vmatpush1.xpose.msra.mxu0 0.0
        %5347 = vmatprep.subr.mxu0 0.0
        %5348 = vmatpush1.xpose.msra.mxu0 0.0
        %5349 = vmatprep.subr.mxu0 0.0
        %5350 = vmatpush1.xpose.msra.mxu0 0.0
        %5351 = vmatprep.subr.mxu0 0.0
        %5352 = vmatpush1.xpose.msra.mxu0 0.0
        %5353 = vmatprep.subr.mxu0 0.0
        %5354 = vmatpush1.xpose.msra.mxu0 0.0
        %5355 = vmatprep.subr.mxu0 0.0
        %5356 = vmatpush1.xpose.msra.mxu0 0.0
        %5357 = vmatprep.subr.mxu0 0.0
        %5358 = vmatpush1.xpose.msra.mxu0 0.0
        %5359 = vmatprep.subr.mxu0 0.0
        %5360 = vmatpush1.xpose.msra.mxu0 0.0
        %5361 = vmatprep.subr.mxu0 0.0
        %5362 = vmatpush1.xpose.msra.mxu0 0.0
        %5363 = vmatprep.subr.mxu0 0.0
        %5364 = vmatpush1.xpose.msra.mxu0 0.0
        %5365 = vmatprep.subr.mxu0 0.0
        %5366 = vmatpush1.xpose.msra.mxu0 0.0
        %5367 = vmatprep.subr.mxu0 0.0
        %5368 = vmatpush1.xpose.msra.mxu0 0.0
        %5369 = vmatprep.subr.mxu0 0.0
        %5370 = vmatpush1.xpose.msra.mxu0 0.0
        %5371 = vmatprep.mubr.f32.mxu0 0.0
        %5372 = vmatmul.mubr.f32.gmra.mrb[0].mxu0 %v5299
        %v5373 = vpop.f32.mrb[0].mxu0
        %v5374 = vadd.f32 0.0, %v5373
        %v5375 = vpop.f32.mrb[0].mxu0
        %5376 = vmatprep.mubr.f32.mxu0 0.0
        %5377 = vmatmul.mubr.f32.gmra.mrb[0].mxu0 %v5301
        %v5378 = vpop.f32.mrb[0].mxu0
        %v5379 = vadd.f32 0.0, %v5378
        %v5380 = vpop.f32.mrb[0].mxu0
        %5381 = vmatprep.mubr.f32.mxu0 0.0
        %5382 = vmatmul.mubr.f32.gmra.mrb[0].mxu0 %v5303
        %v5383 = vpop.f32.mrb[0].mxu0
        %v5384 = vadd.f32 0.0, %v5383
        %v5385 = vpop.f32.mrb[0].mxu0
        %5386 = vdwg.mxu0
        %v5387 = vsel %vm2273, %v5374, -inf
        %5388 = vmax.xlane.f32.xlu0 %v5387
        %v5389 = vpop.xlane.xlu0 %5388
        %v5390 = vsel %vm2273, %v5379, -inf
        %5391 = vmax.xlane.f32.xlu0 %v5390
        %v5392 = vpop.xlane.xlu0 %5391
        %v5393 = vsel %vm2273, %v5384, -inf
        %5394 = vmax.xlane.f32.xlu0 %v5393
        %v5395 = vpop.xlane.xlu0 %5394
        %v5396 = vsub.f32 %v5374, %v5389
        %v5397 = vsub.f32 %v5379, %v5392
        %v5398 = vsub.f32 %v5384, %v5395
        %v5399 = vmul.f32 %v5396, 1.442695
        %v5400 = vpow.pop %v5399
        %v5401 = vmul.f32 %v5397, 1.442695
        %v5402 = vpow.pop %v5401
        %v5403 = vmul.f32 %v5398, 1.442695
        %v5404 = vpow.pop %v5403
        %v5405 = vsel %vm2273, %v5400, 0.0
        %5406 = vadd.xlane.f32.xlu0 %v5405
        %v5407 = vpop.xlane.xlu0 %5406
        %v5408 = vsel %vm2273, %v5402, 0.0
        %5409 = vadd.xlane.f32.xlu0 %v5408
        %v5410 = vpop.xlane.xlu0 %5409
        %v5411 = vsel %vm2273, %v5404, 0.0
        %5412 = vadd.xlane.f32.xlu0 %v5411
        %v5413 = vpop.xlane.xlu0 %5412
        %v5414 = vrcp.pop %v5407
        %v5415 = vrcp.pop %v5410
        %v5416 = vrcp.pop %v5413
        %v5417 = vmul.f32 %v5400, %v5414
        %v5418 = vmul.f32 %v5402, %v5415
        %v5419 = vmul.f32 %v5404, %v5416
        %5420 = vrot.lane.b32.xlu0 %v5071, 88
        %v5421 = vpop.permute.xlu0 %5420
        %v5424 = vsel %vm2273, %v5417, 0
        %v5427 = vsel %vm2273, %v5418, 0
        %v5430 = vsel %vm2273, %v5419, 0
        %5432 = vmatprep.subr.mxu0 0.0
        %5433 = vmatpush1.msra.mxu0 %v5421
        %5434 = vmatprep.subr.mxu0 0.0
        %5435 = vmatpush1.msra.mxu0 0.0
        %5436 = vmatprep.subr.mxu0 0.0
        %5437 = vmatpush1.msra.mxu0 0.0
        %5438 = vmatprep.subr.mxu0 0.0
        %5439 = vmatpush1.msra.mxu0 0.0
        %5440 = vmatprep.subr.mxu0 0.0
        %5441 = vmatpush1.msra.mxu0 0.0
        %5442 = vmatprep.subr.mxu0 0.0
        %5443 = vmatpush1.msra.mxu0 0.0
        %5444 = vmatprep.subr.mxu0 0.0
        %5445 = vmatpush1.msra.mxu0 0.0
        %5446 = vmatprep.subr.mxu0 0.0
        %5447 = vmatpush1.msra.mxu0 0.0
        %5448 = vmatprep.subr.mxu0 0.0
        %5449 = vmatpush1.msra.mxu0 0.0
        %5450 = vmatprep.subr.mxu0 0.0
        %5451 = vmatpush1.msra.mxu0 0.0
        %5452 = vmatprep.subr.mxu0 0.0
        %5453 = vmatpush1.msra.mxu0 0.0
        %5454 = vmatprep.subr.mxu0 0.0
        %5455 = vmatpush1.msra.mxu0 0.0
        %5456 = vmatprep.subr.mxu0 0.0
        %5457 = vmatpush1.msra.mxu0 0.0
        %5458 = vmatprep.subr.mxu0 0.0
        %5459 = vmatpush1.msra.mxu0 0.0
        %5460 = vmatprep.subr.mxu0 0.0
        %5461 = vmatpush1.msra.mxu0 0.0
        %5462 = vmatprep.subr.mxu0 0.0
        %5463 = vmatpush1.msra.mxu0 0.0
        %5464 = vmatprep.subr.mxu0 0.0
        %5465 = vmatpush1.msra.mxu0 0.0
        %5466 = vmatprep.subr.mxu0 0.0
        %5467 = vmatpush1.msra.mxu0 0.0
        %5468 = vmatprep.subr.mxu0 0.0
        %5469 = vmatpush1.msra.mxu0 0.0
        %5470 = vmatprep.subr.mxu0 0.0
        %5471 = vmatpush1.msra.mxu0 0.0
        %5472 = vmatprep.subr.mxu0 0.0
        %5473 = vmatpush1.msra.mxu0 0.0
        %5474 = vmatprep.subr.mxu0 0.0
        %5475 = vmatpush1.msra.mxu0 0.0
        %5476 = vmatprep.subr.mxu0 0.0
        %5477 = vmatpush1.msra.mxu0 0.0
        %5478 = vmatprep.subr.mxu0 0.0
        %5479 = vmatpush1.msra.mxu0 0.0
        %5480 = vmatprep.subr.mxu0 0.0
        %5481 = vmatpush1.msra.mxu0 0.0
        %5482 = vmatprep.subr.mxu0 0.0
        %5483 = vmatpush1.msra.mxu0 0.0
        %5484 = vmatprep.subr.mxu0 0.0
        %5485 = vmatpush1.msra.mxu0 0.0
        %5486 = vmatprep.subr.mxu0 0.0
        %5487 = vmatpush1.msra.mxu0 0.0
        %5488 = vmatprep.subr.mxu0 0.0
        %5489 = vmatpush1.msra.mxu0 0.0
        %5490 = vmatprep.subr.mxu0 0.0
        %5491 = vmatpush1.msra.mxu0 0.0
        %5492 = vmatprep.subr.mxu0 0.0
        %5493 = vmatpush1.msra.mxu0 0.0
        %5494 = vmatprep.subr.mxu0 0.0
        %5495 = vmatpush1.msra.mxu0 0.0
        %5496 = vmatprep.mubr.f32.mxu0 0.0
        %5497 = vmatmul.mubr.f32.gmra.mrb[0].mxu0 %v5424
        %v5498 = vpop.f32.mrb[0].mxu0
        %v5499 = vadd.f32 0.0, %v5498
        %v5500 = vpop.f32.mrb[0].mxu0
        %5501 = vmatprep.mubr.f32.mxu0 0.0
        %5502 = vmatmul.mubr.f32.gmra.mrb[0].mxu0 %v5427
        %v5503 = vpop.f32.mrb[0].mxu0
        %v5504 = vadd.f32 0.0, %v5503
        %v5505 = vpop.f32.mrb[0].mxu0
        %5506 = vmatprep.mubr.f32.mxu0 0.0
        %5507 = vmatmul.mubr.f32.gmra.mrb[0].mxu0 %v5430
        %v5508 = vpop.f32.mrb[0].mxu0
        %v5509 = vadd.f32 0.0, %v5508
        %v5510 = vpop.f32.mrb[0].mxu0
        %5511 = vdwg.mxu0
        %5512 = vrot.lane.b32.xlu0 %v4987, 112
        %v5513 = vpop.permute.xlu0 %5512
        %5514 = vrot.lane.b32.xlu0 %v4988, 112
        %v5515 = vpop.permute.xlu0 %5514
        %5516 = vrot.lane.b32.xlu0 %v4989, 112
        %v5517 = vpop.permute.xlu0 %5516
        %5518 = vrot.lane.b32.xlu0 %v5071, 112
        %v5519 = vpop.permute.xlu0 %5518
        %v5520 = vsel %vm2273, %v5513, 0
        %v5522 = vsel %vm2273, %v5515, 0
        %v5524 = vsel %vm2273, %v5517, 0
        %v5526 = vsel %vm2273, %v5519, 0
        %5528 = vmatprep.subr.mxu0 0.0
        %5529 = vmatpush1.xpose.msra.mxu0 %v5526
        %5530 = vmatprep.subr.mxu0 0.0
        %5531 = vmatpush1.xpose.msra.mxu0 0.0
        %5532 = vmatprep.subr.mxu0 0.0
        %5533 = vmatpush1.xpose.msra.mxu0 0.0
        %5534 = vmatprep.subr.mxu0 0.0
        %5535 = vmatpush1.xpose.msra.mxu0 0.0
        %5536 = vmatprep.subr.mxu0 0.0
        %5537 = vmatpush1.xpose.msra.mxu0 0.0
        %5538 = vmatprep.subr.mxu0 0.0
        %5539 = vmatpush1.xpose.msra.mxu0 0.0
        %5540 = vmatprep.subr.mxu0 0.0
        %5541 = vmatpush1.xpose.msra.mxu0 0.0
        %5542 = vmatprep.subr.mxu0 0.0
        %5543 = vmatpush1.xpose.msra.mxu0 0.0
        %5544 = vmatprep.subr.mxu0 0.0
        %5545 = vmatpush1.xpose.msra.mxu0 0.0
        %5546 = vmatprep.subr.mxu0 0.0
        %5547 = vmatpush1.xpose.msra.mxu0 0.0
        %5548 = vmatprep.subr.mxu0 0.0
        %5549 = vmatpush1.xpose.msra.mxu0 0.0
        %5550 = vmatprep.subr.mxu0 0.0
        %5551 = vmatpush1.xpose.msra.mxu0 0.0
        %5552 = vmatprep.subr.mxu0 0.0
        %5553 = vmatpush1.xpose.msra.mxu0 0.0
        %5554 = vmatprep.subr.mxu0 0.0
        %5555 = vmatpush1.xpose.msra.mxu0 0.0
        %5556 = vmatprep.subr.mxu0 0.0
        %5557 = vmatpush1.xpose.msra.mxu0 0.0
        %5558 = vmatprep.subr.mxu0 0.0
        %5559 = vmatpush1.xpose.msra.mxu0 0.0
        %5560 = vmatprep.subr.mxu0 0.0
        %5561 = vmatpush1.xpose.msra.mxu0 0.0
        %5562 = vmatprep.subr.mxu0 0.0
        %5563 = vmatpush1.xpose.msra.mxu0 0.0
        %5564 = vmatprep.subr.mxu0 0.0
        %5565 = vmatpush1.xpose.msra.mxu0 0.0
        %5566 = vmatprep.subr.mxu0 0.0
        %5567 = vmatpush1.xpose.msra.mxu0 0.0
        %5568 = vmatprep.subr.mxu0 0.0
        %5569 = vmatpush1.xpose.msra.mxu0 0.0
        %5570 = vmatprep.subr.mxu0 0.0
        %5571 = vmatpush1.xpose.msra.mxu0 0.0
        %5572 = vmatprep.subr.mxu0 0.0
        %5573 = vmatpush1.xpose.msra.mxu0 0.0
        %5574 = vmatprep.subr.mxu0 0.0
        %5575 = vmatpush1.xpose.msra.mxu0 0.0
        %5576 = vmatprep.subr.mxu0 0.0
        %5577 = vmatpush1.xpose.msra.mxu0 0.0
        %5578 = vmatprep.subr.mxu0 0.0
        %5579 = vmatpush1.xpose.msra.mxu0 0.0
        %5580 = vmatprep.subr.mxu0 0.0
        %5581 = vmatpush1.xpose.msra.mxu0 0.0
        %5582 = vmatprep.subr.mxu0 0.0
        %5583 = vmatpush1.xpose.msra.mxu0 0.0
        %5584 = vmatprep.subr.mxu0 0.0
        %5585 = vmatpush1.xpose.msra.mxu0 0.0
        %5586 = vmatprep.subr.mxu0 0.0
        %5587 = vmatpush1.xpose.msra.mxu0 0.0
        %5588 = vmatprep.subr.mxu0 0.0
        %5589 = vmatpush1.xpose.msra.mxu0 0.0
        %5590 = vmatprep.subr.mxu0 0.0
        %5591 = vmatpush1.xpose.msra.mxu0 0.0
        %5592 = vmatprep.mubr.f32.mxu0 0.0
        %5593 = vmatmul.mubr.f32.gmra.mrb[0].mxu0 %v5520
        %v5594 = vpop.f32.mrb[0].mxu0
        %v5595 = vadd.f32 0.0, %v5594
        %v5596 = vpop.f32.mrb[0].mxu0
        %5597 = vmatprep.mubr.f32.mxu0 0.0
        %5598 = vmatmul.mubr.f32.gmra.mrb[0].mxu0 %v5522
        %v5599 = vpop.f32.mrb[0].mxu0
        %v5600 = vadd.f32 0.0, %v5599
        %v5601 = vpop.f32.mrb[0].mxu0
        %5602 = vmatprep.mubr.f32.mxu0 0.0
        %5603 = vmatmul.mubr.f32.gmra.mrb[0].mxu0 %v5524
        %v5604 = vpop.f32.mrb[0].mxu0
        %v5605 = vadd.f32 0.0, %v5604
        %v5606 = vpop.f32.mrb[0].mxu0
        %5607 = vdwg.mxu0
        %v5608 = vsel %vm2273, %v5595, -inf
        %5609 = vmax.xlane.f32.xlu0 %v5608
        %v5610 = vpop.xlane.xlu0 %5609
        %v5611 = vsel %vm2273, %v5600, -inf
        %5612 = vmax.xlane.f32.xlu0 %v5611
        %v5613 = vpop.xlane.xlu0 %5612
        %v5614 = vsel %vm2273, %v5605, -inf
        %5615 = vmax.xlane.f32.xlu0 %v5614
        %v5616 = vpop.xlane.xlu0 %5615
        %v5617 = vsub.f32 %v5595, %v5610
        %v5618 = vsub.f32 %v5600, %v5613
        %v5619 = vsub.f32 %v5605, %v5616
        %v5620 = vmul.f32 %v5617, 1.442695
        %v5621 = vpow.pop %v5620
        %v5622 = vmul.f32 %v5618, 1.442695
        %v5623 = vpow.pop %v5622
        %v5624 = vmul.f32 %v5619, 1.442695
        %v5625 = vpow.pop %v5624
        %v5626 = vsel %vm2273, %v5621, 0.0
        %5627 = vadd.xlane.f32.xlu0 %v5626
        %v5628 = vpop.xlane.xlu0 %5627
        %v5629 = vsel %vm2273, %v5623, 0.0
        %5630 = vadd.xlane.f32.xlu0 %v5629
        %v5631 = vpop.xlane.xlu0 %5630
        %v5632 = vsel %vm2273, %v5625, 0.0
        %5633 = vadd.xlane.f32.xlu0 %v5632
        %v5634 = vpop.xlane.xlu0 %5633
        %v5635 = vrcp.pop %v5628
        %v5636 = vrcp.pop %v5631
        %v5637 = vrcp.pop %v5634
        %v5638 = vmul.f32 %v5621, %v5635
        %v5639 = vmul.f32 %v5623, %v5636
        %v5640 = vmul.f32 %v5625, %v5637
        %5641 = vrot.lane.b32.xlu0 %v5071, 80
        %v5642 = vpop.permute.xlu0 %5641
        %v5645 = vsel %vm2273, %v5638, 0
        %v5648 = vsel %vm2273, %v5639, 0
        %v5651 = vsel %vm2273, %v5640, 0
        %5653 = vmatprep.subr.mxu0 0.0
        %5654 = vmatpush1.msra.mxu0 %v5642
        %5655 = vmatprep.subr.mxu0 0.0
        %5656 = vmatpush1.msra.mxu0 0.0
        %5657 = vmatprep.subr.mxu0 0.0
        %5658 = vmatpush1.msra.mxu0 0.0
        %5659 = vmatprep.subr.mxu0 0.0
        %5660 = vmatpush1.msra.mxu0 0.0
        %5661 = vmatprep.subr.mxu0 0.0
        %5662 = vmatpush1.msra.mxu0 0.0
        %5663 = vmatprep.subr.mxu0 0.0
        %5664 = vmatpush1.msra.mxu0 0.0
        %5665 = vmatprep.subr.mxu0 0.0
        %5666 = vmatpush1.msra.mxu0 0.0
        %5667 = vmatprep.subr.mxu0 0.0
        %5668 = vmatpush1.msra.mxu0 0.0
        %5669 = vmatprep.subr.mxu0 0.0
        %5670 = vmatpush1.msra.mxu0 0.0
        %5671 = vmatprep.subr.mxu0 0.0
        %5672 = vmatpush1.msra.mxu0 0.0
        %5673 = vmatprep.subr.mxu0 0.0
        %5674 = vmatpush1.msra.mxu0 0.0
        %5675 = vmatprep.subr.mxu0 0.0
        %5676 = vmatpush1.msra.mxu0 0.0
        %5677 = vmatprep.subr.mxu0 0.0
        %5678 = vmatpush1.msra.mxu0 0.0
        %5679 = vmatprep.subr.mxu0 0.0
        %5680 = vmatpush1.msra.mxu0 0.0
        %5681 = vmatprep.subr.mxu0 0.0
        %5682 = vmatpush1.msra.mxu0 0.0
        %5683 = vmatprep.subr.mxu0 0.0
        %5684 = vmatpush1.msra.mxu0 0.0
        %5685 = vmatprep.subr.mxu0 0.0
        %5686 = vmatpush1.msra.mxu0 0.0
        %5687 = vmatprep.subr.mxu0 0.0
        %5688 = vmatpush1.msra.mxu0 0.0
        %5689 = vmatprep.subr.mxu0 0.0
        %5690 = vmatpush1.msra.mxu0 0.0
        %5691 = vmatprep.subr.mxu0 0.0
        %5692 = vmatpush1.msra.mxu0 0.0
        %5693 = vmatprep.subr.mxu0 0.0
        %5694 = vmatpush1.msra.mxu0 0.0
        %5695 = vmatprep.subr.mxu0 0.0
        %5696 = vmatpush1.msra.mxu0 0.0
        %5697 = vmatprep.subr.mxu0 0.0
        %5698 = vmatpush1.msra.mxu0 0.0
        %5699 = vmatprep.subr.mxu0 0.0
        %5700 = vmatpush1.msra.mxu0 0.0
        %5701 = vmatprep.subr.mxu0 0.0
        %5702 = vmatpush1.msra.mxu0 0.0
        %5703 = vmatprep.subr.mxu0 0.0
        %5704 = vmatpush1.msra.mxu0 0.0
        %5705 = vmatprep.subr.mxu0 0.0
        %5706 = vmatpush1.msra.mxu0 0.0
        %5707 = vmatprep.subr.mxu0 0.0
        %5708 = vmatpush1.msra.mxu0 0.0
        %5709 = vmatprep.subr.mxu0 0.0
        %5710 = vmatpush1.msra.mxu0 0.0
        %5711 = vmatprep.subr.mxu0 0.0
        %5712 = vmatpush1.msra.mxu0 0.0
        %5713 = vmatprep.subr.mxu0 0.0
        %5714 = vmatpush1.msra.mxu0 0.0
        %5715 = vmatprep.subr.mxu0 0.0
        %5716 = vmatpush1.msra.mxu0 0.0
        %5717 = vmatprep.mubr.f32.mxu0 0.0
        %5718 = vmatmul.mubr.f32.gmra.mrb[0].mxu0 %v5645
        %v5719 = vpop.f32.mrb[0].mxu0
        %v5720 = vadd.f32 0.0, %v5719
        %v5721 = vpop.f32.mrb[0].mxu0
        %5722 = vmatprep.mubr.f32.mxu0 0.0
        %5723 = vmatmul.mubr.f32.gmra.mrb[0].mxu0 %v5648
        %v5724 = vpop.f32.mrb[0].mxu0
        %v5725 = vadd.f32 0.0, %v5724
        %v5726 = vpop.f32.mrb[0].mxu0
        %5727 = vmatprep.mubr.f32.mxu0 0.0
        %5728 = vmatmul.mubr.f32.gmra.mrb[0].mxu0 %v5651
        %v5729 = vpop.f32.mrb[0].mxu0
        %v5730 = vadd.f32 0.0, %v5729
        %v5731 = vpop.f32.mrb[0].mxu0
        %5732 = vdwg.mxu0
        %5733 = vrot.lane.b32.xlu0 %v4987, 104
        %v5734 = vpop.permute.xlu0 %5733
        %5735 = vrot.lane.b32.xlu0 %v4988, 104
        %v5736 = vpop.permute.xlu0 %5735
        %5737 = vrot.lane.b32.xlu0 %v4989, 104
        %v5738 = vpop.permute.xlu0 %5737
        %5739 = vrot.lane.b32.xlu0 %v5071, 104
        %v5740 = vpop.permute.xlu0 %5739
        %v5741 = vsel %vm2273, %v5734, 0
        %v5743 = vsel %vm2273, %v5736, 0
        %v5745 = vsel %vm2273, %v5738, 0
        %v5747 = vsel %vm2273, %v5740, 0
        %5749 = vmatprep.subr.mxu0 0.0
        %5750 = vmatpush1.xpose.msra.mxu0 %v5747
        %5751 = vmatprep.subr.mxu0 0.0
        %5752 = vmatpush1.xpose.msra.mxu0 0.0
        %5753 = vmatprep.subr.mxu0 0.0
        %5754 = vmatpush1.xpose.msra.mxu0 0.0
        %5755 = vmatprep.subr.mxu0 0.0
        %5756 = vmatpush1.xpose.msra.mxu0 0.0
        %5757 = vmatprep.subr.mxu0 0.0
        %5758 = vmatpush1.xpose.msra.mxu0 0.0
        %5759 = vmatprep.subr.mxu0 0.0
        %5760 = vmatpush1.xpose.msra.mxu0 0.0
        %5761 = vmatprep.subr.mxu0 0.0
        %5762 = vmatpush1.xpose.msra.mxu0 0.0
        %5763 = vmatprep.subr.mxu0 0.0
        %5764 = vmatpush1.xpose.msra.mxu0 0.0
        %5765 = vmatprep.subr.mxu0 0.0
        %5766 = vmatpush1.xpose.msra.mxu0 0.0
        %5767 = vmatprep.subr.mxu0 0.0
        %5768 = vmatpush1.xpose.msra.mxu0 0.0
        %5769 = vmatprep.subr.mxu0 0.0
        %5770 = vmatpush1.xpose.msra.mxu0 0.0
        %5771 = vmatprep.subr.mxu0 0.0
        %5772 = vmatpush1.xpose.msra.mxu0 0.0
        %5773 = vmatprep.subr.mxu0 0.0
        %5774 = vmatpush1.xpose.msra.mxu0 0.0
        %5775 = vmatprep.subr.mxu0 0.0
        %5776 = vmatpush1.xpose.msra.mxu0 0.0
        %5777 = vmatprep.subr.mxu0 0.0
        %5778 = vmatpush1.xpose.msra.mxu0 0.0
        %5779 = vmatprep.subr.mxu0 0.0
        %5780 = vmatpush1.xpose.msra.mxu0 0.0
        %5781 = vmatprep.subr.mxu0 0.0
        %5782 = vmatpush1.xpose.msra.mxu0 0.0
        %5783 = vmatprep.subr.mxu0 0.0
        %5784 = vmatpush1.xpose.msra.mxu0 0.0
        %5785 = vmatprep.subr.mxu0 0.0
        %5786 = vmatpush1.xpose.msra.mxu0 0.0
        %5787 = vmatprep.subr.mxu0 0.0
        %5788 = vmatpush1.xpose.msra.mxu0 0.0
        %5789 = vmatprep.subr.mxu0 0.0
        %5790 = vmatpush1.xpose.msra.mxu0 0.0
        %5791 = vmatprep.subr.mxu0 0.0
        %5792 = vmatpush1.xpose.msra.mxu0 0.0
        %5793 = vmatprep.subr.mxu0 0.0
        %5794 = vmatpush1.xpose.msra.mxu0 0.0
        %5795 = vmatprep.subr.mxu0 0.0
        %5796 = vmatpush1.xpose.msra.mxu0 0.0
        %5797 = vmatprep.subr.mxu0 0.0
        %5798 = vmatpush1.xpose.msra.mxu0 0.0
        %5799 = vmatprep.subr.mxu0 0.0
        %5800 = vmatpush1.xpose.msra.mxu0 0.0
        %5801 = vmatprep.subr.mxu0 0.0
        %5802 = vmatpush1.xpose.msra.mxu0 0.0
        %5803 = vmatprep.subr.mxu0 0.0
        %5804 = vmatpush1.xpose.msra.mxu0 0.0
        %5805 = vmatprep.subr.mxu0 0.0
        %5806 = vmatpush1.xpose.msra.mxu0 0.0
        %5807 = vmatprep.subr.mxu0 0.0
        %5808 = vmatpush1.xpose.msra.mxu0 0.0
        %5809 = vmatprep.subr.mxu0 0.0
        %5810 = vmatpush1.xpose.msra.mxu0 0.0
        %5811 = vmatprep.subr.mxu0 0.0
        %5812 = vmatpush1.xpose.msra.mxu0 0.0
        %5813 = vmatprep.mubr.f32.mxu0 0.0
        %5814 = vmatmul.mubr.f32.gmra.mrb[0].mxu0 %v5741
        %v5815 = vpop.f32.mrb[0].mxu0
        %v5816 = vadd.f32 0.0, %v5815
        %v5817 = vpop.f32.mrb[0].mxu0
        %5818 = vmatprep.mubr.f32.mxu0 0.0
        %5819 = vmatmul.mubr.f32.gmra.mrb[0].mxu0 %v5743
        %v5820 = vpop.f32.mrb[0].mxu0
        %v5821 = vadd.f32 0.0, %v5820
        %v5822 = vpop.f32.mrb[0].mxu0
        %5823 = vmatprep.mubr.f32.mxu0 0.0
        %5824 = vmatmul.mubr.f32.gmra.mrb[0].mxu0 %v5745
        %v5825 = vpop.f32.mrb[0].mxu0
        %v5826 = vadd.f32 0.0, %v5825
        %v5827 = vpop.f32.mrb[0].mxu0
        %5828 = vdwg.mxu0
        %v5829 = vsel %vm2273, %v5816, -inf
        %5830 = vmax.xlane.f32.xlu0 %v5829
        %v5831 = vpop.xlane.xlu0 %5830
        %v5832 = vsel %vm2273, %v5821, -inf
        %5833 = vmax.xlane.f32.xlu0 %v5832
        %v5834 = vpop.xlane.xlu0 %5833
        %v5835 = vsel %vm2273, %v5826, -inf
        %5836 = vmax.xlane.f32.xlu0 %v5835
        %v5837 = vpop.xlane.xlu0 %5836
        %v5838 = vsub.f32 %v5816, %v5831
        %v5839 = vsub.f32 %v5821, %v5834
        %v5840 = vsub.f32 %v5826, %v5837
        %v5841 = vmul.f32 %v5838, 1.442695
        %v5842 = vpow.pop %v5841
        %v5843 = vmul.f32 %v5839, 1.442695
        %v5844 = vpow.pop %v5843
        %v5845 = vmul.f32 %v5840, 1.442695
        %v5846 = vpow.pop %v5845
        %v5847 = vsel %vm2273, %v5842, 0.0
        %5848 = vadd.xlane.f32.xlu0 %v5847
        %v5849 = vpop.xlane.xlu0 %5848
        %v5850 = vsel %vm2273, %v5844, 0.0
        %5851 = vadd.xlane.f32.xlu0 %v5850
        %v5852 = vpop.xlane.xlu0 %5851
        %v5853 = vsel %vm2273, %v5846, 0.0
        %5854 = vadd.xlane.f32.xlu0 %v5853
        %v5855 = vpop.xlane.xlu0 %5854
        %v5856 = vrcp.pop %v5849
        %v5857 = vrcp.pop %v5852
        %v5858 = vrcp.pop %v5855
        %v5859 = vmul.f32 %v5842, %v5856
        %v5860 = vmul.f32 %v5844, %v5857
        %v5861 = vmul.f32 %v5846, %v5858
        %5862 = vrot.lane.b32.xlu0 %v5071, 72
        %v5863 = vpop.permute.xlu0 %5862
        %v5866 = vsel %vm2273, %v5859, 0
        %v5869 = vsel %vm2273, %v5860, 0
        %v5872 = vsel %vm2273, %v5861, 0
        %5874 = vmatprep.subr.mxu0 0.0
        %5875 = vmatpush1.msra.mxu0 %v5863
        %5876 = vmatprep.subr.mxu0 0.0
        %5877 = vmatpush1.msra.mxu0 0.0
        %5878 = vmatprep.subr.mxu0 0.0
        %5879 = vmatpush1.msra.mxu0 0.0
        %5880 = vmatprep.subr.mxu0 0.0
        %5881 = vmatpush1.msra.mxu0 0.0
        %5882 = vmatprep.subr.mxu0 0.0
        %5883 = vmatpush1.msra.mxu0 0.0
        %5884 = vmatprep.subr.mxu0 0.0
        %5885 = vmatpush1.msra.mxu0 0.0
        %5886 = vmatprep.subr.mxu0 0.0
        %5887 = vmatpush1.msra.mxu0 0.0
        %5888 = vmatprep.subr.mxu0 0.0
        %5889 = vmatpush1.msra.mxu0 0.0
        %5890 = vmatprep.subr.mxu0 0.0
        %5891 = vmatpush1.msra.mxu0 0.0
        %5892 = vmatprep.subr.mxu0 0.0
        %5893 = vmatpush1.msra.mxu0 0.0
        %5894 = vmatprep.subr.mxu0 0.0
        %5895 = vmatpush1.msra.mxu0 0.0
        %5896 = vmatprep.subr.mxu0 0.0
        %5897 = vmatpush1.msra.mxu0 0.0
        %5898 = vmatprep.subr.mxu0 0.0
        %5899 = vmatpush1.msra.mxu0 0.0
        %5900 = vmatprep.subr.mxu0 0.0
        %5901 = vmatpush1.msra.mxu0 0.0
        %5902 = vmatprep.subr.mxu0 0.0
        %5903 = vmatpush1.msra.mxu0 0.0
        %5904 = vmatprep.subr.mxu0 0.0
        %5905 = vmatpush1.msra.mxu0 0.0
        %5906 = vmatprep.subr.mxu0 0.0
        %5907 = vmatpush1.msra.mxu0 0.0
        %5908 = vmatprep.subr.mxu0 0.0
        %5909 = vmatpush1.msra.mxu0 0.0
        %5910 = vmatprep.subr.mxu0 0.0
        %5911 = vmatpush1.msra.mxu0 0.0
        %5912 = vmatprep.subr.mxu0 0.0
        %5913 = vmatpush1.msra.mxu0 0.0
        %5914 = vmatprep.subr.mxu0 0.0
        %5915 = vmatpush1.msra.mxu0 0.0
        %5916 = vmatprep.subr.mxu0 0.0
        %5917 = vmatpush1.msra.mxu0 0.0
        %5918 = vmatprep.subr.mxu0 0.0
        %5919 = vmatpush1.msra.mxu0 0.0
        %5920 = vmatprep.subr.mxu0 0.0
        %5921 = vmatpush1.msra.mxu0 0.0
        %5922 = vmatprep.subr.mxu0 0.0
        %5923 = vmatpush1.msra.mxu0 0.0
        %5924 = vmatprep.subr.mxu0 0.0
        %5925 = vmatpush1.msra.mxu0 0.0
        %5926 = vmatprep.subr.mxu0 0.0
        %5927 = vmatpush1.msra.mxu0 0.0
        %5928 = vmatprep.subr.mxu0 0.0
        %5929 = vmatpush1.msra.mxu0 0.0
        %5930 = vmatprep.subr.mxu0 0.0
        %5931 = vmatpush1.msra.mxu0 0.0
        %5932 = vmatprep.subr.mxu0 0.0
        %5933 = vmatpush1.msra.mxu0 0.0
        %5934 = vmatprep.subr.mxu0 0.0
        %5935 = vmatpush1.msra.mxu0 0.0
        %5936 = vmatprep.subr.mxu0 0.0
        %5937 = vmatpush1.msra.mxu0 0.0
        %5938 = vmatprep.mubr.f32.mxu0 0.0
        %5939 = vmatmul.mubr.f32.gmra.mrb[0].mxu0 %v5866
        %v5940 = vpop.f32.mrb[0].mxu0
        %v5941 = vadd.f32 0.0, %v5940
        %v5942 = vpop.f32.mrb[0].mxu0
        %5943 = vmatprep.mubr.f32.mxu0 0.0
        %5944 = vmatmul.mubr.f32.gmra.mrb[0].mxu0 %v5869
        %v5945 = vpop.f32.mrb[0].mxu0
        %v5946 = vadd.f32 0.0, %v5945
        %v5947 = vpop.f32.mrb[0].mxu0
        %5948 = vmatprep.mubr.f32.mxu0 0.0
        %5949 = vmatmul.mubr.f32.gmra.mrb[0].mxu0 %v5872
        %v5950 = vpop.f32.mrb[0].mxu0
        %v5951 = vadd.f32 0.0, %v5950
        %v5952 = vpop.f32.mrb[0].mxu0
        %5953 = vdwg.mxu0
        %5957 = vrot.lane.b32.xlu0 %v5499, 8
        %v5958 = vpop.permute.xlu0 %5957
        %5959 = vrot.lane.b32.xlu0 %v5504, 8
        %v5960 = vpop.permute.xlu0 %5959
        %5961 = vrot.lane.b32.xlu0 %v5509, 8
        %v5962 = vpop.permute.xlu0 %5961
        %5969 = vrot.lane.b32.xlu0 %v5720, 16
        %v5970 = vpop.permute.xlu0 %5969
        %5971 = vrot.lane.b32.xlu0 %v5725, 16
        %v5972 = vpop.permute.xlu0 %5971
        %5973 = vrot.lane.b32.xlu0 %v5730, 16
        %v5974 = vpop.permute.xlu0 %5973
        %5981 = vrot.lane.b32.xlu0 %v5941, 24
        %v5982 = vpop.permute.xlu0 %5981
        %5983 = vrot.lane.b32.xlu0 %v5946, 24
        %v5984 = vpop.permute.xlu0 %5983
        %5985 = vrot.lane.b32.xlu0 %v5951, 24
        %v5986 = vpop.permute.xlu0 %5985
        %v5990 = vsel %vm2273, %v5278, %v5958
        %v5991 = vsel %vm2273, %v5283, %v5960
        %v5992 = vsel %vm2273, %v5288, %v5962
        %v5993 = vsel %vm2277, %v5990, %v5970
        %v5994 = vsel %vm2277, %v5991, %v5972
        %v5995 = vsel %vm2277, %v5992, %v5974
        %v5996 = vsel %vm2444, %v5993, %v5982
        %v5997 = vsel %vm2444, %v5994, %v5984
        %v5998 = vsel %vm2444, %v5995, %v5986
        %v5999 = vld [vmem:[%s1513] sm:$0xff]
        %v6000 = vld [vmem:[%s1513 + $0x8] sm:$0xff]
        %v6001 = vld [vmem:[%s1513 + $0x10] sm:$0xff]
        %v6002 = vld [vmem:[%s1513 + $0x18] sm:$0xff]
        %v6003 = vld [vmem:[%s1516] sm:$0x1]
        %v6005 = vlaneseq
        %v6006 = vshrl.u32 %v6005, 7
        %v6007 = vsub.s32 0, %v6006
        %v6008 = vrot.slane %v6003, %v6007
        %v6011 = vsel %vm1563, %v5996, 0
        %v6014 = vsel %vm1563, %v5997, 0
        %v6017 = vsel %vm1563, %v5998, 0
        %6019 = vmatprep.subr.mxu0 0.0
        %6020 = vmatpush1.msra.mxu0 %v5999
        %6021 = vmatprep.subr.mxu0 0.0
        %6022 = vmatpush1.msra.mxu0 %v6000
        %6023 = vmatprep.subr.mxu0 0.0
        %6024 = vmatpush1.msra.mxu0 %v6001
        %6025 = vmatprep.subr.mxu0 0.0
        %6026 = vmatpush1.msra.mxu0 %v6002
        %6027 = vmatprep.subr.mxu0 0.0
        %6028 = vmatpush1.msra.mxu0 0.0
        %6029 = vmatprep.subr.mxu0 0.0
        %6030 = vmatpush1.msra.mxu0 0.0
        %6031 = vmatprep.subr.mxu0 0.0
        %6032 = vmatpush1.msra.mxu0 0.0
        %6033 = vmatprep.subr.mxu0 0.0
        %6034 = vmatpush1.msra.mxu0 0.0
        %6035 = vmatprep.subr.mxu0 0.0
        %6036 = vmatpush1.msra.mxu0 0.0
        %6037 = vmatprep.subr.mxu0 0.0
        %6038 = vmatpush1.msra.mxu0 0.0
        %6039 = vmatprep.subr.mxu0 0.0
        %6040 = vmatpush1.msra.mxu0 0.0
        %6041 = vmatprep.subr.mxu0 0.0
        %6042 = vmatpush1.msra.mxu0 0.0
        %6043 = vmatprep.subr.mxu0 0.0
        %6044 = vmatpush1.msra.mxu0 0.0
        %6045 = vmatprep.subr.mxu0 0.0
        %6046 = vmatpush1.msra.mxu0 0.0
        %6047 = vmatprep.subr.mxu0 0.0
        %6048 = vmatpush1.msra.mxu0 0.0
        %6049 = vmatprep.subr.mxu0 0.0
        %6050 = vmatpush1.msra.mxu0 0.0
        %6051 = vmatprep.subr.mxu0 0.0
        %6052 = vmatpush1.msra.mxu0 0.0
        %6053 = vmatprep.subr.mxu0 0.0
        %6054 = vmatpush1.msra.mxu0 0.0
        %6055 = vmatprep.subr.mxu0 0.0
        %6056 = vmatpush1.msra.mxu0 0.0
        %6057 = vmatprep.subr.mxu0 0.0
        %6058 = vmatpush1.msra.mxu0 0.0
        %6059 = vmatprep.subr.mxu0 0.0
        %6060 = vmatpush1.msra.mxu0 0.0
        %6061 = vmatprep.subr.mxu0 0.0
        %6062 = vmatpush1.msra.mxu0 0.0
        %6063 = vmatprep.subr.mxu0 0.0
        %6064 = vmatpush1.msra.mxu0 0.0
        %6065 = vmatprep.subr.mxu0 0.0
        %6066 = vmatpush1.msra.mxu0 0.0
        %6067 = vmatprep.subr.mxu0 0.0
        %6068 = vmatpush1.msra.mxu0 0.0
        %6069 = vmatprep.subr.mxu0 0.0
        %6070 = vmatpush1.msra.mxu0 0.0
        %6071 = vmatprep.subr.mxu0 0.0
        %6072 = vmatpush1.msra.mxu0 0.0
        %6073 = vmatprep.subr.mxu0 0.0
        %6074 = vmatpush1.msra.mxu0 0.0
        %6075 = vmatprep.subr.mxu0 0.0
        %6076 = vmatpush1.msra.mxu0 0.0
        %6077 = vmatprep.subr.mxu0 0.0
        %6078 = vmatpush1.msra.mxu0 0.0
        %6079 = vmatprep.subr.mxu0 0.0
        %6080 = vmatpush1.msra.mxu0 0.0
        %6081 = vmatprep.subr.mxu0 0.0
        %6082 = vmatpush1.msra.mxu0 0.0
        %6083 = vmatprep.mubr.f32.mxu0 0.0
        %6084 = vmatmul.mubr.f32.gmra.mrb[0].mxu0 %v6011
        %v6085 = vpop.f32.mrb[0].mxu0
        %v6086 = vadd.f32 %v6008, %v6085
        %v6087 = vpop.f32.mrb[0].mxu0
        %6088 = vmatprep.mubr.f32.mxu0 0.0
        %6089 = vmatmul.mubr.f32.gmra.mrb[0].mxu0 %v6014
        %v6090 = vpop.f32.mrb[0].mxu0
        %v6091 = vadd.f32 %v6008, %v6090
        %v6092 = vpop.f32.mrb[0].mxu0
        %6093 = vmatprep.mubr.f32.mxu0 0.0
        %6094 = vmatmul.mubr.f32.gmra.mrb[0].mxu0 %v6017
        %v6095 = vpop.f32.mrb[0].mxu0
        %v6096 = vadd.f32 %v6008, %v6095
        %v6097 = vpop.f32.mrb[0].mxu0
        %6098 = vdwg.mxu0
        %v6099 = vadd.f32 %v4892, %v6086
        %v6100 = vadd.f32 %v1557, %v6091
        %v6101 = vadd.f32 %v1558, %v6096
        %v6102 = vsel %vm1563, %v6099, 0.0
        %6103 = vadd.xlane.f32.xlu0 %v6102
        %v6104 = vpop.xlane.xlu0 %6103
        %v6105 = vsel %vm1563, %v6100, 0.0
        %6106 = vadd.xlane.f32.xlu0 %v6105
        %v6107 = vpop.xlane.xlu0 %6106
        %v6108 = vsel %vm1563, %v6101, 0.0
        %6109 = vadd.xlane.f32.xlu0 %v6108
        %v6110 = vpop.xlane.xlu0 %6109
        %v6111 = vmul.f32 %v6104, %v1567
        %v6112 = vmul.f32 %v6107, %v1567
        %v6113 = vmul.f32 %v6110, %v1567
        %v6114 = vsub.f32 %v6099, %v6111
        %v6115 = vsub.f32 %v6100, %v6112
        %v6116 = vsub.f32 %v6101, %v6113
        %v6117 = vmul.f32 %v6114, %v6114
        %v6118 = vmul.f32 %v6115, %v6115
        %v6119 = vmul.f32 %v6116, %v6116
        %v6120 = vsel %vm1563, %v6117, 0.0
        %6121 = vadd.xlane.f32.xlu0 %v6120
        %v6122 = vpop.xlane.xlu0 %6121
        %v6123 = vsel %vm1563, %v6118, 0.0
        %6124 = vadd.xlane.f32.xlu0 %v6123
        %v6125 = vpop.xlane.xlu0 %6124
        %v6126 = vsel %vm1563, %v6119, 0.0
        %6127 = vadd.xlane.f32.xlu0 %v6126
        %v6128 = vpop.xlane.xlu0 %6127
        %v6129 = vmul.f32 %v6122, %v1567
        %v6130 = vmul.f32 %v6125, %v1567
        %v6131 = vmul.f32 %v6128, %v1567
        %v6132 = vadd.f32 %v6129, 1e-05
        %v6133 = vadd.f32 %v6130, 1e-05
        %v6134 = vadd.f32 %v6131, 1e-05
        %v6135 = vrsqrt.pop %v6132
        %v6136 = vrsqrt.pop %v6133
        %v6137 = vrsqrt.pop %v6134
        %v6138 = vmul.f32 %v6114, %v6135
        %v6139 = vmul.f32 %v6115, %v6136
        %v6140 = vmul.f32 %v6116, %v6137
        %v6141 = vld [vmem:[%s1519] sm:$0x1]
        %v6143 = vlaneseq
        %v6144 = vshrl.u32 %v6143, 7
        %v6145 = vsub.s32 0, %v6144
        %v6146 = vrot.slane %v6141, %v6145
        %v6148 = vmul.f32 %v6138, %v6146
        %v6149 = vmul.f32 %v6139, %v6146
        %v6150 = vmul.f32 %v6140, %v6146
        %v6151 = vld [vmem:[%s1522] sm:$0x1]
        %v6153 = vlaneseq
        %v6154 = vshrl.u32 %v6153, 7
        %v6155 = vsub.s32 0, %v6154
        %v6156 = vrot.slane %v6151, %v6155
        %v6158 = vadd.f32 %v6148, %v6156
        %v6159 = vadd.f32 %v6149, %v6156
        %v6160 = vadd.f32 %v6150, %v6156
        %v6161 = vld [vmem:[%s1527] sm:$0xff]
        %v6162 = vld [vmem:[%s1527 + $0x8] sm:$0xff]
        %v6163 = vld [vmem:[%s1527 + $0x10] sm:$0xff]
        %v6164 = vld [vmem:[%s1527 + $0x18] sm:$0xff]
        %v6165 = vld [vmem:[%s1530] sm:$0x1]
        %v6167 = vlaneseq
        %v6168 = vshrl.u32 %v6167, 7
        %v6169 = vsub.s32 0, %v6168
        %v6170 = vrot.slane %v6165, %v6169
        %v6173 = vsel %vm1563, %v6158, 0
        %v6176 = vsel %vm1563, %v6159, 0
        %v6179 = vsel %vm1563, %v6160, 0
        %6181 = vmatprep.subr.mxu0 0.0
        %6182 = vmatpush1.msra.mxu0 %v6161
        %6183 = vmatprep.subr.mxu0 0.0
        %6184 = vmatpush1.msra.mxu0 %v6162
        %6185 = vmatprep.subr.mxu0 0.0
        %6186 = vmatpush1.msra.mxu0 %v6163
        %6187 = vmatprep.subr.mxu0 0.0
        %6188 = vmatpush1.msra.mxu0 %v6164
        %6189 = vmatprep.subr.mxu0 0.0
        %6190 = vmatpush1.msra.mxu0 0.0
        %6191 = vmatprep.subr.mxu0 0.0
        %6192 = vmatpush1.msra.mxu0 0.0
        %6193 = vmatprep.subr.mxu0 0.0
        %6194 = vmatpush1.msra.mxu0 0.0
        %6195 = vmatprep.subr.mxu0 0.0
        %6196 = vmatpush1.msra.mxu0 0.0
        %6197 = vmatprep.subr.mxu0 0.0
        %6198 = vmatpush1.msra.mxu0 0.0
        %6199 = vmatprep.subr.mxu0 0.0
        %6200 = vmatpush1.msra.mxu0 0.0
        %6201 = vmatprep.subr.mxu0 0.0
        %6202 = vmatpush1.msra.mxu0 0.0
        %6203 = vmatprep.subr.mxu0 0.0
        %6204 = vmatpush1.msra.mxu0 0.0
        %6205 = vmatprep.subr.mxu0 0.0
        %6206 = vmatpush1.msra.mxu0 0.0
        %6207 = vmatprep.subr.mxu0 0.0
        %6208 = vmatpush1.msra.mxu0 0.0
        %6209 = vmatprep.subr.mxu0 0.0
        %6210 = vmatpush1.msra.mxu0 0.0
        %6211 = vmatprep.subr.mxu0 0.0
        %6212 = vmatpush1.msra.mxu0 0.0
        %6213 = vmatprep.subr.mxu0 0.0
        %6214 = vmatpush1.msra.mxu0 0.0
        %6215 = vmatprep.subr.mxu0 0.0
        %6216 = vmatpush1.msra.mxu0 0.0
        %6217 = vmatprep.subr.mxu0 0.0
        %6218 = vmatpush1.msra.mxu0 0.0
        %6219 = vmatprep.subr.mxu0 0.0
        %6220 = vmatpush1.msra.mxu0 0.0
        %6221 = vmatprep.subr.mxu0 0.0
        %6222 = vmatpush1.msra.mxu0 0.0
        %6223 = vmatprep.subr.mxu0 0.0
        %6224 = vmatpush1.msra.mxu0 0.0
        %6225 = vmatprep.subr.mxu0 0.0
        %6226 = vmatpush1.msra.mxu0 0.0
        %6227 = vmatprep.subr.mxu0 0.0
        %6228 = vmatpush1.msra.mxu0 0.0
        %6229 = vmatprep.subr.mxu0 0.0
        %6230 = vmatpush1.msra.mxu0 0.0
        %6231 = vmatprep.subr.mxu0 0.0
        %6232 = vmatpush1.msra.mxu0 0.0
        %6233 = vmatprep.subr.mxu0 0.0
        %6234 = vmatpush1.msra.mxu0 0.0
        %6235 = vmatprep.subr.mxu0 0.0
        %6236 = vmatpush1.msra.mxu0 0.0
        %6237 = vmatprep.subr.mxu0 0.0
        %6238 = vmatpush1.msra.mxu0 0.0
        %6239 = vmatprep.subr.mxu0 0.0
        %6240 = vmatpush1.msra.mxu0 0.0
        %6241 = vmatprep.subr.mxu0 0.0
        %6242 = vmatpush1.msra.mxu0 0.0
        %6243 = vmatprep.subr.mxu0 0.0
        %6244 = vmatpush1.msra.mxu0 0.0
        %6245 = vmatprep.mubr.f32.mxu0 0.0
        %6246 = vmatmul.mubr.f32.gmra.mrb[0].mxu0 %v6173
        %v6247 = vpop.f32.mrb[0].mxu0
        %v6248 = vadd.f32 %v6170, %v6247
        %v6249 = vpop.f32.mrb[0].mxu0
        %6250 = vmatprep.mubr.f32.mxu0 0.0
        %6251 = vmatmul.mubr.f32.gmra.mrb[0].mxu0 %v6176
        %v6252 = vpop.f32.mrb[0].mxu0
        %v6253 = vadd.f32 %v6170, %v6252
        %v6254 = vpop.f32.mrb[0].mxu0
        %6255 = vmatprep.mubr.f32.mxu0 0.0
        %6256 = vmatmul.mubr.f32.gmra.mrb[0].mxu0 %v6179
        %v6257 = vpop.f32.mrb[0].mxu0
        %v6258 = vadd.f32 %v6170, %v6257
        %v6259 = vpop.f32.mrb[0].mxu0
        %6260 = vdwg.mxu0
        %v6261 = vmax.f32 %v6248, 0.0
        %v6262 = vmax.f32 %v6253, 0.0
        %v6263 = vmax.f32 %v6258, 0.0
        %v6264 = vld [vmem:[%s1535] sm:$0xff]
        %v6265 = vld [vmem:[%s1535 + $0x8] sm:$0xff]
        %v6266 = vld [vmem:[%s1535 + $0x10] sm:$0xff]
        %v6267 = vld [vmem:[%s1535 + $0x18] sm:$0xff]
        %v6268 = vld [vmem:[%s1535 + $0x20] sm:$0xff]
        %v6269 = vld [vmem:[%s1535 + $0x28] sm:$0xff]
        %v6270 = vld [vmem:[%s1535 + $0x30] sm:$0xff]
        %v6271 = vld [vmem:[%s1535 + $0x38] sm:$0xff]
        %v6272 = vld [vmem:[%s1535 + $0x40] sm:$0xff]
        %v6273 = vld [vmem:[%s1535 + $0x48] sm:$0xff]
        %v6274 = vld [vmem:[%s1535 + $0x50] sm:$0xff]
        %v6275 = vld [vmem:[%s1535 + $0x58] sm:$0xff]
        %v6276 = vld [vmem:[%s1535 + $0x60] sm:$0xff]
        %v6277 = vld [vmem:[%s1535 + $0x68] sm:$0xff]
        %v6278 = vld [vmem:[%s1535 + $0x70] sm:$0xff]
        %v6279 = vld [vmem:[%s1535 + $0x78] sm:$0xff]
        %6280 = vmatprep.subr.mxu0 0.0
        %6281 = vmatpush1.msra.mxu0 %v6264
        %6282 = vmatprep.subr.mxu0 0.0
        %6283 = vmatpush1.msra.mxu0 %v6265
        %6284 = vmatprep.subr.mxu0 0.0
        %6285 = vmatpush1.msra.mxu0 %v6266
        %6286 = vmatprep.subr.mxu0 0.0
        %6287 = vmatpush1.msra.mxu0 %v6267
        %6288 = vmatprep.subr.mxu0 0.0
        %6289 = vmatpush1.msra.mxu0 %v6268
        %6290 = vmatprep.subr.mxu0 0.0
        %6291 = vmatpush1.msra.mxu0 %v6269
        %6292 = vmatprep.subr.mxu0 0.0
        %6293 = vmatpush1.msra.mxu0 %v6270
        %6294 = vmatprep.subr.mxu0 0.0
        %6295 = vmatpush1.msra.mxu0 %v6271
        %6296 = vmatprep.subr.mxu0 0.0
        %6297 = vmatpush1.msra.mxu0 %v6272
        %6298 = vmatprep.subr.mxu0 0.0
        %6299 = vmatpush1.msra.mxu0 %v6273
        %6300 = vmatprep.subr.mxu0 0.0
        %6301 = vmatpush1.msra.mxu0 %v6274
        %6302 = vmatprep.subr.mxu0 0.0
        %6303 = vmatpush1.msra.mxu0 %v6275
        %6304 = vmatprep.subr.mxu0 0.0
        %6305 = vmatpush1.msra.mxu0 %v6276
        %6306 = vmatprep.subr.mxu0 0.0
        %6307 = vmatpush1.msra.mxu0 %v6277
        %6308 = vmatprep.subr.mxu0 0.0
        %6309 = vmatpush1.msra.mxu0 %v6278
        %6310 = vmatprep.subr.mxu0 0.0
        %6311 = vmatpush1.msra.mxu0 %v6279
        %6312 = vmatprep.subr.mxu0 0.0
        %6313 = vmatpush1.msra.mxu0 0.0
        %6314 = vmatprep.subr.mxu0 0.0
        %6315 = vmatpush1.msra.mxu0 0.0
        %6316 = vmatprep.subr.mxu0 0.0
        %6317 = vmatpush1.msra.mxu0 0.0
        %6318 = vmatprep.subr.mxu0 0.0
        %6319 = vmatpush1.msra.mxu0 0.0
        %6320 = vmatprep.subr.mxu0 0.0
        %6321 = vmatpush1.msra.mxu0 0.0
        %6322 = vmatprep.subr.mxu0 0.0
        %6323 = vmatpush1.msra.mxu0 0.0
        %6324 = vmatprep.subr.mxu0 0.0
        %6325 = vmatpush1.msra.mxu0 0.0
        %6326 = vmatprep.subr.mxu0 0.0
        %6327 = vmatpush1.msra.mxu0 0.0
        %6328 = vmatprep.subr.mxu0 0.0
        %6329 = vmatpush1.msra.mxu0 0.0
        %6330 = vmatprep.subr.mxu0 0.0
        %6331 = vmatpush1.msra.mxu0 0.0
        %6332 = vmatprep.subr.mxu0 0.0
        %6333 = vmatpush1.msra.mxu0 0.0
        %6334 = vmatprep.subr.mxu0 0.0
        %6335 = vmatpush1.msra.mxu0 0.0
        %6336 = vmatprep.subr.mxu0 0.0
        %6337 = vmatpush1.msra.mxu0 0.0
        %6338 = vmatprep.subr.mxu0 0.0
        %6339 = vmatpush1.msra.mxu0 0.0
        %6340 = vmatprep.subr.mxu0 0.0
        %6341 = vmatpush1.msra.mxu0 0.0
        %6342 = vmatprep.subr.mxu0 0.0
        %6343 = vmatpush1.msra.mxu0 0.0
        %6344 = vmatprep.mubr.f32.mxu0 0.0
        %6345 = vmatmul.mubr.f32.gmra.mrb[0].mxu0 %v6261
        %v6346 = vpop.f32.mrb[0].mxu0
        %v6347 = vadd.f32 0.0, %v6346
        %v6348 = vpop.f32.mrb[0].mxu0
        %6349 = vmatprep.mubr.f32.mxu0 0.0
        %6350 = vmatmul.mubr.f32.gmra.mrb[0].mxu0 %v6262
        %v6351 = vpop.f32.mrb[0].mxu0
        %v6352 = vadd.f32 0.0, %v6351
        %v6353 = vpop.f32.mrb[0].mxu0
        %6354 = vmatprep.mubr.f32.mxu0 0.0
        %6355 = vmatmul.mubr.f32.gmra.mrb[0].mxu0 %v6263
        %v6356 = vpop.f32.mrb[0].mxu0
        %v6357 = vadd.f32 0.0, %v6356
        %v6358 = vpop.f32.mrb[0].mxu0
        %6359 = vdwg.mxu0
        %v6360 = vadd.f32 %v6158, %v6347
        %v6361 = vadd.f32 %v6159, %v6352
        %v6362 = vadd.f32 %v6160, %v6357
        %v6363 = vld [vmem:[%s1538] sm:$0x1]
        %v6365 = vlaneseq
        %v6366 = vshrl.u32 %v6365, 7
        %v6367 = vsub.s32 0, %v6366
        %v6368 = vrot.slane %v6363, %v6367
        %v6370 = vadd.f32 %v6360, %v6368
        %v6371 = vadd.f32 %v6361, %v6368
        %v6372 = vadd.f32 %v6362, %v6368
        %v6373 = vsel %vm1563, %v6370, 0.0
        %6374 = vadd.xlane.f32.xlu0 %v6373
        %v6375 = vpop.xlane.xlu0 %6374
        %v6376 = vsel %vm1563, %v6371, 0.0
        %6377 = vadd.xlane.f32.xlu0 %v6376
        %v6378 = vpop.xlane.xlu0 %6377
        %v6379 = vsel %vm1563, %v6372, 0.0
        %6380 = vadd.xlane.f32.xlu0 %v6379
        %v6381 = vpop.xlane.xlu0 %6380
        %v6382 = vmul.f32 %v6375, %v1567
        %v6383 = vmul.f32 %v6378, %v1567
        %v6384 = vmul.f32 %v6381, %v1567
        %v6385 = vsub.f32 %v6370, %v6382
        %v6386 = vsub.f32 %v6371, %v6383
        %v6387 = vsub.f32 %v6372, %v6384
        %v6388 = vmul.f32 %v6385, %v6385
        %v6389 = vmul.f32 %v6386, %v6386
        %v6390 = vmul.f32 %v6387, %v6387
        %v6391 = vsel %vm1563, %v6388, 0.0
        %6392 = vadd.xlane.f32.xlu0 %v6391
        %v6393 = vpop.xlane.xlu0 %6392
        %v6394 = vsel %vm1563, %v6389, 0.0
        %6395 = vadd.xlane.f32.xlu0 %v6394
        %v6396 = vpop.xlane.xlu0 %6395
        %v6397 = vsel %vm1563, %v6390, 0.0
        %6398 = vadd.xlane.f32.xlu0 %v6397
        %v6399 = vpop.xlane.xlu0 %6398
        %v6400 = vmul.f32 %v6393, %v1567
        %v6401 = vmul.f32 %v6396, %v1567
        %v6402 = vmul.f32 %v6399, %v1567
        %v6403 = vadd.f32 %v6400, 1e-05
        %v6404 = vadd.f32 %v6401, 1e-05
        %v6405 = vadd.f32 %v6402, 1e-05
        %v6406 = vrsqrt.pop %v6403
        %v6407 = vrsqrt.pop %v6404
        %v6408 = vrsqrt.pop %v6405
        %v6409 = vmul.f32 %v6385, %v6406
        %v6410 = vmul.f32 %v6386, %v6407
        %v6411 = vmul.f32 %v6387, %v6408
        %v6412 = vld [vmem:[%s1541] sm:$0x1]
        %v6414 = vlaneseq
        %v6415 = vshrl.u32 %v6414, 7
        %v6416 = vsub.s32 0, %v6415
        %v6417 = vrot.slane %v6412, %v6416
        %v6419 = vmul.f32 %v6409, %v6417
        %v6420 = vmul.f32 %v6410, %v6417
        %v6421 = vmul.f32 %v6411, %v6417
        %v6422 = vld [vmem:[%s1544] sm:$0x1]
        %v6424 = vlaneseq
        %v6425 = vshrl.u32 %v6424, 7
        %v6426 = vsub.s32 0, %v6425
        %v6427 = vrot.slane %v6422, %v6426
        %v6429 = vadd.f32 %v6419, %v6427
        %v6430 = vadd.f32 %v6420, %v6427
        %v6431 = vadd.f32 %v6421, %v6427
        %6432 = vst.msk [vmem:[#allocation2] sm:$0xff] %vm1563, %v6429
        %6433 = vst.msk [vmem:[#allocation3] sm:$0xff] %vm1563, %v6430
        %6434 = vst.msk [vmem:[#allocation3 + $0x8] sm:$0xff] %vm1563, %v6431
        %6435 = vst.msk [vmem:[%s1414] sm:$0xff] %vm1563, %v6429
        %6436 = vst.msk [vmem:[%s1421] sm:$0xff] %vm1563, %v6430
        %6437 = vst.msk [vmem:[%s1421 + $0x8] sm:$0xff] %vm1563, %v6431
        %s6438 = sand.u32 %s937, 1
        %s6439 = scalar_lea.sflag [#allocation5], %s6438
        %s6440 = sand.u32 %s937, 1
        %s6441 = smul.addr %s6440, 8
        %s6442 = scalar_lea.vmem [#allocation4], %s6441
        %s6443 = sand.u32 %s963, 1
        %s6444 = scalar_lea.sflag [#allocation7], %s6443
        %s6445 = sand.u32 %s963, 1
        %s6446 = smul.addr %s6445, 16
        %s6447 = scalar_lea.vmem [#allocation6], %s6446
        // Predicated region
        $region153: #{lang_enhanced_ipa_decoder.1} parent=147 // pred_check
          %p6448 = pneg %p947
        $region154: #{lang_enhanced_ipa_decoder.1} parent=147 // pred_check_branch
          %6450 = sbr.rel (%p6448) target = $region156
        $region155: #{lang_enhanced_ipa_decoder.1} parent=147 // pred_region
          %s6452 = ssub.s32 128, 128
          %6453 = vsyncadd %s6439, %s6452
          %s6454 = smul.addr %s89, 128
          %s6455 = scalar_lea.hbm %s65, %s6454
          %s6457 = sshll.u32 %s6442, 4
          %s6458 = int_to_ptr.vmem [resolvable:$true] %s6457
          %6460 = dma.vmem_to_hbm [thread:$0]  %s6458, 128, %s6455, %s6439
        $region156: #{lang_enhanced_ipa_decoder.1} parent=147 // pred_fallthru
          _
        // Predicated region
        $region157: #{lang_enhanced_ipa_decoder.1} parent=147 // pred_check
          %p6461 = pneg %p973
        $region158: #{lang_enhanced_ipa_decoder.1} parent=147 // pred_check_branch
          %6463 = sbr.rel (%p6461) target = $region160
        $region159: #{lang_enhanced_ipa_decoder.1} parent=147 // pred_region
          %s6465 = ssub.s32 256, 256
          %6466 = vsyncadd %s6444, %s6465
          %s6467 = smul.addr %s89, 2
          %s6468 = smul.addr %s6467, 128
          %s6469 = scalar_lea.hbm %s67, %s6468
          %s6470 = sshll.u32 %s6447, 4
          %s6471 = int_to_ptr.vmem [resolvable:$true] %s6470
          %6476 = dma.vmem_to_hbm [thread:$0]  %s6471, 256, %s6469, %s6444, 128, 128, 8
        $region160: #{lang_enhanced_ipa_decoder.1} parent=147 // pred_fallthru
          _
      $region148: #{lang_enhanced_ipa_decoder.1} parent=5 // pred_fallthru
        _
      %p6477 = scmp.le.s32.totalorder 2, %s80
      // Predicated region
      $region161: #{lang_enhanced_ipa_decoder.1} parent=5 // pred_check
        %p6478 = pneg %p6477
      $region162: #{lang_enhanced_ipa_decoder.1} parent=5 // pred_check_branch
        %6480 = sbr.rel (%p6478) target = $region164
      $region163: #{lang_enhanced_ipa_decoder.1} parent=5 // pred_region
        %s6481 = ssub.s32 %s80, 2
        // Predicated region
        $region165: #{lang_enhanced_ipa_decoder.1} parent=163 // pred_check
          %p6482 = pneg %p953
        $region166: #{lang_enhanced_ipa_decoder.1} parent=163 // pred_check_branch
          %6484 = sbr.rel (%p6482) target = $region168
        $region167: #{lang_enhanced_ipa_decoder.1} parent=163 // pred_region
          %s6485 = sand.u32 %s938, 1
          %s6486 = scalar_lea.sflag [#allocation5], %s6485
          %s6487 = sand.u32 %s938, 1
          %s6488 = smul.addr %s6487, 8
          %s6489 = scalar_lea.vmem [#allocation4], %s6488
          %6490 = dma.done %s6486, 128
        $region168: #{lang_enhanced_ipa_decoder.1} parent=163 // pred_fallthru
          _
        // Predicated region
        $region169: #{lang_enhanced_ipa_decoder.1} parent=163 // pred_check
          %p6491 = pneg %p979
        $region170: #{lang_enhanced_ipa_decoder.1} parent=163 // pred_check_branch
          %6493 = sbr.rel (%p6491) target = $region172
        $region171: #{lang_enhanced_ipa_decoder.1} parent=163 // pred_region
          %s6494 = sand.u32 %s964, 1
          %s6495 = scalar_lea.sflag [#allocation7], %s6494
          %s6496 = sand.u32 %s964, 1
          %s6497 = smul.addr %s6496, 16
          %s6498 = scalar_lea.vmem [#allocation6], %s6497
          %6499 = dma.done %s6495, 256
        $region172: #{lang_enhanced_ipa_decoder.1} parent=163 // pred_fallthru
          _
      $region164: #{lang_enhanced_ipa_decoder.1} parent=5 // pred_fallthru
        _
    $region6: #{lang_enhanced_ipa_decoder.1} parent=1 // loop_footer
      %s84 = sadd.s32 1, %s80
    $region7: #{lang_enhanced_ipa_decoder.1} parent=1 // loop_footer_branch
      %79 = sbr.rel target = $region3
    $region8: #{lang_enhanced_ipa_decoder.1} parent=1 // loop_exit
      _
    %6500 = vsyncpa [#allocation5], 1
    %s6501 = scalar_lea.sflag [#allocation5], 1
    %6502 = vsyncpa %s6501, 1
    %6503 = vsyncpa [#allocation7], 1
    %s6504 = scalar_lea.sflag [#allocation7], 1
    %6505 = vsyncpa %s6504, 1

</llo_original>
